<compile_context>
chip_gen: v5e
topology: v5e:2x2
jax: 0.10.0
libtpu: 0.0.40
codegen_flags: <defaults>
</compile_context>

<pallas_src>
import jax
import jax.numpy as jnp
from jax import lax
from jax.experimental import pallas as pl
from jax.experimental.pallas import tpu as pltpu


# ----------------------------------------------------------------------------
# Kernel 1: fused, tiled  GCN (+ both MLP heads)
#   out = ELU( PReLU( adj @ (x @ W) + b ) @ Wm + bm )
# grid = (row_tiles, k_tiles); k is the reduction over adj columns (innermost).
# ----------------------------------------------------------------------------
def _gcn_mlp_kernel(a_ref, x_ref, adj_ref, w_ref, b_ref, wm_ref, bm_ref,
                    out_ref, acc_ref):
    k = pl.program_id(1)
    alpha = a_ref[0, 0]                       # PReLU slope, scalar read up front

    @pl.when(k == 0)
    def _init():
        acc_ref[...] = jnp.zeros_like(acc_ref)

    # xw: (tk, CH) = x-rows (tk, CF) @ W (CF, CH)    (bf16 in, f32 accumulate)
    xw = jnp.dot(x_ref[...], w_ref[...], preferred_element_type=jnp.float32)
    # accumulate adj-tile (tm, tk) @ xw
    acc_ref[...] += jnp.dot(adj_ref[...], xw.astype(jnp.bfloat16),
                            preferred_element_type=jnp.float32)

    @pl.when(k == pl.num_programs(1) - 1)
    def _finalize():
        h = acc_ref[...] + b_ref[...]                               # f32 bias
        h = jnp.maximum(h, 0.0) + alpha * jnp.minimum(h, 0.0)       # PReLU
        o = jnp.dot(h.astype(jnp.bfloat16), wm_ref[...],
                    preferred_element_type=jnp.float32) + bm_ref[...]
        out_ref[...] = jnp.maximum(o, 0.0) + jnp.exp(jnp.minimum(o, 0.0)) - 1.0  # ELU


def _choose_tile(n, cap):
    for t in (1024, 512, 256, 128):
        if t <= cap and n % t == 0:
            return t
    return n          # small / irregular N: use the full dimension (no tiling)


def _pad_cols(m, mult=128):
    pad = (-m.shape[1]) % mult
    if pad:
        m = jnp.concatenate([m, jnp.zeros((m.shape[0], pad), m.dtype)], axis=1)
    return m


def gcn_mlp_fused(x, adj, w, b, a, wm, bm, *, tile_m=256, tile_k=256):
    """x:(N,CF) adj:(N,N) w:(CF,CH) b:(1,CH) a:(1,1) wm:(CH,OW) bm:(1,OW).

    Returns (N, OW_padded) f32; OW is zero-padded to a multiple of 128 so the
    output store is lane-dense (extra columns are just ELU(0)=0, sliced away by
    the caller).  For large N raise tile_m/tile_k (e.g. 512/1024) on v5e/v6e;
    keep moderate on v7x (64 MiB VMEM).
    """
    n, cf = x.shape
    ch = w.shape[1]
    wm = _pad_cols(wm)
    bm = _pad_cols(bm)
    ow = wm.shape[1]

    tm = _choose_tile(n, tile_m)
    tk = _choose_tile(n, tile_k)
    grid = (n // tm, n // tk)
    n_row = grid[0]

    x_b = x.astype(jnp.bfloat16)
    adj_b = adj.astype(jnp.bfloat16)
    w_b = w.astype(jnp.bfloat16)
    wm_b = wm.astype(jnp.bfloat16)

    # Advisory cost estimate (xw is recomputed once per row tile).
    flops = 2 * n * n * ch + 2 * n * cf * ch * n_row + 2 * n * ch * ow
    transc = n * ow
    bytes_acc = (n * n * 2 + n * cf * 2 * n_row + (cf * ch + ch * ow) * 2
                 + (ch + ow + 1) * 4 + n * ow * 4)

    # VMEM: double-buffered adj/x/out tiles + f32 accumulator + resident weights.
    vmem_est = (2 * (tm * tk * 2 + tk * cf * 2 + tm * ow * 4)
                + tm * ch * 4 + (cf * ch + ch * ow) * 2 + (ch + ow) * 4)
    vmem_limit = int(min(48 * 2**20, max(2 * vmem_est, 16 * 2**20)))

    grid_spec = pltpu.PrefetchScalarGridSpec(
        num_scalar_prefetch=0,
        grid=grid,
        in_specs=[
            pl.BlockSpec((1, 1), lambda i, k: (0, 0),
                         memory_space=pltpu.MemorySpace.SMEM),   # PReLU slope
            pl.BlockSpec((tk, cf), lambda i, k: (k, 0)),         # x rows
            pl.BlockSpec((tm, tk), lambda i, k: (i, k)),         # adj tile
            pl.BlockSpec((cf, ch), lambda i, k: (0, 0)),         # W   (resident)
            pl.BlockSpec((1, ch), lambda i, k: (0, 0)),          # b   (resident)
            pl.BlockSpec((ch, ow), lambda i, k: (0, 0)),         # Wm  (resident)
            pl.BlockSpec((1, ow), lambda i, k: (0, 0)),          # bm  (resident)
        ],
        out_specs=pl.BlockSpec((tm, ow), lambda i, k: (i, 0)),
        scratch_shapes=[pltpu.VMEM((tm, ch), jnp.float32)],
    )
    return pl.pallas_call(
        _gcn_mlp_kernel,
        out_shape=jax.ShapeDtypeStruct((n, ow), jnp.float32),
        grid_spec=grid_spec,
        compiler_params=pltpu.CompilerParams(
            dimension_semantics=("parallel", "arbitrary"),
            vmem_limit_bytes=vmem_limit),
        cost_estimate=pl.CostEstimate(flops=int(flops),
                                      transcendentals=int(transc),
                                      bytes_accessed=int(bytes_acc)),
    )(a, x_b, adj_b, w_b, b, wm_b, bm)


# ----------------------------------------------------------------------------
# Kernel 2: batched contrastive sums (ALL triples in one pallas_call)
#   out[tr] = sum_n softplus((cos(h, hn) - cos(h, hp)) / t)
#           = sum_n -log( exp(cos(h,hp)/t) / (exp(cos(h,hp)/t)+exp(cos(h,hn)/t)) )
# ----------------------------------------------------------------------------
def _contrast_kernel(invt_ref, h_ref, hp_ref, hn_ref, out_ref):
    inv_t = invt_ref[0, 0]
    h, hp, hn = h_ref[0], hp_ref[0], hn_ref[0]          # (N, H) f32

    def cos(a, b):
        num = jnp.sum(a * b, axis=-1, keepdims=True)
        prod = (jnp.sum(a * a, axis=-1, keepdims=True)
                * jnp.sum(b * b, axis=-1, keepdims=True))
        # 1/max(|a||b|, eps) == rsqrt(max(|a|^2|b|^2, eps^2)); rsqrt -> EUP.
        return num * lax.rsqrt(jnp.maximum(prod, 1e-12))

    z = (cos(h, hn) - cos(h, hp)) * inv_t               # (N, 1)
    sp = jnp.maximum(z, 0.0) + jnp.log(1.0 + jnp.exp(-jnp.abs(z)))   # stable softplus
    total = jnp.sum(sp)
    out_ref[...] = jnp.broadcast_to(total, out_ref.shape)


def contrast_batch(h, hp, hn, t):
    """h/hp/hn: (T, N, H) f32 -> per-triple sums (T,) f32 in one kernel launch."""
    tt, n, hd = h.shape
    inv_t = (1.0 / jnp.asarray(t, jnp.float32)).reshape(1, 1)
    trip = pl.BlockSpec((1, n, hd), lambda tr: (tr, 0, 0))
    out = pl.pallas_call(
        _contrast_kernel,
        out_shape=jax.ShapeDtypeStruct((tt, 8, 128), jnp.float32),
        grid=(tt,),
        in_specs=[pl.BlockSpec((1, 1), lambda tr: (0, 0),
                               memory_space=pltpu.MemorySpace.SMEM),
                  trip, trip, trip],
        out_specs=pl.BlockSpec((1, 8, 128), lambda tr: (tr, 0, 0)),
        compiler_params=pltpu.CompilerParams(dimension_semantics=("parallel",)),
    )(inv_t, h, hp, hn)
    return out[:, 0, 0]


# ----------------------------------------------------------------------------
# modeler.forward in terms of the two kernels
# ----------------------------------------------------------------------------
def _blockdiag2(w):
    z = jnp.zeros_like(w)
    return jnp.concatenate(
        [jnp.concatenate([w, z], axis=1), jnp.concatenate([z, w], axis=1)], axis=0)


def modeler_forward(features, features_pos, features_neg,
                    adj_list, adj_pos_list, params, t,
                    *, tile_m=256, tile_k=256):
    n, _ = features.shape
    hid = params["gcn"][0]["w"].shape[1]
    mlp = params["mlp"]
    m = len(adj_list)

    # Fused MLP heads:  wcu = [Wc | Wu],  bcu = [bc | bu].
    wcu = jnp.concatenate([mlp["wc"], mlp["wu"]], axis=1)        # (H, 2H)
    bcu = jnp.concatenate([mlp["bc"], mlp["bu"]], axis=1)        # (1, 2H)
    wcu4 = _blockdiag2(wcu)                                      # (2H, 4H)
    bcu4 = jnp.tile(bcu, (1, 2))                                 # (1, 4H)

    # features / features_neg share adj -> fuse into one adj matmul (width 2H).
    x_pair = jnp.concatenate([features, features_neg], axis=1)   # (N, 2F)

    h_l, hp_l, hn_l = [], [], []
    idx_intra, idx_f, idx_inter = [], [], []
    h_com_list, h_com_neg_list = [], []

    for i, adj in enumerate(adj_list):
        gp = params["gcn"][i]
        w2 = _blockdiag2(gp["w"])                                # (2F, 2H)
        b2 = jnp.tile(gp["b"], (1, 2))                           # (1, 2H)

        out_pair = gcn_mlp_fused(x_pair, adj, w2, b2, gp["a"], wcu4, bcu4,
                                 tile_m=tile_m, tile_k=tile_k)   # (N, 4H)
        h_com = out_pair[:, 0 * hid:1 * hid]
        h_uni = out_pair[:, 1 * hid:2 * hid]
        h_com_neg = out_pair[:, 2 * hid:3 * hid]
        h_uni_neg = out_pair[:, 3 * hid:4 * hid]

        out_pos = gcn_mlp_fused(features_pos, adj_pos_list[i], gp["w"], gp["b"],
                                gp["a"], wcu, bcu,
                                tile_m=tile_m, tile_k=tile_k)    # (N, >=2H)
        h_com_pos = out_pos[:, 0 * hid:1 * hid]
        h_uni_pos = out_pos[:, 1 * hid:2 * hid]

        h_com_list.append(h_com)
        h_com_neg_list.append(h_com_neg)

        idx_intra.append(len(h_l)); h_l.append(h_com); hp_l.append(h_com_pos); hn_l.append(h_com_neg)
        idx_intra.append(len(h_l)); h_l.append(h_uni); hp_l.append(h_uni_pos); hn_l.append(h_uni_neg)
        idx_f.append(len(h_l));     h_l.append(h_uni); hp_l.append(h_com);     hn_l.append(h_uni_neg)

    # Inter-network terms: cosine is symmetric, so csum(h_i, h_j, h_neg_i)
    # matches the reference's cos(h_j, h_i) / cos(h_neg_i, h_i).
    for i in range(m):
        for j in range(m):
            if i != j:
                idx_inter.append(len(h_l))
                h_l.append(h_com_list[i])
                hp_l.append(h_com_list[j])
                hn_l.append(h_com_neg_list[i])

    sums = contrast_batch(jnp.stack(h_l), jnp.stack(hp_l), jnp.stack(hn_l), t)

    loss_intra = jnp.sum(sums[jnp.array(idx_intra)]) / n
    loss_f = jnp.sum(sums[jnp.array(idx_f)]) / n
    loss_inter = jnp.sum(sums[jnp.array(idx_inter)]) / ((m - 1) * n)
    return loss_intra, loss_f, loss_inter


# ----------------------------------------------------------------------------
# Pure-JAX reference (mxu_dtype=bf16 reproduces the kernel's MXU casts)
# ----------------------------------------------------------------------------
def _ref_forward(features, features_pos, features_neg,
                 adj_list, adj_pos_list, params, t, mxu_dtype=jnp.float32):
    mlp = params["mlp"]

    def mm(a, b):
        return jnp.dot(a.astype(mxu_dtype), b.astype(mxu_dtype),
                       preferred_element_type=jnp.float32)

    def gcn_mlp_ref(x, adj, gp):
        h = mm(adj, mm(x, gp["w"])) + gp["b"]
        h = jnp.maximum(h, 0.0) + gp["a"][0, 0] * jnp.minimum(h, 0.0)
        hc = mm(h, mlp["wc"]) + mlp["bc"]
        hc = jnp.maximum(hc, 0.0) + jnp.exp(jnp.minimum(hc, 0.0)) - 1.0
        hu = mm(h, mlp["wu"]) + mlp["bu"]
        hu = jnp.maximum(hu, 0.0) + jnp.exp(jnp.minimum(hu, 0.0)) - 1.0
        return hc, hu

    def cos(a, b):
        num = jnp.sum(a * b, -1)
        na = jnp.linalg.norm(a, axis=-1)
        nb = jnp.linalg.norm(b, axis=-1)
        return num / jnp.maximum(na * nb, 1e-6)

    def csum(h, hp, hn):
        sp = jnp.exp(cos(h, hp) / t)
        sn = jnp.exp(cos(h, hn) / t)
        return -jnp.sum(jnp.log(sp / (sp + sn)))

    n = features.shape[0]
    li = lf = 0.0
    hcl, hcnl = [], []
    for i, adj in enumerate(adj_list):
        gp = params["gcn"][i]
        hc, hu = gcn_mlp_ref(features, adj, gp)
        hcn, hun = gcn_mlp_ref(features_neg, adj, gp)
        hcp, hup = gcn_mlp_ref(features_pos, adj_pos_list[i], gp)
        hcl.append(hc)
        hcnl.append(hcn)
        li += csum(hc, hcp, hcn) / n + csum(hu, hup, hun) / n
        lf += csum(hu, hc, hun) / n
    m = len(adj_list)
    tot = 0.0
    for i in range(m):
        for j in range(m):
            if i != j:
                tot += csum(hcl[i], hcl[j], hcnl[i])
    return li, lf, tot / ((m - 1) * n)


# ----------------------------------------------------------------------------
# Deterministic parameter init
# ----------------------------------------------------------------------------
def init_params(key, ft, hid, n_networks):
    keys = jax.random.split(key, n_networks + 2)
    gcn = []
    for i in range(n_networks):
        gcn.append({
            "w": 0.1 * jax.random.normal(keys[i], (ft, hid), jnp.float32),
            "b": jnp.zeros((1, hid), jnp.float32),
            "a": jnp.full((1, 1), 0.25, jnp.float32),   # PReLU default slope
        })
    mlp = {
        "wc": 0.1 * jax.random.normal(keys[n_networks], (hid, hid), jnp.float32),
        "bc": jnp.zeros((1, hid), jnp.float32),
        "wu": 0.1 * jax.random.normal(keys[n_networks + 1], (hid, hid), jnp.float32),
        "bu": jnp.zeros((1, hid), jnp.float32),
    }
    return {"gcn": gcn, "mlp": mlp}


if __name__ == "__main__":
    N, F, H, M = 512, 64, 32, 2     # nodes, ft_size, hid_units, n_networks
    T_TEMP = 0.5                    # temperature t

    key = jax.random.PRNGKey(0)
    k = jax.random.split(key, 8)

    features = jax.random.normal(k[0], (N, F), jnp.float32)
    features_pos = features + 0.05 * jax.random.normal(k[1], (N, F), jnp.float32)
    features_neg = jax.random.normal(k[2], (N, F), jnp.float32)

    def make_adj(kk):
        a = (jax.random.uniform(kk, (N, N)) < 0.05).astype(jnp.float32)
        a = jnp.minimum(a + jnp.eye(N, dtype=jnp.float32), 1.0)
        return a / jnp.sum(a, axis=1, keepdims=True)

    adj_list = [make_adj(k[3]), make_adj(k[4])]
    adj_pos_list = [make_adj(k[5]), make_adj(k[6])]

    params = init_params(k[7], F, H, M)

    fwd = jax.jit(modeler_forward)
    out = fwd(features, features_pos, features_neg,
              adj_list, adj_pos_list, params, T_TEMP)
    out = jax.block_until_ready(out)

    # Tight check vs a reference that uses the same bf16-MXU / f32-accum math.
    ref_matched = _ref_forward(features, features_pos, features_neg,
                               adj_list, adj_pos_list, params, T_TEMP,
                               mxu_dtype=jnp.bfloat16)
    for o, r in zip(out, ref_matched):
        assert jnp.allclose(o, r, rtol=5e-3, atol=5e-3), (float(o), float(r))

    # Loose check vs the full-f32 reference (bf16 MXU inputs shift numerics).
    ref_f32 = _ref_forward(features, features_pos, features_neg,
                           adj_list, adj_pos_list, params, T_TEMP)
    for o, r in zip(out, ref_f32):
        assert jnp.allclose(o, r, rtol=1e-1, atol=1e-1), (float(o), float(r))

    print("KERNEL_OK")
</pallas_src>

<mosaic_0001>
module attributes {stable_mosaic.version = 11 : i64} {
  func.func @_gcn_mlp_kernel(%arg0: i32, %arg1: i32, %arg2: memref<1x1xf32, #tpu.memory_space<smem>>, %arg3: memref<256x128xbf16, #tpu.memory_space<vmem>>, %arg4: memref<256x256xbf16, #tpu.memory_space<vmem>>, %arg5: memref<128x64xbf16, #tpu.memory_space<vmem>>, %arg6: memref<1x64xf32, #tpu.memory_space<vmem>>, %arg7: memref<64x128xbf16, #tpu.memory_space<vmem>>, %arg8: memref<1x128xf32, #tpu.memory_space<vmem>>, %arg9: memref<256x128xf32, #tpu.memory_space<vmem>>, %arg10: memref<256x64xf32, #tpu.memory_space<vmem>>) attributes {dimension_semantics = [#tpu.dimension_semantics<parallel>, #tpu.dimension_semantics<arbitrary>], iteration_bounds = array<i64: 2, 2>, scalar_prefetch = 0 : i64, scratch_operands = 1 : i64, tpu.core_type = #tpu.core_type<tc>, window_params = [{transform_indices = @transform_0, window_bounds = array<i64: 1, 1>}, {transform_indices = @transform_1, window_bounds = array<i64: 256, 128>}, {transform_indices = @transform_2, window_bounds = array<i64: 256, 256>}, {pipeline_mode = #tpu.pipeline_mode<synchronous>, transform_indices = @transform_3, window_bounds = array<i64: 128, 64>}, {pipeline_mode = #tpu.pipeline_mode<synchronous>, transform_indices = @transform_4, window_bounds = array<i64: 1, 64>}, {pipeline_mode = #tpu.pipeline_mode<synchronous>, transform_indices = @transform_5, window_bounds = array<i64: 64, 128>}, {pipeline_mode = #tpu.pipeline_mode<synchronous>, transform_indices = @transform_6, window_bounds = array<i64: 1, 128>}, {transform_indices = @transform_7, window_bounds = array<i64: 256, 128>}]} {
    %c0 = arith.constant 0 : index
    %c0_0 = arith.constant 0 : index
    %0 = memref.load %arg2[%c0, %c0_0] : memref<1x1xf32, #tpu.memory_space<smem>>
    %c0_i32 = arith.constant 0 : i32
    %1 = arith.cmpi eq, %arg1, %c0_i32 : i32
    %2 = arith.extui %1 : i1 to i32
    %c0_i32_1 = arith.constant 0 : i32
    %3 = arith.cmpi ne, %2, %c0_i32_1 : i32
    scf.if %3 {
      %cst_14 = arith.constant 0.000000e+00 : f32
      %16 = vector.broadcast %cst_14 : f32 to vector<256x64xf32>
      %c0_15 = arith.constant 0 : index
      %c0_16 = arith.constant 0 : index
      %17 = vector.load %arg10[%c0_15, %c0_16] : memref<256x64xf32, #tpu.memory_space<vmem>>, vector<256x64xf32>
      tpu.vector_store %arg10[%c0_15, %c0_16], %16 {strides = array<i32>} : memref<256x64xf32, #tpu.memory_space<vmem>>, vector<256x64xf32>,
    } else {
    }
    %c0_2 = arith.constant 0 : index
    %c0_3 = arith.constant 0 : index
    %4 = vector.load %arg3[%c0_2, %c0_3] : memref<256x128xbf16, #tpu.memory_space<vmem>>, vector<256x128xbf16>
    %c0_4 = arith.constant 0 : index
    %c0_5 = arith.constant 0 : index
    %5 = vector.load %arg5[%c0_4, %c0_5] : memref<128x64xbf16, #tpu.memory_space<vmem>>, vector<128x64xbf16>
    %cst = arith.constant dense<0.000000e+00> : vector<256x64xf32>
    %6 = tpu.matmul %4, %5, %cst {dimension_numbers = #tpu.dot_dimension_numbers<[1], [0], [0], [1], [0, 0, 1, 1], [], []>} : vector<256x128xbf16>, vector<128x64xbf16>, vector<256x64xf32> -> vector<256x64xf32>
    %c0_6 = arith.constant 0 : index
    %c0_7 = arith.constant 0 : index
    %7 = vector.load %arg10[%c0_6, %c0_7] : memref<256x64xf32, #tpu.memory_space<vmem>>, vector<256x64xf32>
    %c0_8 = arith.constant 0 : index
    %c0_9 = arith.constant 0 : index
    %8 = vector.load %arg4[%c0_8, %c0_9] : memref<256x256xbf16, #tpu.memory_space<vmem>>, vector<256x256xbf16>
    %9 = arith.truncf %6 : vector<256x64xf32> to vector<256x64xbf16>
    %cst_10 = arith.constant dense<0.000000e+00> : vector<256x64xf32>
    %10 = tpu.matmul %8, %9, %cst_10 {dimension_numbers = #tpu.dot_dimension_numbers<[1], [0], [0], [1], [0, 0, 1, 1], [], []>} : vector<256x256xbf16>, vector<256x64xbf16>, vector<256x64xf32> -> vector<256x64xf32>
    %11 = arith.addf %7, %10 : vector<256x64xf32>
    %c0_11 = arith.constant 0 : index
    %c0_12 = arith.constant 0 : index
    %12 = vector.load %arg10[%c0_11, %c0_12] : memref<256x64xf32, #tpu.memory_space<vmem>>, vector<256x64xf32>
    tpu.vector_store %arg10[%c0_11, %c0_12], %11 {strides = array<i32>} : memref<256x64xf32, #tpu.memory_space<vmem>>, vector<256x64xf32>,
    %c1_i32 = arith.constant 1 : i32
    %13 = arith.cmpi eq, %arg1, %c1_i32 : i32
    %14 = arith.extui %13 : i1 to i32
    %c0_i32_13 = arith.constant 0 : i32
    %15 = arith.cmpi ne, %14, %c0_i32_13 : i32
    scf.if %15 {
      %c0_14 = arith.constant 0 : index
      %c0_15 = arith.constant 0 : index
      %16 = vector.load %arg10[%c0_14, %c0_15] : memref<256x64xf32, #tpu.memory_space<vmem>>, vector<256x64xf32>
      %c0_16 = arith.constant 0 : index
      %c0_17 = arith.constant 0 : index
      %17 = vector.load %arg6[%c0_16, %c0_17] : memref<1x64xf32, #tpu.memory_space<vmem>>, vector<1x64xf32>
      %18 = vector.broadcast %17 : vector<1x64xf32> to vector<256x64xf32>
      %19 = arith.addf %16, %18 : vector<256x64xf32>
      %cst_18 = arith.constant 0.000000e+00 : f32
      %20 = vector.broadcast %cst_18 : f32 to vector<256x64xf32>
      %21 = arith.maximumf %19, %20 : vector<256x64xf32>
      %cst_19 = arith.constant 0.000000e+00 : f32
      %22 = vector.broadcast %cst_19 : f32 to vector<256x64xf32>
      %23 = arith.minimumf %19, %22 : vector<256x64xf32>
      %24 = vector.broadcast %0 : f32 to vector<256x64xf32>
      %25 = arith.mulf %24, %23 : vector<256x64xf32>
      %26 = arith.addf %21, %25 : vector<256x64xf32>
      %27 = arith.truncf %26 : vector<256x64xf32> to vector<256x64xbf16>
      %c0_20 = arith.constant 0 : index
      %c0_21 = arith.constant 0 : index
      %28 = vector.load %arg7[%c0_20, %c0_21] : memref<64x128xbf16, #tpu.memory_space<vmem>>, vector<64x128xbf16>
      %cst_22 = arith.constant dense<0.000000e+00> : vector<256x128xf32>
      %29 = tpu.matmul %27, %28, %cst_22 {dimension_numbers = #tpu.dot_dimension_numbers<[1], [0], [0], [1], [0, 0, 1, 1], [], []>} : vector<256x64xbf16>, vector<64x128xbf16>, vector<256x128xf32> -> vector<256x128xf32>
      %c0_23 = arith.constant 0 : index
      %c0_24 = arith.constant 0 : index
      %30 = vector.load %arg8[%c0_23, %c0_24] : memref<1x128xf32, #tpu.memory_space<vmem>>, vector<1x128xf32>
      %31 = vector.broadcast %30 : vector<1x128xf32> to vector<256x128xf32>
      %32 = arith.addf %29, %31 : vector<256x128xf32>
      %cst_25 = arith.constant 0.000000e+00 : f32
      %33 = vector.broadcast %cst_25 : f32 to vector<256x128xf32>
      %34 = arith.maximumf %32, %33 : vector<256x128xf32>
      %cst_26 = arith.constant 0.000000e+00 : f32
      %35 = vector.broadcast %cst_26 : f32 to vector<256x128xf32>
      %36 = arith.minimumf %32, %35 : vector<256x128xf32>
      %37 = math.exp %36 : vector<256x128xf32>
      %38 = arith.addf %34, %37 : vector<256x128xf32>
      %cst_27 = arith.constant 1.000000e+00 : f32
      %39 = vector.broadcast %cst_27 : f32 to vector<256x128xf32>
      %40 = arith.subf %38, %39 : vector<256x128xf32>
      %c0_28 = arith.constant 0 : index
      %c0_29 = arith.constant 0 : index
      %41 = vector.load %arg9[%c0_28, %c0_29] : memref<256x128xf32, #tpu.memory_space<vmem>>, vector<256x128xf32>
      tpu.vector_store %arg9[%c0_28, %c0_29], %40 {strides = array<i32>} : memref<256x128xf32, #tpu.memory_space<vmem>>, vector<256x128xf32>,
    } else {
    }
    return
  }
  func.func @transform_0(%arg0: i32, %arg1: i32) -> (i32, i32) {
    %c0_i32 = arith.constant 0 : i32
    %c0_i32_0 = arith.constant 0 : i32
    %c0_i32_1 = arith.constant 0 : i32
    return %c0_i32, %c0_i32_0 : i32, i32
  }
  func.func @transform_1(%arg0: i32, %arg1: i32) -> (i32, i32) {
    %c0_i32 = arith.constant 0 : i32
    %c0_i32_0 = arith.constant 0 : i32
    return %arg1, %c0_i32 : i32, i32
  }
  func.func @transform_2(%arg0: i32, %arg1: i32) -> (i32, i32) {
    %c0_i32 = arith.constant 0 : i32
    return %arg0, %arg1 : i32, i32
  }
  func.func @transform_3(%arg0: i32, %arg1: i32) -> (i32, i32) {
    %c0_i32 = arith.constant 0 : i32
    %c0_i32_0 = arith.constant 0 : i32
    %c0_i32_1 = arith.constant 0 : i32
    return %c0_i32, %c0_i32_0 : i32, i32
  }
  func.func @transform_4(%arg0: i32, %arg1: i32) -> (i32, i32) {
    %c0_i32 = arith.constant 0 : i32
    %c0_i32_0 = arith.constant 0 : i32
    %c0_i32_1 = arith.constant 0 : i32
    return %c0_i32, %c0_i32_0 : i32, i32
  }
  func.func @transform_5(%arg0: i32, %arg1: i32) -> (i32, i32) {
    %c0_i32 = arith.constant 0 : i32
    %c0_i32_0 = arith.constant 0 : i32
    %c0_i32_1 = arith.constant 0 : i32
    return %c0_i32, %c0_i32_0 : i32, i32
  }
  func.func @transform_6(%arg0: i32, %arg1: i32) -> (i32, i32) {
    %c0_i32 = arith.constant 0 : i32
    %c0_i32_0 = arith.constant 0 : i32
    %c0_i32_1 = arith.constant 0 : i32
    return %c0_i32, %c0_i32_0 : i32, i32
  }
  func.func @transform_7(%arg0: i32, %arg1: i32) -> (i32, i32) {
    %c0_i32 = arith.constant 0 : i32
    %c0_i32_0 = arith.constant 0 : i32
    return %arg0, %c0_i32 : i32, i32
  }
}

module attributes {stable_mosaic.version = 11 : i64} {
  func.func @_gcn_mlp_kernel(%arg0: i32, %arg1: i32, %arg2: memref<1x1xf32, #tpu.memory_space<smem>>, %arg3: memref<256x64xbf16, #tpu.memory_space<vmem>>, %arg4: memref<256x256xbf16, #tpu.memory_space<vmem>>, %arg5: memref<64x32xbf16, #tpu.memory_space<vmem>>, %arg6: memref<1x32xf32, #tpu.memory_space<vmem>>, %arg7: memref<32x128xbf16, #tpu.memory_space<vmem>>, %arg8: memref<1x128xf32, #tpu.memory_space<vmem>>, %arg9: memref<256x128xf32, #tpu.memory_space<vmem>>, %arg10: memref<256x32xf32, #tpu.memory_space<vmem>>) attributes {dimension_semantics = [#tpu.dimension_semantics<parallel>, #tpu.dimension_semantics<arbitrary>], iteration_bounds = array<i64: 2, 2>, scalar_prefetch = 0 : i64, scratch_operands = 1 : i64, tpu.core_type = #tpu.core_type<tc>, window_params = [{transform_indices = @transform_0, window_bounds = array<i64: 1, 1>}, {transform_indices = @transform_1, window_bounds = array<i64: 256, 64>}, {transform_indices = @transform_2, window_bounds = array<i64: 256, 256>}, {pipeline_mode = #tpu.pipeline_mode<synchronous>, transform_indices = @transform_3, window_bounds = array<i64: 64, 32>}, {pipeline_mode = #tpu.pipeline_mode<synchronous>, transform_indices = @transform_4, window_bounds = array<i64: 1, 32>}, {pipeline_mode = #tpu.pipeline_mode<synchronous>, transform_indices = @transform_5, window_bounds = array<i64: 32, 128>}, {pipeline_mode = #tpu.pipeline_mode<synchronous>, transform_indices = @transform_6, window_bounds = array<i64: 1, 128>}, {transform_indices = @transform_7, window_bounds = array<i64: 256, 128>}]} {
    %c0 = arith.constant 0 : index
    %c0_0 = arith.constant 0 : index
    %0 = memref.load %arg2[%c0, %c0_0] : memref<1x1xf32, #tpu.memory_space<smem>>
    %c0_i32 = arith.constant 0 : i32
    %1 = arith.cmpi eq, %arg1, %c0_i32 : i32
    %2 = arith.extui %1 : i1 to i32
    %c0_i32_1 = arith.constant 0 : i32
    %3 = arith.cmpi ne, %2, %c0_i32_1 : i32
    scf.if %3 {
      %cst_14 = arith.constant 0.000000e+00 : f32
      %16 = vector.broadcast %cst_14 : f32 to vector<256x32xf32>
      %c0_15 = arith.constant 0 : index
      %c0_16 = arith.constant 0 : index
      %17 = vector.load %arg10[%c0_15, %c0_16] : memref<256x32xf32, #tpu.memory_space<vmem>>, vector<256x32xf32>
      tpu.vector_store %arg10[%c0_15, %c0_16], %16 {strides = array<i32>} : memref<256x32xf32, #tpu.memory_space<vmem>>, vector<256x32xf32>,
    } else {
    }
    %c0_2 = arith.constant 0 : index
    %c0_3 = arith.constant 0 : index
    %4 = vector.load %arg3[%c0_2, %c0_3] : memref<256x64xbf16, #tpu.memory_space<vmem>>, vector<256x64xbf16>
    %c0_4 = arith.constant 0 : index
    %c0_5 = arith.constant 0 : index
    %5 = vector.load %arg5[%c0_4, %c0_5] : memref<64x32xbf16, #tpu.memory_space<vmem>>, vector<64x32xbf16>
    %cst = arith.constant dense<0.000000e+00> : vector<256x32xf32>
    %6 = tpu.matmul %4, %5, %cst {dimension_numbers = #tpu.dot_dimension_numbers<[1], [0], [0], [1], [0, 0, 1, 1], [], []>} : vector<256x64xbf16>, vector<64x32xbf16>, vector<256x32xf32> -> vector<256x32xf32>
    %c0_6 = arith.constant 0 : index
    %c0_7 = arith.constant 0 : index
    %7 = vector.load %arg10[%c0_6, %c0_7] : memref<256x32xf32, #tpu.memory_space<vmem>>, vector<256x32xf32>
    %c0_8 = arith.constant 0 : index
    %c0_9 = arith.constant 0 : index
    %8 = vector.load %arg4[%c0_8, %c0_9] : memref<256x256xbf16, #tpu.memory_space<vmem>>, vector<256x256xbf16>
    %9 = arith.truncf %6 : vector<256x32xf32> to vector<256x32xbf16>
    %cst_10 = arith.constant dense<0.000000e+00> : vector<256x32xf32>
    %10 = tpu.matmul %8, %9, %cst_10 {dimension_numbers = #tpu.dot_dimension_numbers<[1], [0], [0], [1], [0, 0, 1, 1], [], []>} : vector<256x256xbf16>, vector<256x32xbf16>, vector<256x32xf32> -> vector<256x32xf32>
    %11 = arith.addf %7, %10 : vector<256x32xf32>
    %c0_11 = arith.constant 0 : index
    %c0_12 = arith.constant 0 : index
    %12 = vector.load %arg10[%c0_11, %c0_12] : memref<256x32xf32, #tpu.memory_space<vmem>>, vector<256x32xf32>
    tpu.vector_store %arg10[%c0_11, %c0_12], %11 {strides = array<i32>} : memref<256x32xf32, #tpu.memory_space<vmem>>, vector<256x32xf32>,
    %c1_i32 = arith.constant 1 : i32
    %13 = arith.cmpi eq, %arg1, %c1_i32 : i32
    %14 = arith.extui %13 : i1 to i32
    %c0_i32_13 = arith.constant 0 : i32
    %15 = arith.cmpi ne, %14, %c0_i32_13 : i32
    scf.if %15 {
      %c0_14 = arith.constant 0 : index
      %c0_15 = arith.constant 0 : index
      %16 = vector.load %arg10[%c0_14, %c0_15] : memref<256x32xf32, #tpu.memory_space<vmem>>, vector<256x32xf32>
      %c0_16 = arith.constant 0 : index
      %c0_17 = arith.constant 0 : index
      %17 = vector.load %arg6[%c0_16, %c0_17] : memref<1x32xf32, #tpu.memory_space<vmem>>, vector<1x32xf32>
      %18 = vector.broadcast %17 : vector<1x32xf32> to vector<256x32xf32>
      %19 = arith.addf %16, %18 : vector<256x32xf32>
      %cst_18 = arith.constant 0.000000e+00 : f32
      %20 = vector.broadcast %cst_18 : f32 to vector<256x32xf32>
      %21 = arith.maximumf %19, %20 : vector<256x32xf32>
      %cst_19 = arith.constant 0.000000e+00 : f32
      %22 = vector.broadcast %cst_19 : f32 to vector<256x32xf32>
      %23 = arith.minimumf %19, %22 : vector<256x32xf32>
      %24 = vector.broadcast %0 : f32 to vector<256x32xf32>
      %25 = arith.mulf %24, %23 : vector<256x32xf32>
      %26 = arith.addf %21, %25 : vector<256x32xf32>
      %27 = arith.truncf %26 : vector<256x32xf32> to vector<256x32xbf16>
      %c0_20 = arith.constant 0 : index
      %c0_21 = arith.constant 0 : index
      %28 = vector.load %arg7[%c0_20, %c0_21] : memref<32x128xbf16, #tpu.memory_space<vmem>>, vector<32x128xbf16>
      %cst_22 = arith.constant dense<0.000000e+00> : vector<256x128xf32>
      %29 = tpu.matmul %27, %28, %cst_22 {dimension_numbers = #tpu.dot_dimension_numbers<[1], [0], [0], [1], [0, 0, 1, 1], [], []>} : vector<256x32xbf16>, vector<32x128xbf16>, vector<256x128xf32> -> vector<256x128xf32>
      %c0_23 = arith.constant 0 : index
      %c0_24 = arith.constant 0 : index
      %30 = vector.load %arg8[%c0_23, %c0_24] : memref<1x128xf32, #tpu.memory_space<vmem>>, vector<1x128xf32>
      %31 = vector.broadcast %30 : vector<1x128xf32> to vector<256x128xf32>
      %32 = arith.addf %29, %31 : vector<256x128xf32>
      %cst_25 = arith.constant 0.000000e+00 : f32
      %33 = vector.broadcast %cst_25 : f32 to vector<256x128xf32>
      %34 = arith.maximumf %32, %33 : vector<256x128xf32>
      %cst_26 = arith.constant 0.000000e+00 : f32
      %35 = vector.broadcast %cst_26 : f32 to vector<256x128xf32>
      %36 = arith.minimumf %32, %35 : vector<256x128xf32>
      %37 = math.exp %36 : vector<256x128xf32>
      %38 = arith.addf %34, %37 : vector<256x128xf32>
      %cst_27 = arith.constant 1.000000e+00 : f32
      %39 = vector.broadcast %cst_27 : f32 to vector<256x128xf32>
      %40 = arith.subf %38, %39 : vector<256x128xf32>
      %c0_28 = arith.constant 0 : index
      %c0_29 = arith.constant 0 : index
      %41 = vector.load %arg9[%c0_28, %c0_29] : memref<256x128xf32, #tpu.memory_space<vmem>>, vector<256x128xf32>
      tpu.vector_store %arg9[%c0_28, %c0_29], %40 {strides = array<i32>} : memref<256x128xf32, #tpu.memory_space<vmem>>, vector<256x128xf32>,
    } else {
    }
    return
  }
  func.func @transform_0(%arg0: i32, %arg1: i32) -> (i32, i32) {
    %c0_i32 = arith.constant 0 : i32
    %c0_i32_0 = arith.constant 0 : i32
    %c0_i32_1 = arith.constant 0 : i32
    return %c0_i32, %c0_i32_0 : i32, i32
  }
  func.func @transform_1(%arg0: i32, %arg1: i32) -> (i32, i32) {
    %c0_i32 = arith.constant 0 : i32
    %c0_i32_0 = arith.constant 0 : i32
    return %arg1, %c0_i32 : i32, i32
  }
  func.func @transform_2(%arg0: i32, %arg1: i32) -> (i32, i32) {
    %c0_i32 = arith.constant 0 : i32
    return %arg0, %arg1 : i32, i32
  }
  func.func @transform_3(%arg0: i32, %arg1: i32) -> (i32, i32) {
    %c0_i32 = arith.constant 0 : i32
    %c0_i32_0 = arith.constant 0 : i32
    %c0_i32_1 = arith.constant 0 : i32
    return %c0_i32, %c0_i32_0 : i32, i32
  }
  func.func @transform_4(%arg0: i32, %arg1: i32) -> (i32, i32) {
    %c0_i32 = arith.constant 0 : i32
    %c0_i32_0 = arith.constant 0 : i32
    %c0_i32_1 = arith.constant 0 : i32
    return %c0_i32, %c0_i32_0 : i32, i32
  }
  func.func @transform_5(%arg0: i32, %arg1: i32) -> (i32, i32) {
    %c0_i32 = arith.constant 0 : i32
    %c0_i32_0 = arith.constant 0 : i32
    %c0_i32_1 = arith.constant 0 : i32
    return %c0_i32, %c0_i32_0 : i32, i32
  }
  func.func @transform_6(%arg0: i32, %arg1: i32) -> (i32, i32) {
    %c0_i32 = arith.constant 0 : i32
    %c0_i32_0 = arith.constant 0 : i32
    %c0_i32_1 = arith.constant 0 : i32
    return %c0_i32, %c0_i32_0 : i32, i32
  }
  func.func @transform_7(%arg0: i32, %arg1: i32) -> (i32, i32) {
    %c0_i32 = arith.constant 0 : i32
    %c0_i32_0 = arith.constant 0 : i32
    return %arg0, %c0_i32 : i32, i32
  }
}

module attributes {stable_mosaic.version = 11 : i64} {
  func.func @_contrast_kernel(%arg0: i32, %arg1: memref<1x1xf32, #tpu.memory_space<smem>>, %arg2: memref<1x512x32xf32, #tpu.memory_space<vmem>>, %arg3: memref<1x512x32xf32, #tpu.memory_space<vmem>>, %arg4: memref<1x512x32xf32, #tpu.memory_space<vmem>>, %arg5: memref<1x8x128xf32, #tpu.memory_space<vmem>>) attributes {dimension_semantics = [#tpu.dimension_semantics<parallel>], iteration_bounds = array<i64: 8>, scalar_prefetch = 0 : i64, scratch_operands = 0 : i64, tpu.core_type = #tpu.core_type<tc>, window_params = [{transform_indices = @transform_0, window_bounds = array<i64: 1, 1>}, {transform_indices = @transform_1, window_bounds = array<i64: 1, 512, 32>}, {transform_indices = @transform_2, window_bounds = array<i64: 1, 512, 32>}, {transform_indices = @transform_3, window_bounds = array<i64: 1, 512, 32>}, {transform_indices = @transform_4, window_bounds = array<i64: 1, 8, 128>}]} {
    %c0 = arith.constant 0 : index
    %c0_0 = arith.constant 0 : index
    %0 = memref.load %arg1[%c0, %c0_0] : memref<1x1xf32, #tpu.memory_space<smem>>
    %c0_1 = arith.constant 0 : index
    %c0_2 = arith.constant 0 : index
    %c0_3 = arith.constant 0 : index
    %1 = vector.load %arg2[%c0_1, %c0_2, %c0_3] : memref<1x512x32xf32, #tpu.memory_space<vmem>>, vector<1x512x32xf32>
    %2 = vector.shape_cast %1 : vector<1x512x32xf32> to vector<512x32xf32>
    %c0_4 = arith.constant 0 : index
    %c0_5 = arith.constant 0 : index
    %c0_6 = arith.constant 0 : index
    %3 = vector.load %arg3[%c0_4, %c0_5, %c0_6] : memref<1x512x32xf32, #tpu.memory_space<vmem>>, vector<1x512x32xf32>
    %4 = vector.shape_cast %3 : vector<1x512x32xf32> to vector<512x32xf32>
    %c0_7 = arith.constant 0 : index
    %c0_8 = arith.constant 0 : index
    %c0_9 = arith.constant 0 : index
    %5 = vector.load %arg4[%c0_7, %c0_8, %c0_9] : memref<1x512x32xf32, #tpu.memory_space<vmem>>, vector<1x512x32xf32>
    %6 = vector.shape_cast %5 : vector<1x512x32xf32> to vector<512x32xf32>
    %7 = arith.mulf %2, %6 : vector<512x32xf32>
    %cst = arith.constant dense<0.000000e+00> : vector<512xf32>
    %8 = vector.multi_reduction <add>, %7, %cst [1] : vector<512x32xf32> to vector<512xf32>
    %9 = vector.shape_cast %8 : vector<512xf32> to vector<512x1xf32>
    %10 = arith.mulf %2, %2 : vector<512x32xf32>
    %cst_10 = arith.constant dense<0.000000e+00> : vector<512xf32>
    %11 = vector.multi_reduction <add>, %10, %cst_10 [1] : vector<512x32xf32> to vector<512xf32>
    %12 = vector.shape_cast %11 : vector<512xf32> to vector<512x1xf32>
    %13 = arith.mulf %6, %6 : vector<512x32xf32>
    %cst_11 = arith.constant dense<0.000000e+00> : vector<512xf32>
    %14 = vector.multi_reduction <add>, %13, %cst_11 [1] : vector<512x32xf32> to vector<512xf32>
    %15 = vector.shape_cast %14 : vector<512xf32> to vector<512x1xf32>
    %16 = arith.mulf %12, %15 : vector<512x1xf32>
    %cst_12 = arith.constant 9.99999996E-13 : f32
    %17 = vector.broadcast %cst_12 : f32 to vector<512x1xf32>
    %18 = arith.maximumf %16, %17 : vector<512x1xf32>
    %19 = math.rsqrt %18 : vector<512x1xf32>
    %20 = arith.mulf %9, %19 : vector<512x1xf32>
    %21 = arith.mulf %2, %4 : vector<512x32xf32>
    %cst_13 = arith.constant dense<0.000000e+00> : vector<512xf32>
    %22 = vector.multi_reduction <add>, %21, %cst_13 [1] : vector<512x32xf32> to vector<512xf32>
    %23 = vector.shape_cast %22 : vector<512xf32> to vector<512x1xf32>
    %24 = arith.mulf %2, %2 : vector<512x32xf32>
    %cst_14 = arith.constant dense<0.000000e+00> : vector<512xf32>
    %25 = vector.multi_reduction <add>, %24, %cst_14 [1] : vector<512x32xf32> to vector<512xf32>
    %26 = vector.shape_cast %25 : vector<512xf32> to vector<512x1xf32>
    %27 = arith.mulf %4, %4 : vector<512x32xf32>
    %cst_15 = arith.constant dense<0.000000e+00> : vector<512xf32>
    %28 = vector.multi_reduction <add>, %27, %cst_15 [1] : vector<512x32xf32> to vector<512xf32>
    %29 = vector.shape_cast %28 : vector<512xf32> to vector<512x1xf32>
    %30 = arith.mulf %26, %29 : vector<512x1xf32>
    %cst_16 = arith.constant 9.99999996E-13 : f32
    %31 = vector.broadcast %cst_16 : f32 to vector<512x1xf32>
    %32 = arith.maximumf %30, %31 : vector<512x1xf32>
    %33 = math.rsqrt %32 : vector<512x1xf32>
    %34 = arith.mulf %23, %33 : vector<512x1xf32>
    %35 = arith.subf %20, %34 : vector<512x1xf32>
    %36 = vector.broadcast %0 : f32 to vector<512x1xf32>
    %37 = arith.mulf %35, %36 : vector<512x1xf32>
    %cst_17 = arith.constant 0.000000e+00 : f32
    %38 = vector.broadcast %cst_17 : f32 to vector<512x1xf32>
    %39 = arith.maximumf %37, %38 : vector<512x1xf32>
    %40 = math.absf %37 : vector<512x1xf32>
    %cst_18 = arith.constant 0.000000e+00 : f32
    %41 = vector.broadcast %cst_18 : f32 to vector<512x1xf32>
    %42 = arith.subf %41, %40 : vector<512x1xf32>
    %43 = math.exp %42 : vector<512x1xf32>
    %cst_19 = arith.constant 1.000000e+00 : f32
    %44 = vector.broadcast %cst_19 : f32 to vector<512x1xf32>
    %45 = arith.addf %44, %43 : vector<512x1xf32>
    %46 = math.log %45 : vector<512x1xf32>
    %47 = arith.addf %39, %46 : vector<512x1xf32>
    %48 = vector.shape_cast %47 : vector<512x1xf32> to vector<1x512x1xf32>
    %cst_20 = arith.constant dense<0.000000e+00> : vector<1xf32>
    %49 = vector.multi_reduction <add>, %48, %cst_20 [1, 2] : vector<1x512x1xf32> to vector<1xf32>
    %50 = vector.shape_cast %49 : vector<1xf32> to vector<1x1x1xf32>
    %51 = vector.extract %50[0, 0, 0] : f32 from vector<1x1x1xf32>
    %52 = vector.broadcast %51 : f32 to vector<1x8x128xf32>
    %c0_21 = arith.constant 0 : index
    %c0_22 = arith.constant 0 : index
    %c0_23 = arith.constant 0 : index
    %53 = vector.load %arg5[%c0_21, %c0_22, %c0_23] : memref<1x8x128xf32, #tpu.memory_space<vmem>>, vector<1x8x128xf32>
    tpu.vector_store %arg5[%c0_21, %c0_22, %c0_23], %52 {strides = array<i32>} : memref<1x8x128xf32, #tpu.memory_space<vmem>>, vector<1x8x128xf32>,
    return
  }
  func.func @transform_0(%arg0: i32) -> (i32, i32) {
    %c0_i32 = arith.constant 0 : i32
    %c0_i32_0 = arith.constant 0 : i32
    %c0_i32_1 = arith.constant 0 : i32
    return %c0_i32, %c0_i32_0 : i32, i32
  }
  func.func @transform_1(%arg0: i32) -> (i32, i32, i32) {
    %c0_i32 = arith.constant 0 : i32
    %c0_i32_0 = arith.constant 0 : i32
    %c0_i32_1 = arith.constant 0 : i32
    return %arg0, %c0_i32, %c0_i32_0 : i32, i32, i32
  }
  func.func @transform_2(%arg0: i32) -> (i32, i32, i32) {
    %c0_i32 = arith.constant 0 : i32
    %c0_i32_0 = arith.constant 0 : i32
    %c0_i32_1 = arith.constant 0 : i32
    return %arg0, %c0_i32, %c0_i32_0 : i32, i32, i32
  }
  func.func @transform_3(%arg0: i32) -> (i32, i32, i32) {
    %c0_i32 = arith.constant 0 : i32
    %c0_i32_0 = arith.constant 0 : i32
    %c0_i32_1 = arith.constant 0 : i32
    return %arg0, %c0_i32, %c0_i32_0 : i32, i32, i32
  }
  func.func @transform_4(%arg0: i32) -> (i32, i32, i32) {
    %c0_i32 = arith.constant 0 : i32
    %c0_i32_0 = arith.constant 0 : i32
    %c0_i32_1 = arith.constant 0 : i32
    return %arg0, %c0_i32, %c0_i32_0 : i32, i32, i32
  }
}

</mosaic_0001>

<llo_original>
// kernel: modeler_forward.5
$region0: #{modeler_forward.5}
  #allocation0 [shape = 'u32[]', space=smem, size = 0x4, offset = 0x4, fixed_abs, tag = 'smem constant byte address 0x4 - core index']
  #allocation1 [shape = 'u32[72,128]{1,0:T(1,128)}', space=vmem, size = 0x9000, scoped, tag = 'internal scratch']
  #allocation2 [shape = 'f32[256,64]{1,0:T(8,128)}', space=vmem, size = 0x20000, scoped, tag = 'scratch operand']
  #allocation3 [shape = 'f32[1,1]{1,0:T(1,128)S(6)}', space=smem, size = 0x200, scoped, tag = 'scoped memory for modeler_forward.5']
  %s0 = inlined_call_operand.<no memory space> [shape: f32[1,1], index: 0, kind: input, shape index: {}]
  %s1 = inlined_call_operand.vmem [shape: bf16[512,128], index: 1, kind: input, shape index: {}]
  %s2 = inlined_call_operand.vmem [shape: bf16[512,512], index: 2, kind: input, shape index: {}]
  %s3 = inlined_call_operand.vmem [shape: bf16[128,64], index: 3, kind: input, shape index: {}]
  %s4 = inlined_call_operand.vmem [shape: f32[1,64], index: 4, kind: input, shape index: {}]
  %s5 = inlined_call_operand.vmem [shape: bf16[64,128], index: 5, kind: input, shape index: {}]
  %s6 = inlined_call_operand.vmem [shape: f32[1,128], index: 6, kind: input, shape index: {}]
  %s7 = inlined_call_operand.vmem [shape: f32[512,128], index: 7, kind: output, shape index: {}]
  %s8 = sld [smem:[#allocation0]]
  $region107: #{modeler_forward.5} parent=0
    _
  %s10 = ssub.s32 1, %s8
  %s11 = scalar_select 0, %s10, %s8
  %12 = sst [smem:[#allocation3]] %s0
  $region1: #{modeler_forward.5} parent=0
    #allocation4 [shape = 'u8[262144]{0}', space=vmem, size = 0x40000, scoped, tag = 'input window, operand 2']
    loop: start=0, step=1, limit=6
    $region2: #{modeler_forward.5} parent=1 // loop_pre_header
      _
    $region3: #{modeler_forward.5} parent=1 // loop_header
      %s14 = sphi 0, %s18
      %p15 = scmp.ge.s32.totalorder %s14, 6
      %s21 = sphi 0, %s33
      %s22 = sphi 0, %s29
      %s23 = sphi 0, %s21
      %s24 = sphi 0, %s22
      %s25 = sphi 0, %s23
      %s26 = sphi 0, %s24
      %s34 = sphi 0, %s34
      %s36 = sphi 0, %s34
      %s37 = sphi 0, %s36
      %s51 = sphi 0, %s37
      %s57 = sphi 0, %s59
      %s60 = sphi 0, %s57
      %s61 = sphi 0, %s60
      %s77 = sphi 0, %s61
      %s85 = sphi 0, %s87
      %s88 = sphi 0, %s85
      %s89 = sphi 0, %s88
      %s105 = sphi 0, %s89
      %s109 = sphi 0, %s109
      %s111 = sphi 0, %s109
      %s112 = sphi 0, %s111
      %s126 = sphi 0, %s112
      %s130 = sphi 0, %s130
      %s132 = sphi 0, %s130
      %s133 = sphi 0, %s132
      %s147 = sphi 0, %s133
      %s151 = sphi 0, %s151
      %s153 = sphi 0, %s151
      %s154 = sphi 0, %s153
      %s168 = sphi 0, %s154
      %s172 = sphi 0, %s172
      %s174 = sphi 0, %s172
      %s175 = sphi 0, %s174
      %s189 = sphi 0, %s175
      %s195 = sphi 0, %s197
      %s198 = sphi 0, %s195
      %s199 = sphi 0, %s198
      %s215 = sphi 0, %s199
    $region4: #{modeler_forward.5} parent=1 // loop_header_branch
      %17 = sbr.rel (%p15) target = $region8
    $region5: #{modeler_forward.5} parent=1 // loop_body
      %s19 = ssub.s32 %s14, 1
      %s20 = ssub.s32 %s14, 2
      %s27 = sadd.s32 1, %s22
      %p28 = scmp.ge.s32.totalorder %s27, 2
      %s29 = scalar_select %p28, 0, %s27
      %s30 = sadd.s32 1, %s21
      %s31 = scalar_select %p28, %s30, %s21
      %p32 = scmp.ge.s32.totalorder %s31, 2
      %s33 = scalar_select %p32, 0, %s31
      %s35 = sadd.s32 %s34, 1
      %p38 = scmp.eq.s32.totalorder %s14, 3
      %p39 = scmp.ne.s32.totalorder %s34, %s36
      %p40 = scmp.eq.s32.totalorder %s14, 0
      %p41 = por %p39, %p40
      %p42 = scmp.ne.s32.totalorder %s34, %s36
      %p43 = scmp.eq.s32.totalorder %s19, 3
      %p44 = por %p42, %p43
      %p45 = scmp.ne.s32.totalorder %s36, %s37
      %p46 = scmp.eq.s32.totalorder %s19, 0
      %p47 = por %p45, %p46
      %p48 = scmp.ne.s32.totalorder %s36, %s37
      %p49 = scmp.eq.s32.totalorder %s20, 3
      %p50 = por %p48, %p49
      %p52 = scmp.ne.s32.totalorder %s37, %s51
      %p53 = scmp.eq.s32.totalorder %s20, 0
      %p54 = por %p52, %p53
      %s55 = ssub.s32 %s22, %s29
      %p56 = scmp.eq.s32.totalorder %s55, 0
      %s58 = sadd.s32 %s57, 1
      %s59 = scalar_select %p56, %s57, %s58
      %p62 = pneg %p56
      %p63 = scmp.eq.s32.totalorder %s14, 3
      %p64 = por %p62, %p63
      %p65 = scmp.ne.s32.totalorder %s57, %s60
      %p66 = scmp.eq.s32.totalorder %s14, 0
      %p67 = por %p65, %p66
      %p68 = scmp.ne.s32.totalorder %s57, %s60
      %p69 = scmp.eq.s32.totalorder %s19, 3
      %p70 = por %p68, %p69
      %p71 = scmp.ne.s32.totalorder %s60, %s61
      %p72 = scmp.eq.s32.totalorder %s19, 0
      %p73 = por %p71, %p72
      %p74 = scmp.ne.s32.totalorder %s60, %s61
      %p75 = scmp.eq.s32.totalorder %s20, 3
      %p76 = por %p74, %p75
      %p78 = scmp.ne.s32.totalorder %s61, %s77
      %p79 = scmp.eq.s32.totalorder %s20, 0
      %p80 = por %p78, %p79
      %s81 = ssub.s32 %s21, %s33
      %s82 = ssub.s32 %s22, %s29
      %s83 = sor.u32 %s81, %s82
      %p84 = scmp.eq.s32.totalorder %s83, 0
      %s86 = sadd.s32 %s85, 1
      %s87 = scalar_select %p84, %s85, %s86
      %p90 = pneg %p84
      %p91 = scmp.eq.s32.totalorder %s14, 3
      %p92 = por %p90, %p91
      %p93 = scmp.ne.s32.totalorder %s85, %s88
      %p94 = scmp.eq.s32.totalorder %s14, 0
      %p95 = por %p93, %p94
      %p96 = scmp.ne.s32.totalorder %s85, %s88
      %p97 = scmp.eq.s32.totalorder %s19, 3
      %p98 = por %p96, %p97
      %p99 = scmp.ne.s32.totalorder %s88, %s89
      %p100 = scmp.eq.s32.totalorder %s19, 0
      %p101 = por %p99, %p100
      %p102 = scmp.ne.s32.totalorder %s88, %s89
      %p103 = scmp.eq.s32.totalorder %s20, 3
      %p104 = por %p102, %p103
      %p106 = scmp.ne.s32.totalorder %s89, %s105
      %p107 = scmp.eq.s32.totalorder %s20, 0
      %p108 = por %p106, %p107
      %s110 = sadd.s32 %s109, 1
      %p113 = scmp.eq.s32.totalorder %s14, 3
      %p114 = scmp.ne.s32.totalorder %s109, %s111
      %p115 = scmp.eq.s32.totalorder %s14, 0
      %p116 = por %p114, %p115
      %p117 = scmp.ne.s32.totalorder %s109, %s111
      %p118 = scmp.eq.s32.totalorder %s19, 3
      %p119 = por %p117, %p118
      %p120 = scmp.ne.s32.totalorder %s111, %s112
      %p121 = scmp.eq.s32.totalorder %s19, 0
      %p122 = por %p120, %p121
      %p123 = scmp.ne.s32.totalorder %s111, %s112
      %p124 = scmp.eq.s32.totalorder %s20, 3
      %p125 = por %p123, %p124
      %p127 = scmp.ne.s32.totalorder %s112, %s126
      %p128 = scmp.eq.s32.totalorder %s20, 0
      %p129 = por %p127, %p128
      %s131 = sadd.s32 %s130, 1
      %p134 = scmp.eq.s32.totalorder %s14, 3
      %p135 = scmp.ne.s32.totalorder %s130, %s132
      %p136 = scmp.eq.s32.totalorder %s14, 0
      %p137 = por %p135, %p136
      %p138 = scmp.ne.s32.totalorder %s130, %s132
      %p139 = scmp.eq.s32.totalorder %s19, 3
      %p140 = por %p138, %p139
      %p141 = scmp.ne.s32.totalorder %s132, %s133
      %p142 = scmp.eq.s32.totalorder %s19, 0
      %p143 = por %p141, %p142
      %p144 = scmp.ne.s32.totalorder %s132, %s133
      %p145 = scmp.eq.s32.totalorder %s20, 3
      %p146 = por %p144, %p145
      %p148 = scmp.ne.s32.totalorder %s133, %s147
      %p149 = scmp.eq.s32.totalorder %s20, 0
      %p150 = por %p148, %p149
      %s152 = sadd.s32 %s151, 1
      %p155 = scmp.eq.s32.totalorder %s14, 3
      %p156 = scmp.ne.s32.totalorder %s151, %s153
      %p157 = scmp.eq.s32.totalorder %s14, 0
      %p158 = por %p156, %p157
      %p159 = scmp.ne.s32.totalorder %s151, %s153
      %p160 = scmp.eq.s32.totalorder %s19, 3
      %p161 = por %p159, %p160
      %p162 = scmp.ne.s32.totalorder %s153, %s154
      %p163 = scmp.eq.s32.totalorder %s19, 0
      %p164 = por %p162, %p163
      %p165 = scmp.ne.s32.totalorder %s153, %s154
      %p166 = scmp.eq.s32.totalorder %s20, 3
      %p167 = por %p165, %p166
      %p169 = scmp.ne.s32.totalorder %s154, %s168
      %p170 = scmp.eq.s32.totalorder %s20, 0
      %p171 = por %p169, %p170
      %s173 = sadd.s32 %s172, 1
      %p176 = scmp.eq.s32.totalorder %s14, 3
      %p177 = scmp.ne.s32.totalorder %s172, %s174
      %p178 = scmp.eq.s32.totalorder %s14, 0
      %p179 = por %p177, %p178
      %p180 = scmp.ne.s32.totalorder %s172, %s174
      %p181 = scmp.eq.s32.totalorder %s19, 3
      %p182 = por %p180, %p181
      %p183 = scmp.ne.s32.totalorder %s174, %s175
      %p184 = scmp.eq.s32.totalorder %s19, 0
      %p185 = por %p183, %p184
      %p186 = scmp.ne.s32.totalorder %s174, %s175
      %p187 = scmp.eq.s32.totalorder %s20, 3
      %p188 = por %p186, %p187
      %p190 = scmp.ne.s32.totalorder %s175, %s189
      %p191 = scmp.eq.s32.totalorder %s20, 0
      %p192 = por %p190, %p191
      %s193 = ssub.s32 %s21, %s33
      %p194 = scmp.eq.s32.totalorder %s193, 0
      %s196 = sadd.s32 %s195, 1
      %s197 = scalar_select %p194, %s195, %s196
      %p200 = pneg %p194
      %p201 = scmp.eq.s32.totalorder %s14, 3
      %p202 = por %p200, %p201
      %p203 = scmp.ne.s32.totalorder %s195, %s198
      %p204 = scmp.eq.s32.totalorder %s14, 0
      %p205 = por %p203, %p204
      %p206 = scmp.ne.s32.totalorder %s195, %s198
      %p207 = scmp.eq.s32.totalorder %s19, 3
      %p208 = por %p206, %p207
      %p209 = scmp.ne.s32.totalorder %s198, %s199
      %p210 = scmp.eq.s32.totalorder %s19, 0
      %p211 = por %p209, %p210
      %p212 = scmp.ne.s32.totalorder %s198, %s199
      %p213 = scmp.eq.s32.totalorder %s20, 3
      %p214 = por %p212, %p213
      %p216 = scmp.ne.s32.totalorder %s199, %s215
      %p217 = scmp.eq.s32.totalorder %s20, 0
      %p218 = por %p216, %p217
      %p219 = scmp.le.s32.totalorder 1, %s14
      %p220 = scmp.lt.s32.totalorder %s14, 5
      %p221 = pnand %p219, %p220
      %p222 = pneg %p221
      // Predicated region
      $region9: #{modeler_forward.5} parent=5 // pred_check
        _
      $region10: #{modeler_forward.5} parent=5 // pred_check_branch
        %224 = sbr.rel (%p221) target = $region12
      $region11: #{modeler_forward.5} parent=5 // pred_region
        %s225 = ssub.s32 %s14, 1
        // Predicated region
        $region13: #{modeler_forward.5} parent=11 // pred_check
          %p226 = pneg %p47
        $region14: #{modeler_forward.5} parent=11 // pred_check_branch
          %228 = sbr.rel (%p226) target = $region16
        $region15: #{modeler_forward.5} parent=11 // pred_region
          _
        $region16: #{modeler_forward.5} parent=11 // pred_fallthru
          _
        // Predicated region
        $region17: #{modeler_forward.5} parent=11 // pred_check
          %p229 = pneg %p122
        $region18: #{modeler_forward.5} parent=11 // pred_check_branch
          %231 = sbr.rel (%p229) target = $region20
        $region19: #{modeler_forward.5} parent=11 // pred_region
          _
        $region20: #{modeler_forward.5} parent=11 // pred_fallthru
          _
        // Predicated region
        $region21: #{modeler_forward.5} parent=11 // pred_check
          %p232 = pneg %p143
        $region22: #{modeler_forward.5} parent=11 // pred_check_branch
          %234 = sbr.rel (%p232) target = $region24
        $region23: #{modeler_forward.5} parent=11 // pred_region
          _
        $region24: #{modeler_forward.5} parent=11 // pred_fallthru
          _
        // Predicated region
        $region25: #{modeler_forward.5} parent=11 // pred_check
          %p235 = pneg %p164
        $region26: #{modeler_forward.5} parent=11 // pred_check_branch
          %237 = sbr.rel (%p235) target = $region28
        $region27: #{modeler_forward.5} parent=11 // pred_region
          _
        $region28: #{modeler_forward.5} parent=11 // pred_fallthru
          _
        // Predicated region
        $region29: #{modeler_forward.5} parent=11 // pred_check
          %p238 = pneg %p185
        $region30: #{modeler_forward.5} parent=11 // pred_check_branch
          %240 = sbr.rel (%p238) target = $region32
        $region31: #{modeler_forward.5} parent=11 // pred_region
          _
        $region32: #{modeler_forward.5} parent=11 // pred_fallthru
          _
      $region12: #{modeler_forward.5} parent=5 // pred_fallthru
        _
      %p241 = scmp.lt.s32.totalorder %s14, 4
      // Predicated region
      $region33: #{modeler_forward.5} parent=5 // pred_check
        %p242 = pneg %p241
      $region34: #{modeler_forward.5} parent=5 // pred_check_branch
        %244 = sbr.rel (%p242) target = $region36
      $region35: #{modeler_forward.5} parent=5 // pred_region
        // Predicated region
        $region37: #{modeler_forward.5} parent=35 // pred_check
          %p245 = pneg %p67
        $region38: #{modeler_forward.5} parent=35 // pred_check_branch
          %247 = sbr.rel (%p245) target = $region40
        $region39: #{modeler_forward.5} parent=35 // pred_region
          %s248 = smul.u32 32, %s22
          %p249 = scmp.lt.s32.totalorder %s248, 63
          %s250 = scalar_select %p249, %s248, 63
          %s251 = smul.addr %s250, 4
          %s252 = scalar_lea.vmem %s1, %s251
          %s253 = smul.u32 32, %s22
        $region40: #{modeler_forward.5} parent=35 // pred_fallthru
          _
        // Predicated region
        $region41: #{modeler_forward.5} parent=35 // pred_check
          %p254 = pneg %p95
        $region42: #{modeler_forward.5} parent=35 // pred_check_branch
          %256 = sbr.rel (%p254) target = $region44
        $region43: #{modeler_forward.5} parent=35 // pred_region
          %s257 = sand.u32 %s85, 1
          %s258 = sand.u32 %s85, 1
          %s259 = smul.addr %s258, 256
          %s260 = scalar_lea.vmem [#allocation4], %s259
          %s261 = smul.u32 32, %s21
          %s262 = smul.u32 2, %s22
          %s263 = smul.addr %s261, 4
          %s264 = sadd.s32 %s262, %s263
          %s265 = smul.addr %s264, 4
          %s266 = scalar_lea.vmem %s2, %s265
          // Predicated region
          $region45: #{modeler_forward.5} parent=43 // pred_check
            _
          $region46: #{modeler_forward.5} parent=43 // pred_check_branch
            %268 = sbr.rel (0) target = $region48
          $region47: #{modeler_forward.5} parent=43 // pred_region
            // Predicated region
            $region49: #{modeler_forward.5} parent=47 // pred_check
              _
            $region50: #{modeler_forward.5} parent=47 // pred_check_branch
              %270 = sbr.rel (0) target = $region52
            $region51: #{modeler_forward.5} parent=47 // pred_region
              // Predicated region
              $region64: #{modeler_forward.5} parent=51 // pred_check
                _
              $region65: #{modeler_forward.5} parent=51 // pred_check_branch
                %348 = sbr.rel (0) target = $region67
              $region66: #{modeler_forward.5} parent=51 // pred_region
                loop: start=0, step=1, limit=1
                $region68: #{modeler_forward.5} parent=66 // loop_pre_header
                  _
                $region69: #{modeler_forward.5} parent=66 // loop_header
                  %s350 = sphi 0, %s354
                  %p351 = scmp.ge.s32.totalorder %s350, 1
                  %s355 = sphi %s266, %s266
                  %s356 = sphi %s260, %s260
                $region70: #{modeler_forward.5} parent=66 // loop_header_branch
                  %353 = sbr.rel (%p351) target = $region74
                $region71: #{modeler_forward.5} parent=66 // loop_body
                  %v357 = vld [vmem:[%s355] sm:$0xff]
                  %358 = vst [vmem:[%s356] sm:$0xff] %v357
                  %v359 = vld [vmem:[%s355 + $0x10] sm:$0xff]
                  %360 = vst [vmem:[%s356 + $0x8] sm:$0xff] %v359
                  %v361 = vld [vmem:[%s355 + $0x20] sm:$0xff]
                  %362 = vst [vmem:[%s356 + $0x10] sm:$0xff] %v361
                  %v363 = vld [vmem:[%s355 + $0x30] sm:$0xff]
                  %364 = vst [vmem:[%s356 + $0x18] sm:$0xff] %v363
                  %v365 = vld [vmem:[%s355 + $0x40] sm:$0xff]
                  %366 = vst [vmem:[%s356 + $0x20] sm:$0xff] %v365
                  %v367 = vld [vmem:[%s355 + $0x50] sm:$0xff]
                  %368 = vst [vmem:[%s356 + $0x28] sm:$0xff] %v367
                  %v369 = vld [vmem:[%s355 + $0x60] sm:$0xff]
                  %370 = vst [vmem:[%s356 + $0x30] sm:$0xff] %v369
                  %v371 = vld [vmem:[%s355 + $0x70] sm:$0xff]
                  %372 = vst [vmem:[%s356 + $0x38] sm:$0xff] %v371
                  %v373 = vld [vmem:[%s355 + $0x80] sm:$0xff]
                  %374 = vst [vmem:[%s356 + $0x40] sm:$0xff] %v373
                  %v375 = vld [vmem:[%s355 + $0x90] sm:$0xff]
                  %376 = vst [vmem:[%s356 + $0x48] sm:$0xff] %v375
                  %v377 = vld [vmem:[%s355 + $0xa0] sm:$0xff]
                  %378 = vst [vmem:[%s356 + $0x50] sm:$0xff] %v377
                  %v379 = vld [vmem:[%s355 + $0xb0] sm:$0xff]
                  %380 = vst [vmem:[%s356 + $0x58] sm:$0xff] %v379
                  %v381 = vld [vmem:[%s355 + $0xc0] sm:$0xff]
                  %382 = vst [vmem:[%s356 + $0x60] sm:$0xff] %v381
                  %v383 = vld [vmem:[%s355 + $0xd0] sm:$0xff]
                  %384 = vst [vmem:[%s356 + $0x68] sm:$0xff] %v383
                  %v385 = vld [vmem:[%s355 + $0xe0] sm:$0xff]
                  %386 = vst [vmem:[%s356 + $0x70] sm:$0xff] %v385
                  %v387 = vld [vmem:[%s355 + $0xf0] sm:$0xff]
                  %388 = vst [vmem:[%s356 + $0x78] sm:$0xff] %v387
                  %v389 = vld [vmem:[%s355 + $0x100] sm:$0xff]
                  %390 = vst [vmem:[%s356 + $0x80] sm:$0xff] %v389
                  %v391 = vld [vmem:[%s355 + $0x110] sm:$0xff]
                  %392 = vst [vmem:[%s356 + $0x88] sm:$0xff] %v391
                  %v393 = vld [vmem:[%s355 + $0x120] sm:$0xff]
                  %394 = vst [vmem:[%s356 + $0x90] sm:$0xff] %v393
                  %v395 = vld [vmem:[%s355 + $0x130] sm:$0xff]
                  %396 = vst [vmem:[%s356 + $0x98] sm:$0xff] %v395
                  %v397 = vld [vmem:[%s355 + $0x140] sm:$0xff]
                  %398 = vst [vmem:[%s356 + $0xa0] sm:$0xff] %v397
                  %v399 = vld [vmem:[%s355 + $0x150] sm:$0xff]
                  %400 = vst [vmem:[%s356 + $0xa8] sm:$0xff] %v399
                  %v401 = vld [vmem:[%s355 + $0x160] sm:$0xff]
                  %402 = vst [vmem:[%s356 + $0xb0] sm:$0xff] %v401
                  %v403 = vld [vmem:[%s355 + $0x170] sm:$0xff]
                  %404 = vst [vmem:[%s356 + $0xb8] sm:$0xff] %v403
                  %v405 = vld [vmem:[%s355 + $0x180] sm:$0xff]
                  %406 = vst [vmem:[%s356 + $0xc0] sm:$0xff] %v405
                  %v407 = vld [vmem:[%s355 + $0x190] sm:$0xff]
                  %408 = vst [vmem:[%s356 + $0xc8] sm:$0xff] %v407
                  %v409 = vld [vmem:[%s355 + $0x1a0] sm:$0xff]
                  %410 = vst [vmem:[%s356 + $0xd0] sm:$0xff] %v409
                  %v411 = vld [vmem:[%s355 + $0x1b0] sm:$0xff]
                  %412 = vst [vmem:[%s356 + $0xd8] sm:$0xff] %v411
                  %v413 = vld [vmem:[%s355 + $0x1c0] sm:$0xff]
                  %414 = vst [vmem:[%s356 + $0xe0] sm:$0xff] %v413
                  %v415 = vld [vmem:[%s355 + $0x1d0] sm:$0xff]
                  %416 = vst [vmem:[%s356 + $0xe8] sm:$0xff] %v415
                  %v417 = vld [vmem:[%s355 + $0x1e0] sm:$0xff]
                  %418 = vst [vmem:[%s356 + $0xf0] sm:$0xff] %v417
                  %v419 = vld [vmem:[%s355 + $0x1f0] sm:$0xff]
                  %420 = vst [vmem:[%s356 + $0xf8] sm:$0xff] %v419
                $region72: #{modeler_forward.5} parent=66 // loop_footer
                  %s354 = sadd.s32 1, %s350
                $region73: #{modeler_forward.5} parent=66 // loop_footer_branch
                  %349 = sbr.rel target = $region69
                $region74: #{modeler_forward.5} parent=66 // loop_exit
                  _
              $region67: #{modeler_forward.5} parent=51 // pred_fallthru
                _
              // Predicated region
              $region75: #{modeler_forward.5} parent=51 // pred_check
                _
              $region76: #{modeler_forward.5} parent=51 // pred_check_branch
                %422 = sbr.rel target = $region78
              $region77: #{modeler_forward.5} parent=51 // pred_region
                _
              $region78: #{modeler_forward.5} parent=51 // pred_fallthru
                _
            $region52: #{modeler_forward.5} parent=47 // pred_fallthru
              _
            // Predicated region
            $region53: #{modeler_forward.5} parent=47 // pred_check
              _
            $region54: #{modeler_forward.5} parent=47 // pred_check_branch
              %272 = sbr.rel target = $region56
            $region55: #{modeler_forward.5} parent=47 // pred_region
              %s274 = ssub.s32 256, 1
              loop: start=0, step=1, limit=1
              $region57: #{modeler_forward.5} parent=55 // loop_pre_header
                _
              $region58: #{modeler_forward.5} parent=55 // loop_header
                %s276 = sphi 0, %s280
                %p277 = scmp.ge.s32.totalorder %s276, 1
                %s281 = sphi %s266, %s266
                %s282 = sphi %s260, %s260
              $region59: #{modeler_forward.5} parent=55 // loop_header_branch
                %279 = sbr.rel (%p277) target = $region63
              $region60: #{modeler_forward.5} parent=55 // loop_body
                %v283 = vld [vmem:[%s281] sm:%s274]
                %284 = vst [vmem:[%s282] sm:%s274] %v283
                %v285 = vld [vmem:[%s281 + $0x10] sm:%s274]
                %286 = vst [vmem:[%s282 + $0x8] sm:%s274] %v285
                %v287 = vld [vmem:[%s281 + $0x20] sm:%s274]
                %288 = vst [vmem:[%s282 + $0x10] sm:%s274] %v287
                %v289 = vld [vmem:[%s281 + $0x30] sm:%s274]
                %290 = vst [vmem:[%s282 + $0x18] sm:%s274] %v289
                %v291 = vld [vmem:[%s281 + $0x40] sm:%s274]
                %292 = vst [vmem:[%s282 + $0x20] sm:%s274] %v291
                %v293 = vld [vmem:[%s281 + $0x50] sm:%s274]
                %294 = vst [vmem:[%s282 + $0x28] sm:%s274] %v293
                %v295 = vld [vmem:[%s281 + $0x60] sm:%s274]
                %296 = vst [vmem:[%s282 + $0x30] sm:%s274] %v295
                %v297 = vld [vmem:[%s281 + $0x70] sm:%s274]
                %298 = vst [vmem:[%s282 + $0x38] sm:%s274] %v297
                %v299 = vld [vmem:[%s281 + $0x80] sm:%s274]
                %300 = vst [vmem:[%s282 + $0x40] sm:%s274] %v299
                %v301 = vld [vmem:[%s281 + $0x90] sm:%s274]
                %302 = vst [vmem:[%s282 + $0x48] sm:%s274] %v301
                %v303 = vld [vmem:[%s281 + $0xa0] sm:%s274]
                %304 = vst [vmem:[%s282 + $0x50] sm:%s274] %v303
                %v305 = vld [vmem:[%s281 + $0xb0] sm:%s274]
                %306 = vst [vmem:[%s282 + $0x58] sm:%s274] %v305
                %v307 = vld [vmem:[%s281 + $0xc0] sm:%s274]
                %308 = vst [vmem:[%s282 + $0x60] sm:%s274] %v307
                %v309 = vld [vmem:[%s281 + $0xd0] sm:%s274]
                %310 = vst [vmem:[%s282 + $0x68] sm:%s274] %v309
                %v311 = vld [vmem:[%s281 + $0xe0] sm:%s274]
                %312 = vst [vmem:[%s282 + $0x70] sm:%s274] %v311
                %v313 = vld [vmem:[%s281 + $0xf0] sm:%s274]
                %314 = vst [vmem:[%s282 + $0x78] sm:%s274] %v313
                %v315 = vld [vmem:[%s281 + $0x100] sm:%s274]
                %316 = vst [vmem:[%s282 + $0x80] sm:%s274] %v315
                %v317 = vld [vmem:[%s281 + $0x110] sm:%s274]
                %318 = vst [vmem:[%s282 + $0x88] sm:%s274] %v317
                %v319 = vld [vmem:[%s281 + $0x120] sm:%s274]
                %320 = vst [vmem:[%s282 + $0x90] sm:%s274] %v319
                %v321 = vld [vmem:[%s281 + $0x130] sm:%s274]
                %322 = vst [vmem:[%s282 + $0x98] sm:%s274] %v321
                %v323 = vld [vmem:[%s281 + $0x140] sm:%s274]
                %324 = vst [vmem:[%s282 + $0xa0] sm:%s274] %v323
                %v325 = vld [vmem:[%s281 + $0x150] sm:%s274]
                %326 = vst [vmem:[%s282 + $0xa8] sm:%s274] %v325
                %v327 = vld [vmem:[%s281 + $0x160] sm:%s274]
                %328 = vst [vmem:[%s282 + $0xb0] sm:%s274] %v327
                %v329 = vld [vmem:[%s281 + $0x170] sm:%s274]
                %330 = vst [vmem:[%s282 + $0xb8] sm:%s274] %v329
                %v331 = vld [vmem:[%s281 + $0x180] sm:%s274]
                %332 = vst [vmem:[%s282 + $0xc0] sm:%s274] %v331
                %v333 = vld [vmem:[%s281 + $0x190] sm:%s274]
                %334 = vst [vmem:[%s282 + $0xc8] sm:%s274] %v333
                %v335 = vld [vmem:[%s281 + $0x1a0] sm:%s274]
                %336 = vst [vmem:[%s282 + $0xd0] sm:%s274] %v335
                %v337 = vld [vmem:[%s281 + $0x1b0] sm:%s274]
                %338 = vst [vmem:[%s282 + $0xd8] sm:%s274] %v337
                %v339 = vld [vmem:[%s281 + $0x1c0] sm:%s274]
                %340 = vst [vmem:[%s282 + $0xe0] sm:%s274] %v339
                %v341 = vld [vmem:[%s281 + $0x1d0] sm:%s274]
                %342 = vst [vmem:[%s282 + $0xe8] sm:%s274] %v341
                %v343 = vld [vmem:[%s281 + $0x1e0] sm:%s274]
                %344 = vst [vmem:[%s282 + $0xf0] sm:%s274] %v343
                %v345 = vld [vmem:[%s281 + $0x1f0] sm:%s274]
                %346 = vst [vmem:[%s282 + $0xf8] sm:%s274] %v345
              $region61: #{modeler_forward.5} parent=55 // loop_footer
                %s280 = sadd.s32 1, %s276
              $region62: #{modeler_forward.5} parent=55 // loop_footer_branch
                %275 = sbr.rel target = $region58
              $region63: #{modeler_forward.5} parent=55 // loop_exit
                _
            $region56: #{modeler_forward.5} parent=47 // pred_fallthru
              _
          $region48: #{modeler_forward.5} parent=43 // pred_fallthru
            _
          %423 = vnop
        $region44: #{modeler_forward.5} parent=35 // pred_fallthru
          _
      $region36: #{modeler_forward.5} parent=5 // pred_fallthru
        _
      %p424 = scmp.le.s32.totalorder 1, %s14
      %p425 = scmp.lt.s32.totalorder %s14, 5
      %p426 = pnand %p424, %p425
      %p427 = pneg %p426
      // Predicated region
      $region79: #{modeler_forward.5} parent=5 // pred_check
        _
      $region80: #{modeler_forward.5} parent=5 // pred_check_branch
        %429 = sbr.rel (%p426) target = $region82
      $region81: #{modeler_forward.5} parent=5 // pred_region
        %s430 = ssub.s32 %s14, 1
        %s431 = sand.u32 %s88, 1
        %s432 = sand.u32 %s88, 1
        %s433 = smul.addr %s432, 256
        %s434 = scalar_lea.vmem [#allocation4], %s433
        // Predicated region
        $region83: #{modeler_forward.5} parent=81 // pred_check
          %p435 = pneg %p101
        $region84: #{modeler_forward.5} parent=81 // pred_check_branch
          %437 = sbr.rel (%p435) target = $region86
        $region85: #{modeler_forward.5} parent=81 // pred_region
          _
        $region86: #{modeler_forward.5} parent=81 // pred_fallthru
          _
        %p438 = pneg %p47
        %p439 = pneg %p44
        %s440 = smul.u32 32, %s24
        %p441 = scmp.lt.s32.totalorder %s440, 63
        %s442 = scalar_select %p441, %s440, 63
        %s443 = smul.addr %s442, 4
        %s444 = scalar_lea.vmem %s1, %s443
        %p445 = pneg %p73
        %p446 = pneg %p70
        %s447 = sand.u32 %s88, 1
        %s448 = sand.u32 %s88, 1
        %s449 = smul.addr %s448, 256
        %s450 = scalar_lea.vmem [#allocation4], %s449
        %p451 = pneg %p101
        %p452 = pneg %p98
        %p453 = pneg %p122
        %p454 = pneg %p119
        %p455 = pneg %p143
        %p456 = pneg %p140
        %p457 = pneg %p164
        %p458 = pneg %p161
        %p459 = pneg %p185
        %p460 = pneg %p182
        %p461 = pneg %p211
        %p462 = pneg %p208
        %s463 = smul.u32 32, %s23
        %p464 = scmp.lt.s32.totalorder %s463, 63
        %s465 = scalar_select %p464, %s463, 63
        %s466 = smul.addr %s465, 8
        %s467 = scalar_lea.vmem %s7, %s466
        %s468 = smul.u32 32, %s24
        %p469 = scmp.lt.s32.totalorder %s468, 63
        %s470 = scalar_select %p469, %s468, 63
        %s471 = smul.addr %s470, 4
        %s472 = scalar_lea.vmem %s1, %s471
        %s473 = smul.u32 32, %s24
        %s474 = smul.u32 32, %s23
        %s475 = smul.u32 2, %s24
        %s476 = smul.u32 32, %s23
        %p477 = scmp.lt.s32.totalorder %s476, 63
        %s478 = scalar_select %p477, %s476, 63
        %s479 = smul.addr %s478, 8
        %s480 = scalar_lea.vmem %s7, %s479
        %s481 = smul.u32 32, %s23
        %s483 = sld [smem:[#allocation3]]
        %p484 = scmp.eq.s32.totalorder %s24, 0
        // Predicated region
        $region87: #{modeler_forward.5} parent=81 // pred_check
          %p485 = pneg %p484
        $region88: #{modeler_forward.5} parent=81 // pred_check_branch
          %487 = sbr.rel (%p485) target = $region90
        $region89: #{modeler_forward.5} parent=81 // pred_region
          %vm488 = vcmask 523264
          %489 = vst.msk [vmem:[#allocation2] sm:$0xff] %vm488, 0.0
          %490 = vst.msk [vmem:[#allocation2 + $0x8] sm:$0xff] %vm488, 0.0
          %491 = vst.msk [vmem:[#allocation2 + $0x10] sm:$0xff] %vm488, 0.0
          %492 = vst.msk [vmem:[#allocation2 + $0x18] sm:$0xff] %vm488, 0.0
          %493 = vst.msk [vmem:[#allocation2 + $0x20] sm:$0xff] %vm488, 0.0
          %494 = vst.msk [vmem:[#allocation2 + $0x28] sm:$0xff] %vm488, 0.0
          %495 = vst.msk [vmem:[#allocation2 + $0x30] sm:$0xff] %vm488, 0.0
          %496 = vst.msk [vmem:[#allocation2 + $0x38] sm:$0xff] %vm488, 0.0
          %497 = vst.msk [vmem:[#allocation2 + $0x40] sm:$0xff] %vm488, 0.0
          %498 = vst.msk [vmem:[#allocation2 + $0x48] sm:$0xff] %vm488, 0.0
          %499 = vst.msk [vmem:[#allocation2 + $0x50] sm:$0xff] %vm488, 0.0
          %500 = vst.msk [vmem:[#allocation2 + $0x58] sm:$0xff] %vm488, 0.0
          %501 = vst.msk [vmem:[#allocation2 + $0x60] sm:$0xff] %vm488, 0.0
          %502 = vst.msk [vmem:[#allocation2 + $0x68] sm:$0xff] %vm488, 0.0
          %503 = vst.msk [vmem:[#allocation2 + $0x70] sm:$0xff] %vm488, 0.0
          %504 = vst.msk [vmem:[#allocation2 + $0x78] sm:$0xff] %vm488, 0.0
          %505 = vst.msk [vmem:[#allocation2 + $0x80] sm:$0xff] %vm488, 0.0
          %506 = vst.msk [vmem:[#allocation2 + $0x88] sm:$0xff] %vm488, 0.0
          %507 = vst.msk [vmem:[#allocation2 + $0x90] sm:$0xff] %vm488, 0.0
          %508 = vst.msk [vmem:[#allocation2 + $0x98] sm:$0xff] %vm488, 0.0
          %509 = vst.msk [vmem:[#allocation2 + $0xa0] sm:$0xff] %vm488, 0.0
          %510 = vst.msk [vmem:[#allocation2 + $0xa8] sm:$0xff] %vm488, 0.0
          %511 = vst.msk [vmem:[#allocation2 + $0xb0] sm:$0xff] %vm488, 0.0
          %512 = vst.msk [vmem:[#allocation2 + $0xb8] sm:$0xff] %vm488, 0.0
          %513 = vst.msk [vmem:[#allocation2 + $0xc0] sm:$0xff] %vm488, 0.0
          %514 = vst.msk [vmem:[#allocation2 + $0xc8] sm:$0xff] %vm488, 0.0
          %515 = vst.msk [vmem:[#allocation2 + $0xd0] sm:$0xff] %vm488, 0.0
          %516 = vst.msk [vmem:[#allocation2 + $0xd8] sm:$0xff] %vm488, 0.0
          %517 = vst.msk [vmem:[#allocation2 + $0xe0] sm:$0xff] %vm488, 0.0
          %518 = vst.msk [vmem:[#allocation2 + $0xe8] sm:$0xff] %vm488, 0.0
          %519 = vst.msk [vmem:[#allocation2 + $0xf0] sm:$0xff] %vm488, 0.0
          %520 = vst.msk [vmem:[#allocation2 + $0xf8] sm:$0xff] %vm488, 0.0
        $region90: #{modeler_forward.5} parent=81 // pred_fallthru
          _
        %v521 = vld [vmem:[%s472] sm:$0xf]
        %v522 = vld [vmem:[%s472 + $0x4] sm:$0xf]
        %v523 = vld [vmem:[%s472 + $0x8] sm:$0xf]
        %v524 = vld [vmem:[%s472 + $0xc] sm:$0xf]
        %v525 = vld [vmem:[%s472 + $0x10] sm:$0xf]
        %v526 = vld [vmem:[%s472 + $0x14] sm:$0xf]
        %v527 = vld [vmem:[%s472 + $0x18] sm:$0xf]
        %v528 = vld [vmem:[%s472 + $0x1c] sm:$0xf]
        %v529 = vld [vmem:[%s472 + $0x20] sm:$0xf]
        %v530 = vld [vmem:[%s472 + $0x24] sm:$0xf]
        %v531 = vld [vmem:[%s472 + $0x28] sm:$0xf]
        %v532 = vld [vmem:[%s472 + $0x2c] sm:$0xf]
        %v533 = vld [vmem:[%s472 + $0x30] sm:$0xf]
        %v534 = vld [vmem:[%s472 + $0x34] sm:$0xf]
        %v535 = vld [vmem:[%s472 + $0x38] sm:$0xf]
        %v536 = vld [vmem:[%s472 + $0x3c] sm:$0xf]
        %v537 = vld [vmem:[%s472 + $0x40] sm:$0xf]
        %v538 = vld [vmem:[%s472 + $0x44] sm:$0xf]
        %v539 = vld [vmem:[%s472 + $0x48] sm:$0xf]
        %v540 = vld [vmem:[%s472 + $0x4c] sm:$0xf]
        %v541 = vld [vmem:[%s472 + $0x50] sm:$0xf]
        %v542 = vld [vmem:[%s472 + $0x54] sm:$0xf]
        %v543 = vld [vmem:[%s472 + $0x58] sm:$0xf]
        %v544 = vld [vmem:[%s472 + $0x5c] sm:$0xf]
        %v545 = vld [vmem:[%s472 + $0x60] sm:$0xf]
        %v546 = vld [vmem:[%s472 + $0x64] sm:$0xf]
        %v547 = vld [vmem:[%s472 + $0x68] sm:$0xf]
        %v548 = vld [vmem:[%s472 + $0x6c] sm:$0xf]
        %v549 = vld [vmem:[%s472 + $0x70] sm:$0xf]
        %v550 = vld [vmem:[%s472 + $0x74] sm:$0xf]
        %v551 = vld [vmem:[%s472 + $0x78] sm:$0xf]
        %v552 = vld [vmem:[%s472 + $0x7c] sm:$0xf]
        %v553 = vld [vmem:[%s3] sm:$0xf]
        %v554 = vld [vmem:[%s3 + $0x4] sm:$0xf]
        %v555 = vld [vmem:[%s3 + $0x8] sm:$0xf]
        %v556 = vld [vmem:[%s3 + $0xc] sm:$0xf]
        %v557 = vld [vmem:[%s3 + $0x10] sm:$0xf]
        %v558 = vld [vmem:[%s3 + $0x14] sm:$0xf]
        %v559 = vld [vmem:[%s3 + $0x18] sm:$0xf]
        %v560 = vld [vmem:[%s3 + $0x1c] sm:$0xf]
        %v561 = vld [vmem:[%s3 + $0x20] sm:$0xf]
        %v562 = vld [vmem:[%s3 + $0x24] sm:$0xf]
        %v563 = vld [vmem:[%s3 + $0x28] sm:$0xf]
        %v564 = vld [vmem:[%s3 + $0x2c] sm:$0xf]
        %v565 = vld [vmem:[%s3 + $0x30] sm:$0xf]
        %v566 = vld [vmem:[%s3 + $0x34] sm:$0xf]
        %v567 = vld [vmem:[%s3 + $0x38] sm:$0xf]
        %v568 = vld [vmem:[%s3 + $0x3c] sm:$0xf]
        %v601 = vunpack.c.l.b16 %v521
        %v602 = vunpack.c.l.b16 %v522
        %v603 = vunpack.c.l.b16 %v523
        %v604 = vunpack.c.l.b16 %v524
        %v605 = vunpack.c.l.b16 %v525
        %v606 = vunpack.c.l.b16 %v526
        %v607 = vunpack.c.l.b16 %v527
        %v608 = vunpack.c.l.b16 %v528
        %v609 = vunpack.c.l.b16 %v529
        %v610 = vunpack.c.l.b16 %v530
        %v611 = vunpack.c.l.b16 %v531
        %v612 = vunpack.c.l.b16 %v532
        %v613 = vunpack.c.l.b16 %v533
        %v614 = vunpack.c.l.b16 %v534
        %v615 = vunpack.c.l.b16 %v535
        %v616 = vunpack.c.l.b16 %v536
        %v617 = vunpack.c.l.b16 %v537
        %v618 = vunpack.c.l.b16 %v538
        %v619 = vunpack.c.l.b16 %v539
        %v620 = vunpack.c.l.b16 %v540
        %v621 = vunpack.c.l.b16 %v541
        %v622 = vunpack.c.l.b16 %v542
        %v623 = vunpack.c.l.b16 %v543
        %v624 = vunpack.c.l.b16 %v544
        %v625 = vunpack.c.l.b16 %v545
        %v626 = vunpack.c.l.b16 %v546
        %v627 = vunpack.c.l.b16 %v547
        %v628 = vunpack.c.l.b16 %v548
        %v629 = vunpack.c.l.b16 %v549
        %v630 = vunpack.c.l.b16 %v550
        %v631 = vunpack.c.l.b16 %v551
        %v632 = vunpack.c.l.b16 %v552
        %v633 = vpack.c.b16 %v602, %v601
        %v634 = vpack.c.b16 %v604, %v603
        %v635 = vpack.c.b16 %v606, %v605
        %v636 = vpack.c.b16 %v608, %v607
        %v637 = vpack.c.b16 %v610, %v609
        %v638 = vpack.c.b16 %v612, %v611
        %v639 = vpack.c.b16 %v614, %v613
        %v640 = vpack.c.b16 %v616, %v615
        %v641 = vpack.c.b16 %v618, %v617
        %v642 = vpack.c.b16 %v620, %v619
        %v643 = vpack.c.b16 %v622, %v621
        %v644 = vpack.c.b16 %v624, %v623
        %v645 = vpack.c.b16 %v626, %v625
        %v646 = vpack.c.b16 %v628, %v627
        %v647 = vpack.c.b16 %v630, %v629
        %v648 = vpack.c.b16 %v632, %v631
        %v681 = vunpack.c.l.b16 %v553
        %v682 = vunpack.c.l.b16 %v554
        %v683 = vunpack.c.l.b16 %v555
        %v684 = vunpack.c.l.b16 %v556
        %v685 = vunpack.c.l.b16 %v557
        %v686 = vunpack.c.l.b16 %v558
        %v687 = vunpack.c.l.b16 %v559
        %v688 = vunpack.c.l.b16 %v560
        %v689 = vunpack.c.l.b16 %v561
        %v690 = vunpack.c.l.b16 %v562
        %v691 = vunpack.c.l.b16 %v563
        %v692 = vunpack.c.l.b16 %v564
        %v693 = vunpack.c.l.b16 %v565
        %v694 = vunpack.c.l.b16 %v566
        %v695 = vunpack.c.l.b16 %v567
        %v696 = vunpack.c.l.b16 %v568
        %v697 = vpack.c.b16 %v682, %v681
        %v698 = vpack.c.b16 %v684, %v683
        %v699 = vpack.c.b16 %v686, %v685
        %v700 = vpack.c.b16 %v688, %v687
        %v701 = vpack.c.b16 %v690, %v689
        %v702 = vpack.c.b16 %v692, %v691
        %v703 = vpack.c.b16 %v694, %v693
        %v704 = vpack.c.b16 %v696, %v695
        %713 = vmatpush.bf16.msra.mxu0 %v704
        %714 = vmatpush.bf16.msra.mxu0 %v703
        %715 = vmatpush.bf16.msra.mxu0 %v702
        %716 = vmatpush.bf16.msra.mxu0 %v701
        %717 = vmatpush.bf16.msra.mxu0 %v700
        %718 = vmatpush.bf16.msra.mxu0 %v699
        %719 = vmatpush.bf16.msra.mxu0 %v698
        %720 = vmatpush.bf16.msra.mxu0 %v697
        %721 = vmatmul.bf16.gmra.mxu0 %v633
        %v722 = vpop.f32.mrf.mxu0
        %v723 = vadd.f32 0.0, %v722
        %v724 = vpop.f32.mrf.mxu0
        %v725 = vadd.f32 0.0, %v724
        %726 = vmatmul.bf16.gmra.mxu0 %v634
        %v727 = vpop.f32.mrf.mxu0
        %v728 = vadd.f32 0.0, %v727
        %v729 = vpop.f32.mrf.mxu0
        %v730 = vadd.f32 0.0, %v729
        %731 = vmatmul.bf16.gmra.mxu0 %v635
        %v732 = vpop.f32.mrf.mxu0
        %v733 = vadd.f32 0.0, %v732
        %v734 = vpop.f32.mrf.mxu0
        %v735 = vadd.f32 0.0, %v734
        %736 = vmatmul.bf16.gmra.mxu0 %v636
        %v737 = vpop.f32.mrf.mxu0
        %v738 = vadd.f32 0.0, %v737
        %v739 = vpop.f32.mrf.mxu0
        %v740 = vadd.f32 0.0, %v739
        %741 = vmatmul.bf16.gmra.mxu0 %v637
        %v742 = vpop.f32.mrf.mxu0
        %v743 = vadd.f32 0.0, %v742
        %v744 = vpop.f32.mrf.mxu0
        %v745 = vadd.f32 0.0, %v744
        %746 = vmatmul.bf16.gmra.mxu0 %v638
        %v747 = vpop.f32.mrf.mxu0
        %v748 = vadd.f32 0.0, %v747
        %v749 = vpop.f32.mrf.mxu0
        %v750 = vadd.f32 0.0, %v749
        %751 = vmatmul.bf16.gmra.mxu0 %v639
        %v752 = vpop.f32.mrf.mxu0
        %v753 = vadd.f32 0.0, %v752
        %v754 = vpop.f32.mrf.mxu0
        %v755 = vadd.f32 0.0, %v754
        %756 = vmatmul.bf16.gmra.mxu0 %v640
        %v757 = vpop.f32.mrf.mxu0
        %v758 = vadd.f32 0.0, %v757
        %v759 = vpop.f32.mrf.mxu0
        %v760 = vadd.f32 0.0, %v759
        %761 = vmatmul.bf16.gmra.mxu0 %v641
        %v762 = vpop.f32.mrf.mxu0
        %v763 = vadd.f32 0.0, %v762
        %v764 = vpop.f32.mrf.mxu0
        %v765 = vadd.f32 0.0, %v764
        %766 = vmatmul.bf16.gmra.mxu0 %v642
        %v767 = vpop.f32.mrf.mxu0
        %v768 = vadd.f32 0.0, %v767
        %v769 = vpop.f32.mrf.mxu0
        %v770 = vadd.f32 0.0, %v769
        %771 = vmatmul.bf16.gmra.mxu0 %v643
        %v772 = vpop.f32.mrf.mxu0
        %v773 = vadd.f32 0.0, %v772
        %v774 = vpop.f32.mrf.mxu0
        %v775 = vadd.f32 0.0, %v774
        %776 = vmatmul.bf16.gmra.mxu0 %v644
        %v777 = vpop.f32.mrf.mxu0
        %v778 = vadd.f32 0.0, %v777
        %v779 = vpop.f32.mrf.mxu0
        %v780 = vadd.f32 0.0, %v779
        %781 = vmatmul.bf16.gmra.mxu0 %v645
        %v782 = vpop.f32.mrf.mxu0
        %v783 = vadd.f32 0.0, %v782
        %v784 = vpop.f32.mrf.mxu0
        %v785 = vadd.f32 0.0, %v784
        %786 = vmatmul.bf16.gmra.mxu0 %v646
        %v787 = vpop.f32.mrf.mxu0
        %v788 = vadd.f32 0.0, %v787
        %v789 = vpop.f32.mrf.mxu0
        %v790 = vadd.f32 0.0, %v789
        %791 = vmatmul.bf16.gmra.mxu0 %v647
        %v792 = vpop.f32.mrf.mxu0
        %v793 = vadd.f32 0.0, %v792
        %v794 = vpop.f32.mrf.mxu0
        %v795 = vadd.f32 0.0, %v794
        %796 = vmatmul.bf16.gmra.mxu0 %v648
        %v797 = vpop.f32.mrf.mxu0
        %v798 = vadd.f32 0.0, %v797
        %v799 = vpop.f32.mrf.mxu0
        %v800 = vadd.f32 0.0, %v799
        %801 = vdwg.mxu0
        %v802 = vld [vmem:[#allocation2] sm:$0xff]
        %v803 = vld [vmem:[#allocation2 + $0x8] sm:$0xff]
        %v804 = vld [vmem:[#allocation2 + $0x10] sm:$0xff]
        %v805 = vld [vmem:[#allocation2 + $0x18] sm:$0xff]
        %v806 = vld [vmem:[#allocation2 + $0x20] sm:$0xff]
        %v807 = vld [vmem:[#allocation2 + $0x28] sm:$0xff]
        %v808 = vld [vmem:[#allocation2 + $0x30] sm:$0xff]
        %v809 = vld [vmem:[#allocation2 + $0x38] sm:$0xff]
        %v810 = vld [vmem:[#allocation2 + $0x40] sm:$0xff]
        %v811 = vld [vmem:[#allocation2 + $0x48] sm:$0xff]
        %v812 = vld [vmem:[#allocation2 + $0x50] sm:$0xff]
        %v813 = vld [vmem:[#allocation2 + $0x58] sm:$0xff]
        %v814 = vld [vmem:[#allocation2 + $0x60] sm:$0xff]
        %v815 = vld [vmem:[#allocation2 + $0x68] sm:$0xff]
        %v816 = vld [vmem:[#allocation2 + $0x70] sm:$0xff]
        %v817 = vld [vmem:[#allocation2 + $0x78] sm:$0xff]
        %v818 = vld [vmem:[#allocation2 + $0x80] sm:$0xff]
        %v819 = vld [vmem:[#allocation2 + $0x88] sm:$0xff]
        %v820 = vld [vmem:[#allocation2 + $0x90] sm:$0xff]
        %v821 = vld [vmem:[#allocation2 + $0x98] sm:$0xff]
        %v822 = vld [vmem:[#allocation2 + $0xa0] sm:$0xff]
        %v823 = vld [vmem:[#allocation2 + $0xa8] sm:$0xff]
        %v824 = vld [vmem:[#allocation2 + $0xb0] sm:$0xff]
        %v825 = vld [vmem:[#allocation2 + $0xb8] sm:$0xff]
        %v826 = vld [vmem:[#allocation2 + $0xc0] sm:$0xff]
        %v827 = vld [vmem:[#allocation2 + $0xc8] sm:$0xff]
        %v828 = vld [vmem:[#allocation2 + $0xd0] sm:$0xff]
        %v829 = vld [vmem:[#allocation2 + $0xd8] sm:$0xff]
        %v830 = vld [vmem:[#allocation2 + $0xe0] sm:$0xff]
        %v831 = vld [vmem:[#allocation2 + $0xe8] sm:$0xff]
        %v832 = vld [vmem:[#allocation2 + $0xf0] sm:$0xff]
        %v833 = vld [vmem:[#allocation2 + $0xf8] sm:$0xff]
        %v834 = vld [vmem:[%s434] sm:$0xff]
        %v835 = vld [vmem:[%s434 + $0x8] sm:$0xff]
        %v836 = vld [vmem:[%s434 + $0x10] sm:$0xff]
        %v837 = vld [vmem:[%s434 + $0x18] sm:$0xff]
        %v838 = vld [vmem:[%s434 + $0x20] sm:$0xff]
        %v839 = vld [vmem:[%s434 + $0x28] sm:$0xff]
        %v840 = vld [vmem:[%s434 + $0x30] sm:$0xff]
        %v841 = vld [vmem:[%s434 + $0x38] sm:$0xff]
        %v842 = vld [vmem:[%s434 + $0x40] sm:$0xff]
        %v843 = vld [vmem:[%s434 + $0x48] sm:$0xff]
        %v844 = vld [vmem:[%s434 + $0x50] sm:$0xff]
        %v845 = vld [vmem:[%s434 + $0x58] sm:$0xff]
        %v846 = vld [vmem:[%s434 + $0x60] sm:$0xff]
        %v847 = vld [vmem:[%s434 + $0x68] sm:$0xff]
        %v848 = vld [vmem:[%s434 + $0x70] sm:$0xff]
        %v849 = vld [vmem:[%s434 + $0x78] sm:$0xff]
        %v850 = vld [vmem:[%s434 + $0x80] sm:$0xff]
        %v851 = vld [vmem:[%s434 + $0x88] sm:$0xff]
        %v852 = vld [vmem:[%s434 + $0x90] sm:$0xff]
        %v853 = vld [vmem:[%s434 + $0x98] sm:$0xff]
        %v854 = vld [vmem:[%s434 + $0xa0] sm:$0xff]
        %v855 = vld [vmem:[%s434 + $0xa8] sm:$0xff]
        %v856 = vld [vmem:[%s434 + $0xb0] sm:$0xff]
        %v857 = vld [vmem:[%s434 + $0xb8] sm:$0xff]
        %v858 = vld [vmem:[%s434 + $0xc0] sm:$0xff]
        %v859 = vld [vmem:[%s434 + $0xc8] sm:$0xff]
        %v860 = vld [vmem:[%s434 + $0xd0] sm:$0xff]
        %v861 = vld [vmem:[%s434 + $0xd8] sm:$0xff]
        %v862 = vld [vmem:[%s434 + $0xe0] sm:$0xff]
        %v863 = vld [vmem:[%s434 + $0xe8] sm:$0xff]
        %v864 = vld [vmem:[%s434 + $0xf0] sm:$0xff]
        %v865 = vld [vmem:[%s434 + $0xf8] sm:$0xff]
        %v866 = vpack.c.bf16 %v725, %v723
        %v867 = vpack.c.bf16 %v730, %v728
        %v868 = vpack.c.bf16 %v735, %v733
        %v869 = vpack.c.bf16 %v740, %v738
        %v870 = vpack.c.bf16 %v745, %v743
        %v871 = vpack.c.bf16 %v750, %v748
        %v872 = vpack.c.bf16 %v755, %v753
        %v873 = vpack.c.bf16 %v760, %v758
        %v874 = vpack.c.bf16 %v765, %v763
        %v875 = vpack.c.bf16 %v770, %v768
        %v876 = vpack.c.bf16 %v775, %v773
        %v877 = vpack.c.bf16 %v780, %v778
        %v878 = vpack.c.bf16 %v785, %v783
        %v879 = vpack.c.bf16 %v790, %v788
        %v880 = vpack.c.bf16 %v795, %v793
        %v881 = vpack.c.bf16 %v800, %v798
        %v914 = vunpack.c.l.b16 %v834
        %v915 = vunpack.c.h.b16 %v834
        %v916 = vunpack.c.l.b16 %v835
        %v917 = vunpack.c.h.b16 %v835
        %v918 = vunpack.c.l.b16 %v836
        %v919 = vunpack.c.h.b16 %v836
        %v920 = vunpack.c.l.b16 %v837
        %v921 = vunpack.c.h.b16 %v837
        %v922 = vunpack.c.l.b16 %v838
        %v923 = vunpack.c.h.b16 %v838
        %v924 = vunpack.c.l.b16 %v839
        %v925 = vunpack.c.h.b16 %v839
        %v926 = vunpack.c.l.b16 %v840
        %v927 = vunpack.c.h.b16 %v840
        %v928 = vunpack.c.l.b16 %v841
        %v929 = vunpack.c.h.b16 %v841
        %v930 = vunpack.c.l.b16 %v842
        %v931 = vunpack.c.h.b16 %v842
        %v932 = vunpack.c.l.b16 %v843
        %v933 = vunpack.c.h.b16 %v843
        %v934 = vunpack.c.l.b16 %v844
        %v935 = vunpack.c.h.b16 %v844
        %v936 = vunpack.c.l.b16 %v845
        %v937 = vunpack.c.h.b16 %v845
        %v938 = vunpack.c.l.b16 %v846
        %v939 = vunpack.c.h.b16 %v846
        %v940 = vunpack.c.l.b16 %v847
        %v941 = vunpack.c.h.b16 %v847
        %v942 = vunpack.c.l.b16 %v848
        %v943 = vunpack.c.h.b16 %v848
        %v944 = vunpack.c.l.b16 %v849
        %v945 = vunpack.c.h.b16 %v849
        %v946 = vunpack.c.l.b16 %v850
        %v947 = vunpack.c.h.b16 %v850
        %v948 = vunpack.c.l.b16 %v851
        %v949 = vunpack.c.h.b16 %v851
        %v950 = vunpack.c.l.b16 %v852
        %v951 = vunpack.c.h.b16 %v852
        %v952 = vunpack.c.l.b16 %v853
        %v953 = vunpack.c.h.b16 %v853
        %v954 = vunpack.c.l.b16 %v854
        %v955 = vunpack.c.h.b16 %v854
        %v956 = vunpack.c.l.b16 %v855
        %v957 = vunpack.c.h.b16 %v855
        %v958 = vunpack.c.l.b16 %v856
        %v959 = vunpack.c.h.b16 %v856
        %v960 = vunpack.c.l.b16 %v857
        %v961 = vunpack.c.h.b16 %v857
        %v962 = vunpack.c.l.b16 %v858
        %v963 = vunpack.c.h.b16 %v858
        %v964 = vunpack.c.l.b16 %v859
        %v965 = vunpack.c.h.b16 %v859
        %v966 = vunpack.c.l.b16 %v860
        %v967 = vunpack.c.h.b16 %v860
        %v968 = vunpack.c.l.b16 %v861
        %v969 = vunpack.c.h.b16 %v861
        %v970 = vunpack.c.l.b16 %v862
        %v971 = vunpack.c.h.b16 %v862
        %v972 = vunpack.c.l.b16 %v863
        %v973 = vunpack.c.h.b16 %v863
        %v974 = vunpack.c.l.b16 %v864
        %v975 = vunpack.c.h.b16 %v864
        %v976 = vunpack.c.l.b16 %v865
        %v977 = vunpack.c.h.b16 %v865
        %v978 = vpack.c.b16 %v916, %v914
        %v979 = vpack.c.b16 %v917, %v915
        %v980 = vpack.c.b16 %v920, %v918
        %v981 = vpack.c.b16 %v921, %v919
        %v982 = vpack.c.b16 %v924, %v922
        %v983 = vpack.c.b16 %v925, %v923
        %v984 = vpack.c.b16 %v928, %v926
        %v985 = vpack.c.b16 %v929, %v927
        %v986 = vpack.c.b16 %v932, %v930
        %v987 = vpack.c.b16 %v933, %v931
        %v988 = vpack.c.b16 %v936, %v934
        %v989 = vpack.c.b16 %v937, %v935
        %v990 = vpack.c.b16 %v940, %v938
        %v991 = vpack.c.b16 %v941, %v939
        %v992 = vpack.c.b16 %v944, %v942
        %v993 = vpack.c.b16 %v945, %v943
        %v994 = vpack.c.b16 %v948, %v946
        %v995 = vpack.c.b16 %v949, %v947
        %v996 = vpack.c.b16 %v952, %v950
        %v997 = vpack.c.b16 %v953, %v951
        %v998 = vpack.c.b16 %v956, %v954
        %v999 = vpack.c.b16 %v957, %v955
        %v1000 = vpack.c.b16 %v960, %v958
        %v1001 = vpack.c.b16 %v961, %v959
        %v1002 = vpack.c.b16 %v964, %v962
        %v1003 = vpack.c.b16 %v965, %v963
        %v1004 = vpack.c.b16 %v968, %v966
        %v1005 = vpack.c.b16 %v969, %v967
        %v1006 = vpack.c.b16 %v972, %v970
        %v1007 = vpack.c.b16 %v973, %v971
        %v1008 = vpack.c.b16 %v976, %v974
        %v1009 = vpack.c.b16 %v977, %v975
        %1042 = vmatpush.bf16.msra.mxu0 %v873
        %1043 = vmatpush.bf16.msra.mxu0 %v872
        %1044 = vmatpush.bf16.msra.mxu0 %v871
        %1045 = vmatpush.bf16.msra.mxu0 %v870
        %1046 = vmatpush.bf16.msra.mxu0 %v869
        %1047 = vmatpush.bf16.msra.mxu0 %v868
        %1048 = vmatpush.bf16.msra.mxu0 %v867
        %1049 = vmatpush.bf16.msra.mxu0 %v866
        %1050 = vmatmul.bf16.gmra.mxu0 %v978
        %v1051 = vpop.f32.mrf.mxu0
        %v1052 = vadd.f32 0.0, %v1051
        %v1053 = vpop.f32.mrf.mxu0
        %v1054 = vadd.f32 0.0, %v1053
        %1055 = vmatmul.bf16.gmra.mxu0 %v980
        %v1056 = vpop.f32.mrf.mxu0
        %v1057 = vadd.f32 0.0, %v1056
        %v1058 = vpop.f32.mrf.mxu0
        %v1059 = vadd.f32 0.0, %v1058
        %1060 = vmatmul.bf16.gmra.mxu0 %v982
        %v1061 = vpop.f32.mrf.mxu0
        %v1062 = vadd.f32 0.0, %v1061
        %v1063 = vpop.f32.mrf.mxu0
        %v1064 = vadd.f32 0.0, %v1063
        %1065 = vmatmul.bf16.gmra.mxu0 %v984
        %v1066 = vpop.f32.mrf.mxu0
        %v1067 = vadd.f32 0.0, %v1066
        %v1068 = vpop.f32.mrf.mxu0
        %v1069 = vadd.f32 0.0, %v1068
        %1070 = vmatmul.bf16.gmra.mxu0 %v986
        %v1071 = vpop.f32.mrf.mxu0
        %v1072 = vadd.f32 0.0, %v1071
        %v1073 = vpop.f32.mrf.mxu0
        %v1074 = vadd.f32 0.0, %v1073
        %1075 = vmatmul.bf16.gmra.mxu0 %v988
        %v1076 = vpop.f32.mrf.mxu0
        %v1077 = vadd.f32 0.0, %v1076
        %v1078 = vpop.f32.mrf.mxu0
        %v1079 = vadd.f32 0.0, %v1078
        %1080 = vmatmul.bf16.gmra.mxu0 %v990
        %v1081 = vpop.f32.mrf.mxu0
        %v1082 = vadd.f32 0.0, %v1081
        %v1083 = vpop.f32.mrf.mxu0
        %v1084 = vadd.f32 0.0, %v1083
        %1085 = vmatmul.bf16.gmra.mxu0 %v992
        %v1086 = vpop.f32.mrf.mxu0
        %v1087 = vadd.f32 0.0, %v1086
        %v1088 = vpop.f32.mrf.mxu0
        %v1089 = vadd.f32 0.0, %v1088
        %1090 = vmatmul.bf16.gmra.mxu0 %v994
        %v1091 = vpop.f32.mrf.mxu0
        %v1092 = vadd.f32 0.0, %v1091
        %v1093 = vpop.f32.mrf.mxu0
        %v1094 = vadd.f32 0.0, %v1093
        %1095 = vmatmul.bf16.gmra.mxu0 %v996
        %v1096 = vpop.f32.mrf.mxu0
        %v1097 = vadd.f32 0.0, %v1096
        %v1098 = vpop.f32.mrf.mxu0
        %v1099 = vadd.f32 0.0, %v1098
        %1100 = vmatmul.bf16.gmra.mxu0 %v998
        %v1101 = vpop.f32.mrf.mxu0
        %v1102 = vadd.f32 0.0, %v1101
        %v1103 = vpop.f32.mrf.mxu0
        %v1104 = vadd.f32 0.0, %v1103
        %1105 = vmatmul.bf16.gmra.mxu0 %v1000
        %v1106 = vpop.f32.mrf.mxu0
        %v1107 = vadd.f32 0.0, %v1106
        %v1108 = vpop.f32.mrf.mxu0
        %v1109 = vadd.f32 0.0, %v1108
        %1110 = vmatmul.bf16.gmra.mxu0 %v1002
        %v1111 = vpop.f32.mrf.mxu0
        %v1112 = vadd.f32 0.0, %v1111
        %v1113 = vpop.f32.mrf.mxu0
        %v1114 = vadd.f32 0.0, %v1113
        %1115 = vmatmul.bf16.gmra.mxu0 %v1004
        %v1116 = vpop.f32.mrf.mxu0
        %v1117 = vadd.f32 0.0, %v1116
        %v1118 = vpop.f32.mrf.mxu0
        %v1119 = vadd.f32 0.0, %v1118
        %1120 = vmatmul.bf16.gmra.mxu0 %v1006
        %v1121 = vpop.f32.mrf.mxu0
        %v1122 = vadd.f32 0.0, %v1121
        %v1123 = vpop.f32.mrf.mxu0
        %v1124 = vadd.f32 0.0, %v1123
        %1125 = vmatmul.bf16.gmra.mxu0 %v1008
        %v1126 = vpop.f32.mrf.mxu0
        %v1127 = vadd.f32 0.0, %v1126
        %v1128 = vpop.f32.mrf.mxu0
        %v1129 = vadd.f32 0.0, %v1128
        %1130 = vdwg.mxu0
        %1131 = vmatpush.bf16.msra.mxu0 %v881
        %1132 = vmatpush.bf16.msra.mxu0 %v880
        %1133 = vmatpush.bf16.msra.mxu0 %v879
        %1134 = vmatpush.bf16.msra.mxu0 %v878
        %1135 = vmatpush.bf16.msra.mxu0 %v877
        %1136 = vmatpush.bf16.msra.mxu0 %v876
        %1137 = vmatpush.bf16.msra.mxu0 %v875
        %1138 = vmatpush.bf16.msra.mxu0 %v874
        %1139 = vmatmul.bf16.gmra.mxu0 %v979
        %v1140 = vpop.f32.mrf.mxu0
        %v1141 = vadd.f32 %v1052, %v1140
        %v1142 = vpop.f32.mrf.mxu0
        %v1143 = vadd.f32 %v1054, %v1142
        %1144 = vmatmul.bf16.gmra.mxu0 %v981
        %v1145 = vpop.f32.mrf.mxu0
        %v1146 = vadd.f32 %v1057, %v1145
        %v1147 = vpop.f32.mrf.mxu0
        %v1148 = vadd.f32 %v1059, %v1147
        %1149 = vmatmul.bf16.gmra.mxu0 %v983
        %v1150 = vpop.f32.mrf.mxu0
        %v1151 = vadd.f32 %v1062, %v1150
        %v1152 = vpop.f32.mrf.mxu0
        %v1153 = vadd.f32 %v1064, %v1152
        %1154 = vmatmul.bf16.gmra.mxu0 %v985
        %v1155 = vpop.f32.mrf.mxu0
        %v1156 = vadd.f32 %v1067, %v1155
        %v1157 = vpop.f32.mrf.mxu0
        %v1158 = vadd.f32 %v1069, %v1157
        %1159 = vmatmul.bf16.gmra.mxu0 %v987
        %v1160 = vpop.f32.mrf.mxu0
        %v1161 = vadd.f32 %v1072, %v1160
        %v1162 = vpop.f32.mrf.mxu0
        %v1163 = vadd.f32 %v1074, %v1162
        %1164 = vmatmul.bf16.gmra.mxu0 %v989
        %v1165 = vpop.f32.mrf.mxu0
        %v1166 = vadd.f32 %v1077, %v1165
        %v1167 = vpop.f32.mrf.mxu0
        %v1168 = vadd.f32 %v1079, %v1167
        %1169 = vmatmul.bf16.gmra.mxu0 %v991
        %v1170 = vpop.f32.mrf.mxu0
        %v1171 = vadd.f32 %v1082, %v1170
        %v1172 = vpop.f32.mrf.mxu0
        %v1173 = vadd.f32 %v1084, %v1172
        %1174 = vmatmul.bf16.gmra.mxu0 %v993
        %v1175 = vpop.f32.mrf.mxu0
        %v1176 = vadd.f32 %v1087, %v1175
        %v1177 = vpop.f32.mrf.mxu0
        %v1178 = vadd.f32 %v1089, %v1177
        %1179 = vmatmul.bf16.gmra.mxu0 %v995
        %v1180 = vpop.f32.mrf.mxu0
        %v1181 = vadd.f32 %v1092, %v1180
        %v1182 = vpop.f32.mrf.mxu0
        %v1183 = vadd.f32 %v1094, %v1182
        %1184 = vmatmul.bf16.gmra.mxu0 %v997
        %v1185 = vpop.f32.mrf.mxu0
        %v1186 = vadd.f32 %v1097, %v1185
        %v1187 = vpop.f32.mrf.mxu0
        %v1188 = vadd.f32 %v1099, %v1187
        %1189 = vmatmul.bf16.gmra.mxu0 %v999
        %v1190 = vpop.f32.mrf.mxu0
        %v1191 = vadd.f32 %v1102, %v1190
        %v1192 = vpop.f32.mrf.mxu0
        %v1193 = vadd.f32 %v1104, %v1192
        %1194 = vmatmul.bf16.gmra.mxu0 %v1001
        %v1195 = vpop.f32.mrf.mxu0
        %v1196 = vadd.f32 %v1107, %v1195
        %v1197 = vpop.f32.mrf.mxu0
        %v1198 = vadd.f32 %v1109, %v1197
        %1199 = vmatmul.bf16.gmra.mxu0 %v1003
        %v1200 = vpop.f32.mrf.mxu0
        %v1201 = vadd.f32 %v1112, %v1200
        %v1202 = vpop.f32.mrf.mxu0
        %v1203 = vadd.f32 %v1114, %v1202
        %1204 = vmatmul.bf16.gmra.mxu0 %v1005
        %v1205 = vpop.f32.mrf.mxu0
        %v1206 = vadd.f32 %v1117, %v1205
        %v1207 = vpop.f32.mrf.mxu0
        %v1208 = vadd.f32 %v1119, %v1207
        %1209 = vmatmul.bf16.gmra.mxu0 %v1007
        %v1210 = vpop.f32.mrf.mxu0
        %v1211 = vadd.f32 %v1122, %v1210
        %v1212 = vpop.f32.mrf.mxu0
        %v1213 = vadd.f32 %v1124, %v1212
        %1214 = vmatmul.bf16.gmra.mxu0 %v1009
        %v1215 = vpop.f32.mrf.mxu0
        %v1216 = vadd.f32 %v1127, %v1215
        %v1217 = vpop.f32.mrf.mxu0
        %v1218 = vadd.f32 %v1129, %v1217
        %1219 = vdwg.mxu0
        %v1220 = vadd.f32 %v802, %v1141
        %v1221 = vadd.f32 %v803, %v1143
        %v1222 = vadd.f32 %v804, %v1146
        %v1223 = vadd.f32 %v805, %v1148
        %v1224 = vadd.f32 %v806, %v1151
        %v1225 = vadd.f32 %v807, %v1153
        %v1226 = vadd.f32 %v808, %v1156
        %v1227 = vadd.f32 %v809, %v1158
        %v1228 = vadd.f32 %v810, %v1161
        %v1229 = vadd.f32 %v811, %v1163
        %v1230 = vadd.f32 %v812, %v1166
        %v1231 = vadd.f32 %v813, %v1168
        %v1232 = vadd.f32 %v814, %v1171
        %v1233 = vadd.f32 %v815, %v1173
        %v1234 = vadd.f32 %v816, %v1176
        %v1235 = vadd.f32 %v817, %v1178
        %v1236 = vadd.f32 %v818, %v1181
        %v1237 = vadd.f32 %v819, %v1183
        %v1238 = vadd.f32 %v820, %v1186
        %v1239 = vadd.f32 %v821, %v1188
        %v1240 = vadd.f32 %v822, %v1191
        %v1241 = vadd.f32 %v823, %v1193
        %v1242 = vadd.f32 %v824, %v1196
        %v1243 = vadd.f32 %v825, %v1198
        %v1244 = vadd.f32 %v826, %v1201
        %v1245 = vadd.f32 %v827, %v1203
        %v1246 = vadd.f32 %v828, %v1206
        %v1247 = vadd.f32 %v829, %v1208
        %v1248 = vadd.f32 %v830, %v1211
        %v1249 = vadd.f32 %v831, %v1213
        %v1250 = vadd.f32 %v832, %v1216
        %v1251 = vadd.f32 %v833, %v1218
        %vm1252 = vcmask 523264
        %1253 = vst.msk [vmem:[#allocation2] sm:$0xff] %vm1252, %v1220
        %1254 = vst.msk [vmem:[#allocation2 + $0x8] sm:$0xff] %vm1252, %v1221
        %1255 = vst.msk [vmem:[#allocation2 + $0x10] sm:$0xff] %vm1252, %v1222
        %1256 = vst.msk [vmem:[#allocation2 + $0x18] sm:$0xff] %vm1252, %v1223
        %1257 = vst.msk [vmem:[#allocation2 + $0x20] sm:$0xff] %vm1252, %v1224
        %1258 = vst.msk [vmem:[#allocation2 + $0x28] sm:$0xff] %vm1252, %v1225
        %1259 = vst.msk [vmem:[#allocation2 + $0x30] sm:$0xff] %vm1252, %v1226
        %1260 = vst.msk [vmem:[#allocation2 + $0x38] sm:$0xff] %vm1252, %v1227
        %1261 = vst.msk [vmem:[#allocation2 + $0x40] sm:$0xff] %vm1252, %v1228
        %1262 = vst.msk [vmem:[#allocation2 + $0x48] sm:$0xff] %vm1252, %v1229
        %1263 = vst.msk [vmem:[#allocation2 + $0x50] sm:$0xff] %vm1252, %v1230
        %1264 = vst.msk [vmem:[#allocation2 + $0x58] sm:$0xff] %vm1252, %v1231
        %1265 = vst.msk [vmem:[#allocation2 + $0x60] sm:$0xff] %vm1252, %v1232
        %1266 = vst.msk [vmem:[#allocation2 + $0x68] sm:$0xff] %vm1252, %v1233
        %1267 = vst.msk [vmem:[#allocation2 + $0x70] sm:$0xff] %vm1252, %v1234
        %1268 = vst.msk [vmem:[#allocation2 + $0x78] sm:$0xff] %vm1252, %v1235
        %1269 = vst.msk [vmem:[#allocation2 + $0x80] sm:$0xff] %vm1252, %v1236
        %1270 = vst.msk [vmem:[#allocation2 + $0x88] sm:$0xff] %vm1252, %v1237
        %1271 = vst.msk [vmem:[#allocation2 + $0x90] sm:$0xff] %vm1252, %v1238
        %1272 = vst.msk [vmem:[#allocation2 + $0x98] sm:$0xff] %vm1252, %v1239
        %1273 = vst.msk [vmem:[#allocation2 + $0xa0] sm:$0xff] %vm1252, %v1240
        %1274 = vst.msk [vmem:[#allocation2 + $0xa8] sm:$0xff] %vm1252, %v1241
        %1275 = vst.msk [vmem:[#allocation2 + $0xb0] sm:$0xff] %vm1252, %v1242
        %1276 = vst.msk [vmem:[#allocation2 + $0xb8] sm:$0xff] %vm1252, %v1243
        %1277 = vst.msk [vmem:[#allocation2 + $0xc0] sm:$0xff] %vm1252, %v1244
        %1278 = vst.msk [vmem:[#allocation2 + $0xc8] sm:$0xff] %vm1252, %v1245
        %1279 = vst.msk [vmem:[#allocation2 + $0xd0] sm:$0xff] %vm1252, %v1246
        %1280 = vst.msk [vmem:[#allocation2 + $0xd8] sm:$0xff] %vm1252, %v1247
        %1281 = vst.msk [vmem:[#allocation2 + $0xe0] sm:$0xff] %vm1252, %v1248
        %1282 = vst.msk [vmem:[#allocation2 + $0xe8] sm:$0xff] %vm1252, %v1249
        %1283 = vst.msk [vmem:[#allocation2 + $0xf0] sm:$0xff] %vm1252, %v1250
        %1284 = vst.msk [vmem:[#allocation2 + $0xf8] sm:$0xff] %vm1252, %v1251
        %p1285 = scmp.eq.s32.totalorder %s24, 1
        // Predicated region
        $region91: #{modeler_forward.5} parent=81 // pred_check
          %p1286 = pneg %p1285
        $region92: #{modeler_forward.5} parent=81 // pred_check_branch
          %1288 = sbr.rel (%p1286) target = $region94
        $region93: #{modeler_forward.5} parent=81 // pred_region
          %v1289 = vld [vmem:[#allocation2] sm:$0xff]
          %v1290 = vld [vmem:[#allocation2 + $0x8] sm:$0xff]
          %v1291 = vld [vmem:[#allocation2 + $0x10] sm:$0xff]
          %v1292 = vld [vmem:[#allocation2 + $0x18] sm:$0xff]
          %v1293 = vld [vmem:[#allocation2 + $0x20] sm:$0xff]
          %v1294 = vld [vmem:[#allocation2 + $0x28] sm:$0xff]
          %v1295 = vld [vmem:[#allocation2 + $0x30] sm:$0xff]
          %v1296 = vld [vmem:[#allocation2 + $0x38] sm:$0xff]
          %v1297 = vld [vmem:[#allocation2 + $0x40] sm:$0xff]
          %v1298 = vld [vmem:[#allocation2 + $0x48] sm:$0xff]
          %v1299 = vld [vmem:[#allocation2 + $0x50] sm:$0xff]
          %v1300 = vld [vmem:[#allocation2 + $0x58] sm:$0xff]
          %v1301 = vld [vmem:[#allocation2 + $0x60] sm:$0xff]
          %v1302 = vld [vmem:[#allocation2 + $0x68] sm:$0xff]
          %v1303 = vld [vmem:[#allocation2 + $0x70] sm:$0xff]
          %v1304 = vld [vmem:[#allocation2 + $0x78] sm:$0xff]
          %v1305 = vld [vmem:[#allocation2 + $0x80] sm:$0xff]
          %v1306 = vld [vmem:[#allocation2 + $0x88] sm:$0xff]
          %v1307 = vld [vmem:[#allocation2 + $0x90] sm:$0xff]
          %v1308 = vld [vmem:[#allocation2 + $0x98] sm:$0xff]
          %v1309 = vld [vmem:[#allocation2 + $0xa0] sm:$0xff]
          %v1310 = vld [vmem:[#allocation2 + $0xa8] sm:$0xff]
          %v1311 = vld [vmem:[#allocation2 + $0xb0] sm:$0xff]
          %v1312 = vld [vmem:[#allocation2 + $0xb8] sm:$0xff]
          %v1313 = vld [vmem:[#allocation2 + $0xc0] sm:$0xff]
          %v1314 = vld [vmem:[#allocation2 + $0xc8] sm:$0xff]
          %v1315 = vld [vmem:[#allocation2 + $0xd0] sm:$0xff]
          %v1316 = vld [vmem:[#allocation2 + $0xd8] sm:$0xff]
          %v1317 = vld [vmem:[#allocation2 + $0xe0] sm:$0xff]
          %v1318 = vld [vmem:[#allocation2 + $0xe8] sm:$0xff]
          %v1319 = vld [vmem:[#allocation2 + $0xf0] sm:$0xff]
          %v1320 = vld [vmem:[#allocation2 + $0xf8] sm:$0xff]
          %v1321 = vld [vmem:[%s4] sm:$0x1]
          %v1323 = vperm.slane %v1321, 0
          %v1325 = vadd.f32 %v1289, %v1323
          %v1326 = vadd.f32 %v1290, %v1323
          %v1327 = vadd.f32 %v1291, %v1323
          %v1328 = vadd.f32 %v1292, %v1323
          %v1329 = vadd.f32 %v1293, %v1323
          %v1330 = vadd.f32 %v1294, %v1323
          %v1331 = vadd.f32 %v1295, %v1323
          %v1332 = vadd.f32 %v1296, %v1323
          %v1333 = vadd.f32 %v1297, %v1323
          %v1334 = vadd.f32 %v1298, %v1323
          %v1335 = vadd.f32 %v1299, %v1323
          %v1336 = vadd.f32 %v1300, %v1323
          %v1337 = vadd.f32 %v1301, %v1323
          %v1338 = vadd.f32 %v1302, %v1323
          %v1339 = vadd.f32 %v1303, %v1323
          %v1340 = vadd.f32 %v1304, %v1323
          %v1341 = vadd.f32 %v1305, %v1323
          %v1342 = vadd.f32 %v1306, %v1323
          %v1343 = vadd.f32 %v1307, %v1323
          %v1344 = vadd.f32 %v1308, %v1323
          %v1345 = vadd.f32 %v1309, %v1323
          %v1346 = vadd.f32 %v1310, %v1323
          %v1347 = vadd.f32 %v1311, %v1323
          %v1348 = vadd.f32 %v1312, %v1323
          %v1349 = vadd.f32 %v1313, %v1323
          %v1350 = vadd.f32 %v1314, %v1323
          %v1351 = vadd.f32 %v1315, %v1323
          %v1352 = vadd.f32 %v1316, %v1323
          %v1353 = vadd.f32 %v1317, %v1323
          %v1354 = vadd.f32 %v1318, %v1323
          %v1355 = vadd.f32 %v1319, %v1323
          %v1356 = vadd.f32 %v1320, %v1323
          %v1357 = vmax.f32 %v1325, 0.0
          %v1358 = vmax.f32 %v1326, 0.0
          %v1359 = vmax.f32 %v1327, 0.0
          %v1360 = vmax.f32 %v1328, 0.0
          %v1361 = vmax.f32 %v1329, 0.0
          %v1362 = vmax.f32 %v1330, 0.0
          %v1363 = vmax.f32 %v1331, 0.0
          %v1364 = vmax.f32 %v1332, 0.0
          %v1365 = vmax.f32 %v1333, 0.0
          %v1366 = vmax.f32 %v1334, 0.0
          %v1367 = vmax.f32 %v1335, 0.0
          %v1368 = vmax.f32 %v1336, 0.0
          %v1369 = vmax.f32 %v1337, 0.0
          %v1370 = vmax.f32 %v1338, 0.0
          %v1371 = vmax.f32 %v1339, 0.0
          %v1372 = vmax.f32 %v1340, 0.0
          %v1373 = vmax.f32 %v1341, 0.0
          %v1374 = vmax.f32 %v1342, 0.0
          %v1375 = vmax.f32 %v1343, 0.0
          %v1376 = vmax.f32 %v1344, 0.0
          %v1377 = vmax.f32 %v1345, 0.0
          %v1378 = vmax.f32 %v1346, 0.0
          %v1379 = vmax.f32 %v1347, 0.0
          %v1380 = vmax.f32 %v1348, 0.0
          %v1381 = vmax.f32 %v1349, 0.0
          %v1382 = vmax.f32 %v1350, 0.0
          %v1383 = vmax.f32 %v1351, 0.0
          %v1384 = vmax.f32 %v1352, 0.0
          %v1385 = vmax.f32 %v1353, 0.0
          %v1386 = vmax.f32 %v1354, 0.0
          %v1387 = vmax.f32 %v1355, 0.0
          %v1388 = vmax.f32 %v1356, 0.0
          %v1389 = vmin.f32 %v1325, 0.0
          %v1390 = vmin.f32 %v1326, 0.0
          %v1391 = vmin.f32 %v1327, 0.0
          %v1392 = vmin.f32 %v1328, 0.0
          %v1393 = vmin.f32 %v1329, 0.0
          %v1394 = vmin.f32 %v1330, 0.0
          %v1395 = vmin.f32 %v1331, 0.0
          %v1396 = vmin.f32 %v1332, 0.0
          %v1397 = vmin.f32 %v1333, 0.0
          %v1398 = vmin.f32 %v1334, 0.0
          %v1399 = vmin.f32 %v1335, 0.0
          %v1400 = vmin.f32 %v1336, 0.0
          %v1401 = vmin.f32 %v1337, 0.0
          %v1402 = vmin.f32 %v1338, 0.0
          %v1403 = vmin.f32 %v1339, 0.0
          %v1404 = vmin.f32 %v1340, 0.0
          %v1405 = vmin.f32 %v1341, 0.0
          %v1406 = vmin.f32 %v1342, 0.0
          %v1407 = vmin.f32 %v1343, 0.0
          %v1408 = vmin.f32 %v1344, 0.0
          %v1409 = vmin.f32 %v1345, 0.0
          %v1410 = vmin.f32 %v1346, 0.0
          %v1411 = vmin.f32 %v1347, 0.0
          %v1412 = vmin.f32 %v1348, 0.0
          %v1413 = vmin.f32 %v1349, 0.0
          %v1414 = vmin.f32 %v1350, 0.0
          %v1415 = vmin.f32 %v1351, 0.0
          %v1416 = vmin.f32 %v1352, 0.0
          %v1417 = vmin.f32 %v1353, 0.0
          %v1418 = vmin.f32 %v1354, 0.0
          %v1419 = vmin.f32 %v1355, 0.0
          %v1420 = vmin.f32 %v1356, 0.0
          %v1421 = vstv %s483
          %v1422 = vmul.f32 %v1421, %v1389
          %v1423 = vmul.f32 %v1421, %v1390
          %v1424 = vmul.f32 %v1421, %v1391
          %v1425 = vmul.f32 %v1421, %v1392
          %v1426 = vmul.f32 %v1421, %v1393
          %v1427 = vmul.f32 %v1421, %v1394
          %v1428 = vmul.f32 %v1421, %v1395
          %v1429 = vmul.f32 %v1421, %v1396
          %v1430 = vmul.f32 %v1421, %v1397
          %v1431 = vmul.f32 %v1421, %v1398
          %v1432 = vmul.f32 %v1421, %v1399
          %v1433 = vmul.f32 %v1421, %v1400
          %v1434 = vmul.f32 %v1421, %v1401
          %v1435 = vmul.f32 %v1421, %v1402
          %v1436 = vmul.f32 %v1421, %v1403
          %v1437 = vmul.f32 %v1421, %v1404
          %v1438 = vmul.f32 %v1421, %v1405
          %v1439 = vmul.f32 %v1421, %v1406
          %v1440 = vmul.f32 %v1421, %v1407
          %v1441 = vmul.f32 %v1421, %v1408
          %v1442 = vmul.f32 %v1421, %v1409
          %v1443 = vmul.f32 %v1421, %v1410
          %v1444 = vmul.f32 %v1421, %v1411
          %v1445 = vmul.f32 %v1421, %v1412
          %v1446 = vmul.f32 %v1421, %v1413
          %v1447 = vmul.f32 %v1421, %v1414
          %v1448 = vmul.f32 %v1421, %v1415
          %v1449 = vmul.f32 %v1421, %v1416
          %v1450 = vmul.f32 %v1421, %v1417
          %v1451 = vmul.f32 %v1421, %v1418
          %v1452 = vmul.f32 %v1421, %v1419
          %v1453 = vmul.f32 %v1421, %v1420
          %v1454 = vadd.f32 %v1357, %v1422
          %v1455 = vadd.f32 %v1358, %v1423
          %v1456 = vadd.f32 %v1359, %v1424
          %v1457 = vadd.f32 %v1360, %v1425
          %v1458 = vadd.f32 %v1361, %v1426
          %v1459 = vadd.f32 %v1362, %v1427
          %v1460 = vadd.f32 %v1363, %v1428
          %v1461 = vadd.f32 %v1364, %v1429
          %v1462 = vadd.f32 %v1365, %v1430
          %v1463 = vadd.f32 %v1366, %v1431
          %v1464 = vadd.f32 %v1367, %v1432
          %v1465 = vadd.f32 %v1368, %v1433
          %v1466 = vadd.f32 %v1369, %v1434
          %v1467 = vadd.f32 %v1370, %v1435
          %v1468 = vadd.f32 %v1371, %v1436
          %v1469 = vadd.f32 %v1372, %v1437
          %v1470 = vadd.f32 %v1373, %v1438
          %v1471 = vadd.f32 %v1374, %v1439
          %v1472 = vadd.f32 %v1375, %v1440
          %v1473 = vadd.f32 %v1376, %v1441
          %v1474 = vadd.f32 %v1377, %v1442
          %v1475 = vadd.f32 %v1378, %v1443
          %v1476 = vadd.f32 %v1379, %v1444
          %v1477 = vadd.f32 %v1380, %v1445
          %v1478 = vadd.f32 %v1381, %v1446
          %v1479 = vadd.f32 %v1382, %v1447
          %v1480 = vadd.f32 %v1383, %v1448
          %v1481 = vadd.f32 %v1384, %v1449
          %v1482 = vadd.f32 %v1385, %v1450
          %v1483 = vadd.f32 %v1386, %v1451
          %v1484 = vadd.f32 %v1387, %v1452
          %v1485 = vadd.f32 %v1388, %v1453
          %v1486 = vpack.c.bf16 %v1455, %v1454
          %v1487 = vpack.c.bf16 %v1457, %v1456
          %v1488 = vpack.c.bf16 %v1459, %v1458
          %v1489 = vpack.c.bf16 %v1461, %v1460
          %v1490 = vpack.c.bf16 %v1463, %v1462
          %v1491 = vpack.c.bf16 %v1465, %v1464
          %v1492 = vpack.c.bf16 %v1467, %v1466
          %v1493 = vpack.c.bf16 %v1469, %v1468
          %v1494 = vpack.c.bf16 %v1471, %v1470
          %v1495 = vpack.c.bf16 %v1473, %v1472
          %v1496 = vpack.c.bf16 %v1475, %v1474
          %v1497 = vpack.c.bf16 %v1477, %v1476
          %v1498 = vpack.c.bf16 %v1479, %v1478
          %v1499 = vpack.c.bf16 %v1481, %v1480
          %v1500 = vpack.c.bf16 %v1483, %v1482
          %v1501 = vpack.c.bf16 %v1485, %v1484
          %v1502 = vld [vmem:[%s5] sm:$0xf]
          %v1503 = vld [vmem:[%s5 + $0x4] sm:$0xf]
          %v1504 = vld [vmem:[%s5 + $0x8] sm:$0xf]
          %v1505 = vld [vmem:[%s5 + $0xc] sm:$0xf]
          %v1506 = vld [vmem:[%s5 + $0x10] sm:$0xf]
          %v1507 = vld [vmem:[%s5 + $0x14] sm:$0xf]
          %v1508 = vld [vmem:[%s5 + $0x18] sm:$0xf]
          %v1509 = vld [vmem:[%s5 + $0x1c] sm:$0xf]
          %v1510 = vld [vmem:[%s6] sm:$0x1]
          %v1512 = vperm.slane %v1510, 0
          %v1522 = vunpack.c.l.b16 %v1502
          %v1523 = vunpack.c.l.b16 %v1503
          %v1524 = vunpack.c.l.b16 %v1504
          %v1525 = vunpack.c.l.b16 %v1505
          %v1526 = vunpack.c.l.b16 %v1506
          %v1527 = vunpack.c.l.b16 %v1507
          %v1528 = vunpack.c.l.b16 %v1508
          %v1529 = vunpack.c.l.b16 %v1509
          %v1530 = vpack.c.b16 %v1523, %v1522
          %v1531 = vpack.c.b16 %v1525, %v1524
          %v1532 = vpack.c.b16 %v1527, %v1526
          %v1533 = vpack.c.b16 %v1529, %v1528
          %v1539 = vsel %vm1252, %v1486, 0
          %v1542 = vsel %vm1252, %v1487, 0
          %v1545 = vsel %vm1252, %v1488, 0
          %v1548 = vsel %vm1252, %v1489, 0
          %v1551 = vsel %vm1252, %v1490, 0
          %v1554 = vsel %vm1252, %v1491, 0
          %v1557 = vsel %vm1252, %v1492, 0
          %v1560 = vsel %vm1252, %v1493, 0
          %v1563 = vsel %vm1252, %v1494, 0
          %v1566 = vsel %vm1252, %v1495, 0
          %v1569 = vsel %vm1252, %v1496, 0
          %v1572 = vsel %vm1252, %v1497, 0
          %v1575 = vsel %vm1252, %v1498, 0
          %v1578 = vsel %vm1252, %v1499, 0
          %v1581 = vsel %vm1252, %v1500, 0
          %v1584 = vsel %vm1252, %v1501, 0
          %1586 = vmatpush.bf16.msra.mxu0 0
          %1587 = vmatpush.bf16.msra.mxu0 0
          %1588 = vmatpush.bf16.msra.mxu0 0
          %1589 = vmatpush.bf16.msra.mxu0 0
          %1590 = vmatpush.bf16.msra.mxu0 %v1533
          %1591 = vmatpush.bf16.msra.mxu0 %v1532
          %1592 = vmatpush.bf16.msra.mxu0 %v1531
          %1593 = vmatpush.bf16.msra.mxu0 %v1530
          %1594 = vmatmul.bf16.gmra.mxu0 %v1539
          %v1595 = vpop.f32.mrf.mxu0
          %v1596 = vadd.f32 %v1512, %v1595
          %v1597 = vpop.f32.mrf.mxu0
          %v1598 = vadd.f32 %v1512, %v1597
          %1599 = vmatmul.bf16.gmra.mxu0 %v1542
          %v1600 = vpop.f32.mrf.mxu0
          %v1601 = vadd.f32 %v1512, %v1600
          %v1602 = vpop.f32.mrf.mxu0
          %v1603 = vadd.f32 %v1512, %v1602
          %1604 = vmatmul.bf16.gmra.mxu0 %v1545
          %v1605 = vpop.f32.mrf.mxu0
          %v1606 = vadd.f32 %v1512, %v1605
          %v1607 = vpop.f32.mrf.mxu0
          %v1608 = vadd.f32 %v1512, %v1607
          %1609 = vmatmul.bf16.gmra.mxu0 %v1548
          %v1610 = vpop.f32.mrf.mxu0
          %v1611 = vadd.f32 %v1512, %v1610
          %v1612 = vpop.f32.mrf.mxu0
          %v1613 = vadd.f32 %v1512, %v1612
          %1614 = vmatmul.bf16.gmra.mxu0 %v1551
          %v1615 = vpop.f32.mrf.mxu0
          %v1616 = vadd.f32 %v1512, %v1615
          %v1617 = vpop.f32.mrf.mxu0
          %v1618 = vadd.f32 %v1512, %v1617
          %1619 = vmatmul.bf16.gmra.mxu0 %v1554
          %v1620 = vpop.f32.mrf.mxu0
          %v1621 = vadd.f32 %v1512, %v1620
          %v1622 = vpop.f32.mrf.mxu0
          %v1623 = vadd.f32 %v1512, %v1622
          %1624 = vmatmul.bf16.gmra.mxu0 %v1557
          %v1625 = vpop.f32.mrf.mxu0
          %v1626 = vadd.f32 %v1512, %v1625
          %v1627 = vpop.f32.mrf.mxu0
          %v1628 = vadd.f32 %v1512, %v1627
          %1629 = vmatmul.bf16.gmra.mxu0 %v1560
          %v1630 = vpop.f32.mrf.mxu0
          %v1631 = vadd.f32 %v1512, %v1630
          %v1632 = vpop.f32.mrf.mxu0
          %v1633 = vadd.f32 %v1512, %v1632
          %1634 = vmatmul.bf16.gmra.mxu0 %v1563
          %v1635 = vpop.f32.mrf.mxu0
          %v1636 = vadd.f32 %v1512, %v1635
          %v1637 = vpop.f32.mrf.mxu0
          %v1638 = vadd.f32 %v1512, %v1637
          %1639 = vmatmul.bf16.gmra.mxu0 %v1566
          %v1640 = vpop.f32.mrf.mxu0
          %v1641 = vadd.f32 %v1512, %v1640
          %v1642 = vpop.f32.mrf.mxu0
          %v1643 = vadd.f32 %v1512, %v1642
          %1644 = vmatmul.bf16.gmra.mxu0 %v1569
          %v1645 = vpop.f32.mrf.mxu0
          %v1646 = vadd.f32 %v1512, %v1645
          %v1647 = vpop.f32.mrf.mxu0
          %v1648 = vadd.f32 %v1512, %v1647
          %1649 = vmatmul.bf16.gmra.mxu0 %v1572
          %v1650 = vpop.f32.mrf.mxu0
          %v1651 = vadd.f32 %v1512, %v1650
          %v1652 = vpop.f32.mrf.mxu0
          %v1653 = vadd.f32 %v1512, %v1652
          %1654 = vmatmul.bf16.gmra.mxu0 %v1575
          %v1655 = vpop.f32.mrf.mxu0
          %v1656 = vadd.f32 %v1512, %v1655
          %v1657 = vpop.f32.mrf.mxu0
          %v1658 = vadd.f32 %v1512, %v1657
          %1659 = vmatmul.bf16.gmra.mxu0 %v1578
          %v1660 = vpop.f32.mrf.mxu0
          %v1661 = vadd.f32 %v1512, %v1660
          %v1662 = vpop.f32.mrf.mxu0
          %v1663 = vadd.f32 %v1512, %v1662
          %1664 = vmatmul.bf16.gmra.mxu0 %v1581
          %v1665 = vpop.f32.mrf.mxu0
          %v1666 = vadd.f32 %v1512, %v1665
          %v1667 = vpop.f32.mrf.mxu0
          %v1668 = vadd.f32 %v1512, %v1667
          %1669 = vmatmul.bf16.gmra.mxu0 %v1584
          %v1670 = vpop.f32.mrf.mxu0
          %v1671 = vadd.f32 %v1512, %v1670
          %v1672 = vpop.f32.mrf.mxu0
          %v1673 = vadd.f32 %v1512, %v1672
          %1674 = vdwg.mxu0
          %v1675 = vmax.f32 %v1596, 0.0
          %v1676 = vmax.f32 %v1598, 0.0
          %v1677 = vmax.f32 %v1601, 0.0
          %v1678 = vmax.f32 %v1603, 0.0
          %v1679 = vmax.f32 %v1606, 0.0
          %v1680 = vmax.f32 %v1608, 0.0
          %v1681 = vmax.f32 %v1611, 0.0
          %v1682 = vmax.f32 %v1613, 0.0
          %v1683 = vmax.f32 %v1616, 0.0
          %v1684 = vmax.f32 %v1618, 0.0
          %v1685 = vmax.f32 %v1621, 0.0
          %v1686 = vmax.f32 %v1623, 0.0
          %v1687 = vmax.f32 %v1626, 0.0
          %v1688 = vmax.f32 %v1628, 0.0
          %v1689 = vmax.f32 %v1631, 0.0
          %v1690 = vmax.f32 %v1633, 0.0
          %v1691 = vmax.f32 %v1636, 0.0
          %v1692 = vmax.f32 %v1638, 0.0
          %v1693 = vmax.f32 %v1641, 0.0
          %v1694 = vmax.f32 %v1643, 0.0
          %v1695 = vmax.f32 %v1646, 0.0
          %v1696 = vmax.f32 %v1648, 0.0
          %v1697 = vmax.f32 %v1651, 0.0
          %v1698 = vmax.f32 %v1653, 0.0
          %v1699 = vmax.f32 %v1656, 0.0
          %v1700 = vmax.f32 %v1658, 0.0
          %v1701 = vmax.f32 %v1661, 0.0
          %v1702 = vmax.f32 %v1663, 0.0
          %v1703 = vmax.f32 %v1666, 0.0
          %v1704 = vmax.f32 %v1668, 0.0
          %v1705 = vmax.f32 %v1671, 0.0
          %v1706 = vmax.f32 %v1673, 0.0
          %v1707 = vmin.f32 %v1596, 0.0
          %v1708 = vmin.f32 %v1598, 0.0
          %v1709 = vmin.f32 %v1601, 0.0
          %v1710 = vmin.f32 %v1603, 0.0
          %v1711 = vmin.f32 %v1606, 0.0
          %v1712 = vmin.f32 %v1608, 0.0
          %v1713 = vmin.f32 %v1611, 0.0
          %v1714 = vmin.f32 %v1613, 0.0
          %v1715 = vmin.f32 %v1616, 0.0
          %v1716 = vmin.f32 %v1618, 0.0
          %v1717 = vmin.f32 %v1621, 0.0
          %v1718 = vmin.f32 %v1623, 0.0
          %v1719 = vmin.f32 %v1626, 0.0
          %v1720 = vmin.f32 %v1628, 0.0
          %v1721 = vmin.f32 %v1631, 0.0
          %v1722 = vmin.f32 %v1633, 0.0
          %v1723 = vmin.f32 %v1636, 0.0
          %v1724 = vmin.f32 %v1638, 0.0
          %v1725 = vmin.f32 %v1641, 0.0
          %v1726 = vmin.f32 %v1643, 0.0
          %v1727 = vmin.f32 %v1646, 0.0
          %v1728 = vmin.f32 %v1648, 0.0
          %v1729 = vmin.f32 %v1651, 0.0
          %v1730 = vmin.f32 %v1653, 0.0
          %v1731 = vmin.f32 %v1656, 0.0
          %v1732 = vmin.f32 %v1658, 0.0
          %v1733 = vmin.f32 %v1661, 0.0
          %v1734 = vmin.f32 %v1663, 0.0
          %v1735 = vmin.f32 %v1666, 0.0
          %v1736 = vmin.f32 %v1668, 0.0
          %v1737 = vmin.f32 %v1671, 0.0
          %v1738 = vmin.f32 %v1673, 0.0
          %v1739 = vmul.f32 %v1707, 1.442695
          %v1740 = vpow.pop %v1739
          %v1741 = vmul.f32 %v1708, 1.442695
          %v1742 = vpow.pop %v1741
          %v1743 = vmul.f32 %v1709, 1.442695
          %v1744 = vpow.pop %v1743
          %v1745 = vmul.f32 %v1710, 1.442695
          %v1746 = vpow.pop %v1745
          %v1747 = vmul.f32 %v1711, 1.442695
          %v1748 = vpow.pop %v1747
          %v1749 = vmul.f32 %v1712, 1.442695
          %v1750 = vpow.pop %v1749
          %v1751 = vmul.f32 %v1713, 1.442695
          %v1752 = vpow.pop %v1751
          %v1753 = vmul.f32 %v1714, 1.442695
          %v1754 = vpow.pop %v1753
          %v1755 = vmul.f32 %v1715, 1.442695
          %v1756 = vpow.pop %v1755
          %v1757 = vmul.f32 %v1716, 1.442695
          %v1758 = vpow.pop %v1757
          %v1759 = vmul.f32 %v1717, 1.442695
          %v1760 = vpow.pop %v1759
          %v1761 = vmul.f32 %v1718, 1.442695
          %v1762 = vpow.pop %v1761
          %v1763 = vmul.f32 %v1719, 1.442695
          %v1764 = vpow.pop %v1763
          %v1765 = vmul.f32 %v1720, 1.442695
          %v1766 = vpow.pop %v1765
          %v1767 = vmul.f32 %v1721, 1.442695
          %v1768 = vpow.pop %v1767
          %v1769 = vmul.f32 %v1722, 1.442695
          %v1770 = vpow.pop %v1769
          %v1771 = vmul.f32 %v1723, 1.442695
          %v1772 = vpow.pop %v1771
          %v1773 = vmul.f32 %v1724, 1.442695
          %v1774 = vpow.pop %v1773
          %v1775 = vmul.f32 %v1725, 1.442695
          %v1776 = vpow.pop %v1775
          %v1777 = vmul.f32 %v1726, 1.442695
          %v1778 = vpow.pop %v1777
          %v1779 = vmul.f32 %v1727, 1.442695
          %v1780 = vpow.pop %v1779
          %v1781 = vmul.f32 %v1728, 1.442695
          %v1782 = vpow.pop %v1781
          %v1783 = vmul.f32 %v1729, 1.442695
          %v1784 = vpow.pop %v1783
          %v1785 = vmul.f32 %v1730, 1.442695
          %v1786 = vpow.pop %v1785
          %v1787 = vmul.f32 %v1731, 1.442695
          %v1788 = vpow.pop %v1787
          %v1789 = vmul.f32 %v1732, 1.442695
          %v1790 = vpow.pop %v1789
          %v1791 = vmul.f32 %v1733, 1.442695
          %v1792 = vpow.pop %v1791
          %v1793 = vmul.f32 %v1734, 1.442695
          %v1794 = vpow.pop %v1793
          %v1795 = vmul.f32 %v1735, 1.442695
          %v1796 = vpow.pop %v1795
          %v1797 = vmul.f32 %v1736, 1.442695
          %v1798 = vpow.pop %v1797
          %v1799 = vmul.f32 %v1737, 1.442695
          %v1800 = vpow.pop %v1799
          %v1801 = vmul.f32 %v1738, 1.442695
          %v1802 = vpow.pop %v1801
          %v1803 = vadd.f32 %v1675, %v1740
          %v1804 = vadd.f32 %v1676, %v1742
          %v1805 = vadd.f32 %v1677, %v1744
          %v1806 = vadd.f32 %v1678, %v1746
          %v1807 = vadd.f32 %v1679, %v1748
          %v1808 = vadd.f32 %v1680, %v1750
          %v1809 = vadd.f32 %v1681, %v1752
          %v1810 = vadd.f32 %v1682, %v1754
          %v1811 = vadd.f32 %v1683, %v1756
          %v1812 = vadd.f32 %v1684, %v1758
          %v1813 = vadd.f32 %v1685, %v1760
          %v1814 = vadd.f32 %v1686, %v1762
          %v1815 = vadd.f32 %v1687, %v1764
          %v1816 = vadd.f32 %v1688, %v1766
          %v1817 = vadd.f32 %v1689, %v1768
          %v1818 = vadd.f32 %v1690, %v1770
          %v1819 = vadd.f32 %v1691, %v1772
          %v1820 = vadd.f32 %v1692, %v1774
          %v1821 = vadd.f32 %v1693, %v1776
          %v1822 = vadd.f32 %v1694, %v1778
          %v1823 = vadd.f32 %v1695, %v1780
          %v1824 = vadd.f32 %v1696, %v1782
          %v1825 = vadd.f32 %v1697, %v1784
          %v1826 = vadd.f32 %v1698, %v1786
          %v1827 = vadd.f32 %v1699, %v1788
          %v1828 = vadd.f32 %v1700, %v1790
          %v1829 = vadd.f32 %v1701, %v1792
          %v1830 = vadd.f32 %v1702, %v1794
          %v1831 = vadd.f32 %v1703, %v1796
          %v1832 = vadd.f32 %v1704, %v1798
          %v1833 = vadd.f32 %v1705, %v1800
          %v1834 = vadd.f32 %v1706, %v1802
          %v1835 = vsub.f32 %v1803, 1.0
          %v1836 = vsub.f32 %v1804, 1.0
          %v1837 = vsub.f32 %v1805, 1.0
          %v1838 = vsub.f32 %v1806, 1.0
          %v1839 = vsub.f32 %v1807, 1.0
          %v1840 = vsub.f32 %v1808, 1.0
          %v1841 = vsub.f32 %v1809, 1.0
          %v1842 = vsub.f32 %v1810, 1.0
          %v1843 = vsub.f32 %v1811, 1.0
          %v1844 = vsub.f32 %v1812, 1.0
          %v1845 = vsub.f32 %v1813, 1.0
          %v1846 = vsub.f32 %v1814, 1.0
          %v1847 = vsub.f32 %v1815, 1.0
          %v1848 = vsub.f32 %v1816, 1.0
          %v1849 = vsub.f32 %v1817, 1.0
          %v1850 = vsub.f32 %v1818, 1.0
          %v1851 = vsub.f32 %v1819, 1.0
          %v1852 = vsub.f32 %v1820, 1.0
          %v1853 = vsub.f32 %v1821, 1.0
          %v1854 = vsub.f32 %v1822, 1.0
          %v1855 = vsub.f32 %v1823, 1.0
          %v1856 = vsub.f32 %v1824, 1.0
          %v1857 = vsub.f32 %v1825, 1.0
          %v1858 = vsub.f32 %v1826, 1.0
          %v1859 = vsub.f32 %v1827, 1.0
          %v1860 = vsub.f32 %v1828, 1.0
          %v1861 = vsub.f32 %v1829, 1.0
          %v1862 = vsub.f32 %v1830, 1.0
          %v1863 = vsub.f32 %v1831, 1.0
          %v1864 = vsub.f32 %v1832, 1.0
          %v1865 = vsub.f32 %v1833, 1.0
          %v1866 = vsub.f32 %v1834, 1.0
          %1867 = vst [vmem:[%s480] sm:$0xff] %v1835
          %1868 = vst [vmem:[%s480 + $0x8] sm:$0xff] %v1836
          %1869 = vst [vmem:[%s480 + $0x10] sm:$0xff] %v1837
          %1870 = vst [vmem:[%s480 + $0x18] sm:$0xff] %v1838
          %1871 = vst [vmem:[%s480 + $0x20] sm:$0xff] %v1839
          %1872 = vst [vmem:[%s480 + $0x28] sm:$0xff] %v1840
          %1873 = vst [vmem:[%s480 + $0x30] sm:$0xff] %v1841
          %1874 = vst [vmem:[%s480 + $0x38] sm:$0xff] %v1842
          %1875 = vst [vmem:[%s480 + $0x40] sm:$0xff] %v1843
          %1876 = vst [vmem:[%s480 + $0x48] sm:$0xff] %v1844
          %1877 = vst [vmem:[%s480 + $0x50] sm:$0xff] %v1845
          %1878 = vst [vmem:[%s480 + $0x58] sm:$0xff] %v1846
          %1879 = vst [vmem:[%s480 + $0x60] sm:$0xff] %v1847
          %1880 = vst [vmem:[%s480 + $0x68] sm:$0xff] %v1848
          %1881 = vst [vmem:[%s480 + $0x70] sm:$0xff] %v1849
          %1882 = vst [vmem:[%s480 + $0x78] sm:$0xff] %v1850
          %1883 = vst [vmem:[%s480 + $0x80] sm:$0xff] %v1851
          %1884 = vst [vmem:[%s480 + $0x88] sm:$0xff] %v1852
          %1885 = vst [vmem:[%s480 + $0x90] sm:$0xff] %v1853
          %1886 = vst [vmem:[%s480 + $0x98] sm:$0xff] %v1854
          %1887 = vst [vmem:[%s480 + $0xa0] sm:$0xff] %v1855
          %1888 = vst [vmem:[%s480 + $0xa8] sm:$0xff] %v1856
          %1889 = vst [vmem:[%s480 + $0xb0] sm:$0xff] %v1857
          %1890 = vst [vmem:[%s480 + $0xb8] sm:$0xff] %v1858
          %1891 = vst [vmem:[%s480 + $0xc0] sm:$0xff] %v1859
          %1892 = vst [vmem:[%s480 + $0xc8] sm:$0xff] %v1860
          %1893 = vst [vmem:[%s480 + $0xd0] sm:$0xff] %v1861
          %1894 = vst [vmem:[%s480 + $0xd8] sm:$0xff] %v1862
          %1895 = vst [vmem:[%s480 + $0xe0] sm:$0xff] %v1863
          %1896 = vst [vmem:[%s480 + $0xe8] sm:$0xff] %v1864
          %1897 = vst [vmem:[%s480 + $0xf0] sm:$0xff] %v1865
          %1898 = vst [vmem:[%s480 + $0xf8] sm:$0xff] %v1866
        $region94: #{modeler_forward.5} parent=81 // pred_fallthru
          _
        %s1899 = smul.u32 32, %s23
        %p1900 = scmp.lt.s32.totalorder %s1899, 63
        %s1901 = scalar_select %p1900, %s1899, 63
        %s1902 = smul.addr %s1901, 8
        %s1903 = scalar_lea.vmem %s7, %s1902
        // Predicated region
        $region95: #{modeler_forward.5} parent=81 // pred_check
          %p1904 = pneg %p208
        $region96: #{modeler_forward.5} parent=81 // pred_check_branch
          %1906 = sbr.rel (%p1904) target = $region98
        $region97: #{modeler_forward.5} parent=81 // pred_region
          %s1907 = smul.u32 32, %s23
        $region98: #{modeler_forward.5} parent=81 // pred_fallthru
          _
      $region82: #{modeler_forward.5} parent=5 // pred_fallthru
        _
      %p1908 = scmp.le.s32.totalorder 2, %s14
      // Predicated region
      $region99: #{modeler_forward.5} parent=5 // pred_check
        %p1909 = pneg %p1908
      $region100: #{modeler_forward.5} parent=5 // pred_check_branch
        %1911 = sbr.rel (%p1909) target = $region102
      $region101: #{modeler_forward.5} parent=5 // pred_region
        %s1912 = ssub.s32 %s14, 2
        // Predicated region
        $region103: #{modeler_forward.5} parent=101 // pred_check
          %p1913 = pneg %p214
        $region104: #{modeler_forward.5} parent=101 // pred_check_branch
          %1915 = sbr.rel (%p1913) target = $region106
        $region105: #{modeler_forward.5} parent=101 // pred_region
          %s1916 = smul.u32 32, %s25
          %p1917 = scmp.lt.s32.totalorder %s1916, 63
          %s1918 = scalar_select %p1917, %s1916, 63
          %s1919 = smul.addr %s1918, 8
          %s1920 = scalar_lea.vmem %s7, %s1919
        $region106: #{modeler_forward.5} parent=101 // pred_fallthru
          _
      $region102: #{modeler_forward.5} parent=5 // pred_fallthru
        _
    $region6: #{modeler_forward.5} parent=1 // loop_footer
      %s18 = sadd.s32 1, %s14
    $region7: #{modeler_forward.5} parent=1 // loop_footer_branch
      %13 = sbr.rel target = $region3
    $region8: #{modeler_forward.5} parent=1 // loop_exit
      _

// kernel: modeler_forward.6
$region0: #{modeler_forward.6}
  #allocation0 [shape = 'u32[]', space=smem, size = 0x4, offset = 0x4, fixed_abs, tag = 'smem constant byte address 0x4 - core index']
  #allocation1 [shape = 'u32[72,128]{1,0:T(1,128)}', space=vmem, size = 0x9000, scoped, tag = 'internal scratch']
  #allocation2 [shape = 'f32[256,32]{1,0:T(8,128)}', space=vmem, size = 0x20000, scoped, tag = 'scratch operand']
  #allocation3 [shape = 'f32[1,1]{1,0:T(1,128)S(6)}', space=smem, size = 0x200, scoped, tag = 'scoped memory for modeler_forward.6']
  %s0 = inlined_call_operand.<no memory space> [shape: f32[1,1], index: 0, kind: input, shape index: {}]
  %s1 = inlined_call_operand.vmem [shape: bf16[512,64], index: 1, kind: input, shape index: {}]
  %s2 = inlined_call_operand.vmem [shape: bf16[512,512], index: 2, kind: input, shape index: {}]
  %s3 = inlined_call_operand.vmem [shape: bf16[64,32], index: 3, kind: input, shape index: {}]
  %s4 = inlined_call_operand.vmem [shape: f32[1,32], index: 4, kind: input, shape index: {}]
  %s5 = inlined_call_operand.vmem [shape: bf16[32,128], index: 5, kind: input, shape index: {}]
  %s6 = inlined_call_operand.vmem [shape: f32[1,128], index: 6, kind: input, shape index: {}]
  %s7 = inlined_call_operand.vmem [shape: f32[512,128], index: 7, kind: output, shape index: {}]
  %s8 = sld [smem:[#allocation0]]
  $region107: #{modeler_forward.6} parent=0
    _
  %s10 = ssub.s32 1, %s8
  %s11 = scalar_select 0, %s10, %s8
  %12 = sst [smem:[#allocation3]] %s0
  $region1: #{modeler_forward.6} parent=0
    #allocation4 [shape = 'u8[262144]{0}', space=vmem, size = 0x40000, scoped, tag = 'input window, operand 2']
    loop: start=0, step=1, limit=6
    $region2: #{modeler_forward.6} parent=1 // loop_pre_header
      _
    $region3: #{modeler_forward.6} parent=1 // loop_header
      %s14 = sphi 0, %s18
      %p15 = scmp.ge.s32.totalorder %s14, 6
      %s21 = sphi 0, %s33
      %s22 = sphi 0, %s29
      %s23 = sphi 0, %s21
      %s24 = sphi 0, %s22
      %s25 = sphi 0, %s23
      %s26 = sphi 0, %s24
      %s34 = sphi 0, %s34
      %s36 = sphi 0, %s34
      %s37 = sphi 0, %s36
      %s51 = sphi 0, %s37
      %s57 = sphi 0, %s59
      %s60 = sphi 0, %s57
      %s61 = sphi 0, %s60
      %s77 = sphi 0, %s61
      %s85 = sphi 0, %s87
      %s88 = sphi 0, %s85
      %s89 = sphi 0, %s88
      %s105 = sphi 0, %s89
      %s109 = sphi 0, %s109
      %s111 = sphi 0, %s109
      %s112 = sphi 0, %s111
      %s126 = sphi 0, %s112
      %s130 = sphi 0, %s130
      %s132 = sphi 0, %s130
      %s133 = sphi 0, %s132
      %s147 = sphi 0, %s133
      %s151 = sphi 0, %s151
      %s153 = sphi 0, %s151
      %s154 = sphi 0, %s153
      %s168 = sphi 0, %s154
      %s172 = sphi 0, %s172
      %s174 = sphi 0, %s172
      %s175 = sphi 0, %s174
      %s189 = sphi 0, %s175
      %s195 = sphi 0, %s197
      %s198 = sphi 0, %s195
      %s199 = sphi 0, %s198
      %s215 = sphi 0, %s199
    $region4: #{modeler_forward.6} parent=1 // loop_header_branch
      %17 = sbr.rel (%p15) target = $region8
    $region5: #{modeler_forward.6} parent=1 // loop_body
      %s19 = ssub.s32 %s14, 1
      %s20 = ssub.s32 %s14, 2
      %s27 = sadd.s32 1, %s22
      %p28 = scmp.ge.s32.totalorder %s27, 2
      %s29 = scalar_select %p28, 0, %s27
      %s30 = sadd.s32 1, %s21
      %s31 = scalar_select %p28, %s30, %s21
      %p32 = scmp.ge.s32.totalorder %s31, 2
      %s33 = scalar_select %p32, 0, %s31
      %s35 = sadd.s32 %s34, 1
      %p38 = scmp.eq.s32.totalorder %s14, 3
      %p39 = scmp.ne.s32.totalorder %s34, %s36
      %p40 = scmp.eq.s32.totalorder %s14, 0
      %p41 = por %p39, %p40
      %p42 = scmp.ne.s32.totalorder %s34, %s36
      %p43 = scmp.eq.s32.totalorder %s19, 3
      %p44 = por %p42, %p43
      %p45 = scmp.ne.s32.totalorder %s36, %s37
      %p46 = scmp.eq.s32.totalorder %s19, 0
      %p47 = por %p45, %p46
      %p48 = scmp.ne.s32.totalorder %s36, %s37
      %p49 = scmp.eq.s32.totalorder %s20, 3
      %p50 = por %p48, %p49
      %p52 = scmp.ne.s32.totalorder %s37, %s51
      %p53 = scmp.eq.s32.totalorder %s20, 0
      %p54 = por %p52, %p53
      %s55 = ssub.s32 %s22, %s29
      %p56 = scmp.eq.s32.totalorder %s55, 0
      %s58 = sadd.s32 %s57, 1
      %s59 = scalar_select %p56, %s57, %s58
      %p62 = pneg %p56
      %p63 = scmp.eq.s32.totalorder %s14, 3
      %p64 = por %p62, %p63
      %p65 = scmp.ne.s32.totalorder %s57, %s60
      %p66 = scmp.eq.s32.totalorder %s14, 0
      %p67 = por %p65, %p66
      %p68 = scmp.ne.s32.totalorder %s57, %s60
      %p69 = scmp.eq.s32.totalorder %s19, 3
      %p70 = por %p68, %p69
      %p71 = scmp.ne.s32.totalorder %s60, %s61
      %p72 = scmp.eq.s32.totalorder %s19, 0
      %p73 = por %p71, %p72
      %p74 = scmp.ne.s32.totalorder %s60, %s61
      %p75 = scmp.eq.s32.totalorder %s20, 3
      %p76 = por %p74, %p75
      %p78 = scmp.ne.s32.totalorder %s61, %s77
      %p79 = scmp.eq.s32.totalorder %s20, 0
      %p80 = por %p78, %p79
      %s81 = ssub.s32 %s21, %s33
      %s82 = ssub.s32 %s22, %s29
      %s83 = sor.u32 %s81, %s82
      %p84 = scmp.eq.s32.totalorder %s83, 0
      %s86 = sadd.s32 %s85, 1
      %s87 = scalar_select %p84, %s85, %s86
      %p90 = pneg %p84
      %p91 = scmp.eq.s32.totalorder %s14, 3
      %p92 = por %p90, %p91
      %p93 = scmp.ne.s32.totalorder %s85, %s88
      %p94 = scmp.eq.s32.totalorder %s14, 0
      %p95 = por %p93, %p94
      %p96 = scmp.ne.s32.totalorder %s85, %s88
      %p97 = scmp.eq.s32.totalorder %s19, 3
      %p98 = por %p96, %p97
      %p99 = scmp.ne.s32.totalorder %s88, %s89
      %p100 = scmp.eq.s32.totalorder %s19, 0
      %p101 = por %p99, %p100
      %p102 = scmp.ne.s32.totalorder %s88, %s89
      %p103 = scmp.eq.s32.totalorder %s20, 3
      %p104 = por %p102, %p103
      %p106 = scmp.ne.s32.totalorder %s89, %s105
      %p107 = scmp.eq.s32.totalorder %s20, 0
      %p108 = por %p106, %p107
      %s110 = sadd.s32 %s109, 1
      %p113 = scmp.eq.s32.totalorder %s14, 3
      %p114 = scmp.ne.s32.totalorder %s109, %s111
      %p115 = scmp.eq.s32.totalorder %s14, 0
      %p116 = por %p114, %p115
      %p117 = scmp.ne.s32.totalorder %s109, %s111
      %p118 = scmp.eq.s32.totalorder %s19, 3
      %p119 = por %p117, %p118
      %p120 = scmp.ne.s32.totalorder %s111, %s112
      %p121 = scmp.eq.s32.totalorder %s19, 0
      %p122 = por %p120, %p121
      %p123 = scmp.ne.s32.totalorder %s111, %s112
      %p124 = scmp.eq.s32.totalorder %s20, 3
      %p125 = por %p123, %p124
      %p127 = scmp.ne.s32.totalorder %s112, %s126
      %p128 = scmp.eq.s32.totalorder %s20, 0
      %p129 = por %p127, %p128
      %s131 = sadd.s32 %s130, 1
      %p134 = scmp.eq.s32.totalorder %s14, 3
      %p135 = scmp.ne.s32.totalorder %s130, %s132
      %p136 = scmp.eq.s32.totalorder %s14, 0
      %p137 = por %p135, %p136
      %p138 = scmp.ne.s32.totalorder %s130, %s132
      %p139 = scmp.eq.s32.totalorder %s19, 3
      %p140 = por %p138, %p139
      %p141 = scmp.ne.s32.totalorder %s132, %s133
      %p142 = scmp.eq.s32.totalorder %s19, 0
      %p143 = por %p141, %p142
      %p144 = scmp.ne.s32.totalorder %s132, %s133
      %p145 = scmp.eq.s32.totalorder %s20, 3
      %p146 = por %p144, %p145
      %p148 = scmp.ne.s32.totalorder %s133, %s147
      %p149 = scmp.eq.s32.totalorder %s20, 0
      %p150 = por %p148, %p149
      %s152 = sadd.s32 %s151, 1
      %p155 = scmp.eq.s32.totalorder %s14, 3
      %p156 = scmp.ne.s32.totalorder %s151, %s153
      %p157 = scmp.eq.s32.totalorder %s14, 0
      %p158 = por %p156, %p157
      %p159 = scmp.ne.s32.totalorder %s151, %s153
      %p160 = scmp.eq.s32.totalorder %s19, 3
      %p161 = por %p159, %p160
      %p162 = scmp.ne.s32.totalorder %s153, %s154
      %p163 = scmp.eq.s32.totalorder %s19, 0
      %p164 = por %p162, %p163
      %p165 = scmp.ne.s32.totalorder %s153, %s154
      %p166 = scmp.eq.s32.totalorder %s20, 3
      %p167 = por %p165, %p166
      %p169 = scmp.ne.s32.totalorder %s154, %s168
      %p170 = scmp.eq.s32.totalorder %s20, 0
      %p171 = por %p169, %p170
      %s173 = sadd.s32 %s172, 1
      %p176 = scmp.eq.s32.totalorder %s14, 3
      %p177 = scmp.ne.s32.totalorder %s172, %s174
      %p178 = scmp.eq.s32.totalorder %s14, 0
      %p179 = por %p177, %p178
      %p180 = scmp.ne.s32.totalorder %s172, %s174
      %p181 = scmp.eq.s32.totalorder %s19, 3
      %p182 = por %p180, %p181
      %p183 = scmp.ne.s32.totalorder %s174, %s175
      %p184 = scmp.eq.s32.totalorder %s19, 0
      %p185 = por %p183, %p184
      %p186 = scmp.ne.s32.totalorder %s174, %s175
      %p187 = scmp.eq.s32.totalorder %s20, 3
      %p188 = por %p186, %p187
      %p190 = scmp.ne.s32.totalorder %s175, %s189
      %p191 = scmp.eq.s32.totalorder %s20, 0
      %p192 = por %p190, %p191
      %s193 = ssub.s32 %s21, %s33
      %p194 = scmp.eq.s32.totalorder %s193, 0
      %s196 = sadd.s32 %s195, 1
      %s197 = scalar_select %p194, %s195, %s196
      %p200 = pneg %p194
      %p201 = scmp.eq.s32.totalorder %s14, 3
      %p202 = por %p200, %p201
      %p203 = scmp.ne.s32.totalorder %s195, %s198
      %p204 = scmp.eq.s32.totalorder %s14, 0
      %p205 = por %p203, %p204
      %p206 = scmp.ne.s32.totalorder %s195, %s198
      %p207 = scmp.eq.s32.totalorder %s19, 3
      %p208 = por %p206, %p207
      %p209 = scmp.ne.s32.totalorder %s198, %s199
      %p210 = scmp.eq.s32.totalorder %s19, 0
      %p211 = por %p209, %p210
      %p212 = scmp.ne.s32.totalorder %s198, %s199
      %p213 = scmp.eq.s32.totalorder %s20, 3
      %p214 = por %p212, %p213
      %p216 = scmp.ne.s32.totalorder %s199, %s215
      %p217 = scmp.eq.s32.totalorder %s20, 0
      %p218 = por %p216, %p217
      %p219 = scmp.le.s32.totalorder 1, %s14
      %p220 = scmp.lt.s32.totalorder %s14, 5
      %p221 = pnand %p219, %p220
      %p222 = pneg %p221
      // Predicated region
      $region9: #{modeler_forward.6} parent=5 // pred_check
        _
      $region10: #{modeler_forward.6} parent=5 // pred_check_branch
        %224 = sbr.rel (%p221) target = $region12
      $region11: #{modeler_forward.6} parent=5 // pred_region
        %s225 = ssub.s32 %s14, 1
        // Predicated region
        $region13: #{modeler_forward.6} parent=11 // pred_check
          %p226 = pneg %p47
        $region14: #{modeler_forward.6} parent=11 // pred_check_branch
          %228 = sbr.rel (%p226) target = $region16
        $region15: #{modeler_forward.6} parent=11 // pred_region
          _
        $region16: #{modeler_forward.6} parent=11 // pred_fallthru
          _
        // Predicated region
        $region17: #{modeler_forward.6} parent=11 // pred_check
          %p229 = pneg %p122
        $region18: #{modeler_forward.6} parent=11 // pred_check_branch
          %231 = sbr.rel (%p229) target = $region20
        $region19: #{modeler_forward.6} parent=11 // pred_region
          _
        $region20: #{modeler_forward.6} parent=11 // pred_fallthru
          _
        // Predicated region
        $region21: #{modeler_forward.6} parent=11 // pred_check
          %p232 = pneg %p143
        $region22: #{modeler_forward.6} parent=11 // pred_check_branch
          %234 = sbr.rel (%p232) target = $region24
        $region23: #{modeler_forward.6} parent=11 // pred_region
          _
        $region24: #{modeler_forward.6} parent=11 // pred_fallthru
          _
        // Predicated region
        $region25: #{modeler_forward.6} parent=11 // pred_check
          %p235 = pneg %p164
        $region26: #{modeler_forward.6} parent=11 // pred_check_branch
          %237 = sbr.rel (%p235) target = $region28
        $region27: #{modeler_forward.6} parent=11 // pred_region
          _
        $region28: #{modeler_forward.6} parent=11 // pred_fallthru
          _
        // Predicated region
        $region29: #{modeler_forward.6} parent=11 // pred_check
          %p238 = pneg %p185
        $region30: #{modeler_forward.6} parent=11 // pred_check_branch
          %240 = sbr.rel (%p238) target = $region32
        $region31: #{modeler_forward.6} parent=11 // pred_region
          _
        $region32: #{modeler_forward.6} parent=11 // pred_fallthru
          _
      $region12: #{modeler_forward.6} parent=5 // pred_fallthru
        _
      %p241 = scmp.lt.s32.totalorder %s14, 4
      // Predicated region
      $region33: #{modeler_forward.6} parent=5 // pred_check
        %p242 = pneg %p241
      $region34: #{modeler_forward.6} parent=5 // pred_check_branch
        %244 = sbr.rel (%p242) target = $region36
      $region35: #{modeler_forward.6} parent=5 // pred_region
        // Predicated region
        $region37: #{modeler_forward.6} parent=35 // pred_check
          %p245 = pneg %p67
        $region38: #{modeler_forward.6} parent=35 // pred_check_branch
          %247 = sbr.rel (%p245) target = $region40
        $region39: #{modeler_forward.6} parent=35 // pred_region
          %s248 = smul.u32 32, %s22
          %p249 = scmp.lt.s32.totalorder %s248, 63
          %s250 = scalar_select %p249, %s248, 63
          %s251 = smul.addr %s250, 4
          %s252 = scalar_lea.vmem %s1, %s251
          %s253 = smul.u32 32, %s22
        $region40: #{modeler_forward.6} parent=35 // pred_fallthru
          _
        // Predicated region
        $region41: #{modeler_forward.6} parent=35 // pred_check
          %p254 = pneg %p95
        $region42: #{modeler_forward.6} parent=35 // pred_check_branch
          %256 = sbr.rel (%p254) target = $region44
        $region43: #{modeler_forward.6} parent=35 // pred_region
          %s257 = sand.u32 %s85, 1
          %s258 = sand.u32 %s85, 1
          %s259 = smul.addr %s258, 256
          %s260 = scalar_lea.vmem [#allocation4], %s259
          %s261 = smul.u32 32, %s21
          %s262 = smul.u32 2, %s22
          %s263 = smul.addr %s261, 4
          %s264 = sadd.s32 %s262, %s263
          %s265 = smul.addr %s264, 4
          %s266 = scalar_lea.vmem %s2, %s265
          // Predicated region
          $region45: #{modeler_forward.6} parent=43 // pred_check
            _
          $region46: #{modeler_forward.6} parent=43 // pred_check_branch
            %268 = sbr.rel (0) target = $region48
          $region47: #{modeler_forward.6} parent=43 // pred_region
            // Predicated region
            $region49: #{modeler_forward.6} parent=47 // pred_check
              _
            $region50: #{modeler_forward.6} parent=47 // pred_check_branch
              %270 = sbr.rel (0) target = $region52
            $region51: #{modeler_forward.6} parent=47 // pred_region
              // Predicated region
              $region64: #{modeler_forward.6} parent=51 // pred_check
                _
              $region65: #{modeler_forward.6} parent=51 // pred_check_branch
                %348 = sbr.rel (0) target = $region67
              $region66: #{modeler_forward.6} parent=51 // pred_region
                loop: start=0, step=1, limit=1
                $region68: #{modeler_forward.6} parent=66 // loop_pre_header
                  _
                $region69: #{modeler_forward.6} parent=66 // loop_header
                  %s350 = sphi 0, %s354
                  %p351 = scmp.ge.s32.totalorder %s350, 1
                  %s355 = sphi %s266, %s266
                  %s356 = sphi %s260, %s260
                $region70: #{modeler_forward.6} parent=66 // loop_header_branch
                  %353 = sbr.rel (%p351) target = $region74
                $region71: #{modeler_forward.6} parent=66 // loop_body
                  %v357 = vld [vmem:[%s355] sm:$0xff]
                  %358 = vst [vmem:[%s356] sm:$0xff] %v357
                  %v359 = vld [vmem:[%s355 + $0x10] sm:$0xff]
                  %360 = vst [vmem:[%s356 + $0x8] sm:$0xff] %v359
                  %v361 = vld [vmem:[%s355 + $0x20] sm:$0xff]
                  %362 = vst [vmem:[%s356 + $0x10] sm:$0xff] %v361
                  %v363 = vld [vmem:[%s355 + $0x30] sm:$0xff]
                  %364 = vst [vmem:[%s356 + $0x18] sm:$0xff] %v363
                  %v365 = vld [vmem:[%s355 + $0x40] sm:$0xff]
                  %366 = vst [vmem:[%s356 + $0x20] sm:$0xff] %v365
                  %v367 = vld [vmem:[%s355 + $0x50] sm:$0xff]
                  %368 = vst [vmem:[%s356 + $0x28] sm:$0xff] %v367
                  %v369 = vld [vmem:[%s355 + $0x60] sm:$0xff]
                  %370 = vst [vmem:[%s356 + $0x30] sm:$0xff] %v369
                  %v371 = vld [vmem:[%s355 + $0x70] sm:$0xff]
                  %372 = vst [vmem:[%s356 + $0x38] sm:$0xff] %v371
                  %v373 = vld [vmem:[%s355 + $0x80] sm:$0xff]
                  %374 = vst [vmem:[%s356 + $0x40] sm:$0xff] %v373
                  %v375 = vld [vmem:[%s355 + $0x90] sm:$0xff]
                  %376 = vst [vmem:[%s356 + $0x48] sm:$0xff] %v375
                  %v377 = vld [vmem:[%s355 + $0xa0] sm:$0xff]
                  %378 = vst [vmem:[%s356 + $0x50] sm:$0xff] %v377
                  %v379 = vld [vmem:[%s355 + $0xb0] sm:$0xff]
                  %380 = vst [vmem:[%s356 + $0x58] sm:$0xff] %v379
                  %v381 = vld [vmem:[%s355 + $0xc0] sm:$0xff]
                  %382 = vst [vmem:[%s356 + $0x60] sm:$0xff] %v381
                  %v383 = vld [vmem:[%s355 + $0xd0] sm:$0xff]
                  %384 = vst [vmem:[%s356 + $0x68] sm:$0xff] %v383
                  %v385 = vld [vmem:[%s355 + $0xe0] sm:$0xff]
                  %386 = vst [vmem:[%s356 + $0x70] sm:$0xff] %v385
                  %v387 = vld [vmem:[%s355 + $0xf0] sm:$0xff]
                  %388 = vst [vmem:[%s356 + $0x78] sm:$0xff] %v387
                  %v389 = vld [vmem:[%s355 + $0x100] sm:$0xff]
                  %390 = vst [vmem:[%s356 + $0x80] sm:$0xff] %v389
                  %v391 = vld [vmem:[%s355 + $0x110] sm:$0xff]
                  %392 = vst [vmem:[%s356 + $0x88] sm:$0xff] %v391
                  %v393 = vld [vmem:[%s355 + $0x120] sm:$0xff]
                  %394 = vst [vmem:[%s356 + $0x90] sm:$0xff] %v393
                  %v395 = vld [vmem:[%s355 + $0x130] sm:$0xff]
                  %396 = vst [vmem:[%s356 + $0x98] sm:$0xff] %v395
                  %v397 = vld [vmem:[%s355 + $0x140] sm:$0xff]
                  %398 = vst [vmem:[%s356 + $0xa0] sm:$0xff] %v397
                  %v399 = vld [vmem:[%s355 + $0x150] sm:$0xff]
                  %400 = vst [vmem:[%s356 + $0xa8] sm:$0xff] %v399
                  %v401 = vld [vmem:[%s355 + $0x160] sm:$0xff]
                  %402 = vst [vmem:[%s356 + $0xb0] sm:$0xff] %v401
                  %v403 = vld [vmem:[%s355 + $0x170] sm:$0xff]
                  %404 = vst [vmem:[%s356 + $0xb8] sm:$0xff] %v403
                  %v405 = vld [vmem:[%s355 + $0x180] sm:$0xff]
                  %406 = vst [vmem:[%s356 + $0xc0] sm:$0xff] %v405
                  %v407 = vld [vmem:[%s355 + $0x190] sm:$0xff]
                  %408 = vst [vmem:[%s356 + $0xc8] sm:$0xff] %v407
                  %v409 = vld [vmem:[%s355 + $0x1a0] sm:$0xff]
                  %410 = vst [vmem:[%s356 + $0xd0] sm:$0xff] %v409
                  %v411 = vld [vmem:[%s355 + $0x1b0] sm:$0xff]
                  %412 = vst [vmem:[%s356 + $0xd8] sm:$0xff] %v411
                  %v413 = vld [vmem:[%s355 + $0x1c0] sm:$0xff]
                  %414 = vst [vmem:[%s356 + $0xe0] sm:$0xff] %v413
                  %v415 = vld [vmem:[%s355 + $0x1d0] sm:$0xff]
                  %416 = vst [vmem:[%s356 + $0xe8] sm:$0xff] %v415
                  %v417 = vld [vmem:[%s355 + $0x1e0] sm:$0xff]
                  %418 = vst [vmem:[%s356 + $0xf0] sm:$0xff] %v417
                  %v419 = vld [vmem:[%s355 + $0x1f0] sm:$0xff]
                  %420 = vst [vmem:[%s356 + $0xf8] sm:$0xff] %v419
                $region72: #{modeler_forward.6} parent=66 // loop_footer
                  %s354 = sadd.s32 1, %s350
                $region73: #{modeler_forward.6} parent=66 // loop_footer_branch
                  %349 = sbr.rel target = $region69
                $region74: #{modeler_forward.6} parent=66 // loop_exit
                  _
              $region67: #{modeler_forward.6} parent=51 // pred_fallthru
                _
              // Predicated region
              $region75: #{modeler_forward.6} parent=51 // pred_check
                _
              $region76: #{modeler_forward.6} parent=51 // pred_check_branch
                %422 = sbr.rel target = $region78
              $region77: #{modeler_forward.6} parent=51 // pred_region
                _
              $region78: #{modeler_forward.6} parent=51 // pred_fallthru
                _
            $region52: #{modeler_forward.6} parent=47 // pred_fallthru
              _
            // Predicated region
            $region53: #{modeler_forward.6} parent=47 // pred_check
              _
            $region54: #{modeler_forward.6} parent=47 // pred_check_branch
              %272 = sbr.rel target = $region56
            $region55: #{modeler_forward.6} parent=47 // pred_region
              %s274 = ssub.s32 256, 1
              loop: start=0, step=1, limit=1
              $region57: #{modeler_forward.6} parent=55 // loop_pre_header
                _
              $region58: #{modeler_forward.6} parent=55 // loop_header
                %s276 = sphi 0, %s280
                %p277 = scmp.ge.s32.totalorder %s276, 1
                %s281 = sphi %s266, %s266
                %s282 = sphi %s260, %s260
              $region59: #{modeler_forward.6} parent=55 // loop_header_branch
                %279 = sbr.rel (%p277) target = $region63
              $region60: #{modeler_forward.6} parent=55 // loop_body
                %v283 = vld [vmem:[%s281] sm:%s274]
                %284 = vst [vmem:[%s282] sm:%s274] %v283
                %v285 = vld [vmem:[%s281 + $0x10] sm:%s274]
                %286 = vst [vmem:[%s282 + $0x8] sm:%s274] %v285
                %v287 = vld [vmem:[%s281 + $0x20] sm:%s274]
                %288 = vst [vmem:[%s282 + $0x10] sm:%s274] %v287
                %v289 = vld [vmem:[%s281 + $0x30] sm:%s274]
                %290 = vst [vmem:[%s282 + $0x18] sm:%s274] %v289
                %v291 = vld [vmem:[%s281 + $0x40] sm:%s274]
                %292 = vst [vmem:[%s282 + $0x20] sm:%s274] %v291
                %v293 = vld [vmem:[%s281 + $0x50] sm:%s274]
                %294 = vst [vmem:[%s282 + $0x28] sm:%s274] %v293
                %v295 = vld [vmem:[%s281 + $0x60] sm:%s274]
                %296 = vst [vmem:[%s282 + $0x30] sm:%s274] %v295
                %v297 = vld [vmem:[%s281 + $0x70] sm:%s274]
                %298 = vst [vmem:[%s282 + $0x38] sm:%s274] %v297
                %v299 = vld [vmem:[%s281 + $0x80] sm:%s274]
                %300 = vst [vmem:[%s282 + $0x40] sm:%s274] %v299
                %v301 = vld [vmem:[%s281 + $0x90] sm:%s274]
                %302 = vst [vmem:[%s282 + $0x48] sm:%s274] %v301
                %v303 = vld [vmem:[%s281 + $0xa0] sm:%s274]
                %304 = vst [vmem:[%s282 + $0x50] sm:%s274] %v303
                %v305 = vld [vmem:[%s281 + $0xb0] sm:%s274]
                %306 = vst [vmem:[%s282 + $0x58] sm:%s274] %v305
                %v307 = vld [vmem:[%s281 + $0xc0] sm:%s274]
                %308 = vst [vmem:[%s282 + $0x60] sm:%s274] %v307
                %v309 = vld [vmem:[%s281 + $0xd0] sm:%s274]
                %310 = vst [vmem:[%s282 + $0x68] sm:%s274] %v309
                %v311 = vld [vmem:[%s281 + $0xe0] sm:%s274]
                %312 = vst [vmem:[%s282 + $0x70] sm:%s274] %v311
                %v313 = vld [vmem:[%s281 + $0xf0] sm:%s274]
                %314 = vst [vmem:[%s282 + $0x78] sm:%s274] %v313
                %v315 = vld [vmem:[%s281 + $0x100] sm:%s274]
                %316 = vst [vmem:[%s282 + $0x80] sm:%s274] %v315
                %v317 = vld [vmem:[%s281 + $0x110] sm:%s274]
                %318 = vst [vmem:[%s282 + $0x88] sm:%s274] %v317
                %v319 = vld [vmem:[%s281 + $0x120] sm:%s274]
                %320 = vst [vmem:[%s282 + $0x90] sm:%s274] %v319
                %v321 = vld [vmem:[%s281 + $0x130] sm:%s274]
                %322 = vst [vmem:[%s282 + $0x98] sm:%s274] %v321
                %v323 = vld [vmem:[%s281 + $0x140] sm:%s274]
                %324 = vst [vmem:[%s282 + $0xa0] sm:%s274] %v323
                %v325 = vld [vmem:[%s281 + $0x150] sm:%s274]
                %326 = vst [vmem:[%s282 + $0xa8] sm:%s274] %v325
                %v327 = vld [vmem:[%s281 + $0x160] sm:%s274]
                %328 = vst [vmem:[%s282 + $0xb0] sm:%s274] %v327
                %v329 = vld [vmem:[%s281 + $0x170] sm:%s274]
                %330 = vst [vmem:[%s282 + $0xb8] sm:%s274] %v329
                %v331 = vld [vmem:[%s281 + $0x180] sm:%s274]
                %332 = vst [vmem:[%s282 + $0xc0] sm:%s274] %v331
                %v333 = vld [vmem:[%s281 + $0x190] sm:%s274]
                %334 = vst [vmem:[%s282 + $0xc8] sm:%s274] %v333
                %v335 = vld [vmem:[%s281 + $0x1a0] sm:%s274]
                %336 = vst [vmem:[%s282 + $0xd0] sm:%s274] %v335
                %v337 = vld [vmem:[%s281 + $0x1b0] sm:%s274]
                %338 = vst [vmem:[%s282 + $0xd8] sm:%s274] %v337
                %v339 = vld [vmem:[%s281 + $0x1c0] sm:%s274]
                %340 = vst [vmem:[%s282 + $0xe0] sm:%s274] %v339
                %v341 = vld [vmem:[%s281 + $0x1d0] sm:%s274]
                %342 = vst [vmem:[%s282 + $0xe8] sm:%s274] %v341
                %v343 = vld [vmem:[%s281 + $0x1e0] sm:%s274]
                %344 = vst [vmem:[%s282 + $0xf0] sm:%s274] %v343
                %v345 = vld [vmem:[%s281 + $0x1f0] sm:%s274]
                %346 = vst [vmem:[%s282 + $0xf8] sm:%s274] %v345
              $region61: #{modeler_forward.6} parent=55 // loop_footer
                %s280 = sadd.s32 1, %s276
              $region62: #{modeler_forward.6} parent=55 // loop_footer_branch
                %275 = sbr.rel target = $region58
              $region63: #{modeler_forward.6} parent=55 // loop_exit
                _
            $region56: #{modeler_forward.6} parent=47 // pred_fallthru
              _
          $region48: #{modeler_forward.6} parent=43 // pred_fallthru
            _
          %423 = vnop
        $region44: #{modeler_forward.6} parent=35 // pred_fallthru
          _
      $region36: #{modeler_forward.6} parent=5 // pred_fallthru
        _
      %p424 = scmp.le.s32.totalorder 1, %s14
      %p425 = scmp.lt.s32.totalorder %s14, 5
      %p426 = pnand %p424, %p425
      %p427 = pneg %p426
      // Predicated region
      $region79: #{modeler_forward.6} parent=5 // pred_check
        _
      $region80: #{modeler_forward.6} parent=5 // pred_check_branch
        %429 = sbr.rel (%p426) target = $region82
      $region81: #{modeler_forward.6} parent=5 // pred_region
        %s430 = ssub.s32 %s14, 1
        %s431 = sand.u32 %s88, 1
        %s432 = sand.u32 %s88, 1
        %s433 = smul.addr %s432, 256
        %s434 = scalar_lea.vmem [#allocation4], %s433
        // Predicated region
        $region83: #{modeler_forward.6} parent=81 // pred_check
          %p435 = pneg %p101
        $region84: #{modeler_forward.6} parent=81 // pred_check_branch
          %437 = sbr.rel (%p435) target = $region86
        $region85: #{modeler_forward.6} parent=81 // pred_region
          _
        $region86: #{modeler_forward.6} parent=81 // pred_fallthru
          _
        %p438 = pneg %p47
        %p439 = pneg %p44
        %s440 = smul.u32 32, %s24
        %p441 = scmp.lt.s32.totalorder %s440, 63
        %s442 = scalar_select %p441, %s440, 63
        %s443 = smul.addr %s442, 4
        %s444 = scalar_lea.vmem %s1, %s443
        %p445 = pneg %p73
        %p446 = pneg %p70
        %s447 = sand.u32 %s88, 1
        %s448 = sand.u32 %s88, 1
        %s449 = smul.addr %s448, 256
        %s450 = scalar_lea.vmem [#allocation4], %s449
        %p451 = pneg %p101
        %p452 = pneg %p98
        %p453 = pneg %p122
        %p454 = pneg %p119
        %p455 = pneg %p143
        %p456 = pneg %p140
        %p457 = pneg %p164
        %p458 = pneg %p161
        %p459 = pneg %p185
        %p460 = pneg %p182
        %p461 = pneg %p211
        %p462 = pneg %p208
        %s463 = smul.u32 32, %s23
        %p464 = scmp.lt.s32.totalorder %s463, 63
        %s465 = scalar_select %p464, %s463, 63
        %s466 = smul.addr %s465, 8
        %s467 = scalar_lea.vmem %s7, %s466
        %s468 = smul.u32 32, %s24
        %p469 = scmp.lt.s32.totalorder %s468, 63
        %s470 = scalar_select %p469, %s468, 63
        %s471 = smul.addr %s470, 4
        %s472 = scalar_lea.vmem %s1, %s471
        %s473 = smul.u32 32, %s24
        %s474 = smul.u32 32, %s23
        %s475 = smul.u32 2, %s24
        %s476 = smul.u32 32, %s23
        %p477 = scmp.lt.s32.totalorder %s476, 63
        %s478 = scalar_select %p477, %s476, 63
        %s479 = smul.addr %s478, 8
        %s480 = scalar_lea.vmem %s7, %s479
        %s481 = smul.u32 32, %s23
        %s483 = sld [smem:[#allocation3]]
        %p484 = scmp.eq.s32.totalorder %s24, 0
        // Predicated region
        $region87: #{modeler_forward.6} parent=81 // pred_check
          %p485 = pneg %p484
        $region88: #{modeler_forward.6} parent=81 // pred_check_branch
          %487 = sbr.rel (%p485) target = $region90
        $region89: #{modeler_forward.6} parent=81 // pred_region
          %vm488 = vcmask 261120
          %489 = vst.msk [vmem:[#allocation2] sm:$0xff] %vm488, 0.0
          %490 = vst.msk [vmem:[#allocation2 + $0x8] sm:$0xff] %vm488, 0.0
          %491 = vst.msk [vmem:[#allocation2 + $0x10] sm:$0xff] %vm488, 0.0
          %492 = vst.msk [vmem:[#allocation2 + $0x18] sm:$0xff] %vm488, 0.0
          %493 = vst.msk [vmem:[#allocation2 + $0x20] sm:$0xff] %vm488, 0.0
          %494 = vst.msk [vmem:[#allocation2 + $0x28] sm:$0xff] %vm488, 0.0
          %495 = vst.msk [vmem:[#allocation2 + $0x30] sm:$0xff] %vm488, 0.0
          %496 = vst.msk [vmem:[#allocation2 + $0x38] sm:$0xff] %vm488, 0.0
          %497 = vst.msk [vmem:[#allocation2 + $0x40] sm:$0xff] %vm488, 0.0
          %498 = vst.msk [vmem:[#allocation2 + $0x48] sm:$0xff] %vm488, 0.0
          %499 = vst.msk [vmem:[#allocation2 + $0x50] sm:$0xff] %vm488, 0.0
          %500 = vst.msk [vmem:[#allocation2 + $0x58] sm:$0xff] %vm488, 0.0
          %501 = vst.msk [vmem:[#allocation2 + $0x60] sm:$0xff] %vm488, 0.0
          %502 = vst.msk [vmem:[#allocation2 + $0x68] sm:$0xff] %vm488, 0.0
          %503 = vst.msk [vmem:[#allocation2 + $0x70] sm:$0xff] %vm488, 0.0
          %504 = vst.msk [vmem:[#allocation2 + $0x78] sm:$0xff] %vm488, 0.0
          %505 = vst.msk [vmem:[#allocation2 + $0x80] sm:$0xff] %vm488, 0.0
          %506 = vst.msk [vmem:[#allocation2 + $0x88] sm:$0xff] %vm488, 0.0
          %507 = vst.msk [vmem:[#allocation2 + $0x90] sm:$0xff] %vm488, 0.0
          %508 = vst.msk [vmem:[#allocation2 + $0x98] sm:$0xff] %vm488, 0.0
          %509 = vst.msk [vmem:[#allocation2 + $0xa0] sm:$0xff] %vm488, 0.0
          %510 = vst.msk [vmem:[#allocation2 + $0xa8] sm:$0xff] %vm488, 0.0
          %511 = vst.msk [vmem:[#allocation2 + $0xb0] sm:$0xff] %vm488, 0.0
          %512 = vst.msk [vmem:[#allocation2 + $0xb8] sm:$0xff] %vm488, 0.0
          %513 = vst.msk [vmem:[#allocation2 + $0xc0] sm:$0xff] %vm488, 0.0
          %514 = vst.msk [vmem:[#allocation2 + $0xc8] sm:$0xff] %vm488, 0.0
          %515 = vst.msk [vmem:[#allocation2 + $0xd0] sm:$0xff] %vm488, 0.0
          %516 = vst.msk [vmem:[#allocation2 + $0xd8] sm:$0xff] %vm488, 0.0
          %517 = vst.msk [vmem:[#allocation2 + $0xe0] sm:$0xff] %vm488, 0.0
          %518 = vst.msk [vmem:[#allocation2 + $0xe8] sm:$0xff] %vm488, 0.0
          %519 = vst.msk [vmem:[#allocation2 + $0xf0] sm:$0xff] %vm488, 0.0
          %520 = vst.msk [vmem:[#allocation2 + $0xf8] sm:$0xff] %vm488, 0.0
        $region90: #{modeler_forward.6} parent=81 // pred_fallthru
          _
        %v521 = vld [vmem:[%s472] sm:$0xf]
        %v522 = vld [vmem:[%s472 + $0x4] sm:$0xf]
        %v523 = vld [vmem:[%s472 + $0x8] sm:$0xf]
        %v524 = vld [vmem:[%s472 + $0xc] sm:$0xf]
        %v525 = vld [vmem:[%s472 + $0x10] sm:$0xf]
        %v526 = vld [vmem:[%s472 + $0x14] sm:$0xf]
        %v527 = vld [vmem:[%s472 + $0x18] sm:$0xf]
        %v528 = vld [vmem:[%s472 + $0x1c] sm:$0xf]
        %v529 = vld [vmem:[%s472 + $0x20] sm:$0xf]
        %v530 = vld [vmem:[%s472 + $0x24] sm:$0xf]
        %v531 = vld [vmem:[%s472 + $0x28] sm:$0xf]
        %v532 = vld [vmem:[%s472 + $0x2c] sm:$0xf]
        %v533 = vld [vmem:[%s472 + $0x30] sm:$0xf]
        %v534 = vld [vmem:[%s472 + $0x34] sm:$0xf]
        %v535 = vld [vmem:[%s472 + $0x38] sm:$0xf]
        %v536 = vld [vmem:[%s472 + $0x3c] sm:$0xf]
        %v537 = vld [vmem:[%s472 + $0x40] sm:$0xf]
        %v538 = vld [vmem:[%s472 + $0x44] sm:$0xf]
        %v539 = vld [vmem:[%s472 + $0x48] sm:$0xf]
        %v540 = vld [vmem:[%s472 + $0x4c] sm:$0xf]
        %v541 = vld [vmem:[%s472 + $0x50] sm:$0xf]
        %v542 = vld [vmem:[%s472 + $0x54] sm:$0xf]
        %v543 = vld [vmem:[%s472 + $0x58] sm:$0xf]
        %v544 = vld [vmem:[%s472 + $0x5c] sm:$0xf]
        %v545 = vld [vmem:[%s472 + $0x60] sm:$0xf]
        %v546 = vld [vmem:[%s472 + $0x64] sm:$0xf]
        %v547 = vld [vmem:[%s472 + $0x68] sm:$0xf]
        %v548 = vld [vmem:[%s472 + $0x6c] sm:$0xf]
        %v549 = vld [vmem:[%s472 + $0x70] sm:$0xf]
        %v550 = vld [vmem:[%s472 + $0x74] sm:$0xf]
        %v551 = vld [vmem:[%s472 + $0x78] sm:$0xf]
        %v552 = vld [vmem:[%s472 + $0x7c] sm:$0xf]
        %v553 = vld [vmem:[%s3] sm:$0xf]
        %v554 = vld [vmem:[%s3 + $0x4] sm:$0xf]
        %v555 = vld [vmem:[%s3 + $0x8] sm:$0xf]
        %v556 = vld [vmem:[%s3 + $0xc] sm:$0xf]
        %v557 = vld [vmem:[%s3 + $0x10] sm:$0xf]
        %v558 = vld [vmem:[%s3 + $0x14] sm:$0xf]
        %v559 = vld [vmem:[%s3 + $0x18] sm:$0xf]
        %v560 = vld [vmem:[%s3 + $0x1c] sm:$0xf]
        %v593 = vunpack.c.l.b16 %v521
        %v594 = vunpack.c.l.b16 %v522
        %v595 = vunpack.c.l.b16 %v523
        %v596 = vunpack.c.l.b16 %v524
        %v597 = vunpack.c.l.b16 %v525
        %v598 = vunpack.c.l.b16 %v526
        %v599 = vunpack.c.l.b16 %v527
        %v600 = vunpack.c.l.b16 %v528
        %v601 = vunpack.c.l.b16 %v529
        %v602 = vunpack.c.l.b16 %v530
        %v603 = vunpack.c.l.b16 %v531
        %v604 = vunpack.c.l.b16 %v532
        %v605 = vunpack.c.l.b16 %v533
        %v606 = vunpack.c.l.b16 %v534
        %v607 = vunpack.c.l.b16 %v535
        %v608 = vunpack.c.l.b16 %v536
        %v609 = vunpack.c.l.b16 %v537
        %v610 = vunpack.c.l.b16 %v538
        %v611 = vunpack.c.l.b16 %v539
        %v612 = vunpack.c.l.b16 %v540
        %v613 = vunpack.c.l.b16 %v541
        %v614 = vunpack.c.l.b16 %v542
        %v615 = vunpack.c.l.b16 %v543
        %v616 = vunpack.c.l.b16 %v544
        %v617 = vunpack.c.l.b16 %v545
        %v618 = vunpack.c.l.b16 %v546
        %v619 = vunpack.c.l.b16 %v547
        %v620 = vunpack.c.l.b16 %v548
        %v621 = vunpack.c.l.b16 %v549
        %v622 = vunpack.c.l.b16 %v550
        %v623 = vunpack.c.l.b16 %v551
        %v624 = vunpack.c.l.b16 %v552
        %v625 = vpack.c.b16 %v594, %v593
        %v626 = vpack.c.b16 %v596, %v595
        %v627 = vpack.c.b16 %v598, %v597
        %v628 = vpack.c.b16 %v600, %v599
        %v629 = vpack.c.b16 %v602, %v601
        %v630 = vpack.c.b16 %v604, %v603
        %v631 = vpack.c.b16 %v606, %v605
        %v632 = vpack.c.b16 %v608, %v607
        %v633 = vpack.c.b16 %v610, %v609
        %v634 = vpack.c.b16 %v612, %v611
        %v635 = vpack.c.b16 %v614, %v613
        %v636 = vpack.c.b16 %v616, %v615
        %v637 = vpack.c.b16 %v618, %v617
        %v638 = vpack.c.b16 %v620, %v619
        %v639 = vpack.c.b16 %v622, %v621
        %v640 = vpack.c.b16 %v624, %v623
        %v649 = vunpack.c.l.b16 %v553
        %v650 = vunpack.c.l.b16 %v554
        %v651 = vunpack.c.l.b16 %v555
        %v652 = vunpack.c.l.b16 %v556
        %v653 = vunpack.c.l.b16 %v557
        %v654 = vunpack.c.l.b16 %v558
        %v655 = vunpack.c.l.b16 %v559
        %v656 = vunpack.c.l.b16 %v560
        %v657 = vpack.c.b16 %v650, %v649
        %v658 = vpack.c.b16 %v652, %v651
        %v659 = vpack.c.b16 %v654, %v653
        %v660 = vpack.c.b16 %v656, %v655
        %vm665 = vcmask 523264
        %v667 = vsel %vm665, %v625, 0
        %v670 = vsel %vm665, %v626, 0
        %v673 = vsel %vm665, %v627, 0
        %v676 = vsel %vm665, %v628, 0
        %v679 = vsel %vm665, %v629, 0
        %v682 = vsel %vm665, %v630, 0
        %v685 = vsel %vm665, %v631, 0
        %v688 = vsel %vm665, %v632, 0
        %v691 = vsel %vm665, %v633, 0
        %v694 = vsel %vm665, %v634, 0
        %v697 = vsel %vm665, %v635, 0
        %v700 = vsel %vm665, %v636, 0
        %v703 = vsel %vm665, %v637, 0
        %v706 = vsel %vm665, %v638, 0
        %v709 = vsel %vm665, %v639, 0
        %v712 = vsel %vm665, %v640, 0
        %714 = vmatpush.bf16.msra.mxu0 0
        %715 = vmatpush.bf16.msra.mxu0 0
        %716 = vmatpush.bf16.msra.mxu0 0
        %717 = vmatpush.bf16.msra.mxu0 0
        %718 = vmatpush.bf16.msra.mxu0 %v660
        %719 = vmatpush.bf16.msra.mxu0 %v659
        %720 = vmatpush.bf16.msra.mxu0 %v658
        %721 = vmatpush.bf16.msra.mxu0 %v657
        %722 = vmatmul.bf16.gmra.mxu0 %v667
        %v723 = vpop.f32.mrf.mxu0
        %v724 = vadd.f32 0.0, %v723
        %v725 = vpop.f32.mrf.mxu0
        %v726 = vadd.f32 0.0, %v725
        %727 = vmatmul.bf16.gmra.mxu0 %v670
        %v728 = vpop.f32.mrf.mxu0
        %v729 = vadd.f32 0.0, %v728
        %v730 = vpop.f32.mrf.mxu0
        %v731 = vadd.f32 0.0, %v730
        %732 = vmatmul.bf16.gmra.mxu0 %v673
        %v733 = vpop.f32.mrf.mxu0
        %v734 = vadd.f32 0.0, %v733
        %v735 = vpop.f32.mrf.mxu0
        %v736 = vadd.f32 0.0, %v735
        %737 = vmatmul.bf16.gmra.mxu0 %v676
        %v738 = vpop.f32.mrf.mxu0
        %v739 = vadd.f32 0.0, %v738
        %v740 = vpop.f32.mrf.mxu0
        %v741 = vadd.f32 0.0, %v740
        %742 = vmatmul.bf16.gmra.mxu0 %v679
        %v743 = vpop.f32.mrf.mxu0
        %v744 = vadd.f32 0.0, %v743
        %v745 = vpop.f32.mrf.mxu0
        %v746 = vadd.f32 0.0, %v745
        %747 = vmatmul.bf16.gmra.mxu0 %v682
        %v748 = vpop.f32.mrf.mxu0
        %v749 = vadd.f32 0.0, %v748
        %v750 = vpop.f32.mrf.mxu0
        %v751 = vadd.f32 0.0, %v750
        %752 = vmatmul.bf16.gmra.mxu0 %v685
        %v753 = vpop.f32.mrf.mxu0
        %v754 = vadd.f32 0.0, %v753
        %v755 = vpop.f32.mrf.mxu0
        %v756 = vadd.f32 0.0, %v755
        %757 = vmatmul.bf16.gmra.mxu0 %v688
        %v758 = vpop.f32.mrf.mxu0
        %v759 = vadd.f32 0.0, %v758
        %v760 = vpop.f32.mrf.mxu0
        %v761 = vadd.f32 0.0, %v760
        %762 = vmatmul.bf16.gmra.mxu0 %v691
        %v763 = vpop.f32.mrf.mxu0
        %v764 = vadd.f32 0.0, %v763
        %v765 = vpop.f32.mrf.mxu0
        %v766 = vadd.f32 0.0, %v765
        %767 = vmatmul.bf16.gmra.mxu0 %v694
        %v768 = vpop.f32.mrf.mxu0
        %v769 = vadd.f32 0.0, %v768
        %v770 = vpop.f32.mrf.mxu0
        %v771 = vadd.f32 0.0, %v770
        %772 = vmatmul.bf16.gmra.mxu0 %v697
        %v773 = vpop.f32.mrf.mxu0
        %v774 = vadd.f32 0.0, %v773
        %v775 = vpop.f32.mrf.mxu0
        %v776 = vadd.f32 0.0, %v775
        %777 = vmatmul.bf16.gmra.mxu0 %v700
        %v778 = vpop.f32.mrf.mxu0
        %v779 = vadd.f32 0.0, %v778
        %v780 = vpop.f32.mrf.mxu0
        %v781 = vadd.f32 0.0, %v780
        %782 = vmatmul.bf16.gmra.mxu0 %v703
        %v783 = vpop.f32.mrf.mxu0
        %v784 = vadd.f32 0.0, %v783
        %v785 = vpop.f32.mrf.mxu0
        %v786 = vadd.f32 0.0, %v785
        %787 = vmatmul.bf16.gmra.mxu0 %v706
        %v788 = vpop.f32.mrf.mxu0
        %v789 = vadd.f32 0.0, %v788
        %v790 = vpop.f32.mrf.mxu0
        %v791 = vadd.f32 0.0, %v790
        %792 = vmatmul.bf16.gmra.mxu0 %v709
        %v793 = vpop.f32.mrf.mxu0
        %v794 = vadd.f32 0.0, %v793
        %v795 = vpop.f32.mrf.mxu0
        %v796 = vadd.f32 0.0, %v795
        %797 = vmatmul.bf16.gmra.mxu0 %v712
        %v798 = vpop.f32.mrf.mxu0
        %v799 = vadd.f32 0.0, %v798
        %v800 = vpop.f32.mrf.mxu0
        %v801 = vadd.f32 0.0, %v800
        %802 = vdwg.mxu0
        %v803 = vld [vmem:[#allocation2] sm:$0xff]
        %v804 = vld [vmem:[#allocation2 + $0x8] sm:$0xff]
        %v805 = vld [vmem:[#allocation2 + $0x10] sm:$0xff]
        %v806 = vld [vmem:[#allocation2 + $0x18] sm:$0xff]
        %v807 = vld [vmem:[#allocation2 + $0x20] sm:$0xff]
        %v808 = vld [vmem:[#allocation2 + $0x28] sm:$0xff]
        %v809 = vld [vmem:[#allocation2 + $0x30] sm:$0xff]
        %v810 = vld [vmem:[#allocation2 + $0x38] sm:$0xff]
        %v811 = vld [vmem:[#allocation2 + $0x40] sm:$0xff]
        %v812 = vld [vmem:[#allocation2 + $0x48] sm:$0xff]
        %v813 = vld [vmem:[#allocation2 + $0x50] sm:$0xff]
        %v814 = vld [vmem:[#allocation2 + $0x58] sm:$0xff]
        %v815 = vld [vmem:[#allocation2 + $0x60] sm:$0xff]
        %v816 = vld [vmem:[#allocation2 + $0x68] sm:$0xff]
        %v817 = vld [vmem:[#allocation2 + $0x70] sm:$0xff]
        %v818 = vld [vmem:[#allocation2 + $0x78] sm:$0xff]
        %v819 = vld [vmem:[#allocation2 + $0x80] sm:$0xff]
        %v820 = vld [vmem:[#allocation2 + $0x88] sm:$0xff]
        %v821 = vld [vmem:[#allocation2 + $0x90] sm:$0xff]
        %v822 = vld [vmem:[#allocation2 + $0x98] sm:$0xff]
        %v823 = vld [vmem:[#allocation2 + $0xa0] sm:$0xff]
        %v824 = vld [vmem:[#allocation2 + $0xa8] sm:$0xff]
        %v825 = vld [vmem:[#allocation2 + $0xb0] sm:$0xff]
        %v826 = vld [vmem:[#allocation2 + $0xb8] sm:$0xff]
        %v827 = vld [vmem:[#allocation2 + $0xc0] sm:$0xff]
        %v828 = vld [vmem:[#allocation2 + $0xc8] sm:$0xff]
        %v829 = vld [vmem:[#allocation2 + $0xd0] sm:$0xff]
        %v830 = vld [vmem:[#allocation2 + $0xd8] sm:$0xff]
        %v831 = vld [vmem:[#allocation2 + $0xe0] sm:$0xff]
        %v832 = vld [vmem:[#allocation2 + $0xe8] sm:$0xff]
        %v833 = vld [vmem:[#allocation2 + $0xf0] sm:$0xff]
        %v834 = vld [vmem:[#allocation2 + $0xf8] sm:$0xff]
        %v835 = vld [vmem:[%s434] sm:$0xff]
        %v836 = vld [vmem:[%s434 + $0x8] sm:$0xff]
        %v837 = vld [vmem:[%s434 + $0x10] sm:$0xff]
        %v838 = vld [vmem:[%s434 + $0x18] sm:$0xff]
        %v839 = vld [vmem:[%s434 + $0x20] sm:$0xff]
        %v840 = vld [vmem:[%s434 + $0x28] sm:$0xff]
        %v841 = vld [vmem:[%s434 + $0x30] sm:$0xff]
        %v842 = vld [vmem:[%s434 + $0x38] sm:$0xff]
        %v843 = vld [vmem:[%s434 + $0x40] sm:$0xff]
        %v844 = vld [vmem:[%s434 + $0x48] sm:$0xff]
        %v845 = vld [vmem:[%s434 + $0x50] sm:$0xff]
        %v846 = vld [vmem:[%s434 + $0x58] sm:$0xff]
        %v847 = vld [vmem:[%s434 + $0x60] sm:$0xff]
        %v848 = vld [vmem:[%s434 + $0x68] sm:$0xff]
        %v849 = vld [vmem:[%s434 + $0x70] sm:$0xff]
        %v850 = vld [vmem:[%s434 + $0x78] sm:$0xff]
        %v851 = vld [vmem:[%s434 + $0x80] sm:$0xff]
        %v852 = vld [vmem:[%s434 + $0x88] sm:$0xff]
        %v853 = vld [vmem:[%s434 + $0x90] sm:$0xff]
        %v854 = vld [vmem:[%s434 + $0x98] sm:$0xff]
        %v855 = vld [vmem:[%s434 + $0xa0] sm:$0xff]
        %v856 = vld [vmem:[%s434 + $0xa8] sm:$0xff]
        %v857 = vld [vmem:[%s434 + $0xb0] sm:$0xff]
        %v858 = vld [vmem:[%s434 + $0xb8] sm:$0xff]
        %v859 = vld [vmem:[%s434 + $0xc0] sm:$0xff]
        %v860 = vld [vmem:[%s434 + $0xc8] sm:$0xff]
        %v861 = vld [vmem:[%s434 + $0xd0] sm:$0xff]
        %v862 = vld [vmem:[%s434 + $0xd8] sm:$0xff]
        %v863 = vld [vmem:[%s434 + $0xe0] sm:$0xff]
        %v864 = vld [vmem:[%s434 + $0xe8] sm:$0xff]
        %v865 = vld [vmem:[%s434 + $0xf0] sm:$0xff]
        %v866 = vld [vmem:[%s434 + $0xf8] sm:$0xff]
        %v867 = vpack.c.bf16 %v726, %v724
        %v868 = vpack.c.bf16 %v731, %v729
        %v869 = vpack.c.bf16 %v736, %v734
        %v870 = vpack.c.bf16 %v741, %v739
        %v871 = vpack.c.bf16 %v746, %v744
        %v872 = vpack.c.bf16 %v751, %v749
        %v873 = vpack.c.bf16 %v756, %v754
        %v874 = vpack.c.bf16 %v761, %v759
        %v875 = vpack.c.bf16 %v766, %v764
        %v876 = vpack.c.bf16 %v771, %v769
        %v877 = vpack.c.bf16 %v776, %v774
        %v878 = vpack.c.bf16 %v781, %v779
        %v879 = vpack.c.bf16 %v786, %v784
        %v880 = vpack.c.bf16 %v791, %v789
        %v881 = vpack.c.bf16 %v796, %v794
        %v882 = vpack.c.bf16 %v801, %v799
        %v915 = vunpack.c.l.b16 %v835
        %v916 = vunpack.c.h.b16 %v835
        %v917 = vunpack.c.l.b16 %v836
        %v918 = vunpack.c.h.b16 %v836
        %v919 = vunpack.c.l.b16 %v837
        %v920 = vunpack.c.h.b16 %v837
        %v921 = vunpack.c.l.b16 %v838
        %v922 = vunpack.c.h.b16 %v838
        %v923 = vunpack.c.l.b16 %v839
        %v924 = vunpack.c.h.b16 %v839
        %v925 = vunpack.c.l.b16 %v840
        %v926 = vunpack.c.h.b16 %v840
        %v927 = vunpack.c.l.b16 %v841
        %v928 = vunpack.c.h.b16 %v841
        %v929 = vunpack.c.l.b16 %v842
        %v930 = vunpack.c.h.b16 %v842
        %v931 = vunpack.c.l.b16 %v843
        %v932 = vunpack.c.h.b16 %v843
        %v933 = vunpack.c.l.b16 %v844
        %v934 = vunpack.c.h.b16 %v844
        %v935 = vunpack.c.l.b16 %v845
        %v936 = vunpack.c.h.b16 %v845
        %v937 = vunpack.c.l.b16 %v846
        %v938 = vunpack.c.h.b16 %v846
        %v939 = vunpack.c.l.b16 %v847
        %v940 = vunpack.c.h.b16 %v847
        %v941 = vunpack.c.l.b16 %v848
        %v942 = vunpack.c.h.b16 %v848
        %v943 = vunpack.c.l.b16 %v849
        %v944 = vunpack.c.h.b16 %v849
        %v945 = vunpack.c.l.b16 %v850
        %v946 = vunpack.c.h.b16 %v850
        %v947 = vunpack.c.l.b16 %v851
        %v948 = vunpack.c.h.b16 %v851
        %v949 = vunpack.c.l.b16 %v852
        %v950 = vunpack.c.h.b16 %v852
        %v951 = vunpack.c.l.b16 %v853
        %v952 = vunpack.c.h.b16 %v853
        %v953 = vunpack.c.l.b16 %v854
        %v954 = vunpack.c.h.b16 %v854
        %v955 = vunpack.c.l.b16 %v855
        %v956 = vunpack.c.h.b16 %v855
        %v957 = vunpack.c.l.b16 %v856
        %v958 = vunpack.c.h.b16 %v856
        %v959 = vunpack.c.l.b16 %v857
        %v960 = vunpack.c.h.b16 %v857
        %v961 = vunpack.c.l.b16 %v858
        %v962 = vunpack.c.h.b16 %v858
        %v963 = vunpack.c.l.b16 %v859
        %v964 = vunpack.c.h.b16 %v859
        %v965 = vunpack.c.l.b16 %v860
        %v966 = vunpack.c.h.b16 %v860
        %v967 = vunpack.c.l.b16 %v861
        %v968 = vunpack.c.h.b16 %v861
        %v969 = vunpack.c.l.b16 %v862
        %v970 = vunpack.c.h.b16 %v862
        %v971 = vunpack.c.l.b16 %v863
        %v972 = vunpack.c.h.b16 %v863
        %v973 = vunpack.c.l.b16 %v864
        %v974 = vunpack.c.h.b16 %v864
        %v975 = vunpack.c.l.b16 %v865
        %v976 = vunpack.c.h.b16 %v865
        %v977 = vunpack.c.l.b16 %v866
        %v978 = vunpack.c.h.b16 %v866
        %v979 = vpack.c.b16 %v917, %v915
        %v980 = vpack.c.b16 %v918, %v916
        %v981 = vpack.c.b16 %v921, %v919
        %v982 = vpack.c.b16 %v922, %v920
        %v983 = vpack.c.b16 %v925, %v923
        %v984 = vpack.c.b16 %v926, %v924
        %v985 = vpack.c.b16 %v929, %v927
        %v986 = vpack.c.b16 %v930, %v928
        %v987 = vpack.c.b16 %v933, %v931
        %v988 = vpack.c.b16 %v934, %v932
        %v989 = vpack.c.b16 %v937, %v935
        %v990 = vpack.c.b16 %v938, %v936
        %v991 = vpack.c.b16 %v941, %v939
        %v992 = vpack.c.b16 %v942, %v940
        %v993 = vpack.c.b16 %v945, %v943
        %v994 = vpack.c.b16 %v946, %v944
        %v995 = vpack.c.b16 %v949, %v947
        %v996 = vpack.c.b16 %v950, %v948
        %v997 = vpack.c.b16 %v953, %v951
        %v998 = vpack.c.b16 %v954, %v952
        %v999 = vpack.c.b16 %v957, %v955
        %v1000 = vpack.c.b16 %v958, %v956
        %v1001 = vpack.c.b16 %v961, %v959
        %v1002 = vpack.c.b16 %v962, %v960
        %v1003 = vpack.c.b16 %v965, %v963
        %v1004 = vpack.c.b16 %v966, %v964
        %v1005 = vpack.c.b16 %v969, %v967
        %v1006 = vpack.c.b16 %v970, %v968
        %v1007 = vpack.c.b16 %v973, %v971
        %v1008 = vpack.c.b16 %v974, %v972
        %v1009 = vpack.c.b16 %v977, %v975
        %v1010 = vpack.c.b16 %v978, %v976
        %1043 = vmatpush.bf16.msra.mxu0 %v874
        %1044 = vmatpush.bf16.msra.mxu0 %v873
        %1045 = vmatpush.bf16.msra.mxu0 %v872
        %1046 = vmatpush.bf16.msra.mxu0 %v871
        %1047 = vmatpush.bf16.msra.mxu0 %v870
        %1048 = vmatpush.bf16.msra.mxu0 %v869
        %1049 = vmatpush.bf16.msra.mxu0 %v868
        %1050 = vmatpush.bf16.msra.mxu0 %v867
        %1051 = vmatmul.bf16.gmra.mxu0 %v979
        %v1052 = vpop.f32.mrf.mxu0
        %v1053 = vadd.f32 0.0, %v1052
        %v1054 = vpop.f32.mrf.mxu0
        %v1055 = vadd.f32 0.0, %v1054
        %1056 = vmatmul.bf16.gmra.mxu0 %v981
        %v1057 = vpop.f32.mrf.mxu0
        %v1058 = vadd.f32 0.0, %v1057
        %v1059 = vpop.f32.mrf.mxu0
        %v1060 = vadd.f32 0.0, %v1059
        %1061 = vmatmul.bf16.gmra.mxu0 %v983
        %v1062 = vpop.f32.mrf.mxu0
        %v1063 = vadd.f32 0.0, %v1062
        %v1064 = vpop.f32.mrf.mxu0
        %v1065 = vadd.f32 0.0, %v1064
        %1066 = vmatmul.bf16.gmra.mxu0 %v985
        %v1067 = vpop.f32.mrf.mxu0
        %v1068 = vadd.f32 0.0, %v1067
        %v1069 = vpop.f32.mrf.mxu0
        %v1070 = vadd.f32 0.0, %v1069
        %1071 = vmatmul.bf16.gmra.mxu0 %v987
        %v1072 = vpop.f32.mrf.mxu0
        %v1073 = vadd.f32 0.0, %v1072
        %v1074 = vpop.f32.mrf.mxu0
        %v1075 = vadd.f32 0.0, %v1074
        %1076 = vmatmul.bf16.gmra.mxu0 %v989
        %v1077 = vpop.f32.mrf.mxu0
        %v1078 = vadd.f32 0.0, %v1077
        %v1079 = vpop.f32.mrf.mxu0
        %v1080 = vadd.f32 0.0, %v1079
        %1081 = vmatmul.bf16.gmra.mxu0 %v991
        %v1082 = vpop.f32.mrf.mxu0
        %v1083 = vadd.f32 0.0, %v1082
        %v1084 = vpop.f32.mrf.mxu0
        %v1085 = vadd.f32 0.0, %v1084
        %1086 = vmatmul.bf16.gmra.mxu0 %v993
        %v1087 = vpop.f32.mrf.mxu0
        %v1088 = vadd.f32 0.0, %v1087
        %v1089 = vpop.f32.mrf.mxu0
        %v1090 = vadd.f32 0.0, %v1089
        %1091 = vmatmul.bf16.gmra.mxu0 %v995
        %v1092 = vpop.f32.mrf.mxu0
        %v1093 = vadd.f32 0.0, %v1092
        %v1094 = vpop.f32.mrf.mxu0
        %v1095 = vadd.f32 0.0, %v1094
        %1096 = vmatmul.bf16.gmra.mxu0 %v997
        %v1097 = vpop.f32.mrf.mxu0
        %v1098 = vadd.f32 0.0, %v1097
        %v1099 = vpop.f32.mrf.mxu0
        %v1100 = vadd.f32 0.0, %v1099
        %1101 = vmatmul.bf16.gmra.mxu0 %v999
        %v1102 = vpop.f32.mrf.mxu0
        %v1103 = vadd.f32 0.0, %v1102
        %v1104 = vpop.f32.mrf.mxu0
        %v1105 = vadd.f32 0.0, %v1104
        %1106 = vmatmul.bf16.gmra.mxu0 %v1001
        %v1107 = vpop.f32.mrf.mxu0
        %v1108 = vadd.f32 0.0, %v1107
        %v1109 = vpop.f32.mrf.mxu0
        %v1110 = vadd.f32 0.0, %v1109
        %1111 = vmatmul.bf16.gmra.mxu0 %v1003
        %v1112 = vpop.f32.mrf.mxu0
        %v1113 = vadd.f32 0.0, %v1112
        %v1114 = vpop.f32.mrf.mxu0
        %v1115 = vadd.f32 0.0, %v1114
        %1116 = vmatmul.bf16.gmra.mxu0 %v1005
        %v1117 = vpop.f32.mrf.mxu0
        %v1118 = vadd.f32 0.0, %v1117
        %v1119 = vpop.f32.mrf.mxu0
        %v1120 = vadd.f32 0.0, %v1119
        %1121 = vmatmul.bf16.gmra.mxu0 %v1007
        %v1122 = vpop.f32.mrf.mxu0
        %v1123 = vadd.f32 0.0, %v1122
        %v1124 = vpop.f32.mrf.mxu0
        %v1125 = vadd.f32 0.0, %v1124
        %1126 = vmatmul.bf16.gmra.mxu0 %v1009
        %v1127 = vpop.f32.mrf.mxu0
        %v1128 = vadd.f32 0.0, %v1127
        %v1129 = vpop.f32.mrf.mxu0
        %v1130 = vadd.f32 0.0, %v1129
        %1131 = vdwg.mxu0
        %1132 = vmatpush.bf16.msra.mxu0 %v882
        %1133 = vmatpush.bf16.msra.mxu0 %v881
        %1134 = vmatpush.bf16.msra.mxu0 %v880
        %1135 = vmatpush.bf16.msra.mxu0 %v879
        %1136 = vmatpush.bf16.msra.mxu0 %v878
        %1137 = vmatpush.bf16.msra.mxu0 %v877
        %1138 = vmatpush.bf16.msra.mxu0 %v876
        %1139 = vmatpush.bf16.msra.mxu0 %v875
        %1140 = vmatmul.bf16.gmra.mxu0 %v980
        %v1141 = vpop.f32.mrf.mxu0
        %v1142 = vadd.f32 %v1053, %v1141
        %v1143 = vpop.f32.mrf.mxu0
        %v1144 = vadd.f32 %v1055, %v1143
        %1145 = vmatmul.bf16.gmra.mxu0 %v982
        %v1146 = vpop.f32.mrf.mxu0
        %v1147 = vadd.f32 %v1058, %v1146
        %v1148 = vpop.f32.mrf.mxu0
        %v1149 = vadd.f32 %v1060, %v1148
        %1150 = vmatmul.bf16.gmra.mxu0 %v984
        %v1151 = vpop.f32.mrf.mxu0
        %v1152 = vadd.f32 %v1063, %v1151
        %v1153 = vpop.f32.mrf.mxu0
        %v1154 = vadd.f32 %v1065, %v1153
        %1155 = vmatmul.bf16.gmra.mxu0 %v986
        %v1156 = vpop.f32.mrf.mxu0
        %v1157 = vadd.f32 %v1068, %v1156
        %v1158 = vpop.f32.mrf.mxu0
        %v1159 = vadd.f32 %v1070, %v1158
        %1160 = vmatmul.bf16.gmra.mxu0 %v988
        %v1161 = vpop.f32.mrf.mxu0
        %v1162 = vadd.f32 %v1073, %v1161
        %v1163 = vpop.f32.mrf.mxu0
        %v1164 = vadd.f32 %v1075, %v1163
        %1165 = vmatmul.bf16.gmra.mxu0 %v990
        %v1166 = vpop.f32.mrf.mxu0
        %v1167 = vadd.f32 %v1078, %v1166
        %v1168 = vpop.f32.mrf.mxu0
        %v1169 = vadd.f32 %v1080, %v1168
        %1170 = vmatmul.bf16.gmra.mxu0 %v992
        %v1171 = vpop.f32.mrf.mxu0
        %v1172 = vadd.f32 %v1083, %v1171
        %v1173 = vpop.f32.mrf.mxu0
        %v1174 = vadd.f32 %v1085, %v1173
        %1175 = vmatmul.bf16.gmra.mxu0 %v994
        %v1176 = vpop.f32.mrf.mxu0
        %v1177 = vadd.f32 %v1088, %v1176
        %v1178 = vpop.f32.mrf.mxu0
        %v1179 = vadd.f32 %v1090, %v1178
        %1180 = vmatmul.bf16.gmra.mxu0 %v996
        %v1181 = vpop.f32.mrf.mxu0
        %v1182 = vadd.f32 %v1093, %v1181
        %v1183 = vpop.f32.mrf.mxu0
        %v1184 = vadd.f32 %v1095, %v1183
        %1185 = vmatmul.bf16.gmra.mxu0 %v998
        %v1186 = vpop.f32.mrf.mxu0
        %v1187 = vadd.f32 %v1098, %v1186
        %v1188 = vpop.f32.mrf.mxu0
        %v1189 = vadd.f32 %v1100, %v1188
        %1190 = vmatmul.bf16.gmra.mxu0 %v1000
        %v1191 = vpop.f32.mrf.mxu0
        %v1192 = vadd.f32 %v1103, %v1191
        %v1193 = vpop.f32.mrf.mxu0
        %v1194 = vadd.f32 %v1105, %v1193
        %1195 = vmatmul.bf16.gmra.mxu0 %v1002
        %v1196 = vpop.f32.mrf.mxu0
        %v1197 = vadd.f32 %v1108, %v1196
        %v1198 = vpop.f32.mrf.mxu0
        %v1199 = vadd.f32 %v1110, %v1198
        %1200 = vmatmul.bf16.gmra.mxu0 %v1004
        %v1201 = vpop.f32.mrf.mxu0
        %v1202 = vadd.f32 %v1113, %v1201
        %v1203 = vpop.f32.mrf.mxu0
        %v1204 = vadd.f32 %v1115, %v1203
        %1205 = vmatmul.bf16.gmra.mxu0 %v1006
        %v1206 = vpop.f32.mrf.mxu0
        %v1207 = vadd.f32 %v1118, %v1206
        %v1208 = vpop.f32.mrf.mxu0
        %v1209 = vadd.f32 %v1120, %v1208
        %1210 = vmatmul.bf16.gmra.mxu0 %v1008
        %v1211 = vpop.f32.mrf.mxu0
        %v1212 = vadd.f32 %v1123, %v1211
        %v1213 = vpop.f32.mrf.mxu0
        %v1214 = vadd.f32 %v1125, %v1213
        %1215 = vmatmul.bf16.gmra.mxu0 %v1010
        %v1216 = vpop.f32.mrf.mxu0
        %v1217 = vadd.f32 %v1128, %v1216
        %v1218 = vpop.f32.mrf.mxu0
        %v1219 = vadd.f32 %v1130, %v1218
        %1220 = vdwg.mxu0
        %v1221 = vadd.f32 %v803, %v1142
        %v1222 = vadd.f32 %v804, %v1144
        %v1223 = vadd.f32 %v805, %v1147
        %v1224 = vadd.f32 %v806, %v1149
        %v1225 = vadd.f32 %v807, %v1152
        %v1226 = vadd.f32 %v808, %v1154
        %v1227 = vadd.f32 %v809, %v1157
        %v1228 = vadd.f32 %v810, %v1159
        %v1229 = vadd.f32 %v811, %v1162
        %v1230 = vadd.f32 %v812, %v1164
        %v1231 = vadd.f32 %v813, %v1167
        %v1232 = vadd.f32 %v814, %v1169
        %v1233 = vadd.f32 %v815, %v1172
        %v1234 = vadd.f32 %v816, %v1174
        %v1235 = vadd.f32 %v817, %v1177
        %v1236 = vadd.f32 %v818, %v1179
        %v1237 = vadd.f32 %v819, %v1182
        %v1238 = vadd.f32 %v820, %v1184
        %v1239 = vadd.f32 %v821, %v1187
        %v1240 = vadd.f32 %v822, %v1189
        %v1241 = vadd.f32 %v823, %v1192
        %v1242 = vadd.f32 %v824, %v1194
        %v1243 = vadd.f32 %v825, %v1197
        %v1244 = vadd.f32 %v826, %v1199
        %v1245 = vadd.f32 %v827, %v1202
        %v1246 = vadd.f32 %v828, %v1204
        %v1247 = vadd.f32 %v829, %v1207
        %v1248 = vadd.f32 %v830, %v1209
        %v1249 = vadd.f32 %v831, %v1212
        %v1250 = vadd.f32 %v832, %v1214
        %v1251 = vadd.f32 %v833, %v1217
        %v1252 = vadd.f32 %v834, %v1219
        %vm1253 = vcmask 261120
        %1254 = vst.msk [vmem:[#allocation2] sm:$0xff] %vm1253, %v1221
        %1255 = vst.msk [vmem:[#allocation2 + $0x8] sm:$0xff] %vm1253, %v1222
        %1256 = vst.msk [vmem:[#allocation2 + $0x10] sm:$0xff] %vm1253, %v1223
        %1257 = vst.msk [vmem:[#allocation2 + $0x18] sm:$0xff] %vm1253, %v1224
        %1258 = vst.msk [vmem:[#allocation2 + $0x20] sm:$0xff] %vm1253, %v1225
        %1259 = vst.msk [vmem:[#allocation2 + $0x28] sm:$0xff] %vm1253, %v1226
        %1260 = vst.msk [vmem:[#allocation2 + $0x30] sm:$0xff] %vm1253, %v1227
        %1261 = vst.msk [vmem:[#allocation2 + $0x38] sm:$0xff] %vm1253, %v1228
        %1262 = vst.msk [vmem:[#allocation2 + $0x40] sm:$0xff] %vm1253, %v1229
        %1263 = vst.msk [vmem:[#allocation2 + $0x48] sm:$0xff] %vm1253, %v1230
        %1264 = vst.msk [vmem:[#allocation2 + $0x50] sm:$0xff] %vm1253, %v1231
        %1265 = vst.msk [vmem:[#allocation2 + $0x58] sm:$0xff] %vm1253, %v1232
        %1266 = vst.msk [vmem:[#allocation2 + $0x60] sm:$0xff] %vm1253, %v1233
        %1267 = vst.msk [vmem:[#allocation2 + $0x68] sm:$0xff] %vm1253, %v1234
        %1268 = vst.msk [vmem:[#allocation2 + $0x70] sm:$0xff] %vm1253, %v1235
        %1269 = vst.msk [vmem:[#allocation2 + $0x78] sm:$0xff] %vm1253, %v1236
        %1270 = vst.msk [vmem:[#allocation2 + $0x80] sm:$0xff] %vm1253, %v1237
        %1271 = vst.msk [vmem:[#allocation2 + $0x88] sm:$0xff] %vm1253, %v1238
        %1272 = vst.msk [vmem:[#allocation2 + $0x90] sm:$0xff] %vm1253, %v1239
        %1273 = vst.msk [vmem:[#allocation2 + $0x98] sm:$0xff] %vm1253, %v1240
        %1274 = vst.msk [vmem:[#allocation2 + $0xa0] sm:$0xff] %vm1253, %v1241
        %1275 = vst.msk [vmem:[#allocation2 + $0xa8] sm:$0xff] %vm1253, %v1242
        %1276 = vst.msk [vmem:[#allocation2 + $0xb0] sm:$0xff] %vm1253, %v1243
        %1277 = vst.msk [vmem:[#allocation2 + $0xb8] sm:$0xff] %vm1253, %v1244
        %1278 = vst.msk [vmem:[#allocation2 + $0xc0] sm:$0xff] %vm1253, %v1245
        %1279 = vst.msk [vmem:[#allocation2 + $0xc8] sm:$0xff] %vm1253, %v1246
        %1280 = vst.msk [vmem:[#allocation2 + $0xd0] sm:$0xff] %vm1253, %v1247
        %1281 = vst.msk [vmem:[#allocation2 + $0xd8] sm:$0xff] %vm1253, %v1248
        %1282 = vst.msk [vmem:[#allocation2 + $0xe0] sm:$0xff] %vm1253, %v1249
        %1283 = vst.msk [vmem:[#allocation2 + $0xe8] sm:$0xff] %vm1253, %v1250
        %1284 = vst.msk [vmem:[#allocation2 + $0xf0] sm:$0xff] %vm1253, %v1251
        %1285 = vst.msk [vmem:[#allocation2 + $0xf8] sm:$0xff] %vm1253, %v1252
        %p1286 = scmp.eq.s32.totalorder %s24, 1
        // Predicated region
        $region91: #{modeler_forward.6} parent=81 // pred_check
          %p1287 = pneg %p1286
        $region92: #{modeler_forward.6} parent=81 // pred_check_branch
          %1289 = sbr.rel (%p1287) target = $region94
        $region93: #{modeler_forward.6} parent=81 // pred_region
          %v1290 = vld [vmem:[#allocation2] sm:$0xff]
          %v1291 = vld [vmem:[#allocation2 + $0x8] sm:$0xff]
          %v1292 = vld [vmem:[#allocation2 + $0x10] sm:$0xff]
          %v1293 = vld [vmem:[#allocation2 + $0x18] sm:$0xff]
          %v1294 = vld [vmem:[#allocation2 + $0x20] sm:$0xff]
          %v1295 = vld [vmem:[#allocation2 + $0x28] sm:$0xff]
          %v1296 = vld [vmem:[#allocation2 + $0x30] sm:$0xff]
          %v1297 = vld [vmem:[#allocation2 + $0x38] sm:$0xff]
          %v1298 = vld [vmem:[#allocation2 + $0x40] sm:$0xff]
          %v1299 = vld [vmem:[#allocation2 + $0x48] sm:$0xff]
          %v1300 = vld [vmem:[#allocation2 + $0x50] sm:$0xff]
          %v1301 = vld [vmem:[#allocation2 + $0x58] sm:$0xff]
          %v1302 = vld [vmem:[#allocation2 + $0x60] sm:$0xff]
          %v1303 = vld [vmem:[#allocation2 + $0x68] sm:$0xff]
          %v1304 = vld [vmem:[#allocation2 + $0x70] sm:$0xff]
          %v1305 = vld [vmem:[#allocation2 + $0x78] sm:$0xff]
          %v1306 = vld [vmem:[#allocation2 + $0x80] sm:$0xff]
          %v1307 = vld [vmem:[#allocation2 + $0x88] sm:$0xff]
          %v1308 = vld [vmem:[#allocation2 + $0x90] sm:$0xff]
          %v1309 = vld [vmem:[#allocation2 + $0x98] sm:$0xff]
          %v1310 = vld [vmem:[#allocation2 + $0xa0] sm:$0xff]
          %v1311 = vld [vmem:[#allocation2 + $0xa8] sm:$0xff]
          %v1312 = vld [vmem:[#allocation2 + $0xb0] sm:$0xff]
          %v1313 = vld [vmem:[#allocation2 + $0xb8] sm:$0xff]
          %v1314 = vld [vmem:[#allocation2 + $0xc0] sm:$0xff]
          %v1315 = vld [vmem:[#allocation2 + $0xc8] sm:$0xff]
          %v1316 = vld [vmem:[#allocation2 + $0xd0] sm:$0xff]
          %v1317 = vld [vmem:[#allocation2 + $0xd8] sm:$0xff]
          %v1318 = vld [vmem:[#allocation2 + $0xe0] sm:$0xff]
          %v1319 = vld [vmem:[#allocation2 + $0xe8] sm:$0xff]
          %v1320 = vld [vmem:[#allocation2 + $0xf0] sm:$0xff]
          %v1321 = vld [vmem:[#allocation2 + $0xf8] sm:$0xff]
          %v1322 = vld [vmem:[%s4] sm:$0x1]
          %v1324 = vperm.slane %v1322, 0
          %v1326 = vadd.f32 %v1290, %v1324
          %v1327 = vadd.f32 %v1291, %v1324
          %v1328 = vadd.f32 %v1292, %v1324
          %v1329 = vadd.f32 %v1293, %v1324
          %v1330 = vadd.f32 %v1294, %v1324
          %v1331 = vadd.f32 %v1295, %v1324
          %v1332 = vadd.f32 %v1296, %v1324
          %v1333 = vadd.f32 %v1297, %v1324
          %v1334 = vadd.f32 %v1298, %v1324
          %v1335 = vadd.f32 %v1299, %v1324
          %v1336 = vadd.f32 %v1300, %v1324
          %v1337 = vadd.f32 %v1301, %v1324
          %v1338 = vadd.f32 %v1302, %v1324
          %v1339 = vadd.f32 %v1303, %v1324
          %v1340 = vadd.f32 %v1304, %v1324
          %v1341 = vadd.f32 %v1305, %v1324
          %v1342 = vadd.f32 %v1306, %v1324
          %v1343 = vadd.f32 %v1307, %v1324
          %v1344 = vadd.f32 %v1308, %v1324
          %v1345 = vadd.f32 %v1309, %v1324
          %v1346 = vadd.f32 %v1310, %v1324
          %v1347 = vadd.f32 %v1311, %v1324
          %v1348 = vadd.f32 %v1312, %v1324
          %v1349 = vadd.f32 %v1313, %v1324
          %v1350 = vadd.f32 %v1314, %v1324
          %v1351 = vadd.f32 %v1315, %v1324
          %v1352 = vadd.f32 %v1316, %v1324
          %v1353 = vadd.f32 %v1317, %v1324
          %v1354 = vadd.f32 %v1318, %v1324
          %v1355 = vadd.f32 %v1319, %v1324
          %v1356 = vadd.f32 %v1320, %v1324
          %v1357 = vadd.f32 %v1321, %v1324
          %v1358 = vmax.f32 %v1326, 0.0
          %v1359 = vmax.f32 %v1327, 0.0
          %v1360 = vmax.f32 %v1328, 0.0
          %v1361 = vmax.f32 %v1329, 0.0
          %v1362 = vmax.f32 %v1330, 0.0
          %v1363 = vmax.f32 %v1331, 0.0
          %v1364 = vmax.f32 %v1332, 0.0
          %v1365 = vmax.f32 %v1333, 0.0
          %v1366 = vmax.f32 %v1334, 0.0
          %v1367 = vmax.f32 %v1335, 0.0
          %v1368 = vmax.f32 %v1336, 0.0
          %v1369 = vmax.f32 %v1337, 0.0
          %v1370 = vmax.f32 %v1338, 0.0
          %v1371 = vmax.f32 %v1339, 0.0
          %v1372 = vmax.f32 %v1340, 0.0
          %v1373 = vmax.f32 %v1341, 0.0
          %v1374 = vmax.f32 %v1342, 0.0
          %v1375 = vmax.f32 %v1343, 0.0
          %v1376 = vmax.f32 %v1344, 0.0
          %v1377 = vmax.f32 %v1345, 0.0
          %v1378 = vmax.f32 %v1346, 0.0
          %v1379 = vmax.f32 %v1347, 0.0
          %v1380 = vmax.f32 %v1348, 0.0
          %v1381 = vmax.f32 %v1349, 0.0
          %v1382 = vmax.f32 %v1350, 0.0
          %v1383 = vmax.f32 %v1351, 0.0
          %v1384 = vmax.f32 %v1352, 0.0
          %v1385 = vmax.f32 %v1353, 0.0
          %v1386 = vmax.f32 %v1354, 0.0
          %v1387 = vmax.f32 %v1355, 0.0
          %v1388 = vmax.f32 %v1356, 0.0
          %v1389 = vmax.f32 %v1357, 0.0
          %v1390 = vmin.f32 %v1326, 0.0
          %v1391 = vmin.f32 %v1327, 0.0
          %v1392 = vmin.f32 %v1328, 0.0
          %v1393 = vmin.f32 %v1329, 0.0
          %v1394 = vmin.f32 %v1330, 0.0
          %v1395 = vmin.f32 %v1331, 0.0
          %v1396 = vmin.f32 %v1332, 0.0
          %v1397 = vmin.f32 %v1333, 0.0
          %v1398 = vmin.f32 %v1334, 0.0
          %v1399 = vmin.f32 %v1335, 0.0
          %v1400 = vmin.f32 %v1336, 0.0
          %v1401 = vmin.f32 %v1337, 0.0
          %v1402 = vmin.f32 %v1338, 0.0
          %v1403 = vmin.f32 %v1339, 0.0
          %v1404 = vmin.f32 %v1340, 0.0
          %v1405 = vmin.f32 %v1341, 0.0
          %v1406 = vmin.f32 %v1342, 0.0
          %v1407 = vmin.f32 %v1343, 0.0
          %v1408 = vmin.f32 %v1344, 0.0
          %v1409 = vmin.f32 %v1345, 0.0
          %v1410 = vmin.f32 %v1346, 0.0
          %v1411 = vmin.f32 %v1347, 0.0
          %v1412 = vmin.f32 %v1348, 0.0
          %v1413 = vmin.f32 %v1349, 0.0
          %v1414 = vmin.f32 %v1350, 0.0
          %v1415 = vmin.f32 %v1351, 0.0
          %v1416 = vmin.f32 %v1352, 0.0
          %v1417 = vmin.f32 %v1353, 0.0
          %v1418 = vmin.f32 %v1354, 0.0
          %v1419 = vmin.f32 %v1355, 0.0
          %v1420 = vmin.f32 %v1356, 0.0
          %v1421 = vmin.f32 %v1357, 0.0
          %v1422 = vstv %s483
          %v1423 = vmul.f32 %v1422, %v1390
          %v1424 = vmul.f32 %v1422, %v1391
          %v1425 = vmul.f32 %v1422, %v1392
          %v1426 = vmul.f32 %v1422, %v1393
          %v1427 = vmul.f32 %v1422, %v1394
          %v1428 = vmul.f32 %v1422, %v1395
          %v1429 = vmul.f32 %v1422, %v1396
          %v1430 = vmul.f32 %v1422, %v1397
          %v1431 = vmul.f32 %v1422, %v1398
          %v1432 = vmul.f32 %v1422, %v1399
          %v1433 = vmul.f32 %v1422, %v1400
          %v1434 = vmul.f32 %v1422, %v1401
          %v1435 = vmul.f32 %v1422, %v1402
          %v1436 = vmul.f32 %v1422, %v1403
          %v1437 = vmul.f32 %v1422, %v1404
          %v1438 = vmul.f32 %v1422, %v1405
          %v1439 = vmul.f32 %v1422, %v1406
          %v1440 = vmul.f32 %v1422, %v1407
          %v1441 = vmul.f32 %v1422, %v1408
          %v1442 = vmul.f32 %v1422, %v1409
          %v1443 = vmul.f32 %v1422, %v1410
          %v1444 = vmul.f32 %v1422, %v1411
          %v1445 = vmul.f32 %v1422, %v1412
          %v1446 = vmul.f32 %v1422, %v1413
          %v1447 = vmul.f32 %v1422, %v1414
          %v1448 = vmul.f32 %v1422, %v1415
          %v1449 = vmul.f32 %v1422, %v1416
          %v1450 = vmul.f32 %v1422, %v1417
          %v1451 = vmul.f32 %v1422, %v1418
          %v1452 = vmul.f32 %v1422, %v1419
          %v1453 = vmul.f32 %v1422, %v1420
          %v1454 = vmul.f32 %v1422, %v1421
          %v1455 = vadd.f32 %v1358, %v1423
          %v1456 = vadd.f32 %v1359, %v1424
          %v1457 = vadd.f32 %v1360, %v1425
          %v1458 = vadd.f32 %v1361, %v1426
          %v1459 = vadd.f32 %v1362, %v1427
          %v1460 = vadd.f32 %v1363, %v1428
          %v1461 = vadd.f32 %v1364, %v1429
          %v1462 = vadd.f32 %v1365, %v1430
          %v1463 = vadd.f32 %v1366, %v1431
          %v1464 = vadd.f32 %v1367, %v1432
          %v1465 = vadd.f32 %v1368, %v1433
          %v1466 = vadd.f32 %v1369, %v1434
          %v1467 = vadd.f32 %v1370, %v1435
          %v1468 = vadd.f32 %v1371, %v1436
          %v1469 = vadd.f32 %v1372, %v1437
          %v1470 = vadd.f32 %v1373, %v1438
          %v1471 = vadd.f32 %v1374, %v1439
          %v1472 = vadd.f32 %v1375, %v1440
          %v1473 = vadd.f32 %v1376, %v1441
          %v1474 = vadd.f32 %v1377, %v1442
          %v1475 = vadd.f32 %v1378, %v1443
          %v1476 = vadd.f32 %v1379, %v1444
          %v1477 = vadd.f32 %v1380, %v1445
          %v1478 = vadd.f32 %v1381, %v1446
          %v1479 = vadd.f32 %v1382, %v1447
          %v1480 = vadd.f32 %v1383, %v1448
          %v1481 = vadd.f32 %v1384, %v1449
          %v1482 = vadd.f32 %v1385, %v1450
          %v1483 = vadd.f32 %v1386, %v1451
          %v1484 = vadd.f32 %v1387, %v1452
          %v1485 = vadd.f32 %v1388, %v1453
          %v1486 = vadd.f32 %v1389, %v1454
          %v1487 = vpack.c.bf16 %v1456, %v1455
          %v1488 = vpack.c.bf16 %v1458, %v1457
          %v1489 = vpack.c.bf16 %v1460, %v1459
          %v1490 = vpack.c.bf16 %v1462, %v1461
          %v1491 = vpack.c.bf16 %v1464, %v1463
          %v1492 = vpack.c.bf16 %v1466, %v1465
          %v1493 = vpack.c.bf16 %v1468, %v1467
          %v1494 = vpack.c.bf16 %v1470, %v1469
          %v1495 = vpack.c.bf16 %v1472, %v1471
          %v1496 = vpack.c.bf16 %v1474, %v1473
          %v1497 = vpack.c.bf16 %v1476, %v1475
          %v1498 = vpack.c.bf16 %v1478, %v1477
          %v1499 = vpack.c.bf16 %v1480, %v1479
          %v1500 = vpack.c.bf16 %v1482, %v1481
          %v1501 = vpack.c.bf16 %v1484, %v1483
          %v1502 = vpack.c.bf16 %v1486, %v1485
          %v1503 = vld [vmem:[%s5] sm:$0xf]
          %v1504 = vld [vmem:[%s5 + $0x4] sm:$0xf]
          %v1505 = vld [vmem:[%s5 + $0x8] sm:$0xf]
          %v1506 = vld [vmem:[%s5 + $0xc] sm:$0xf]
          %v1507 = vld [vmem:[%s6] sm:$0x1]
          %v1509 = vperm.slane %v1507, 0
          %v1515 = vunpack.c.l.b16 %v1503
          %v1516 = vunpack.c.l.b16 %v1504
          %v1517 = vunpack.c.l.b16 %v1505
          %v1518 = vunpack.c.l.b16 %v1506
          %v1519 = vpack.c.b16 %v1516, %v1515
          %v1520 = vpack.c.b16 %v1518, %v1517
          %v1524 = vsel %vm1253, %v1487, 0
          %v1527 = vsel %vm1253, %v1488, 0
          %v1530 = vsel %vm1253, %v1489, 0
          %v1533 = vsel %vm1253, %v1490, 0
          %v1536 = vsel %vm1253, %v1491, 0
          %v1539 = vsel %vm1253, %v1492, 0
          %v1542 = vsel %vm1253, %v1493, 0
          %v1545 = vsel %vm1253, %v1494, 0
          %v1548 = vsel %vm1253, %v1495, 0
          %v1551 = vsel %vm1253, %v1496, 0
          %v1554 = vsel %vm1253, %v1497, 0
          %v1557 = vsel %vm1253, %v1498, 0
          %v1560 = vsel %vm1253, %v1499, 0
          %v1563 = vsel %vm1253, %v1500, 0
          %v1566 = vsel %vm1253, %v1501, 0
          %v1569 = vsel %vm1253, %v1502, 0
          %1571 = vmatpush.bf16.msra.mxu0 0
          %1572 = vmatpush.bf16.msra.mxu0 0
          %1573 = vmatpush.bf16.msra.mxu0 0
          %1574 = vmatpush.bf16.msra.mxu0 0
          %1575 = vmatpush.bf16.msra.mxu0 0
          %1576 = vmatpush.bf16.msra.mxu0 0
          %1577 = vmatpush.bf16.msra.mxu0 %v1520
          %1578 = vmatpush.bf16.msra.mxu0 %v1519
          %1579 = vmatmul.bf16.gmra.mxu0 %v1524
          %v1580 = vpop.f32.mrf.mxu0
          %v1581 = vadd.f32 %v1509, %v1580
          %v1582 = vpop.f32.mrf.mxu0
          %v1583 = vadd.f32 %v1509, %v1582
          %1584 = vmatmul.bf16.gmra.mxu0 %v1527
          %v1585 = vpop.f32.mrf.mxu0
          %v1586 = vadd.f32 %v1509, %v1585
          %v1587 = vpop.f32.mrf.mxu0
          %v1588 = vadd.f32 %v1509, %v1587
          %1589 = vmatmul.bf16.gmra.mxu0 %v1530
          %v1590 = vpop.f32.mrf.mxu0
          %v1591 = vadd.f32 %v1509, %v1590
          %v1592 = vpop.f32.mrf.mxu0
          %v1593 = vadd.f32 %v1509, %v1592
          %1594 = vmatmul.bf16.gmra.mxu0 %v1533
          %v1595 = vpop.f32.mrf.mxu0
          %v1596 = vadd.f32 %v1509, %v1595
          %v1597 = vpop.f32.mrf.mxu0
          %v1598 = vadd.f32 %v1509, %v1597
          %1599 = vmatmul.bf16.gmra.mxu0 %v1536
          %v1600 = vpop.f32.mrf.mxu0
          %v1601 = vadd.f32 %v1509, %v1600
          %v1602 = vpop.f32.mrf.mxu0
          %v1603 = vadd.f32 %v1509, %v1602
          %1604 = vmatmul.bf16.gmra.mxu0 %v1539
          %v1605 = vpop.f32.mrf.mxu0
          %v1606 = vadd.f32 %v1509, %v1605
          %v1607 = vpop.f32.mrf.mxu0
          %v1608 = vadd.f32 %v1509, %v1607
          %1609 = vmatmul.bf16.gmra.mxu0 %v1542
          %v1610 = vpop.f32.mrf.mxu0
          %v1611 = vadd.f32 %v1509, %v1610
          %v1612 = vpop.f32.mrf.mxu0
          %v1613 = vadd.f32 %v1509, %v1612
          %1614 = vmatmul.bf16.gmra.mxu0 %v1545
          %v1615 = vpop.f32.mrf.mxu0
          %v1616 = vadd.f32 %v1509, %v1615
          %v1617 = vpop.f32.mrf.mxu0
          %v1618 = vadd.f32 %v1509, %v1617
          %1619 = vmatmul.bf16.gmra.mxu0 %v1548
          %v1620 = vpop.f32.mrf.mxu0
          %v1621 = vadd.f32 %v1509, %v1620
          %v1622 = vpop.f32.mrf.mxu0
          %v1623 = vadd.f32 %v1509, %v1622
          %1624 = vmatmul.bf16.gmra.mxu0 %v1551
          %v1625 = vpop.f32.mrf.mxu0
          %v1626 = vadd.f32 %v1509, %v1625
          %v1627 = vpop.f32.mrf.mxu0
          %v1628 = vadd.f32 %v1509, %v1627
          %1629 = vmatmul.bf16.gmra.mxu0 %v1554
          %v1630 = vpop.f32.mrf.mxu0
          %v1631 = vadd.f32 %v1509, %v1630
          %v1632 = vpop.f32.mrf.mxu0
          %v1633 = vadd.f32 %v1509, %v1632
          %1634 = vmatmul.bf16.gmra.mxu0 %v1557
          %v1635 = vpop.f32.mrf.mxu0
          %v1636 = vadd.f32 %v1509, %v1635
          %v1637 = vpop.f32.mrf.mxu0
          %v1638 = vadd.f32 %v1509, %v1637
          %1639 = vmatmul.bf16.gmra.mxu0 %v1560
          %v1640 = vpop.f32.mrf.mxu0
          %v1641 = vadd.f32 %v1509, %v1640
          %v1642 = vpop.f32.mrf.mxu0
          %v1643 = vadd.f32 %v1509, %v1642
          %1644 = vmatmul.bf16.gmra.mxu0 %v1563
          %v1645 = vpop.f32.mrf.mxu0
          %v1646 = vadd.f32 %v1509, %v1645
          %v1647 = vpop.f32.mrf.mxu0
          %v1648 = vadd.f32 %v1509, %v1647
          %1649 = vmatmul.bf16.gmra.mxu0 %v1566
          %v1650 = vpop.f32.mrf.mxu0
          %v1651 = vadd.f32 %v1509, %v1650
          %v1652 = vpop.f32.mrf.mxu0
          %v1653 = vadd.f32 %v1509, %v1652
          %1654 = vmatmul.bf16.gmra.mxu0 %v1569
          %v1655 = vpop.f32.mrf.mxu0
          %v1656 = vadd.f32 %v1509, %v1655
          %v1657 = vpop.f32.mrf.mxu0
          %v1658 = vadd.f32 %v1509, %v1657
          %1659 = vdwg.mxu0
          %v1660 = vmax.f32 %v1581, 0.0
          %v1661 = vmax.f32 %v1583, 0.0
          %v1662 = vmax.f32 %v1586, 0.0
          %v1663 = vmax.f32 %v1588, 0.0
          %v1664 = vmax.f32 %v1591, 0.0
          %v1665 = vmax.f32 %v1593, 0.0
          %v1666 = vmax.f32 %v1596, 0.0
          %v1667 = vmax.f32 %v1598, 0.0
          %v1668 = vmax.f32 %v1601, 0.0
          %v1669 = vmax.f32 %v1603, 0.0
          %v1670 = vmax.f32 %v1606, 0.0
          %v1671 = vmax.f32 %v1608, 0.0
          %v1672 = vmax.f32 %v1611, 0.0
          %v1673 = vmax.f32 %v1613, 0.0
          %v1674 = vmax.f32 %v1616, 0.0
          %v1675 = vmax.f32 %v1618, 0.0
          %v1676 = vmax.f32 %v1621, 0.0
          %v1677 = vmax.f32 %v1623, 0.0
          %v1678 = vmax.f32 %v1626, 0.0
          %v1679 = vmax.f32 %v1628, 0.0
          %v1680 = vmax.f32 %v1631, 0.0
          %v1681 = vmax.f32 %v1633, 0.0
          %v1682 = vmax.f32 %v1636, 0.0
          %v1683 = vmax.f32 %v1638, 0.0
          %v1684 = vmax.f32 %v1641, 0.0
          %v1685 = vmax.f32 %v1643, 0.0
          %v1686 = vmax.f32 %v1646, 0.0
          %v1687 = vmax.f32 %v1648, 0.0
          %v1688 = vmax.f32 %v1651, 0.0
          %v1689 = vmax.f32 %v1653, 0.0
          %v1690 = vmax.f32 %v1656, 0.0
          %v1691 = vmax.f32 %v1658, 0.0
          %v1692 = vmin.f32 %v1581, 0.0
          %v1693 = vmin.f32 %v1583, 0.0
          %v1694 = vmin.f32 %v1586, 0.0
          %v1695 = vmin.f32 %v1588, 0.0
          %v1696 = vmin.f32 %v1591, 0.0
          %v1697 = vmin.f32 %v1593, 0.0
          %v1698 = vmin.f32 %v1596, 0.0
          %v1699 = vmin.f32 %v1598, 0.0
          %v1700 = vmin.f32 %v1601, 0.0
          %v1701 = vmin.f32 %v1603, 0.0
          %v1702 = vmin.f32 %v1606, 0.0
          %v1703 = vmin.f32 %v1608, 0.0
          %v1704 = vmin.f32 %v1611, 0.0
          %v1705 = vmin.f32 %v1613, 0.0
          %v1706 = vmin.f32 %v1616, 0.0
          %v1707 = vmin.f32 %v1618, 0.0
          %v1708 = vmin.f32 %v1621, 0.0
          %v1709 = vmin.f32 %v1623, 0.0
          %v1710 = vmin.f32 %v1626, 0.0
          %v1711 = vmin.f32 %v1628, 0.0
          %v1712 = vmin.f32 %v1631, 0.0
          %v1713 = vmin.f32 %v1633, 0.0
          %v1714 = vmin.f32 %v1636, 0.0
          %v1715 = vmin.f32 %v1638, 0.0
          %v1716 = vmin.f32 %v1641, 0.0
          %v1717 = vmin.f32 %v1643, 0.0
          %v1718 = vmin.f32 %v1646, 0.0
          %v1719 = vmin.f32 %v1648, 0.0
          %v1720 = vmin.f32 %v1651, 0.0
          %v1721 = vmin.f32 %v1653, 0.0
          %v1722 = vmin.f32 %v1656, 0.0
          %v1723 = vmin.f32 %v1658, 0.0
          %v1724 = vmul.f32 %v1692, 1.442695
          %v1725 = vpow.pop %v1724
          %v1726 = vmul.f32 %v1693, 1.442695
          %v1727 = vpow.pop %v1726
          %v1728 = vmul.f32 %v1694, 1.442695
          %v1729 = vpow.pop %v1728
          %v1730 = vmul.f32 %v1695, 1.442695
          %v1731 = vpow.pop %v1730
          %v1732 = vmul.f32 %v1696, 1.442695
          %v1733 = vpow.pop %v1732
          %v1734 = vmul.f32 %v1697, 1.442695
          %v1735 = vpow.pop %v1734
          %v1736 = vmul.f32 %v1698, 1.442695
          %v1737 = vpow.pop %v1736
          %v1738 = vmul.f32 %v1699, 1.442695
          %v1739 = vpow.pop %v1738
          %v1740 = vmul.f32 %v1700, 1.442695
          %v1741 = vpow.pop %v1740
          %v1742 = vmul.f32 %v1701, 1.442695
          %v1743 = vpow.pop %v1742
          %v1744 = vmul.f32 %v1702, 1.442695
          %v1745 = vpow.pop %v1744
          %v1746 = vmul.f32 %v1703, 1.442695
          %v1747 = vpow.pop %v1746
          %v1748 = vmul.f32 %v1704, 1.442695
          %v1749 = vpow.pop %v1748
          %v1750 = vmul.f32 %v1705, 1.442695
          %v1751 = vpow.pop %v1750
          %v1752 = vmul.f32 %v1706, 1.442695
          %v1753 = vpow.pop %v1752
          %v1754 = vmul.f32 %v1707, 1.442695
          %v1755 = vpow.pop %v1754
          %v1756 = vmul.f32 %v1708, 1.442695
          %v1757 = vpow.pop %v1756
          %v1758 = vmul.f32 %v1709, 1.442695
          %v1759 = vpow.pop %v1758
          %v1760 = vmul.f32 %v1710, 1.442695
          %v1761 = vpow.pop %v1760
          %v1762 = vmul.f32 %v1711, 1.442695
          %v1763 = vpow.pop %v1762
          %v1764 = vmul.f32 %v1712, 1.442695
          %v1765 = vpow.pop %v1764
          %v1766 = vmul.f32 %v1713, 1.442695
          %v1767 = vpow.pop %v1766
          %v1768 = vmul.f32 %v1714, 1.442695
          %v1769 = vpow.pop %v1768
          %v1770 = vmul.f32 %v1715, 1.442695
          %v1771 = vpow.pop %v1770
          %v1772 = vmul.f32 %v1716, 1.442695
          %v1773 = vpow.pop %v1772
          %v1774 = vmul.f32 %v1717, 1.442695
          %v1775 = vpow.pop %v1774
          %v1776 = vmul.f32 %v1718, 1.442695
          %v1777 = vpow.pop %v1776
          %v1778 = vmul.f32 %v1719, 1.442695
          %v1779 = vpow.pop %v1778
          %v1780 = vmul.f32 %v1720, 1.442695
          %v1781 = vpow.pop %v1780
          %v1782 = vmul.f32 %v1721, 1.442695
          %v1783 = vpow.pop %v1782
          %v1784 = vmul.f32 %v1722, 1.442695
          %v1785 = vpow.pop %v1784
          %v1786 = vmul.f32 %v1723, 1.442695
          %v1787 = vpow.pop %v1786
          %v1788 = vadd.f32 %v1660, %v1725
          %v1789 = vadd.f32 %v1661, %v1727
          %v1790 = vadd.f32 %v1662, %v1729
          %v1791 = vadd.f32 %v1663, %v1731
          %v1792 = vadd.f32 %v1664, %v1733
          %v1793 = vadd.f32 %v1665, %v1735
          %v1794 = vadd.f32 %v1666, %v1737
          %v1795 = vadd.f32 %v1667, %v1739
          %v1796 = vadd.f32 %v1668, %v1741
          %v1797 = vadd.f32 %v1669, %v1743
          %v1798 = vadd.f32 %v1670, %v1745
          %v1799 = vadd.f32 %v1671, %v1747
          %v1800 = vadd.f32 %v1672, %v1749
          %v1801 = vadd.f32 %v1673, %v1751
          %v1802 = vadd.f32 %v1674, %v1753
          %v1803 = vadd.f32 %v1675, %v1755
          %v1804 = vadd.f32 %v1676, %v1757
          %v1805 = vadd.f32 %v1677, %v1759
          %v1806 = vadd.f32 %v1678, %v1761
          %v1807 = vadd.f32 %v1679, %v1763
          %v1808 = vadd.f32 %v1680, %v1765
          %v1809 = vadd.f32 %v1681, %v1767
          %v1810 = vadd.f32 %v1682, %v1769
          %v1811 = vadd.f32 %v1683, %v1771
          %v1812 = vadd.f32 %v1684, %v1773
          %v1813 = vadd.f32 %v1685, %v1775
          %v1814 = vadd.f32 %v1686, %v1777
          %v1815 = vadd.f32 %v1687, %v1779
          %v1816 = vadd.f32 %v1688, %v1781
          %v1817 = vadd.f32 %v1689, %v1783
          %v1818 = vadd.f32 %v1690, %v1785
          %v1819 = vadd.f32 %v1691, %v1787
          %v1820 = vsub.f32 %v1788, 1.0
          %v1821 = vsub.f32 %v1789, 1.0
          %v1822 = vsub.f32 %v1790, 1.0
          %v1823 = vsub.f32 %v1791, 1.0
          %v1824 = vsub.f32 %v1792, 1.0
          %v1825 = vsub.f32 %v1793, 1.0
          %v1826 = vsub.f32 %v1794, 1.0
          %v1827 = vsub.f32 %v1795, 1.0
          %v1828 = vsub.f32 %v1796, 1.0
          %v1829 = vsub.f32 %v1797, 1.0
          %v1830 = vsub.f32 %v1798, 1.0
          %v1831 = vsub.f32 %v1799, 1.0
          %v1832 = vsub.f32 %v1800, 1.0
          %v1833 = vsub.f32 %v1801, 1.0
          %v1834 = vsub.f32 %v1802, 1.0
          %v1835 = vsub.f32 %v1803, 1.0
          %v1836 = vsub.f32 %v1804, 1.0
          %v1837 = vsub.f32 %v1805, 1.0
          %v1838 = vsub.f32 %v1806, 1.0
          %v1839 = vsub.f32 %v1807, 1.0
          %v1840 = vsub.f32 %v1808, 1.0
          %v1841 = vsub.f32 %v1809, 1.0
          %v1842 = vsub.f32 %v1810, 1.0
          %v1843 = vsub.f32 %v1811, 1.0
          %v1844 = vsub.f32 %v1812, 1.0
          %v1845 = vsub.f32 %v1813, 1.0
          %v1846 = vsub.f32 %v1814, 1.0
          %v1847 = vsub.f32 %v1815, 1.0
          %v1848 = vsub.f32 %v1816, 1.0
          %v1849 = vsub.f32 %v1817, 1.0
          %v1850 = vsub.f32 %v1818, 1.0
          %v1851 = vsub.f32 %v1819, 1.0
          %1852 = vst [vmem:[%s480] sm:$0xff] %v1820
          %1853 = vst [vmem:[%s480 + $0x8] sm:$0xff] %v1821
          %1854 = vst [vmem:[%s480 + $0x10] sm:$0xff] %v1822
          %1855 = vst [vmem:[%s480 + $0x18] sm:$0xff] %v1823
          %1856 = vst [vmem:[%s480 + $0x20] sm:$0xff] %v1824
          %1857 = vst [vmem:[%s480 + $0x28] sm:$0xff] %v1825
          %1858 = vst [vmem:[%s480 + $0x30] sm:$0xff] %v1826
          %1859 = vst [vmem:[%s480 + $0x38] sm:$0xff] %v1827
          %1860 = vst [vmem:[%s480 + $0x40] sm:$0xff] %v1828
          %1861 = vst [vmem:[%s480 + $0x48] sm:$0xff] %v1829
          %1862 = vst [vmem:[%s480 + $0x50] sm:$0xff] %v1830
          %1863 = vst [vmem:[%s480 + $0x58] sm:$0xff] %v1831
          %1864 = vst [vmem:[%s480 + $0x60] sm:$0xff] %v1832
          %1865 = vst [vmem:[%s480 + $0x68] sm:$0xff] %v1833
          %1866 = vst [vmem:[%s480 + $0x70] sm:$0xff] %v1834
          %1867 = vst [vmem:[%s480 + $0x78] sm:$0xff] %v1835
          %1868 = vst [vmem:[%s480 + $0x80] sm:$0xff] %v1836
          %1869 = vst [vmem:[%s480 + $0x88] sm:$0xff] %v1837
          %1870 = vst [vmem:[%s480 + $0x90] sm:$0xff] %v1838
          %1871 = vst [vmem:[%s480 + $0x98] sm:$0xff] %v1839
          %1872 = vst [vmem:[%s480 + $0xa0] sm:$0xff] %v1840
          %1873 = vst [vmem:[%s480 + $0xa8] sm:$0xff] %v1841
          %1874 = vst [vmem:[%s480 + $0xb0] sm:$0xff] %v1842
          %1875 = vst [vmem:[%s480 + $0xb8] sm:$0xff] %v1843
          %1876 = vst [vmem:[%s480 + $0xc0] sm:$0xff] %v1844
          %1877 = vst [vmem:[%s480 + $0xc8] sm:$0xff] %v1845
          %1878 = vst [vmem:[%s480 + $0xd0] sm:$0xff] %v1846
          %1879 = vst [vmem:[%s480 + $0xd8] sm:$0xff] %v1847
          %1880 = vst [vmem:[%s480 + $0xe0] sm:$0xff] %v1848
          %1881 = vst [vmem:[%s480 + $0xe8] sm:$0xff] %v1849
          %1882 = vst [vmem:[%s480 + $0xf0] sm:$0xff] %v1850
          %1883 = vst [vmem:[%s480 + $0xf8] sm:$0xff] %v1851
        $region94: #{modeler_forward.6} parent=81 // pred_fallthru
          _
        %s1884 = smul.u32 32, %s23
        %p1885 = scmp.lt.s32.totalorder %s1884, 63
        %s1886 = scalar_select %p1885, %s1884, 63
        %s1887 = smul.addr %s1886, 8
        %s1888 = scalar_lea.vmem %s7, %s1887
        // Predicated region
        $region95: #{modeler_forward.6} parent=81 // pred_check
          %p1889 = pneg %p208
        $region96: #{modeler_forward.6} parent=81 // pred_check_branch
          %1891 = sbr.rel (%p1889) target = $region98
        $region97: #{modeler_forward.6} parent=81 // pred_region
          %s1892 = smul.u32 32, %s23
        $region98: #{modeler_forward.6} parent=81 // pred_fallthru
          _
      $region82: #{modeler_forward.6} parent=5 // pred_fallthru
        _
      %p1893 = scmp.le.s32.totalorder 2, %s14
      // Predicated region
      $region99: #{modeler_forward.6} parent=5 // pred_check
        %p1894 = pneg %p1893
      $region100: #{modeler_forward.6} parent=5 // pred_check_branch
        %1896 = sbr.rel (%p1894) target = $region102
      $region101: #{modeler_forward.6} parent=5 // pred_region
        %s1897 = ssub.s32 %s14, 2
        // Predicated region
        $region103: #{modeler_forward.6} parent=101 // pred_check
          %p1898 = pneg %p214
        $region104: #{modeler_forward.6} parent=101 // pred_check_branch
          %1900 = sbr.rel (%p1898) target = $region106
        $region105: #{modeler_forward.6} parent=101 // pred_region
          %s1901 = smul.u32 32, %s25
          %p1902 = scmp.lt.s32.totalorder %s1901, 63
          %s1903 = scalar_select %p1902, %s1901, 63
          %s1904 = smul.addr %s1903, 8
          %s1905 = scalar_lea.vmem %s7, %s1904
        $region106: #{modeler_forward.6} parent=101 // pred_fallthru
          _
      $region102: #{modeler_forward.6} parent=5 // pred_fallthru
        _
    $region6: #{modeler_forward.6} parent=1 // loop_footer
      %s18 = sadd.s32 1, %s14
    $region7: #{modeler_forward.6} parent=1 // loop_footer_branch
      %13 = sbr.rel target = $region3
    $region8: #{modeler_forward.6} parent=1 // loop_exit
      _

// kernel: modeler_forward.9
$region0: #{modeler_forward.9}
  #allocation0 [shape = 'u32[]', space=smem, size = 0x4, offset = 0x4, fixed_abs, tag = 'smem constant byte address 0x4 - core index']
  #allocation1 [shape = 'u32[72,128]{1,0:T(1,128)}', space=vmem, size = 0x9000, scoped, tag = 'internal scratch']
  #allocation2 [shape = 'f32[1,1]{1,0:T(1,128)S(6)}', space=smem, size = 0x200, scoped, tag = 'scoped memory for modeler_forward.9']
  %s0 = inlined_call_operand.<no memory space> [shape: f32[1,1], index: 0, kind: input, shape index: {}]
  %s1 = inlined_call_operand.vmem [shape: f32[8,512,32], index: 1, kind: input, shape index: {}]
  %s2 = inlined_call_operand.vmem [shape: f32[8,512,32], index: 2, kind: input, shape index: {}]
  %s3 = inlined_call_operand.vmem [shape: f32[8,512,32], index: 3, kind: input, shape index: {}]
  %s4 = inlined_call_operand.vmem [shape: f32[8,8,128], index: 4, kind: output, shape index: {}]
  %s5 = sld [smem:[#allocation0]]
  $region49: #{modeler_forward.9} parent=0
    _
  %s7 = ssub.s32 1, %s5
  %s8 = scalar_select 0, %s7, %s5
  %9 = sst [smem:[#allocation2]] %s0
  loop: start=0, step=1, limit=10
  $region2: #{modeler_forward.9} parent=0 // loop_pre_header
    _
  $region3: #{modeler_forward.9} parent=0 // loop_header
    %s11 = sphi 0, %s15
    %p12 = scmp.ge.s32.totalorder %s11, 10
    %s19 = sphi 0, %s19
    %s21 = sphi 0, %s19
    %s22 = sphi 0, %s21
    %s36 = sphi 0, %s22
    %s42 = sphi 0, %s44
    %s45 = sphi 0, %s42
    %s46 = sphi 0, %s45
    %s62 = sphi 0, %s46
    %s68 = sphi 0, %s70
    %s71 = sphi 0, %s68
    %s72 = sphi 0, %s71
    %s88 = sphi 0, %s72
    %s94 = sphi 0, %s96
    %s97 = sphi 0, %s94
    %s98 = sphi 0, %s97
    %s114 = sphi 0, %s98
    %s120 = sphi 0, %s122
    %s123 = sphi 0, %s120
    %s124 = sphi 0, %s123
    %s140 = sphi 0, %s124
  $region4: #{modeler_forward.9} parent=0 // loop_header_branch
    %14 = sbr.rel (%p12) target = $region8
  $region5: #{modeler_forward.9} parent=0 // loop_body
    %s16 = ssub.s32 %s11, 1
    %s17 = ssub.s32 %s11, 2
    %s18 = sadd.s32 %s11, 1
    %s20 = sadd.s32 %s19, 1
    %p23 = scmp.eq.s32.totalorder %s11, 7
    %p24 = scmp.ne.s32.totalorder %s19, %s21
    %p25 = scmp.eq.s32.totalorder %s11, 0
    %p26 = por %p24, %p25
    %p27 = scmp.ne.s32.totalorder %s19, %s21
    %p28 = scmp.eq.s32.totalorder %s16, 7
    %p29 = por %p27, %p28
    %p30 = scmp.ne.s32.totalorder %s21, %s22
    %p31 = scmp.eq.s32.totalorder %s16, 0
    %p32 = por %p30, %p31
    %p33 = scmp.ne.s32.totalorder %s21, %s22
    %p34 = scmp.eq.s32.totalorder %s17, 7
    %p35 = por %p33, %p34
    %p37 = scmp.ne.s32.totalorder %s22, %s36
    %p38 = scmp.eq.s32.totalorder %s17, 0
    %p39 = por %p37, %p38
    %s40 = ssub.s32 %s11, %s18
    %p41 = scmp.eq.s32.totalorder %s40, 0
    %s43 = sadd.s32 %s42, 1
    %s44 = scalar_select %p41, %s42, %s43
    %p47 = pneg %p41
    %p48 = scmp.eq.s32.totalorder %s11, 7
    %p49 = por %p47, %p48
    %p50 = scmp.ne.s32.totalorder %s42, %s45
    %p51 = scmp.eq.s32.totalorder %s11, 0
    %p52 = por %p50, %p51
    %p53 = scmp.ne.s32.totalorder %s42, %s45
    %p54 = scmp.eq.s32.totalorder %s16, 7
    %p55 = por %p53, %p54
    %p56 = scmp.ne.s32.totalorder %s45, %s46
    %p57 = scmp.eq.s32.totalorder %s16, 0
    %p58 = por %p56, %p57
    %p59 = scmp.ne.s32.totalorder %s45, %s46
    %p60 = scmp.eq.s32.totalorder %s17, 7
    %p61 = por %p59, %p60
    %p63 = scmp.ne.s32.totalorder %s46, %s62
    %p64 = scmp.eq.s32.totalorder %s17, 0
    %p65 = por %p63, %p64
    %s66 = ssub.s32 %s11, %s18
    %p67 = scmp.eq.s32.totalorder %s66, 0
    %s69 = sadd.s32 %s68, 1
    %s70 = scalar_select %p67, %s68, %s69
    %p73 = pneg %p67
    %p74 = scmp.eq.s32.totalorder %s11, 7
    %p75 = por %p73, %p74
    %p76 = scmp.ne.s32.totalorder %s68, %s71
    %p77 = scmp.eq.s32.totalorder %s11, 0
    %p78 = por %p76, %p77
    %p79 = scmp.ne.s32.totalorder %s68, %s71
    %p80 = scmp.eq.s32.totalorder %s16, 7
    %p81 = por %p79, %p80
    %p82 = scmp.ne.s32.totalorder %s71, %s72
    %p83 = scmp.eq.s32.totalorder %s16, 0
    %p84 = por %p82, %p83
    %p85 = scmp.ne.s32.totalorder %s71, %s72
    %p86 = scmp.eq.s32.totalorder %s17, 7
    %p87 = por %p85, %p86
    %p89 = scmp.ne.s32.totalorder %s72, %s88
    %p90 = scmp.eq.s32.totalorder %s17, 0
    %p91 = por %p89, %p90
    %s92 = ssub.s32 %s11, %s18
    %p93 = scmp.eq.s32.totalorder %s92, 0
    %s95 = sadd.s32 %s94, 1
    %s96 = scalar_select %p93, %s94, %s95
    %p99 = pneg %p93
    %p100 = scmp.eq.s32.totalorder %s11, 7
    %p101 = por %p99, %p100
    %p102 = scmp.ne.s32.totalorder %s94, %s97
    %p103 = scmp.eq.s32.totalorder %s11, 0
    %p104 = por %p102, %p103
    %p105 = scmp.ne.s32.totalorder %s94, %s97
    %p106 = scmp.eq.s32.totalorder %s16, 7
    %p107 = por %p105, %p106
    %p108 = scmp.ne.s32.totalorder %s97, %s98
    %p109 = scmp.eq.s32.totalorder %s16, 0
    %p110 = por %p108, %p109
    %p111 = scmp.ne.s32.totalorder %s97, %s98
    %p112 = scmp.eq.s32.totalorder %s17, 7
    %p113 = por %p111, %p112
    %p115 = scmp.ne.s32.totalorder %s98, %s114
    %p116 = scmp.eq.s32.totalorder %s17, 0
    %p117 = por %p115, %p116
    %s118 = ssub.s32 %s11, %s18
    %p119 = scmp.eq.s32.totalorder %s118, 0
    %s121 = sadd.s32 %s120, 1
    %s122 = scalar_select %p119, %s120, %s121
    %p125 = pneg %p119
    %p126 = scmp.eq.s32.totalorder %s11, 7
    %p127 = por %p125, %p126
    %p128 = scmp.ne.s32.totalorder %s120, %s123
    %p129 = scmp.eq.s32.totalorder %s11, 0
    %p130 = por %p128, %p129
    %p131 = scmp.ne.s32.totalorder %s120, %s123
    %p132 = scmp.eq.s32.totalorder %s16, 7
    %p133 = por %p131, %p132
    %p134 = scmp.ne.s32.totalorder %s123, %s124
    %p135 = scmp.eq.s32.totalorder %s16, 0
    %p136 = por %p134, %p135
    %p137 = scmp.ne.s32.totalorder %s123, %s124
    %p138 = scmp.eq.s32.totalorder %s17, 7
    %p139 = por %p137, %p138
    %p141 = scmp.ne.s32.totalorder %s124, %s140
    %p142 = scmp.eq.s32.totalorder %s17, 0
    %p143 = por %p141, %p142
    %p144 = scmp.le.s32.totalorder 1, %s11
    %p145 = scmp.lt.s32.totalorder %s11, 9
    %p146 = pnand %p144, %p145
    %p147 = pneg %p146
    // Predicated region
    $region9: #{modeler_forward.9} parent=5 // pred_check
      _
    $region10: #{modeler_forward.9} parent=5 // pred_check_branch
      %149 = sbr.rel (%p146) target = $region12
    $region11: #{modeler_forward.9} parent=5 // pred_region
      %s150 = ssub.s32 %s11, 1
      // Predicated region
      $region13: #{modeler_forward.9} parent=11 // pred_check
        %p151 = pneg %p32
      $region14: #{modeler_forward.9} parent=11 // pred_check_branch
        %153 = sbr.rel (%p151) target = $region16
      $region15: #{modeler_forward.9} parent=11 // pred_region
        _
      $region16: #{modeler_forward.9} parent=11 // pred_fallthru
        _
    $region12: #{modeler_forward.9} parent=5 // pred_fallthru
      _
    %p154 = scmp.lt.s32.totalorder %s11, 8
    // Predicated region
    $region17: #{modeler_forward.9} parent=5 // pred_check
      %p155 = pneg %p154
    $region18: #{modeler_forward.9} parent=5 // pred_check_branch
      %157 = sbr.rel (%p155) target = $region20
    $region19: #{modeler_forward.9} parent=5 // pred_region
      // Predicated region
      $region21: #{modeler_forward.9} parent=19 // pred_check
        %p158 = pneg %p52
      $region22: #{modeler_forward.9} parent=19 // pred_check_branch
        %160 = sbr.rel (%p158) target = $region24
      $region23: #{modeler_forward.9} parent=19 // pred_region
        %p161 = scmp.lt.s32.totalorder %s11, 7
        %s162 = scalar_select %p161, %s11, 7
        %s163 = smul.addr %s162, 64
        %s164 = smul.addr %s163, 8
        %s165 = scalar_lea.vmem %s1, %s164
      $region24: #{modeler_forward.9} parent=19 // pred_fallthru
        _
      // Predicated region
      $region25: #{modeler_forward.9} parent=19 // pred_check
        %p166 = pneg %p78
      $region26: #{modeler_forward.9} parent=19 // pred_check_branch
        %168 = sbr.rel (%p166) target = $region28
      $region27: #{modeler_forward.9} parent=19 // pred_region
        %p169 = scmp.lt.s32.totalorder %s11, 7
        %s170 = scalar_select %p169, %s11, 7
        %s171 = smul.addr %s170, 64
        %s172 = smul.addr %s171, 8
        %s173 = scalar_lea.vmem %s2, %s172
      $region28: #{modeler_forward.9} parent=19 // pred_fallthru
        _
      // Predicated region
      $region29: #{modeler_forward.9} parent=19 // pred_check
        %p174 = pneg %p104
      $region30: #{modeler_forward.9} parent=19 // pred_check_branch
        %176 = sbr.rel (%p174) target = $region32
      $region31: #{modeler_forward.9} parent=19 // pred_region
        %p177 = scmp.lt.s32.totalorder %s11, 7
        %s178 = scalar_select %p177, %s11, 7
        %s179 = smul.addr %s178, 64
        %s180 = smul.addr %s179, 8
        %s181 = scalar_lea.vmem %s3, %s180
      $region32: #{modeler_forward.9} parent=19 // pred_fallthru
        _
    $region20: #{modeler_forward.9} parent=5 // pred_fallthru
      _
    %p182 = scmp.le.s32.totalorder 1, %s11
    %p183 = scmp.lt.s32.totalorder %s11, 9
    %p184 = pnand %p182, %p183
    %p185 = pneg %p184
    // Predicated region
    $region33: #{modeler_forward.9} parent=5 // pred_check
      _
    $region34: #{modeler_forward.9} parent=5 // pred_check_branch
      %187 = sbr.rel (%p184) target = $region36
    $region35: #{modeler_forward.9} parent=5 // pred_region
      %s188 = ssub.s32 %s11, 1
      %p189 = pneg %p32
      %p190 = pneg %p29
      %p191 = scmp.lt.s32.totalorder %s16, 7
      %s192 = scalar_select %p191, %s16, 7
      %s193 = smul.addr %s192, 64
      %s194 = smul.addr %s193, 8
      %s195 = scalar_lea.vmem %s1, %s194
      %p196 = pneg %p58
      %p197 = pneg %p55
      %p198 = scmp.lt.s32.totalorder %s16, 7
      %s199 = scalar_select %p198, %s16, 7
      %s200 = smul.addr %s199, 64
      %s201 = smul.addr %s200, 8
      %s202 = scalar_lea.vmem %s2, %s201
      %p203 = pneg %p84
      %p204 = pneg %p81
      %p205 = scmp.lt.s32.totalorder %s16, 7
      %s206 = scalar_select %p205, %s16, 7
      %s207 = smul.addr %s206, 64
      %s208 = smul.addr %s207, 8
      %s209 = scalar_lea.vmem %s3, %s208
      %p210 = pneg %p110
      %p211 = pneg %p107
      %p212 = pneg %p136
      %p213 = pneg %p133
      %p214 = scmp.lt.s32.totalorder %s16, 7
      %s215 = scalar_select %p214, %s16, 7
      %s216 = smul.addr %s215, 8
      %s217 = scalar_lea.vmem %s4, %s216
      %p218 = scmp.lt.s32.totalorder %s16, 7
      %s219 = scalar_select %p218, %s16, 7
      %s220 = smul.addr %s219, 64
      %s221 = smul.addr %s220, 8
      %s222 = scalar_lea.vmem %s1, %s221
      %p223 = scmp.lt.s32.totalorder %s16, 7
      %s224 = scalar_select %p223, %s16, 7
      %s225 = smul.addr %s224, 64
      %s226 = smul.addr %s225, 8
      %s227 = scalar_lea.vmem %s2, %s226
      %p228 = scmp.lt.s32.totalorder %s16, 7
      %s229 = scalar_select %p228, %s16, 7
      %s230 = smul.addr %s229, 64
      %s231 = smul.addr %s230, 8
      %s232 = scalar_lea.vmem %s3, %s231
      %p233 = scmp.lt.s32.totalorder %s16, 7
      %s234 = scalar_select %p233, %s16, 7
      %s235 = smul.addr %s234, 8
      %s236 = scalar_lea.vmem %s4, %s235
      %s237 = sld [smem:[#allocation2]]
      %v238 = vld [vmem:[%s222] sm:$0xff]
      %v239 = vld [vmem:[%s222 + $0x8] sm:$0xff]
      %v240 = vld [vmem:[%s222 + $0x10] sm:$0xff]
      %v241 = vld [vmem:[%s222 + $0x18] sm:$0xff]
      %v242 = vld [vmem:[%s222 + $0x20] sm:$0xff]
      %v243 = vld [vmem:[%s222 + $0x28] sm:$0xff]
      %v244 = vld [vmem:[%s222 + $0x30] sm:$0xff]
      %v245 = vld [vmem:[%s222 + $0x38] sm:$0xff]
      %v246 = vld [vmem:[%s222 + $0x40] sm:$0xff]
      %v247 = vld [vmem:[%s222 + $0x48] sm:$0xff]
      %v248 = vld [vmem:[%s222 + $0x50] sm:$0xff]
      %v249 = vld [vmem:[%s222 + $0x58] sm:$0xff]
      %v250 = vld [vmem:[%s222 + $0x60] sm:$0xff]
      %v251 = vld [vmem:[%s222 + $0x68] sm:$0xff]
      %v252 = vld [vmem:[%s222 + $0x70] sm:$0xff]
      %v253 = vld [vmem:[%s222 + $0x78] sm:$0xff]
      %v254 = vld [vmem:[%s222 + $0x80] sm:$0xff]
      %v255 = vld [vmem:[%s222 + $0x88] sm:$0xff]
      %v256 = vld [vmem:[%s222 + $0x90] sm:$0xff]
      %v257 = vld [vmem:[%s222 + $0x98] sm:$0xff]
      %v258 = vld [vmem:[%s222 + $0xa0] sm:$0xff]
      %v259 = vld [vmem:[%s222 + $0xa8] sm:$0xff]
      %v260 = vld [vmem:[%s222 + $0xb0] sm:$0xff]
      %v261 = vld [vmem:[%s222 + $0xb8] sm:$0xff]
      %v262 = vld [vmem:[%s222 + $0xc0] sm:$0xff]
      %v263 = vld [vmem:[%s222 + $0xc8] sm:$0xff]
      %v264 = vld [vmem:[%s222 + $0xd0] sm:$0xff]
      %v265 = vld [vmem:[%s222 + $0xd8] sm:$0xff]
      %v266 = vld [vmem:[%s222 + $0xe0] sm:$0xff]
      %v267 = vld [vmem:[%s222 + $0xe8] sm:$0xff]
      %v268 = vld [vmem:[%s222 + $0xf0] sm:$0xff]
      %v269 = vld [vmem:[%s222 + $0xf8] sm:$0xff]
      %v270 = vld [vmem:[%s222 + $0x100] sm:$0xff]
      %v271 = vld [vmem:[%s222 + $0x108] sm:$0xff]
      %v272 = vld [vmem:[%s222 + $0x110] sm:$0xff]
      %v273 = vld [vmem:[%s222 + $0x118] sm:$0xff]
      %v274 = vld [vmem:[%s222 + $0x120] sm:$0xff]
      %v275 = vld [vmem:[%s222 + $0x128] sm:$0xff]
      %v276 = vld [vmem:[%s222 + $0x130] sm:$0xff]
      %v277 = vld [vmem:[%s222 + $0x138] sm:$0xff]
      %v278 = vld [vmem:[%s222 + $0x140] sm:$0xff]
      %v279 = vld [vmem:[%s222 + $0x148] sm:$0xff]
      %v280 = vld [vmem:[%s222 + $0x150] sm:$0xff]
      %v281 = vld [vmem:[%s222 + $0x158] sm:$0xff]
      %v282 = vld [vmem:[%s222 + $0x160] sm:$0xff]
      %v283 = vld [vmem:[%s222 + $0x168] sm:$0xff]
      %v284 = vld [vmem:[%s222 + $0x170] sm:$0xff]
      %v285 = vld [vmem:[%s222 + $0x178] sm:$0xff]
      %v286 = vld [vmem:[%s222 + $0x180] sm:$0xff]
      %v287 = vld [vmem:[%s222 + $0x188] sm:$0xff]
      %v288 = vld [vmem:[%s222 + $0x190] sm:$0xff]
      %v289 = vld [vmem:[%s222 + $0x198] sm:$0xff]
      %v290 = vld [vmem:[%s222 + $0x1a0] sm:$0xff]
      %v291 = vld [vmem:[%s222 + $0x1a8] sm:$0xff]
      %v292 = vld [vmem:[%s222 + $0x1b0] sm:$0xff]
      %v293 = vld [vmem:[%s222 + $0x1b8] sm:$0xff]
      %v294 = vld [vmem:[%s222 + $0x1c0] sm:$0xff]
      %v295 = vld [vmem:[%s222 + $0x1c8] sm:$0xff]
      %v296 = vld [vmem:[%s222 + $0x1d0] sm:$0xff]
      %v297 = vld [vmem:[%s222 + $0x1d8] sm:$0xff]
      %v298 = vld [vmem:[%s222 + $0x1e0] sm:$0xff]
      %v299 = vld [vmem:[%s222 + $0x1e8] sm:$0xff]
      %v300 = vld [vmem:[%s222 + $0x1f0] sm:$0xff]
      %v301 = vld [vmem:[%s222 + $0x1f8] sm:$0xff]
      %v302 = vld [vmem:[%s227] sm:$0xff]
      %v303 = vld [vmem:[%s227 + $0x8] sm:$0xff]
      %v304 = vld [vmem:[%s227 + $0x10] sm:$0xff]
      %v305 = vld [vmem:[%s227 + $0x18] sm:$0xff]
      %v306 = vld [vmem:[%s227 + $0x20] sm:$0xff]
      %v307 = vld [vmem:[%s227 + $0x28] sm:$0xff]
      %v308 = vld [vmem:[%s227 + $0x30] sm:$0xff]
      %v309 = vld [vmem:[%s227 + $0x38] sm:$0xff]
      %v310 = vld [vmem:[%s227 + $0x40] sm:$0xff]
      %v311 = vld [vmem:[%s227 + $0x48] sm:$0xff]
      %v312 = vld [vmem:[%s227 + $0x50] sm:$0xff]
      %v313 = vld [vmem:[%s227 + $0x58] sm:$0xff]
      %v314 = vld [vmem:[%s227 + $0x60] sm:$0xff]
      %v315 = vld [vmem:[%s227 + $0x68] sm:$0xff]
      %v316 = vld [vmem:[%s227 + $0x70] sm:$0xff]
      %v317 = vld [vmem:[%s227 + $0x78] sm:$0xff]
      %v318 = vld [vmem:[%s227 + $0x80] sm:$0xff]
      %v319 = vld [vmem:[%s227 + $0x88] sm:$0xff]
      %v320 = vld [vmem:[%s227 + $0x90] sm:$0xff]
      %v321 = vld [vmem:[%s227 + $0x98] sm:$0xff]
      %v322 = vld [vmem:[%s227 + $0xa0] sm:$0xff]
      %v323 = vld [vmem:[%s227 + $0xa8] sm:$0xff]
      %v324 = vld [vmem:[%s227 + $0xb0] sm:$0xff]
      %v325 = vld [vmem:[%s227 + $0xb8] sm:$0xff]
      %v326 = vld [vmem:[%s227 + $0xc0] sm:$0xff]
      %v327 = vld [vmem:[%s227 + $0xc8] sm:$0xff]
      %v328 = vld [vmem:[%s227 + $0xd0] sm:$0xff]
      %v329 = vld [vmem:[%s227 + $0xd8] sm:$0xff]
      %v330 = vld [vmem:[%s227 + $0xe0] sm:$0xff]
      %v331 = vld [vmem:[%s227 + $0xe8] sm:$0xff]
      %v332 = vld [vmem:[%s227 + $0xf0] sm:$0xff]
      %v333 = vld [vmem:[%s227 + $0xf8] sm:$0xff]
      %v334 = vld [vmem:[%s227 + $0x100] sm:$0xff]
      %v335 = vld [vmem:[%s227 + $0x108] sm:$0xff]
      %v336 = vld [vmem:[%s227 + $0x110] sm:$0xff]
      %v337 = vld [vmem:[%s227 + $0x118] sm:$0xff]
      %v338 = vld [vmem:[%s227 + $0x120] sm:$0xff]
      %v339 = vld [vmem:[%s227 + $0x128] sm:$0xff]
      %v340 = vld [vmem:[%s227 + $0x130] sm:$0xff]
      %v341 = vld [vmem:[%s227 + $0x138] sm:$0xff]
      %v342 = vld [vmem:[%s227 + $0x140] sm:$0xff]
      %v343 = vld [vmem:[%s227 + $0x148] sm:$0xff]
      %v344 = vld [vmem:[%s227 + $0x150] sm:$0xff]
      %v345 = vld [vmem:[%s227 + $0x158] sm:$0xff]
      %v346 = vld [vmem:[%s227 + $0x160] sm:$0xff]
      %v347 = vld [vmem:[%s227 + $0x168] sm:$0xff]
      %v348 = vld [vmem:[%s227 + $0x170] sm:$0xff]
      %v349 = vld [vmem:[%s227 + $0x178] sm:$0xff]
      %v350 = vld [vmem:[%s227 + $0x180] sm:$0xff]
      %v351 = vld [vmem:[%s227 + $0x188] sm:$0xff]
      %v352 = vld [vmem:[%s227 + $0x190] sm:$0xff]
      %v353 = vld [vmem:[%s227 + $0x198] sm:$0xff]
      %v354 = vld [vmem:[%s227 + $0x1a0] sm:$0xff]
      %v355 = vld [vmem:[%s227 + $0x1a8] sm:$0xff]
      %v356 = vld [vmem:[%s227 + $0x1b0] sm:$0xff]
      %v357 = vld [vmem:[%s227 + $0x1b8] sm:$0xff]
      %v358 = vld [vmem:[%s227 + $0x1c0] sm:$0xff]
      %v359 = vld [vmem:[%s227 + $0x1c8] sm:$0xff]
      %v360 = vld [vmem:[%s227 + $0x1d0] sm:$0xff]
      %v361 = vld [vmem:[%s227 + $0x1d8] sm:$0xff]
      %v362 = vld [vmem:[%s227 + $0x1e0] sm:$0xff]
      %v363 = vld [vmem:[%s227 + $0x1e8] sm:$0xff]
      %v364 = vld [vmem:[%s227 + $0x1f0] sm:$0xff]
      %v365 = vld [vmem:[%s227 + $0x1f8] sm:$0xff]
      %v366 = vld [vmem:[%s232] sm:$0xff]
      %v367 = vld [vmem:[%s232 + $0x8] sm:$0xff]
      %v368 = vld [vmem:[%s232 + $0x10] sm:$0xff]
      %v369 = vld [vmem:[%s232 + $0x18] sm:$0xff]
      %v370 = vld [vmem:[%s232 + $0x20] sm:$0xff]
      %v371 = vld [vmem:[%s232 + $0x28] sm:$0xff]
      %v372 = vld [vmem:[%s232 + $0x30] sm:$0xff]
      %v373 = vld [vmem:[%s232 + $0x38] sm:$0xff]
      %v374 = vld [vmem:[%s232 + $0x40] sm:$0xff]
      %v375 = vld [vmem:[%s232 + $0x48] sm:$0xff]
      %v376 = vld [vmem:[%s232 + $0x50] sm:$0xff]
      %v377 = vld [vmem:[%s232 + $0x58] sm:$0xff]
      %v378 = vld [vmem:[%s232 + $0x60] sm:$0xff]
      %v379 = vld [vmem:[%s232 + $0x68] sm:$0xff]
      %v380 = vld [vmem:[%s232 + $0x70] sm:$0xff]
      %v381 = vld [vmem:[%s232 + $0x78] sm:$0xff]
      %v382 = vld [vmem:[%s232 + $0x80] sm:$0xff]
      %v383 = vld [vmem:[%s232 + $0x88] sm:$0xff]
      %v384 = vld [vmem:[%s232 + $0x90] sm:$0xff]
      %v385 = vld [vmem:[%s232 + $0x98] sm:$0xff]
      %v386 = vld [vmem:[%s232 + $0xa0] sm:$0xff]
      %v387 = vld [vmem:[%s232 + $0xa8] sm:$0xff]
      %v388 = vld [vmem:[%s232 + $0xb0] sm:$0xff]
      %v389 = vld [vmem:[%s232 + $0xb8] sm:$0xff]
      %v390 = vld [vmem:[%s232 + $0xc0] sm:$0xff]
      %v391 = vld [vmem:[%s232 + $0xc8] sm:$0xff]
      %v392 = vld [vmem:[%s232 + $0xd0] sm:$0xff]
      %v393 = vld [vmem:[%s232 + $0xd8] sm:$0xff]
      %v394 = vld [vmem:[%s232 + $0xe0] sm:$0xff]
      %v395 = vld [vmem:[%s232 + $0xe8] sm:$0xff]
      %v396 = vld [vmem:[%s232 + $0xf0] sm:$0xff]
      %v397 = vld [vmem:[%s232 + $0xf8] sm:$0xff]
      %v398 = vld [vmem:[%s232 + $0x100] sm:$0xff]
      %v399 = vld [vmem:[%s232 + $0x108] sm:$0xff]
      %v400 = vld [vmem:[%s232 + $0x110] sm:$0xff]
      %v401 = vld [vmem:[%s232 + $0x118] sm:$0xff]
      %v402 = vld [vmem:[%s232 + $0x120] sm:$0xff]
      %v403 = vld [vmem:[%s232 + $0x128] sm:$0xff]
      %v404 = vld [vmem:[%s232 + $0x130] sm:$0xff]
      %v405 = vld [vmem:[%s232 + $0x138] sm:$0xff]
      %v406 = vld [vmem:[%s232 + $0x140] sm:$0xff]
      %v407 = vld [vmem:[%s232 + $0x148] sm:$0xff]
      %v408 = vld [vmem:[%s232 + $0x150] sm:$0xff]
      %v409 = vld [vmem:[%s232 + $0x158] sm:$0xff]
      %v410 = vld [vmem:[%s232 + $0x160] sm:$0xff]
      %v411 = vld [vmem:[%s232 + $0x168] sm:$0xff]
      %v412 = vld [vmem:[%s232 + $0x170] sm:$0xff]
      %v413 = vld [vmem:[%s232 + $0x178] sm:$0xff]
      %v414 = vld [vmem:[%s232 + $0x180] sm:$0xff]
      %v415 = vld [vmem:[%s232 + $0x188] sm:$0xff]
      %v416 = vld [vmem:[%s232 + $0x190] sm:$0xff]
      %v417 = vld [vmem:[%s232 + $0x198] sm:$0xff]
      %v418 = vld [vmem:[%s232 + $0x1a0] sm:$0xff]
      %v419 = vld [vmem:[%s232 + $0x1a8] sm:$0xff]
      %v420 = vld [vmem:[%s232 + $0x1b0] sm:$0xff]
      %v421 = vld [vmem:[%s232 + $0x1b8] sm:$0xff]
      %v422 = vld [vmem:[%s232 + $0x1c0] sm:$0xff]
      %v423 = vld [vmem:[%s232 + $0x1c8] sm:$0xff]
      %v424 = vld [vmem:[%s232 + $0x1d0] sm:$0xff]
      %v425 = vld [vmem:[%s232 + $0x1d8] sm:$0xff]
      %v426 = vld [vmem:[%s232 + $0x1e0] sm:$0xff]
      %v427 = vld [vmem:[%s232 + $0x1e8] sm:$0xff]
      %v428 = vld [vmem:[%s232 + $0x1f0] sm:$0xff]
      %v429 = vld [vmem:[%s232 + $0x1f8] sm:$0xff]
      %v430 = vmul.f32 %v238, %v366
      %v431 = vmul.f32 %v239, %v367
      %v432 = vmul.f32 %v240, %v368
      %v433 = vmul.f32 %v241, %v369
      %v434 = vmul.f32 %v242, %v370
      %v435 = vmul.f32 %v243, %v371
      %v436 = vmul.f32 %v244, %v372
      %v437 = vmul.f32 %v245, %v373
      %v438 = vmul.f32 %v246, %v374
      %v439 = vmul.f32 %v247, %v375
      %v440 = vmul.f32 %v248, %v376
      %v441 = vmul.f32 %v249, %v377
      %v442 = vmul.f32 %v250, %v378
      %v443 = vmul.f32 %v251, %v379
      %v444 = vmul.f32 %v252, %v380
      %v445 = vmul.f32 %v253, %v381
      %v446 = vmul.f32 %v254, %v382
      %v447 = vmul.f32 %v255, %v383
      %v448 = vmul.f32 %v256, %v384
      %v449 = vmul.f32 %v257, %v385
      %v450 = vmul.f32 %v258, %v386
      %v451 = vmul.f32 %v259, %v387
      %v452 = vmul.f32 %v260, %v388
      %v453 = vmul.f32 %v261, %v389
      %v454 = vmul.f32 %v262, %v390
      %v455 = vmul.f32 %v263, %v391
      %v456 = vmul.f32 %v264, %v392
      %v457 = vmul.f32 %v265, %v393
      %v458 = vmul.f32 %v266, %v394
      %v459 = vmul.f32 %v267, %v395
      %v460 = vmul.f32 %v268, %v396
      %v461 = vmul.f32 %v269, %v397
      %v462 = vmul.f32 %v270, %v398
      %v463 = vmul.f32 %v271, %v399
      %v464 = vmul.f32 %v272, %v400
      %v465 = vmul.f32 %v273, %v401
      %v466 = vmul.f32 %v274, %v402
      %v467 = vmul.f32 %v275, %v403
      %v468 = vmul.f32 %v276, %v404
      %v469 = vmul.f32 %v277, %v405
      %v470 = vmul.f32 %v278, %v406
      %v471 = vmul.f32 %v279, %v407
      %v472 = vmul.f32 %v280, %v408
      %v473 = vmul.f32 %v281, %v409
      %v474 = vmul.f32 %v282, %v410
      %v475 = vmul.f32 %v283, %v411
      %v476 = vmul.f32 %v284, %v412
      %v477 = vmul.f32 %v285, %v413
      %v478 = vmul.f32 %v286, %v414
      %v479 = vmul.f32 %v287, %v415
      %v480 = vmul.f32 %v288, %v416
      %v481 = vmul.f32 %v289, %v417
      %v482 = vmul.f32 %v290, %v418
      %v483 = vmul.f32 %v291, %v419
      %v484 = vmul.f32 %v292, %v420
      %v485 = vmul.f32 %v293, %v421
      %v486 = vmul.f32 %v294, %v422
      %v487 = vmul.f32 %v295, %v423
      %v488 = vmul.f32 %v296, %v424
      %v489 = vmul.f32 %v297, %v425
      %v490 = vmul.f32 %v298, %v426
      %v491 = vmul.f32 %v299, %v427
      %v492 = vmul.f32 %v300, %v428
      %v493 = vmul.f32 %v301, %v429
      %vm494 = vcmask 261120
      %v495 = vsel %vm494, %v430, 0.0
      %496 = vadd.xlane.f32.xlu0 %v495
      %v497 = vpop.xlane.xlu0 %496
      %v498 = vsel %vm494, %v431, 0.0
      %499 = vadd.xlane.f32.xlu0 %v498
      %v500 = vpop.xlane.xlu0 %499
      %v501 = vsel %vm494, %v432, 0.0
      %502 = vadd.xlane.f32.xlu0 %v501
      %v503 = vpop.xlane.xlu0 %502
      %v504 = vsel %vm494, %v433, 0.0
      %505 = vadd.xlane.f32.xlu0 %v504
      %v506 = vpop.xlane.xlu0 %505
      %v507 = vsel %vm494, %v434, 0.0
      %508 = vadd.xlane.f32.xlu0 %v507
      %v509 = vpop.xlane.xlu0 %508
      %v510 = vsel %vm494, %v435, 0.0
      %511 = vadd.xlane.f32.xlu0 %v510
      %v512 = vpop.xlane.xlu0 %511
      %v513 = vsel %vm494, %v436, 0.0
      %514 = vadd.xlane.f32.xlu0 %v513
      %v515 = vpop.xlane.xlu0 %514
      %v516 = vsel %vm494, %v437, 0.0
      %517 = vadd.xlane.f32.xlu0 %v516
      %v518 = vpop.xlane.xlu0 %517
      %v519 = vsel %vm494, %v438, 0.0
      %520 = vadd.xlane.f32.xlu0 %v519
      %v521 = vpop.xlane.xlu0 %520
      %v522 = vsel %vm494, %v439, 0.0
      %523 = vadd.xlane.f32.xlu0 %v522
      %v524 = vpop.xlane.xlu0 %523
      %v525 = vsel %vm494, %v440, 0.0
      %526 = vadd.xlane.f32.xlu0 %v525
      %v527 = vpop.xlane.xlu0 %526
      %v528 = vsel %vm494, %v441, 0.0
      %529 = vadd.xlane.f32.xlu0 %v528
      %v530 = vpop.xlane.xlu0 %529
      %v531 = vsel %vm494, %v442, 0.0
      %532 = vadd.xlane.f32.xlu0 %v531
      %v533 = vpop.xlane.xlu0 %532
      %v534 = vsel %vm494, %v443, 0.0
      %535 = vadd.xlane.f32.xlu0 %v534
      %v536 = vpop.xlane.xlu0 %535
      %v537 = vsel %vm494, %v444, 0.0
      %538 = vadd.xlane.f32.xlu0 %v537
      %v539 = vpop.xlane.xlu0 %538
      %v540 = vsel %vm494, %v445, 0.0
      %541 = vadd.xlane.f32.xlu0 %v540
      %v542 = vpop.xlane.xlu0 %541
      %v543 = vsel %vm494, %v446, 0.0
      %544 = vadd.xlane.f32.xlu0 %v543
      %v545 = vpop.xlane.xlu0 %544
      %v546 = vsel %vm494, %v447, 0.0
      %547 = vadd.xlane.f32.xlu0 %v546
      %v548 = vpop.xlane.xlu0 %547
      %v549 = vsel %vm494, %v448, 0.0
      %550 = vadd.xlane.f32.xlu0 %v549
      %v551 = vpop.xlane.xlu0 %550
      %v552 = vsel %vm494, %v449, 0.0
      %553 = vadd.xlane.f32.xlu0 %v552
      %v554 = vpop.xlane.xlu0 %553
      %v555 = vsel %vm494, %v450, 0.0
      %556 = vadd.xlane.f32.xlu0 %v555
      %v557 = vpop.xlane.xlu0 %556
      %v558 = vsel %vm494, %v451, 0.0
      %559 = vadd.xlane.f32.xlu0 %v558
      %v560 = vpop.xlane.xlu0 %559
      %v561 = vsel %vm494, %v452, 0.0
      %562 = vadd.xlane.f32.xlu0 %v561
      %v563 = vpop.xlane.xlu0 %562
      %v564 = vsel %vm494, %v453, 0.0
      %565 = vadd.xlane.f32.xlu0 %v564
      %v566 = vpop.xlane.xlu0 %565
      %v567 = vsel %vm494, %v454, 0.0
      %568 = vadd.xlane.f32.xlu0 %v567
      %v569 = vpop.xlane.xlu0 %568
      %v570 = vsel %vm494, %v455, 0.0
      %571 = vadd.xlane.f32.xlu0 %v570
      %v572 = vpop.xlane.xlu0 %571
      %v573 = vsel %vm494, %v456, 0.0
      %574 = vadd.xlane.f32.xlu0 %v573
      %v575 = vpop.xlane.xlu0 %574
      %v576 = vsel %vm494, %v457, 0.0
      %577 = vadd.xlane.f32.xlu0 %v576
      %v578 = vpop.xlane.xlu0 %577
      %v579 = vsel %vm494, %v458, 0.0
      %580 = vadd.xlane.f32.xlu0 %v579
      %v581 = vpop.xlane.xlu0 %580
      %v582 = vsel %vm494, %v459, 0.0
      %583 = vadd.xlane.f32.xlu0 %v582
      %v584 = vpop.xlane.xlu0 %583
      %v585 = vsel %vm494, %v460, 0.0
      %586 = vadd.xlane.f32.xlu0 %v585
      %v587 = vpop.xlane.xlu0 %586
      %v588 = vsel %vm494, %v461, 0.0
      %589 = vadd.xlane.f32.xlu0 %v588
      %v590 = vpop.xlane.xlu0 %589
      %v591 = vsel %vm494, %v462, 0.0
      %592 = vadd.xlane.f32.xlu0 %v591
      %v593 = vpop.xlane.xlu0 %592
      %v594 = vsel %vm494, %v463, 0.0
      %595 = vadd.xlane.f32.xlu0 %v594
      %v596 = vpop.xlane.xlu0 %595
      %v597 = vsel %vm494, %v464, 0.0
      %598 = vadd.xlane.f32.xlu0 %v597
      %v599 = vpop.xlane.xlu0 %598
      %v600 = vsel %vm494, %v465, 0.0
      %601 = vadd.xlane.f32.xlu0 %v600
      %v602 = vpop.xlane.xlu0 %601
      %v603 = vsel %vm494, %v466, 0.0
      %604 = vadd.xlane.f32.xlu0 %v603
      %v605 = vpop.xlane.xlu0 %604
      %v606 = vsel %vm494, %v467, 0.0
      %607 = vadd.xlane.f32.xlu0 %v606
      %v608 = vpop.xlane.xlu0 %607
      %v609 = vsel %vm494, %v468, 0.0
      %610 = vadd.xlane.f32.xlu0 %v609
      %v611 = vpop.xlane.xlu0 %610
      %v612 = vsel %vm494, %v469, 0.0
      %613 = vadd.xlane.f32.xlu0 %v612
      %v614 = vpop.xlane.xlu0 %613
      %v615 = vsel %vm494, %v470, 0.0
      %616 = vadd.xlane.f32.xlu0 %v615
      %v617 = vpop.xlane.xlu0 %616
      %v618 = vsel %vm494, %v471, 0.0
      %619 = vadd.xlane.f32.xlu0 %v618
      %v620 = vpop.xlane.xlu0 %619
      %v621 = vsel %vm494, %v472, 0.0
      %622 = vadd.xlane.f32.xlu0 %v621
      %v623 = vpop.xlane.xlu0 %622
      %v624 = vsel %vm494, %v473, 0.0
      %625 = vadd.xlane.f32.xlu0 %v624
      %v626 = vpop.xlane.xlu0 %625
      %v627 = vsel %vm494, %v474, 0.0
      %628 = vadd.xlane.f32.xlu0 %v627
      %v629 = vpop.xlane.xlu0 %628
      %v630 = vsel %vm494, %v475, 0.0
      %631 = vadd.xlane.f32.xlu0 %v630
      %v632 = vpop.xlane.xlu0 %631
      %v633 = vsel %vm494, %v476, 0.0
      %634 = vadd.xlane.f32.xlu0 %v633
      %v635 = vpop.xlane.xlu0 %634
      %v636 = vsel %vm494, %v477, 0.0
      %637 = vadd.xlane.f32.xlu0 %v636
      %v638 = vpop.xlane.xlu0 %637
      %v639 = vsel %vm494, %v478, 0.0
      %640 = vadd.xlane.f32.xlu0 %v639
      %v641 = vpop.xlane.xlu0 %640
      %v642 = vsel %vm494, %v479, 0.0
      %643 = vadd.xlane.f32.xlu0 %v642
      %v644 = vpop.xlane.xlu0 %643
      %v645 = vsel %vm494, %v480, 0.0
      %646 = vadd.xlane.f32.xlu0 %v645
      %v647 = vpop.xlane.xlu0 %646
      %v648 = vsel %vm494, %v481, 0.0
      %649 = vadd.xlane.f32.xlu0 %v648
      %v650 = vpop.xlane.xlu0 %649
      %v651 = vsel %vm494, %v482, 0.0
      %652 = vadd.xlane.f32.xlu0 %v651
      %v653 = vpop.xlane.xlu0 %652
      %v654 = vsel %vm494, %v483, 0.0
      %655 = vadd.xlane.f32.xlu0 %v654
      %v656 = vpop.xlane.xlu0 %655
      %v657 = vsel %vm494, %v484, 0.0
      %658 = vadd.xlane.f32.xlu0 %v657
      %v659 = vpop.xlane.xlu0 %658
      %v660 = vsel %vm494, %v485, 0.0
      %661 = vadd.xlane.f32.xlu0 %v660
      %v662 = vpop.xlane.xlu0 %661
      %v663 = vsel %vm494, %v486, 0.0
      %664 = vadd.xlane.f32.xlu0 %v663
      %v665 = vpop.xlane.xlu0 %664
      %v666 = vsel %vm494, %v487, 0.0
      %667 = vadd.xlane.f32.xlu0 %v666
      %v668 = vpop.xlane.xlu0 %667
      %v669 = vsel %vm494, %v488, 0.0
      %670 = vadd.xlane.f32.xlu0 %v669
      %v671 = vpop.xlane.xlu0 %670
      %v672 = vsel %vm494, %v489, 0.0
      %673 = vadd.xlane.f32.xlu0 %v672
      %v674 = vpop.xlane.xlu0 %673
      %v675 = vsel %vm494, %v490, 0.0
      %676 = vadd.xlane.f32.xlu0 %v675
      %v677 = vpop.xlane.xlu0 %676
      %v678 = vsel %vm494, %v491, 0.0
      %679 = vadd.xlane.f32.xlu0 %v678
      %v680 = vpop.xlane.xlu0 %679
      %v681 = vsel %vm494, %v492, 0.0
      %682 = vadd.xlane.f32.xlu0 %v681
      %v683 = vpop.xlane.xlu0 %682
      %v684 = vsel %vm494, %v493, 0.0
      %685 = vadd.xlane.f32.xlu0 %v684
      %v686 = vpop.xlane.xlu0 %685
      %v687 = vmul.f32 %v238, %v238
      %v688 = vmul.f32 %v239, %v239
      %v689 = vmul.f32 %v240, %v240
      %v690 = vmul.f32 %v241, %v241
      %v691 = vmul.f32 %v242, %v242
      %v692 = vmul.f32 %v243, %v243
      %v693 = vmul.f32 %v244, %v244
      %v694 = vmul.f32 %v245, %v245
      %v695 = vmul.f32 %v246, %v246
      %v696 = vmul.f32 %v247, %v247
      %v697 = vmul.f32 %v248, %v248
      %v698 = vmul.f32 %v249, %v249
      %v699 = vmul.f32 %v250, %v250
      %v700 = vmul.f32 %v251, %v251
      %v701 = vmul.f32 %v252, %v252
      %v702 = vmul.f32 %v253, %v253
      %v703 = vmul.f32 %v254, %v254
      %v704 = vmul.f32 %v255, %v255
      %v705 = vmul.f32 %v256, %v256
      %v706 = vmul.f32 %v257, %v257
      %v707 = vmul.f32 %v258, %v258
      %v708 = vmul.f32 %v259, %v259
      %v709 = vmul.f32 %v260, %v260
      %v710 = vmul.f32 %v261, %v261
      %v711 = vmul.f32 %v262, %v262
      %v712 = vmul.f32 %v263, %v263
      %v713 = vmul.f32 %v264, %v264
      %v714 = vmul.f32 %v265, %v265
      %v715 = vmul.f32 %v266, %v266
      %v716 = vmul.f32 %v267, %v267
      %v717 = vmul.f32 %v268, %v268
      %v718 = vmul.f32 %v269, %v269
      %v719 = vmul.f32 %v270, %v270
      %v720 = vmul.f32 %v271, %v271
      %v721 = vmul.f32 %v272, %v272
      %v722 = vmul.f32 %v273, %v273
      %v723 = vmul.f32 %v274, %v274
      %v724 = vmul.f32 %v275, %v275
      %v725 = vmul.f32 %v276, %v276
      %v726 = vmul.f32 %v277, %v277
      %v727 = vmul.f32 %v278, %v278
      %v728 = vmul.f32 %v279, %v279
      %v729 = vmul.f32 %v280, %v280
      %v730 = vmul.f32 %v281, %v281
      %v731 = vmul.f32 %v282, %v282
      %v732 = vmul.f32 %v283, %v283
      %v733 = vmul.f32 %v284, %v284
      %v734 = vmul.f32 %v285, %v285
      %v735 = vmul.f32 %v286, %v286
      %v736 = vmul.f32 %v287, %v287
      %v737 = vmul.f32 %v288, %v288
      %v738 = vmul.f32 %v289, %v289
      %v739 = vmul.f32 %v290, %v290
      %v740 = vmul.f32 %v291, %v291
      %v741 = vmul.f32 %v292, %v292
      %v742 = vmul.f32 %v293, %v293
      %v743 = vmul.f32 %v294, %v294
      %v744 = vmul.f32 %v295, %v295
      %v745 = vmul.f32 %v296, %v296
      %v746 = vmul.f32 %v297, %v297
      %v747 = vmul.f32 %v298, %v298
      %v748 = vmul.f32 %v299, %v299
      %v749 = vmul.f32 %v300, %v300
      %v750 = vmul.f32 %v301, %v301
      %v751 = vsel %vm494, %v687, 0.0
      %752 = vadd.xlane.f32.xlu0 %v751
      %v753 = vpop.xlane.xlu0 %752
      %v754 = vsel %vm494, %v688, 0.0
      %755 = vadd.xlane.f32.xlu0 %v754
      %v756 = vpop.xlane.xlu0 %755
      %v757 = vsel %vm494, %v689, 0.0
      %758 = vadd.xlane.f32.xlu0 %v757
      %v759 = vpop.xlane.xlu0 %758
      %v760 = vsel %vm494, %v690, 0.0
      %761 = vadd.xlane.f32.xlu0 %v760
      %v762 = vpop.xlane.xlu0 %761
      %v763 = vsel %vm494, %v691, 0.0
      %764 = vadd.xlane.f32.xlu0 %v763
      %v765 = vpop.xlane.xlu0 %764
      %v766 = vsel %vm494, %v692, 0.0
      %767 = vadd.xlane.f32.xlu0 %v766
      %v768 = vpop.xlane.xlu0 %767
      %v769 = vsel %vm494, %v693, 0.0
      %770 = vadd.xlane.f32.xlu0 %v769
      %v771 = vpop.xlane.xlu0 %770
      %v772 = vsel %vm494, %v694, 0.0
      %773 = vadd.xlane.f32.xlu0 %v772
      %v774 = vpop.xlane.xlu0 %773
      %v775 = vsel %vm494, %v695, 0.0
      %776 = vadd.xlane.f32.xlu0 %v775
      %v777 = vpop.xlane.xlu0 %776
      %v778 = vsel %vm494, %v696, 0.0
      %779 = vadd.xlane.f32.xlu0 %v778
      %v780 = vpop.xlane.xlu0 %779
      %v781 = vsel %vm494, %v697, 0.0
      %782 = vadd.xlane.f32.xlu0 %v781
      %v783 = vpop.xlane.xlu0 %782
      %v784 = vsel %vm494, %v698, 0.0
      %785 = vadd.xlane.f32.xlu0 %v784
      %v786 = vpop.xlane.xlu0 %785
      %v787 = vsel %vm494, %v699, 0.0
      %788 = vadd.xlane.f32.xlu0 %v787
      %v789 = vpop.xlane.xlu0 %788
      %v790 = vsel %vm494, %v700, 0.0
      %791 = vadd.xlane.f32.xlu0 %v790
      %v792 = vpop.xlane.xlu0 %791
      %v793 = vsel %vm494, %v701, 0.0
      %794 = vadd.xlane.f32.xlu0 %v793
      %v795 = vpop.xlane.xlu0 %794
      %v796 = vsel %vm494, %v702, 0.0
      %797 = vadd.xlane.f32.xlu0 %v796
      %v798 = vpop.xlane.xlu0 %797
      %v799 = vsel %vm494, %v703, 0.0
      %800 = vadd.xlane.f32.xlu0 %v799
      %v801 = vpop.xlane.xlu0 %800
      %v802 = vsel %vm494, %v704, 0.0
      %803 = vadd.xlane.f32.xlu0 %v802
      %v804 = vpop.xlane.xlu0 %803
      %v805 = vsel %vm494, %v705, 0.0
      %806 = vadd.xlane.f32.xlu0 %v805
      %v807 = vpop.xlane.xlu0 %806
      %v808 = vsel %vm494, %v706, 0.0
      %809 = vadd.xlane.f32.xlu0 %v808
      %v810 = vpop.xlane.xlu0 %809
      %v811 = vsel %vm494, %v707, 0.0
      %812 = vadd.xlane.f32.xlu0 %v811
      %v813 = vpop.xlane.xlu0 %812
      %v814 = vsel %vm494, %v708, 0.0
      %815 = vadd.xlane.f32.xlu0 %v814
      %v816 = vpop.xlane.xlu0 %815
      %v817 = vsel %vm494, %v709, 0.0
      %818 = vadd.xlane.f32.xlu0 %v817
      %v819 = vpop.xlane.xlu0 %818
      %v820 = vsel %vm494, %v710, 0.0
      %821 = vadd.xlane.f32.xlu0 %v820
      %v822 = vpop.xlane.xlu0 %821
      %v823 = vsel %vm494, %v711, 0.0
      %824 = vadd.xlane.f32.xlu0 %v823
      %v825 = vpop.xlane.xlu0 %824
      %v826 = vsel %vm494, %v712, 0.0
      %827 = vadd.xlane.f32.xlu0 %v826
      %v828 = vpop.xlane.xlu0 %827
      %v829 = vsel %vm494, %v713, 0.0
      %830 = vadd.xlane.f32.xlu0 %v829
      %v831 = vpop.xlane.xlu0 %830
      %v832 = vsel %vm494, %v714, 0.0
      %833 = vadd.xlane.f32.xlu0 %v832
      %v834 = vpop.xlane.xlu0 %833
      %v835 = vsel %vm494, %v715, 0.0
      %836 = vadd.xlane.f32.xlu0 %v835
      %v837 = vpop.xlane.xlu0 %836
      %v838 = vsel %vm494, %v716, 0.0
      %839 = vadd.xlane.f32.xlu0 %v838
      %v840 = vpop.xlane.xlu0 %839
      %v841 = vsel %vm494, %v717, 0.0
      %842 = vadd.xlane.f32.xlu0 %v841
      %v843 = vpop.xlane.xlu0 %842
      %v844 = vsel %vm494, %v718, 0.0
      %845 = vadd.xlane.f32.xlu0 %v844
      %v846 = vpop.xlane.xlu0 %845
      %v847 = vsel %vm494, %v719, 0.0
      %848 = vadd.xlane.f32.xlu0 %v847
      %v849 = vpop.xlane.xlu0 %848
      %v850 = vsel %vm494, %v720, 0.0
      %851 = vadd.xlane.f32.xlu0 %v850
      %v852 = vpop.xlane.xlu0 %851
      %v853 = vsel %vm494, %v721, 0.0
      %854 = vadd.xlane.f32.xlu0 %v853
      %v855 = vpop.xlane.xlu0 %854
      %v856 = vsel %vm494, %v722, 0.0
      %857 = vadd.xlane.f32.xlu0 %v856
      %v858 = vpop.xlane.xlu0 %857
      %v859 = vsel %vm494, %v723, 0.0
      %860 = vadd.xlane.f32.xlu0 %v859
      %v861 = vpop.xlane.xlu0 %860
      %v862 = vsel %vm494, %v724, 0.0
      %863 = vadd.xlane.f32.xlu0 %v862
      %v864 = vpop.xlane.xlu0 %863
      %v865 = vsel %vm494, %v725, 0.0
      %866 = vadd.xlane.f32.xlu0 %v865
      %v867 = vpop.xlane.xlu0 %866
      %v868 = vsel %vm494, %v726, 0.0
      %869 = vadd.xlane.f32.xlu0 %v868
      %v870 = vpop.xlane.xlu0 %869
      %v871 = vsel %vm494, %v727, 0.0
      %872 = vadd.xlane.f32.xlu0 %v871
      %v873 = vpop.xlane.xlu0 %872
      %v874 = vsel %vm494, %v728, 0.0
      %875 = vadd.xlane.f32.xlu0 %v874
      %v876 = vpop.xlane.xlu0 %875
      %v877 = vsel %vm494, %v729, 0.0
      %878 = vadd.xlane.f32.xlu0 %v877
      %v879 = vpop.xlane.xlu0 %878
      %v880 = vsel %vm494, %v730, 0.0
      %881 = vadd.xlane.f32.xlu0 %v880
      %v882 = vpop.xlane.xlu0 %881
      %v883 = vsel %vm494, %v731, 0.0
      %884 = vadd.xlane.f32.xlu0 %v883
      %v885 = vpop.xlane.xlu0 %884
      %v886 = vsel %vm494, %v732, 0.0
      %887 = vadd.xlane.f32.xlu0 %v886
      %v888 = vpop.xlane.xlu0 %887
      %v889 = vsel %vm494, %v733, 0.0
      %890 = vadd.xlane.f32.xlu0 %v889
      %v891 = vpop.xlane.xlu0 %890
      %v892 = vsel %vm494, %v734, 0.0
      %893 = vadd.xlane.f32.xlu0 %v892
      %v894 = vpop.xlane.xlu0 %893
      %v895 = vsel %vm494, %v735, 0.0
      %896 = vadd.xlane.f32.xlu0 %v895
      %v897 = vpop.xlane.xlu0 %896
      %v898 = vsel %vm494, %v736, 0.0
      %899 = vadd.xlane.f32.xlu0 %v898
      %v900 = vpop.xlane.xlu0 %899
      %v901 = vsel %vm494, %v737, 0.0
      %902 = vadd.xlane.f32.xlu0 %v901
      %v903 = vpop.xlane.xlu0 %902
      %v904 = vsel %vm494, %v738, 0.0
      %905 = vadd.xlane.f32.xlu0 %v904
      %v906 = vpop.xlane.xlu0 %905
      %v907 = vsel %vm494, %v739, 0.0
      %908 = vadd.xlane.f32.xlu0 %v907
      %v909 = vpop.xlane.xlu0 %908
      %v910 = vsel %vm494, %v740, 0.0
      %911 = vadd.xlane.f32.xlu0 %v910
      %v912 = vpop.xlane.xlu0 %911
      %v913 = vsel %vm494, %v741, 0.0
      %914 = vadd.xlane.f32.xlu0 %v913
      %v915 = vpop.xlane.xlu0 %914
      %v916 = vsel %vm494, %v742, 0.0
      %917 = vadd.xlane.f32.xlu0 %v916
      %v918 = vpop.xlane.xlu0 %917
      %v919 = vsel %vm494, %v743, 0.0
      %920 = vadd.xlane.f32.xlu0 %v919
      %v921 = vpop.xlane.xlu0 %920
      %v922 = vsel %vm494, %v744, 0.0
      %923 = vadd.xlane.f32.xlu0 %v922
      %v924 = vpop.xlane.xlu0 %923
      %v925 = vsel %vm494, %v745, 0.0
      %926 = vadd.xlane.f32.xlu0 %v925
      %v927 = vpop.xlane.xlu0 %926
      %v928 = vsel %vm494, %v746, 0.0
      %929 = vadd.xlane.f32.xlu0 %v928
      %v930 = vpop.xlane.xlu0 %929
      %v931 = vsel %vm494, %v747, 0.0
      %932 = vadd.xlane.f32.xlu0 %v931
      %v933 = vpop.xlane.xlu0 %932
      %v934 = vsel %vm494, %v748, 0.0
      %935 = vadd.xlane.f32.xlu0 %v934
      %v936 = vpop.xlane.xlu0 %935
      %v937 = vsel %vm494, %v749, 0.0
      %938 = vadd.xlane.f32.xlu0 %v937
      %v939 = vpop.xlane.xlu0 %938
      %v940 = vsel %vm494, %v750, 0.0
      %941 = vadd.xlane.f32.xlu0 %v940
      %v942 = vpop.xlane.xlu0 %941
      %v943 = vmul.f32 %v366, %v366
      %v944 = vmul.f32 %v367, %v367
      %v945 = vmul.f32 %v368, %v368
      %v946 = vmul.f32 %v369, %v369
      %v947 = vmul.f32 %v370, %v370
      %v948 = vmul.f32 %v371, %v371
      %v949 = vmul.f32 %v372, %v372
      %v950 = vmul.f32 %v373, %v373
      %v951 = vmul.f32 %v374, %v374
      %v952 = vmul.f32 %v375, %v375
      %v953 = vmul.f32 %v376, %v376
      %v954 = vmul.f32 %v377, %v377
      %v955 = vmul.f32 %v378, %v378
      %v956 = vmul.f32 %v379, %v379
      %v957 = vmul.f32 %v380, %v380
      %v958 = vmul.f32 %v381, %v381
      %v959 = vmul.f32 %v382, %v382
      %v960 = vmul.f32 %v383, %v383
      %v961 = vmul.f32 %v384, %v384
      %v962 = vmul.f32 %v385, %v385
      %v963 = vmul.f32 %v386, %v386
      %v964 = vmul.f32 %v387, %v387
      %v965 = vmul.f32 %v388, %v388
      %v966 = vmul.f32 %v389, %v389
      %v967 = vmul.f32 %v390, %v390
      %v968 = vmul.f32 %v391, %v391
      %v969 = vmul.f32 %v392, %v392
      %v970 = vmul.f32 %v393, %v393
      %v971 = vmul.f32 %v394, %v394
      %v972 = vmul.f32 %v395, %v395
      %v973 = vmul.f32 %v396, %v396
      %v974 = vmul.f32 %v397, %v397
      %v975 = vmul.f32 %v398, %v398
      %v976 = vmul.f32 %v399, %v399
      %v977 = vmul.f32 %v400, %v400
      %v978 = vmul.f32 %v401, %v401
      %v979 = vmul.f32 %v402, %v402
      %v980 = vmul.f32 %v403, %v403
      %v981 = vmul.f32 %v404, %v404
      %v982 = vmul.f32 %v405, %v405
      %v983 = vmul.f32 %v406, %v406
      %v984 = vmul.f32 %v407, %v407
      %v985 = vmul.f32 %v408, %v408
      %v986 = vmul.f32 %v409, %v409
      %v987 = vmul.f32 %v410, %v410
      %v988 = vmul.f32 %v411, %v411
      %v989 = vmul.f32 %v412, %v412
      %v990 = vmul.f32 %v413, %v413
      %v991 = vmul.f32 %v414, %v414
      %v992 = vmul.f32 %v415, %v415
      %v993 = vmul.f32 %v416, %v416
      %v994 = vmul.f32 %v417, %v417
      %v995 = vmul.f32 %v418, %v418
      %v996 = vmul.f32 %v419, %v419
      %v997 = vmul.f32 %v420, %v420
      %v998 = vmul.f32 %v421, %v421
      %v999 = vmul.f32 %v422, %v422
      %v1000 = vmul.f32 %v423, %v423
      %v1001 = vmul.f32 %v424, %v424
      %v1002 = vmul.f32 %v425, %v425
      %v1003 = vmul.f32 %v426, %v426
      %v1004 = vmul.f32 %v427, %v427
      %v1005 = vmul.f32 %v428, %v428
      %v1006 = vmul.f32 %v429, %v429
      %v1007 = vsel %vm494, %v943, 0.0
      %1008 = vadd.xlane.f32.xlu0 %v1007
      %v1009 = vpop.xlane.xlu0 %1008
      %v1010 = vsel %vm494, %v944, 0.0
      %1011 = vadd.xlane.f32.xlu0 %v1010
      %v1012 = vpop.xlane.xlu0 %1011
      %v1013 = vsel %vm494, %v945, 0.0
      %1014 = vadd.xlane.f32.xlu0 %v1013
      %v1015 = vpop.xlane.xlu0 %1014
      %v1016 = vsel %vm494, %v946, 0.0
      %1017 = vadd.xlane.f32.xlu0 %v1016
      %v1018 = vpop.xlane.xlu0 %1017
      %v1019 = vsel %vm494, %v947, 0.0
      %1020 = vadd.xlane.f32.xlu0 %v1019
      %v1021 = vpop.xlane.xlu0 %1020
      %v1022 = vsel %vm494, %v948, 0.0
      %1023 = vadd.xlane.f32.xlu0 %v1022
      %v1024 = vpop.xlane.xlu0 %1023
      %v1025 = vsel %vm494, %v949, 0.0
      %1026 = vadd.xlane.f32.xlu0 %v1025
      %v1027 = vpop.xlane.xlu0 %1026
      %v1028 = vsel %vm494, %v950, 0.0
      %1029 = vadd.xlane.f32.xlu0 %v1028
      %v1030 = vpop.xlane.xlu0 %1029
      %v1031 = vsel %vm494, %v951, 0.0
      %1032 = vadd.xlane.f32.xlu0 %v1031
      %v1033 = vpop.xlane.xlu0 %1032
      %v1034 = vsel %vm494, %v952, 0.0
      %1035 = vadd.xlane.f32.xlu0 %v1034
      %v1036 = vpop.xlane.xlu0 %1035
      %v1037 = vsel %vm494, %v953, 0.0
      %1038 = vadd.xlane.f32.xlu0 %v1037
      %v1039 = vpop.xlane.xlu0 %1038
      %v1040 = vsel %vm494, %v954, 0.0
      %1041 = vadd.xlane.f32.xlu0 %v1040
      %v1042 = vpop.xlane.xlu0 %1041
      %v1043 = vsel %vm494, %v955, 0.0
      %1044 = vadd.xlane.f32.xlu0 %v1043
      %v1045 = vpop.xlane.xlu0 %1044
      %v1046 = vsel %vm494, %v956, 0.0
      %1047 = vadd.xlane.f32.xlu0 %v1046
      %v1048 = vpop.xlane.xlu0 %1047
      %v1049 = vsel %vm494, %v957, 0.0
      %1050 = vadd.xlane.f32.xlu0 %v1049
      %v1051 = vpop.xlane.xlu0 %1050
      %v1052 = vsel %vm494, %v958, 0.0
      %1053 = vadd.xlane.f32.xlu0 %v1052
      %v1054 = vpop.xlane.xlu0 %1053
      %v1055 = vsel %vm494, %v959, 0.0
      %1056 = vadd.xlane.f32.xlu0 %v1055
      %v1057 = vpop.xlane.xlu0 %1056
      %v1058 = vsel %vm494, %v960, 0.0
      %1059 = vadd.xlane.f32.xlu0 %v1058
      %v1060 = vpop.xlane.xlu0 %1059
      %v1061 = vsel %vm494, %v961, 0.0
      %1062 = vadd.xlane.f32.xlu0 %v1061
      %v1063 = vpop.xlane.xlu0 %1062
      %v1064 = vsel %vm494, %v962, 0.0
      %1065 = vadd.xlane.f32.xlu0 %v1064
      %v1066 = vpop.xlane.xlu0 %1065
      %v1067 = vsel %vm494, %v963, 0.0
      %1068 = vadd.xlane.f32.xlu0 %v1067
      %v1069 = vpop.xlane.xlu0 %1068
      %v1070 = vsel %vm494, %v964, 0.0
      %1071 = vadd.xlane.f32.xlu0 %v1070
      %v1072 = vpop.xlane.xlu0 %1071
      %v1073 = vsel %vm494, %v965, 0.0
      %1074 = vadd.xlane.f32.xlu0 %v1073
      %v1075 = vpop.xlane.xlu0 %1074
      %v1076 = vsel %vm494, %v966, 0.0
      %1077 = vadd.xlane.f32.xlu0 %v1076
      %v1078 = vpop.xlane.xlu0 %1077
      %v1079 = vsel %vm494, %v967, 0.0
      %1080 = vadd.xlane.f32.xlu0 %v1079
      %v1081 = vpop.xlane.xlu0 %1080
      %v1082 = vsel %vm494, %v968, 0.0
      %1083 = vadd.xlane.f32.xlu0 %v1082
      %v1084 = vpop.xlane.xlu0 %1083
      %v1085 = vsel %vm494, %v969, 0.0
      %1086 = vadd.xlane.f32.xlu0 %v1085
      %v1087 = vpop.xlane.xlu0 %1086
      %v1088 = vsel %vm494, %v970, 0.0
      %1089 = vadd.xlane.f32.xlu0 %v1088
      %v1090 = vpop.xlane.xlu0 %1089
      %v1091 = vsel %vm494, %v971, 0.0
      %1092 = vadd.xlane.f32.xlu0 %v1091
      %v1093 = vpop.xlane.xlu0 %1092
      %v1094 = vsel %vm494, %v972, 0.0
      %1095 = vadd.xlane.f32.xlu0 %v1094
      %v1096 = vpop.xlane.xlu0 %1095
      %v1097 = vsel %vm494, %v973, 0.0
      %1098 = vadd.xlane.f32.xlu0 %v1097
      %v1099 = vpop.xlane.xlu0 %1098
      %v1100 = vsel %vm494, %v974, 0.0
      %1101 = vadd.xlane.f32.xlu0 %v1100
      %v1102 = vpop.xlane.xlu0 %1101
      %v1103 = vsel %vm494, %v975, 0.0
      %1104 = vadd.xlane.f32.xlu0 %v1103
      %v1105 = vpop.xlane.xlu0 %1104
      %v1106 = vsel %vm494, %v976, 0.0
      %1107 = vadd.xlane.f32.xlu0 %v1106
      %v1108 = vpop.xlane.xlu0 %1107
      %v1109 = vsel %vm494, %v977, 0.0
      %1110 = vadd.xlane.f32.xlu0 %v1109
      %v1111 = vpop.xlane.xlu0 %1110
      %v1112 = vsel %vm494, %v978, 0.0
      %1113 = vadd.xlane.f32.xlu0 %v1112
      %v1114 = vpop.xlane.xlu0 %1113
      %v1115 = vsel %vm494, %v979, 0.0
      %1116 = vadd.xlane.f32.xlu0 %v1115
      %v1117 = vpop.xlane.xlu0 %1116
      %v1118 = vsel %vm494, %v980, 0.0
      %1119 = vadd.xlane.f32.xlu0 %v1118
      %v1120 = vpop.xlane.xlu0 %1119
      %v1121 = vsel %vm494, %v981, 0.0
      %1122 = vadd.xlane.f32.xlu0 %v1121
      %v1123 = vpop.xlane.xlu0 %1122
      %v1124 = vsel %vm494, %v982, 0.0
      %1125 = vadd.xlane.f32.xlu0 %v1124
      %v1126 = vpop.xlane.xlu0 %1125
      %v1127 = vsel %vm494, %v983, 0.0
      %1128 = vadd.xlane.f32.xlu0 %v1127
      %v1129 = vpop.xlane.xlu0 %1128
      %v1130 = vsel %vm494, %v984, 0.0
      %1131 = vadd.xlane.f32.xlu0 %v1130
      %v1132 = vpop.xlane.xlu0 %1131
      %v1133 = vsel %vm494, %v985, 0.0
      %1134 = vadd.xlane.f32.xlu0 %v1133
      %v1135 = vpop.xlane.xlu0 %1134
      %v1136 = vsel %vm494, %v986, 0.0
      %1137 = vadd.xlane.f32.xlu0 %v1136
      %v1138 = vpop.xlane.xlu0 %1137
      %v1139 = vsel %vm494, %v987, 0.0
      %1140 = vadd.xlane.f32.xlu0 %v1139
      %v1141 = vpop.xlane.xlu0 %1140
      %v1142 = vsel %vm494, %v988, 0.0
      %1143 = vadd.xlane.f32.xlu0 %v1142
      %v1144 = vpop.xlane.xlu0 %1143
      %v1145 = vsel %vm494, %v989, 0.0
      %1146 = vadd.xlane.f32.xlu0 %v1145
      %v1147 = vpop.xlane.xlu0 %1146
      %v1148 = vsel %vm494, %v990, 0.0
      %1149 = vadd.xlane.f32.xlu0 %v1148
      %v1150 = vpop.xlane.xlu0 %1149
      %v1151 = vsel %vm494, %v991, 0.0
      %1152 = vadd.xlane.f32.xlu0 %v1151
      %v1153 = vpop.xlane.xlu0 %1152
      %v1154 = vsel %vm494, %v992, 0.0
      %1155 = vadd.xlane.f32.xlu0 %v1154
      %v1156 = vpop.xlane.xlu0 %1155
      %v1157 = vsel %vm494, %v993, 0.0
      %1158 = vadd.xlane.f32.xlu0 %v1157
      %v1159 = vpop.xlane.xlu0 %1158
      %v1160 = vsel %vm494, %v994, 0.0
      %1161 = vadd.xlane.f32.xlu0 %v1160
      %v1162 = vpop.xlane.xlu0 %1161
      %v1163 = vsel %vm494, %v995, 0.0
      %1164 = vadd.xlane.f32.xlu0 %v1163
      %v1165 = vpop.xlane.xlu0 %1164
      %v1166 = vsel %vm494, %v996, 0.0
      %1167 = vadd.xlane.f32.xlu0 %v1166
      %v1168 = vpop.xlane.xlu0 %1167
      %v1169 = vsel %vm494, %v997, 0.0
      %1170 = vadd.xlane.f32.xlu0 %v1169
      %v1171 = vpop.xlane.xlu0 %1170
      %v1172 = vsel %vm494, %v998, 0.0
      %1173 = vadd.xlane.f32.xlu0 %v1172
      %v1174 = vpop.xlane.xlu0 %1173
      %v1175 = vsel %vm494, %v999, 0.0
      %1176 = vadd.xlane.f32.xlu0 %v1175
      %v1177 = vpop.xlane.xlu0 %1176
      %v1178 = vsel %vm494, %v1000, 0.0
      %1179 = vadd.xlane.f32.xlu0 %v1178
      %v1180 = vpop.xlane.xlu0 %1179
      %v1181 = vsel %vm494, %v1001, 0.0
      %1182 = vadd.xlane.f32.xlu0 %v1181
      %v1183 = vpop.xlane.xlu0 %1182
      %v1184 = vsel %vm494, %v1002, 0.0
      %1185 = vadd.xlane.f32.xlu0 %v1184
      %v1186 = vpop.xlane.xlu0 %1185
      %v1187 = vsel %vm494, %v1003, 0.0
      %1188 = vadd.xlane.f32.xlu0 %v1187
      %v1189 = vpop.xlane.xlu0 %1188
      %v1190 = vsel %vm494, %v1004, 0.0
      %1191 = vadd.xlane.f32.xlu0 %v1190
      %v1192 = vpop.xlane.xlu0 %1191
      %v1193 = vsel %vm494, %v1005, 0.0
      %1194 = vadd.xlane.f32.xlu0 %v1193
      %v1195 = vpop.xlane.xlu0 %1194
      %v1196 = vsel %vm494, %v1006, 0.0
      %1197 = vadd.xlane.f32.xlu0 %v1196
      %v1198 = vpop.xlane.xlu0 %1197
      %v1199 = vmul.f32 %v753, %v1009
      %v1200 = vmul.f32 %v756, %v1012
      %v1201 = vmul.f32 %v759, %v1015
      %v1202 = vmul.f32 %v762, %v1018
      %v1203 = vmul.f32 %v765, %v1021
      %v1204 = vmul.f32 %v768, %v1024
      %v1205 = vmul.f32 %v771, %v1027
      %v1206 = vmul.f32 %v774, %v1030
      %v1207 = vmul.f32 %v777, %v1033
      %v1208 = vmul.f32 %v780, %v1036
      %v1209 = vmul.f32 %v783, %v1039
      %v1210 = vmul.f32 %v786, %v1042
      %v1211 = vmul.f32 %v789, %v1045
      %v1212 = vmul.f32 %v792, %v1048
      %v1213 = vmul.f32 %v795, %v1051
      %v1214 = vmul.f32 %v798, %v1054
      %v1215 = vmul.f32 %v801, %v1057
      %v1216 = vmul.f32 %v804, %v1060
      %v1217 = vmul.f32 %v807, %v1063
      %v1218 = vmul.f32 %v810, %v1066
      %v1219 = vmul.f32 %v813, %v1069
      %v1220 = vmul.f32 %v816, %v1072
      %v1221 = vmul.f32 %v819, %v1075
      %v1222 = vmul.f32 %v822, %v1078
      %v1223 = vmul.f32 %v825, %v1081
      %v1224 = vmul.f32 %v828, %v1084
      %v1225 = vmul.f32 %v831, %v1087
      %v1226 = vmul.f32 %v834, %v1090
      %v1227 = vmul.f32 %v837, %v1093
      %v1228 = vmul.f32 %v840, %v1096
      %v1229 = vmul.f32 %v843, %v1099
      %v1230 = vmul.f32 %v846, %v1102
      %v1231 = vmul.f32 %v849, %v1105
      %v1232 = vmul.f32 %v852, %v1108
      %v1233 = vmul.f32 %v855, %v1111
      %v1234 = vmul.f32 %v858, %v1114
      %v1235 = vmul.f32 %v861, %v1117
      %v1236 = vmul.f32 %v864, %v1120
      %v1237 = vmul.f32 %v867, %v1123
      %v1238 = vmul.f32 %v870, %v1126
      %v1239 = vmul.f32 %v873, %v1129
      %v1240 = vmul.f32 %v876, %v1132
      %v1241 = vmul.f32 %v879, %v1135
      %v1242 = vmul.f32 %v882, %v1138
      %v1243 = vmul.f32 %v885, %v1141
      %v1244 = vmul.f32 %v888, %v1144
      %v1245 = vmul.f32 %v891, %v1147
      %v1246 = vmul.f32 %v894, %v1150
      %v1247 = vmul.f32 %v897, %v1153
      %v1248 = vmul.f32 %v900, %v1156
      %v1249 = vmul.f32 %v903, %v1159
      %v1250 = vmul.f32 %v906, %v1162
      %v1251 = vmul.f32 %v909, %v1165
      %v1252 = vmul.f32 %v912, %v1168
      %v1253 = vmul.f32 %v915, %v1171
      %v1254 = vmul.f32 %v918, %v1174
      %v1255 = vmul.f32 %v921, %v1177
      %v1256 = vmul.f32 %v924, %v1180
      %v1257 = vmul.f32 %v927, %v1183
      %v1258 = vmul.f32 %v930, %v1186
      %v1259 = vmul.f32 %v933, %v1189
      %v1260 = vmul.f32 %v936, %v1192
      %v1261 = vmul.f32 %v939, %v1195
      %v1262 = vmul.f32 %v942, %v1198
      %v1263 = vmax.f32 %v1199, 1e-12
      %v1264 = vmax.f32 %v1200, 1e-12
      %v1265 = vmax.f32 %v1201, 1e-12
      %v1266 = vmax.f32 %v1202, 1e-12
      %v1267 = vmax.f32 %v1203, 1e-12
      %v1268 = vmax.f32 %v1204, 1e-12
      %v1269 = vmax.f32 %v1205, 1e-12
      %v1270 = vmax.f32 %v1206, 1e-12
      %v1271 = vmax.f32 %v1207, 1e-12
      %v1272 = vmax.f32 %v1208, 1e-12
      %v1273 = vmax.f32 %v1209, 1e-12
      %v1274 = vmax.f32 %v1210, 1e-12
      %v1275 = vmax.f32 %v1211, 1e-12
      %v1276 = vmax.f32 %v1212, 1e-12
      %v1277 = vmax.f32 %v1213, 1e-12
      %v1278 = vmax.f32 %v1214, 1e-12
      %v1279 = vmax.f32 %v1215, 1e-12
      %v1280 = vmax.f32 %v1216, 1e-12
      %v1281 = vmax.f32 %v1217, 1e-12
      %v1282 = vmax.f32 %v1218, 1e-12
      %v1283 = vmax.f32 %v1219, 1e-12
      %v1284 = vmax.f32 %v1220, 1e-12
      %v1285 = vmax.f32 %v1221, 1e-12
      %v1286 = vmax.f32 %v1222, 1e-12
      %v1287 = vmax.f32 %v1223, 1e-12
      %v1288 = vmax.f32 %v1224, 1e-12
      %v1289 = vmax.f32 %v1225, 1e-12
      %v1290 = vmax.f32 %v1226, 1e-12
      %v1291 = vmax.f32 %v1227, 1e-12
      %v1292 = vmax.f32 %v1228, 1e-12
      %v1293 = vmax.f32 %v1229, 1e-12
      %v1294 = vmax.f32 %v1230, 1e-12
      %v1295 = vmax.f32 %v1231, 1e-12
      %v1296 = vmax.f32 %v1232, 1e-12
      %v1297 = vmax.f32 %v1233, 1e-12
      %v1298 = vmax.f32 %v1234, 1e-12
      %v1299 = vmax.f32 %v1235, 1e-12
      %v1300 = vmax.f32 %v1236, 1e-12
      %v1301 = vmax.f32 %v1237, 1e-12
      %v1302 = vmax.f32 %v1238, 1e-12
      %v1303 = vmax.f32 %v1239, 1e-12
      %v1304 = vmax.f32 %v1240, 1e-12
      %v1305 = vmax.f32 %v1241, 1e-12
      %v1306 = vmax.f32 %v1242, 1e-12
      %v1307 = vmax.f32 %v1243, 1e-12
      %v1308 = vmax.f32 %v1244, 1e-12
      %v1309 = vmax.f32 %v1245, 1e-12
      %v1310 = vmax.f32 %v1246, 1e-12
      %v1311 = vmax.f32 %v1247, 1e-12
      %v1312 = vmax.f32 %v1248, 1e-12
      %v1313 = vmax.f32 %v1249, 1e-12
      %v1314 = vmax.f32 %v1250, 1e-12
      %v1315 = vmax.f32 %v1251, 1e-12
      %v1316 = vmax.f32 %v1252, 1e-12
      %v1317 = vmax.f32 %v1253, 1e-12
      %v1318 = vmax.f32 %v1254, 1e-12
      %v1319 = vmax.f32 %v1255, 1e-12
      %v1320 = vmax.f32 %v1256, 1e-12
      %v1321 = vmax.f32 %v1257, 1e-12
      %v1322 = vmax.f32 %v1258, 1e-12
      %v1323 = vmax.f32 %v1259, 1e-12
      %v1324 = vmax.f32 %v1260, 1e-12
      %v1325 = vmax.f32 %v1261, 1e-12
      %v1326 = vmax.f32 %v1262, 1e-12
      %v1327 = vrsqrt.pop %v1263
      %v1328 = vmul.f32 %v1327, %v1263
      %v1329 = vmul.f32 %v1328, %v1327
      %v1330 = vmul.f32 0.5, %v1329
      %v1331 = vsub.f32 1.5, %v1330
      %v1332 = vmul.f32 %v1327, %v1331
      %vm1333 = vweird.f32 %v1263
      %vm1334 = vweird.f32 %v1327
      %vm1335 = vmor %vm1333, %vm1334
      %v1336 = vsel %vm1335, %v1327, %v1332
      %v1337 = vrsqrt.pop %v1264
      %v1338 = vmul.f32 %v1337, %v1264
      %v1339 = vmul.f32 %v1338, %v1337
      %v1340 = vmul.f32 0.5, %v1339
      %v1341 = vsub.f32 1.5, %v1340
      %v1342 = vmul.f32 %v1337, %v1341
      %vm1343 = vweird.f32 %v1264
      %vm1344 = vweird.f32 %v1337
      %vm1345 = vmor %vm1343, %vm1344
      %v1346 = vsel %vm1345, %v1337, %v1342
      %v1347 = vrsqrt.pop %v1265
      %v1348 = vmul.f32 %v1347, %v1265
      %v1349 = vmul.f32 %v1348, %v1347
      %v1350 = vmul.f32 0.5, %v1349
      %v1351 = vsub.f32 1.5, %v1350
      %v1352 = vmul.f32 %v1347, %v1351
      %vm1353 = vweird.f32 %v1265
      %vm1354 = vweird.f32 %v1347
      %vm1355 = vmor %vm1353, %vm1354
      %v1356 = vsel %vm1355, %v1347, %v1352
      %v1357 = vrsqrt.pop %v1266
      %v1358 = vmul.f32 %v1357, %v1266
      %v1359 = vmul.f32 %v1358, %v1357
      %v1360 = vmul.f32 0.5, %v1359
      %v1361 = vsub.f32 1.5, %v1360
      %v1362 = vmul.f32 %v1357, %v1361
      %vm1363 = vweird.f32 %v1266
      %vm1364 = vweird.f32 %v1357
      %vm1365 = vmor %vm1363, %vm1364
      %v1366 = vsel %vm1365, %v1357, %v1362
      %v1367 = vrsqrt.pop %v1267
      %v1368 = vmul.f32 %v1367, %v1267
      %v1369 = vmul.f32 %v1368, %v1367
      %v1370 = vmul.f32 0.5, %v1369
      %v1371 = vsub.f32 1.5, %v1370
      %v1372 = vmul.f32 %v1367, %v1371
      %vm1373 = vweird.f32 %v1267
      %vm1374 = vweird.f32 %v1367
      %vm1375 = vmor %vm1373, %vm1374
      %v1376 = vsel %vm1375, %v1367, %v1372
      %v1377 = vrsqrt.pop %v1268
      %v1378 = vmul.f32 %v1377, %v1268
      %v1379 = vmul.f32 %v1378, %v1377
      %v1380 = vmul.f32 0.5, %v1379
      %v1381 = vsub.f32 1.5, %v1380
      %v1382 = vmul.f32 %v1377, %v1381
      %vm1383 = vweird.f32 %v1268
      %vm1384 = vweird.f32 %v1377
      %vm1385 = vmor %vm1383, %vm1384
      %v1386 = vsel %vm1385, %v1377, %v1382
      %v1387 = vrsqrt.pop %v1269
      %v1388 = vmul.f32 %v1387, %v1269
      %v1389 = vmul.f32 %v1388, %v1387
      %v1390 = vmul.f32 0.5, %v1389
      %v1391 = vsub.f32 1.5, %v1390
      %v1392 = vmul.f32 %v1387, %v1391
      %vm1393 = vweird.f32 %v1269
      %vm1394 = vweird.f32 %v1387
      %vm1395 = vmor %vm1393, %vm1394
      %v1396 = vsel %vm1395, %v1387, %v1392
      %v1397 = vrsqrt.pop %v1270
      %v1398 = vmul.f32 %v1397, %v1270
      %v1399 = vmul.f32 %v1398, %v1397
      %v1400 = vmul.f32 0.5, %v1399
      %v1401 = vsub.f32 1.5, %v1400
      %v1402 = vmul.f32 %v1397, %v1401
      %vm1403 = vweird.f32 %v1270
      %vm1404 = vweird.f32 %v1397
      %vm1405 = vmor %vm1403, %vm1404
      %v1406 = vsel %vm1405, %v1397, %v1402
      %v1407 = vrsqrt.pop %v1271
      %v1408 = vmul.f32 %v1407, %v1271
      %v1409 = vmul.f32 %v1408, %v1407
      %v1410 = vmul.f32 0.5, %v1409
      %v1411 = vsub.f32 1.5, %v1410
      %v1412 = vmul.f32 %v1407, %v1411
      %vm1413 = vweird.f32 %v1271
      %vm1414 = vweird.f32 %v1407
      %vm1415 = vmor %vm1413, %vm1414
      %v1416 = vsel %vm1415, %v1407, %v1412
      %v1417 = vrsqrt.pop %v1272
      %v1418 = vmul.f32 %v1417, %v1272
      %v1419 = vmul.f32 %v1418, %v1417
      %v1420 = vmul.f32 0.5, %v1419
      %v1421 = vsub.f32 1.5, %v1420
      %v1422 = vmul.f32 %v1417, %v1421
      %vm1423 = vweird.f32 %v1272
      %vm1424 = vweird.f32 %v1417
      %vm1425 = vmor %vm1423, %vm1424
      %v1426 = vsel %vm1425, %v1417, %v1422
      %v1427 = vrsqrt.pop %v1273
      %v1428 = vmul.f32 %v1427, %v1273
      %v1429 = vmul.f32 %v1428, %v1427
      %v1430 = vmul.f32 0.5, %v1429
      %v1431 = vsub.f32 1.5, %v1430
      %v1432 = vmul.f32 %v1427, %v1431
      %vm1433 = vweird.f32 %v1273
      %vm1434 = vweird.f32 %v1427
      %vm1435 = vmor %vm1433, %vm1434
      %v1436 = vsel %vm1435, %v1427, %v1432
      %v1437 = vrsqrt.pop %v1274
      %v1438 = vmul.f32 %v1437, %v1274
      %v1439 = vmul.f32 %v1438, %v1437
      %v1440 = vmul.f32 0.5, %v1439
      %v1441 = vsub.f32 1.5, %v1440
      %v1442 = vmul.f32 %v1437, %v1441
      %vm1443 = vweird.f32 %v1274
      %vm1444 = vweird.f32 %v1437
      %vm1445 = vmor %vm1443, %vm1444
      %v1446 = vsel %vm1445, %v1437, %v1442
      %v1447 = vrsqrt.pop %v1275
      %v1448 = vmul.f32 %v1447, %v1275
      %v1449 = vmul.f32 %v1448, %v1447
      %v1450 = vmul.f32 0.5, %v1449
      %v1451 = vsub.f32 1.5, %v1450
      %v1452 = vmul.f32 %v1447, %v1451
      %vm1453 = vweird.f32 %v1275
      %vm1454 = vweird.f32 %v1447
      %vm1455 = vmor %vm1453, %vm1454
      %v1456 = vsel %vm1455, %v1447, %v1452
      %v1457 = vrsqrt.pop %v1276
      %v1458 = vmul.f32 %v1457, %v1276
      %v1459 = vmul.f32 %v1458, %v1457
      %v1460 = vmul.f32 0.5, %v1459
      %v1461 = vsub.f32 1.5, %v1460
      %v1462 = vmul.f32 %v1457, %v1461
      %vm1463 = vweird.f32 %v1276
      %vm1464 = vweird.f32 %v1457
      %vm1465 = vmor %vm1463, %vm1464
      %v1466 = vsel %vm1465, %v1457, %v1462
      %v1467 = vrsqrt.pop %v1277
      %v1468 = vmul.f32 %v1467, %v1277
      %v1469 = vmul.f32 %v1468, %v1467
      %v1470 = vmul.f32 0.5, %v1469
      %v1471 = vsub.f32 1.5, %v1470
      %v1472 = vmul.f32 %v1467, %v1471
      %vm1473 = vweird.f32 %v1277
      %vm1474 = vweird.f32 %v1467
      %vm1475 = vmor %vm1473, %vm1474
      %v1476 = vsel %vm1475, %v1467, %v1472
      %v1477 = vrsqrt.pop %v1278
      %v1478 = vmul.f32 %v1477, %v1278
      %v1479 = vmul.f32 %v1478, %v1477
      %v1480 = vmul.f32 0.5, %v1479
      %v1481 = vsub.f32 1.5, %v1480
      %v1482 = vmul.f32 %v1477, %v1481
      %vm1483 = vweird.f32 %v1278
      %vm1484 = vweird.f32 %v1477
      %vm1485 = vmor %vm1483, %vm1484
      %v1486 = vsel %vm1485, %v1477, %v1482
      %v1487 = vrsqrt.pop %v1279
      %v1488 = vmul.f32 %v1487, %v1279
      %v1489 = vmul.f32 %v1488, %v1487
      %v1490 = vmul.f32 0.5, %v1489
      %v1491 = vsub.f32 1.5, %v1490
      %v1492 = vmul.f32 %v1487, %v1491
      %vm1493 = vweird.f32 %v1279
      %vm1494 = vweird.f32 %v1487
      %vm1495 = vmor %vm1493, %vm1494
      %v1496 = vsel %vm1495, %v1487, %v1492
      %v1497 = vrsqrt.pop %v1280
      %v1498 = vmul.f32 %v1497, %v1280
      %v1499 = vmul.f32 %v1498, %v1497
      %v1500 = vmul.f32 0.5, %v1499
      %v1501 = vsub.f32 1.5, %v1500
      %v1502 = vmul.f32 %v1497, %v1501
      %vm1503 = vweird.f32 %v1280
      %vm1504 = vweird.f32 %v1497
      %vm1505 = vmor %vm1503, %vm1504
      %v1506 = vsel %vm1505, %v1497, %v1502
      %v1507 = vrsqrt.pop %v1281
      %v1508 = vmul.f32 %v1507, %v1281
      %v1509 = vmul.f32 %v1508, %v1507
      %v1510 = vmul.f32 0.5, %v1509
      %v1511 = vsub.f32 1.5, %v1510
      %v1512 = vmul.f32 %v1507, %v1511
      %vm1513 = vweird.f32 %v1281
      %vm1514 = vweird.f32 %v1507
      %vm1515 = vmor %vm1513, %vm1514
      %v1516 = vsel %vm1515, %v1507, %v1512
      %v1517 = vrsqrt.pop %v1282
      %v1518 = vmul.f32 %v1517, %v1282
      %v1519 = vmul.f32 %v1518, %v1517
      %v1520 = vmul.f32 0.5, %v1519
      %v1521 = vsub.f32 1.5, %v1520
      %v1522 = vmul.f32 %v1517, %v1521
      %vm1523 = vweird.f32 %v1282
      %vm1524 = vweird.f32 %v1517
      %vm1525 = vmor %vm1523, %vm1524
      %v1526 = vsel %vm1525, %v1517, %v1522
      %v1527 = vrsqrt.pop %v1283
      %v1528 = vmul.f32 %v1527, %v1283
      %v1529 = vmul.f32 %v1528, %v1527
      %v1530 = vmul.f32 0.5, %v1529
      %v1531 = vsub.f32 1.5, %v1530
      %v1532 = vmul.f32 %v1527, %v1531
      %vm1533 = vweird.f32 %v1283
      %vm1534 = vweird.f32 %v1527
      %vm1535 = vmor %vm1533, %vm1534
      %v1536 = vsel %vm1535, %v1527, %v1532
      %v1537 = vrsqrt.pop %v1284
      %v1538 = vmul.f32 %v1537, %v1284
      %v1539 = vmul.f32 %v1538, %v1537
      %v1540 = vmul.f32 0.5, %v1539
      %v1541 = vsub.f32 1.5, %v1540
      %v1542 = vmul.f32 %v1537, %v1541
      %vm1543 = vweird.f32 %v1284
      %vm1544 = vweird.f32 %v1537
      %vm1545 = vmor %vm1543, %vm1544
      %v1546 = vsel %vm1545, %v1537, %v1542
      %v1547 = vrsqrt.pop %v1285
      %v1548 = vmul.f32 %v1547, %v1285
      %v1549 = vmul.f32 %v1548, %v1547
      %v1550 = vmul.f32 0.5, %v1549
      %v1551 = vsub.f32 1.5, %v1550
      %v1552 = vmul.f32 %v1547, %v1551
      %vm1553 = vweird.f32 %v1285
      %vm1554 = vweird.f32 %v1547
      %vm1555 = vmor %vm1553, %vm1554
      %v1556 = vsel %vm1555, %v1547, %v1552
      %v1557 = vrsqrt.pop %v1286
      %v1558 = vmul.f32 %v1557, %v1286
      %v1559 = vmul.f32 %v1558, %v1557
      %v1560 = vmul.f32 0.5, %v1559
      %v1561 = vsub.f32 1.5, %v1560
      %v1562 = vmul.f32 %v1557, %v1561
      %vm1563 = vweird.f32 %v1286
      %vm1564 = vweird.f32 %v1557
      %vm1565 = vmor %vm1563, %vm1564
      %v1566 = vsel %vm1565, %v1557, %v1562
      %v1567 = vrsqrt.pop %v1287
      %v1568 = vmul.f32 %v1567, %v1287
      %v1569 = vmul.f32 %v1568, %v1567
      %v1570 = vmul.f32 0.5, %v1569
      %v1571 = vsub.f32 1.5, %v1570
      %v1572 = vmul.f32 %v1567, %v1571
      %vm1573 = vweird.f32 %v1287
      %vm1574 = vweird.f32 %v1567
      %vm1575 = vmor %vm1573, %vm1574
      %v1576 = vsel %vm1575, %v1567, %v1572
      %v1577 = vrsqrt.pop %v1288
      %v1578 = vmul.f32 %v1577, %v1288
      %v1579 = vmul.f32 %v1578, %v1577
      %v1580 = vmul.f32 0.5, %v1579
      %v1581 = vsub.f32 1.5, %v1580
      %v1582 = vmul.f32 %v1577, %v1581
      %vm1583 = vweird.f32 %v1288
      %vm1584 = vweird.f32 %v1577
      %vm1585 = vmor %vm1583, %vm1584
      %v1586 = vsel %vm1585, %v1577, %v1582
      %v1587 = vrsqrt.pop %v1289
      %v1588 = vmul.f32 %v1587, %v1289
      %v1589 = vmul.f32 %v1588, %v1587
      %v1590 = vmul.f32 0.5, %v1589
      %v1591 = vsub.f32 1.5, %v1590
      %v1592 = vmul.f32 %v1587, %v1591
      %vm1593 = vweird.f32 %v1289
      %vm1594 = vweird.f32 %v1587
      %vm1595 = vmor %vm1593, %vm1594
      %v1596 = vsel %vm1595, %v1587, %v1592
      %v1597 = vrsqrt.pop %v1290
      %v1598 = vmul.f32 %v1597, %v1290
      %v1599 = vmul.f32 %v1598, %v1597
      %v1600 = vmul.f32 0.5, %v1599
      %v1601 = vsub.f32 1.5, %v1600
      %v1602 = vmul.f32 %v1597, %v1601
      %vm1603 = vweird.f32 %v1290
      %vm1604 = vweird.f32 %v1597
      %vm1605 = vmor %vm1603, %vm1604
      %v1606 = vsel %vm1605, %v1597, %v1602
      %v1607 = vrsqrt.pop %v1291
      %v1608 = vmul.f32 %v1607, %v1291
      %v1609 = vmul.f32 %v1608, %v1607
      %v1610 = vmul.f32 0.5, %v1609
      %v1611 = vsub.f32 1.5, %v1610
      %v1612 = vmul.f32 %v1607, %v1611
      %vm1613 = vweird.f32 %v1291
      %vm1614 = vweird.f32 %v1607
      %vm1615 = vmor %vm1613, %vm1614
      %v1616 = vsel %vm1615, %v1607, %v1612
      %v1617 = vrsqrt.pop %v1292
      %v1618 = vmul.f32 %v1617, %v1292
      %v1619 = vmul.f32 %v1618, %v1617
      %v1620 = vmul.f32 0.5, %v1619
      %v1621 = vsub.f32 1.5, %v1620
      %v1622 = vmul.f32 %v1617, %v1621
      %vm1623 = vweird.f32 %v1292
      %vm1624 = vweird.f32 %v1617
      %vm1625 = vmor %vm1623, %vm1624
      %v1626 = vsel %vm1625, %v1617, %v1622
      %v1627 = vrsqrt.pop %v1293
      %v1628 = vmul.f32 %v1627, %v1293
      %v1629 = vmul.f32 %v1628, %v1627
      %v1630 = vmul.f32 0.5, %v1629
      %v1631 = vsub.f32 1.5, %v1630
      %v1632 = vmul.f32 %v1627, %v1631
      %vm1633 = vweird.f32 %v1293
      %vm1634 = vweird.f32 %v1627
      %vm1635 = vmor %vm1633, %vm1634
      %v1636 = vsel %vm1635, %v1627, %v1632
      %v1637 = vrsqrt.pop %v1294
      %v1638 = vmul.f32 %v1637, %v1294
      %v1639 = vmul.f32 %v1638, %v1637
      %v1640 = vmul.f32 0.5, %v1639
      %v1641 = vsub.f32 1.5, %v1640
      %v1642 = vmul.f32 %v1637, %v1641
      %vm1643 = vweird.f32 %v1294
      %vm1644 = vweird.f32 %v1637
      %vm1645 = vmor %vm1643, %vm1644
      %v1646 = vsel %vm1645, %v1637, %v1642
      %v1647 = vrsqrt.pop %v1295
      %v1648 = vmul.f32 %v1647, %v1295
      %v1649 = vmul.f32 %v1648, %v1647
      %v1650 = vmul.f32 0.5, %v1649
      %v1651 = vsub.f32 1.5, %v1650
      %v1652 = vmul.f32 %v1647, %v1651
      %vm1653 = vweird.f32 %v1295
      %vm1654 = vweird.f32 %v1647
      %vm1655 = vmor %vm1653, %vm1654
      %v1656 = vsel %vm1655, %v1647, %v1652
      %v1657 = vrsqrt.pop %v1296
      %v1658 = vmul.f32 %v1657, %v1296
      %v1659 = vmul.f32 %v1658, %v1657
      %v1660 = vmul.f32 0.5, %v1659
      %v1661 = vsub.f32 1.5, %v1660
      %v1662 = vmul.f32 %v1657, %v1661
      %vm1663 = vweird.f32 %v1296
      %vm1664 = vweird.f32 %v1657
      %vm1665 = vmor %vm1663, %vm1664
      %v1666 = vsel %vm1665, %v1657, %v1662
      %v1667 = vrsqrt.pop %v1297
      %v1668 = vmul.f32 %v1667, %v1297
      %v1669 = vmul.f32 %v1668, %v1667
      %v1670 = vmul.f32 0.5, %v1669
      %v1671 = vsub.f32 1.5, %v1670
      %v1672 = vmul.f32 %v1667, %v1671
      %vm1673 = vweird.f32 %v1297
      %vm1674 = vweird.f32 %v1667
      %vm1675 = vmor %vm1673, %vm1674
      %v1676 = vsel %vm1675, %v1667, %v1672
      %v1677 = vrsqrt.pop %v1298
      %v1678 = vmul.f32 %v1677, %v1298
      %v1679 = vmul.f32 %v1678, %v1677
      %v1680 = vmul.f32 0.5, %v1679
      %v1681 = vsub.f32 1.5, %v1680
      %v1682 = vmul.f32 %v1677, %v1681
      %vm1683 = vweird.f32 %v1298
      %vm1684 = vweird.f32 %v1677
      %vm1685 = vmor %vm1683, %vm1684
      %v1686 = vsel %vm1685, %v1677, %v1682
      %v1687 = vrsqrt.pop %v1299
      %v1688 = vmul.f32 %v1687, %v1299
      %v1689 = vmul.f32 %v1688, %v1687
      %v1690 = vmul.f32 0.5, %v1689
      %v1691 = vsub.f32 1.5, %v1690
      %v1692 = vmul.f32 %v1687, %v1691
      %vm1693 = vweird.f32 %v1299
      %vm1694 = vweird.f32 %v1687
      %vm1695 = vmor %vm1693, %vm1694
      %v1696 = vsel %vm1695, %v1687, %v1692
      %v1697 = vrsqrt.pop %v1300
      %v1698 = vmul.f32 %v1697, %v1300
      %v1699 = vmul.f32 %v1698, %v1697
      %v1700 = vmul.f32 0.5, %v1699
      %v1701 = vsub.f32 1.5, %v1700
      %v1702 = vmul.f32 %v1697, %v1701
      %vm1703 = vweird.f32 %v1300
      %vm1704 = vweird.f32 %v1697
      %vm1705 = vmor %vm1703, %vm1704
      %v1706 = vsel %vm1705, %v1697, %v1702
      %v1707 = vrsqrt.pop %v1301
      %v1708 = vmul.f32 %v1707, %v1301
      %v1709 = vmul.f32 %v1708, %v1707
      %v1710 = vmul.f32 0.5, %v1709
      %v1711 = vsub.f32 1.5, %v1710
      %v1712 = vmul.f32 %v1707, %v1711
      %vm1713 = vweird.f32 %v1301
      %vm1714 = vweird.f32 %v1707
      %vm1715 = vmor %vm1713, %vm1714
      %v1716 = vsel %vm1715, %v1707, %v1712
      %v1717 = vrsqrt.pop %v1302
      %v1718 = vmul.f32 %v1717, %v1302
      %v1719 = vmul.f32 %v1718, %v1717
      %v1720 = vmul.f32 0.5, %v1719
      %v1721 = vsub.f32 1.5, %v1720
      %v1722 = vmul.f32 %v1717, %v1721
      %vm1723 = vweird.f32 %v1302
      %vm1724 = vweird.f32 %v1717
      %vm1725 = vmor %vm1723, %vm1724
      %v1726 = vsel %vm1725, %v1717, %v1722
      %v1727 = vrsqrt.pop %v1303
      %v1728 = vmul.f32 %v1727, %v1303
      %v1729 = vmul.f32 %v1728, %v1727
      %v1730 = vmul.f32 0.5, %v1729
      %v1731 = vsub.f32 1.5, %v1730
      %v1732 = vmul.f32 %v1727, %v1731
      %vm1733 = vweird.f32 %v1303
      %vm1734 = vweird.f32 %v1727
      %vm1735 = vmor %vm1733, %vm1734
      %v1736 = vsel %vm1735, %v1727, %v1732
      %v1737 = vrsqrt.pop %v1304
      %v1738 = vmul.f32 %v1737, %v1304
      %v1739 = vmul.f32 %v1738, %v1737
      %v1740 = vmul.f32 0.5, %v1739
      %v1741 = vsub.f32 1.5, %v1740
      %v1742 = vmul.f32 %v1737, %v1741
      %vm1743 = vweird.f32 %v1304
      %vm1744 = vweird.f32 %v1737
      %vm1745 = vmor %vm1743, %vm1744
      %v1746 = vsel %vm1745, %v1737, %v1742
      %v1747 = vrsqrt.pop %v1305
      %v1748 = vmul.f32 %v1747, %v1305
      %v1749 = vmul.f32 %v1748, %v1747
      %v1750 = vmul.f32 0.5, %v1749
      %v1751 = vsub.f32 1.5, %v1750
      %v1752 = vmul.f32 %v1747, %v1751
      %vm1753 = vweird.f32 %v1305
      %vm1754 = vweird.f32 %v1747
      %vm1755 = vmor %vm1753, %vm1754
      %v1756 = vsel %vm1755, %v1747, %v1752
      %v1757 = vrsqrt.pop %v1306
      %v1758 = vmul.f32 %v1757, %v1306
      %v1759 = vmul.f32 %v1758, %v1757
      %v1760 = vmul.f32 0.5, %v1759
      %v1761 = vsub.f32 1.5, %v1760
      %v1762 = vmul.f32 %v1757, %v1761
      %vm1763 = vweird.f32 %v1306
      %vm1764 = vweird.f32 %v1757
      %vm1765 = vmor %vm1763, %vm1764
      %v1766 = vsel %vm1765, %v1757, %v1762
      %v1767 = vrsqrt.pop %v1307
      %v1768 = vmul.f32 %v1767, %v1307
      %v1769 = vmul.f32 %v1768, %v1767
      %v1770 = vmul.f32 0.5, %v1769
      %v1771 = vsub.f32 1.5, %v1770
      %v1772 = vmul.f32 %v1767, %v1771
      %vm1773 = vweird.f32 %v1307
      %vm1774 = vweird.f32 %v1767
      %vm1775 = vmor %vm1773, %vm1774
      %v1776 = vsel %vm1775, %v1767, %v1772
      %v1777 = vrsqrt.pop %v1308
      %v1778 = vmul.f32 %v1777, %v1308
      %v1779 = vmul.f32 %v1778, %v1777
      %v1780 = vmul.f32 0.5, %v1779
      %v1781 = vsub.f32 1.5, %v1780
      %v1782 = vmul.f32 %v1777, %v1781
      %vm1783 = vweird.f32 %v1308
      %vm1784 = vweird.f32 %v1777
      %vm1785 = vmor %vm1783, %vm1784
      %v1786 = vsel %vm1785, %v1777, %v1782
      %v1787 = vrsqrt.pop %v1309
      %v1788 = vmul.f32 %v1787, %v1309
      %v1789 = vmul.f32 %v1788, %v1787
      %v1790 = vmul.f32 0.5, %v1789
      %v1791 = vsub.f32 1.5, %v1790
      %v1792 = vmul.f32 %v1787, %v1791
      %vm1793 = vweird.f32 %v1309
      %vm1794 = vweird.f32 %v1787
      %vm1795 = vmor %vm1793, %vm1794
      %v1796 = vsel %vm1795, %v1787, %v1792
      %v1797 = vrsqrt.pop %v1310
      %v1798 = vmul.f32 %v1797, %v1310
      %v1799 = vmul.f32 %v1798, %v1797
      %v1800 = vmul.f32 0.5, %v1799
      %v1801 = vsub.f32 1.5, %v1800
      %v1802 = vmul.f32 %v1797, %v1801
      %vm1803 = vweird.f32 %v1310
      %vm1804 = vweird.f32 %v1797
      %vm1805 = vmor %vm1803, %vm1804
      %v1806 = vsel %vm1805, %v1797, %v1802
      %v1807 = vrsqrt.pop %v1311
      %v1808 = vmul.f32 %v1807, %v1311
      %v1809 = vmul.f32 %v1808, %v1807
      %v1810 = vmul.f32 0.5, %v1809
      %v1811 = vsub.f32 1.5, %v1810
      %v1812 = vmul.f32 %v1807, %v1811
      %vm1813 = vweird.f32 %v1311
      %vm1814 = vweird.f32 %v1807
      %vm1815 = vmor %vm1813, %vm1814
      %v1816 = vsel %vm1815, %v1807, %v1812
      %v1817 = vrsqrt.pop %v1312
      %v1818 = vmul.f32 %v1817, %v1312
      %v1819 = vmul.f32 %v1818, %v1817
      %v1820 = vmul.f32 0.5, %v1819
      %v1821 = vsub.f32 1.5, %v1820
      %v1822 = vmul.f32 %v1817, %v1821
      %vm1823 = vweird.f32 %v1312
      %vm1824 = vweird.f32 %v1817
      %vm1825 = vmor %vm1823, %vm1824
      %v1826 = vsel %vm1825, %v1817, %v1822
      %v1827 = vrsqrt.pop %v1313
      %v1828 = vmul.f32 %v1827, %v1313
      %v1829 = vmul.f32 %v1828, %v1827
      %v1830 = vmul.f32 0.5, %v1829
      %v1831 = vsub.f32 1.5, %v1830
      %v1832 = vmul.f32 %v1827, %v1831
      %vm1833 = vweird.f32 %v1313
      %vm1834 = vweird.f32 %v1827
      %vm1835 = vmor %vm1833, %vm1834
      %v1836 = vsel %vm1835, %v1827, %v1832
      %v1837 = vrsqrt.pop %v1314
      %v1838 = vmul.f32 %v1837, %v1314
      %v1839 = vmul.f32 %v1838, %v1837
      %v1840 = vmul.f32 0.5, %v1839
      %v1841 = vsub.f32 1.5, %v1840
      %v1842 = vmul.f32 %v1837, %v1841
      %vm1843 = vweird.f32 %v1314
      %vm1844 = vweird.f32 %v1837
      %vm1845 = vmor %vm1843, %vm1844
      %v1846 = vsel %vm1845, %v1837, %v1842
      %v1847 = vrsqrt.pop %v1315
      %v1848 = vmul.f32 %v1847, %v1315
      %v1849 = vmul.f32 %v1848, %v1847
      %v1850 = vmul.f32 0.5, %v1849
      %v1851 = vsub.f32 1.5, %v1850
      %v1852 = vmul.f32 %v1847, %v1851
      %vm1853 = vweird.f32 %v1315
      %vm1854 = vweird.f32 %v1847
      %vm1855 = vmor %vm1853, %vm1854
      %v1856 = vsel %vm1855, %v1847, %v1852
      %v1857 = vrsqrt.pop %v1316
      %v1858 = vmul.f32 %v1857, %v1316
      %v1859 = vmul.f32 %v1858, %v1857
      %v1860 = vmul.f32 0.5, %v1859
      %v1861 = vsub.f32 1.5, %v1860
      %v1862 = vmul.f32 %v1857, %v1861
      %vm1863 = vweird.f32 %v1316
      %vm1864 = vweird.f32 %v1857
      %vm1865 = vmor %vm1863, %vm1864
      %v1866 = vsel %vm1865, %v1857, %v1862
      %v1867 = vrsqrt.pop %v1317
      %v1868 = vmul.f32 %v1867, %v1317
      %v1869 = vmul.f32 %v1868, %v1867
      %v1870 = vmul.f32 0.5, %v1869
      %v1871 = vsub.f32 1.5, %v1870
      %v1872 = vmul.f32 %v1867, %v1871
      %vm1873 = vweird.f32 %v1317
      %vm1874 = vweird.f32 %v1867
      %vm1875 = vmor %vm1873, %vm1874
      %v1876 = vsel %vm1875, %v1867, %v1872
      %v1877 = vrsqrt.pop %v1318
      %v1878 = vmul.f32 %v1877, %v1318
      %v1879 = vmul.f32 %v1878, %v1877
      %v1880 = vmul.f32 0.5, %v1879
      %v1881 = vsub.f32 1.5, %v1880
      %v1882 = vmul.f32 %v1877, %v1881
      %vm1883 = vweird.f32 %v1318
      %vm1884 = vweird.f32 %v1877
      %vm1885 = vmor %vm1883, %vm1884
      %v1886 = vsel %vm1885, %v1877, %v1882
      %v1887 = vrsqrt.pop %v1319
      %v1888 = vmul.f32 %v1887, %v1319
      %v1889 = vmul.f32 %v1888, %v1887
      %v1890 = vmul.f32 0.5, %v1889
      %v1891 = vsub.f32 1.5, %v1890
      %v1892 = vmul.f32 %v1887, %v1891
      %vm1893 = vweird.f32 %v1319
      %vm1894 = vweird.f32 %v1887
      %vm1895 = vmor %vm1893, %vm1894
      %v1896 = vsel %vm1895, %v1887, %v1892
      %v1897 = vrsqrt.pop %v1320
      %v1898 = vmul.f32 %v1897, %v1320
      %v1899 = vmul.f32 %v1898, %v1897
      %v1900 = vmul.f32 0.5, %v1899
      %v1901 = vsub.f32 1.5, %v1900
      %v1902 = vmul.f32 %v1897, %v1901
      %vm1903 = vweird.f32 %v1320
      %vm1904 = vweird.f32 %v1897
      %vm1905 = vmor %vm1903, %vm1904
      %v1906 = vsel %vm1905, %v1897, %v1902
      %v1907 = vrsqrt.pop %v1321
      %v1908 = vmul.f32 %v1907, %v1321
      %v1909 = vmul.f32 %v1908, %v1907
      %v1910 = vmul.f32 0.5, %v1909
      %v1911 = vsub.f32 1.5, %v1910
      %v1912 = vmul.f32 %v1907, %v1911
      %vm1913 = vweird.f32 %v1321
      %vm1914 = vweird.f32 %v1907
      %vm1915 = vmor %vm1913, %vm1914
      %v1916 = vsel %vm1915, %v1907, %v1912
      %v1917 = vrsqrt.pop %v1322
      %v1918 = vmul.f32 %v1917, %v1322
      %v1919 = vmul.f32 %v1918, %v1917
      %v1920 = vmul.f32 0.5, %v1919
      %v1921 = vsub.f32 1.5, %v1920
      %v1922 = vmul.f32 %v1917, %v1921
      %vm1923 = vweird.f32 %v1322
      %vm1924 = vweird.f32 %v1917
      %vm1925 = vmor %vm1923, %vm1924
      %v1926 = vsel %vm1925, %v1917, %v1922
      %v1927 = vrsqrt.pop %v1323
      %v1928 = vmul.f32 %v1927, %v1323
      %v1929 = vmul.f32 %v1928, %v1927
      %v1930 = vmul.f32 0.5, %v1929
      %v1931 = vsub.f32 1.5, %v1930
      %v1932 = vmul.f32 %v1927, %v1931
      %vm1933 = vweird.f32 %v1323
      %vm1934 = vweird.f32 %v1927
      %vm1935 = vmor %vm1933, %vm1934
      %v1936 = vsel %vm1935, %v1927, %v1932
      %v1937 = vrsqrt.pop %v1324
      %v1938 = vmul.f32 %v1937, %v1324
      %v1939 = vmul.f32 %v1938, %v1937
      %v1940 = vmul.f32 0.5, %v1939
      %v1941 = vsub.f32 1.5, %v1940
      %v1942 = vmul.f32 %v1937, %v1941
      %vm1943 = vweird.f32 %v1324
      %vm1944 = vweird.f32 %v1937
      %vm1945 = vmor %vm1943, %vm1944
      %v1946 = vsel %vm1945, %v1937, %v1942
      %v1947 = vrsqrt.pop %v1325
      %v1948 = vmul.f32 %v1947, %v1325
      %v1949 = vmul.f32 %v1948, %v1947
      %v1950 = vmul.f32 0.5, %v1949
      %v1951 = vsub.f32 1.5, %v1950
      %v1952 = vmul.f32 %v1947, %v1951
      %vm1953 = vweird.f32 %v1325
      %vm1954 = vweird.f32 %v1947
      %vm1955 = vmor %vm1953, %vm1954
      %v1956 = vsel %vm1955, %v1947, %v1952
      %v1957 = vrsqrt.pop %v1326
      %v1958 = vmul.f32 %v1957, %v1326
      %v1959 = vmul.f32 %v1958, %v1957
      %v1960 = vmul.f32 0.5, %v1959
      %v1961 = vsub.f32 1.5, %v1960
      %v1962 = vmul.f32 %v1957, %v1961
      %vm1963 = vweird.f32 %v1326
      %vm1964 = vweird.f32 %v1957
      %vm1965 = vmor %vm1963, %vm1964
      %v1966 = vsel %vm1965, %v1957, %v1962
      %v1967 = vmul.f32 %v497, %v1336
      %v1968 = vmul.f32 %v500, %v1346
      %v1969 = vmul.f32 %v503, %v1356
      %v1970 = vmul.f32 %v506, %v1366
      %v1971 = vmul.f32 %v509, %v1376
      %v1972 = vmul.f32 %v512, %v1386
      %v1973 = vmul.f32 %v515, %v1396
      %v1974 = vmul.f32 %v518, %v1406
      %v1975 = vmul.f32 %v521, %v1416
      %v1976 = vmul.f32 %v524, %v1426
      %v1977 = vmul.f32 %v527, %v1436
      %v1978 = vmul.f32 %v530, %v1446
      %v1979 = vmul.f32 %v533, %v1456
      %v1980 = vmul.f32 %v536, %v1466
      %v1981 = vmul.f32 %v539, %v1476
      %v1982 = vmul.f32 %v542, %v1486
      %v1983 = vmul.f32 %v545, %v1496
      %v1984 = vmul.f32 %v548, %v1506
      %v1985 = vmul.f32 %v551, %v1516
      %v1986 = vmul.f32 %v554, %v1526
      %v1987 = vmul.f32 %v557, %v1536
      %v1988 = vmul.f32 %v560, %v1546
      %v1989 = vmul.f32 %v563, %v1556
      %v1990 = vmul.f32 %v566, %v1566
      %v1991 = vmul.f32 %v569, %v1576
      %v1992 = vmul.f32 %v572, %v1586
      %v1993 = vmul.f32 %v575, %v1596
      %v1994 = vmul.f32 %v578, %v1606
      %v1995 = vmul.f32 %v581, %v1616
      %v1996 = vmul.f32 %v584, %v1626
      %v1997 = vmul.f32 %v587, %v1636
      %v1998 = vmul.f32 %v590, %v1646
      %v1999 = vmul.f32 %v593, %v1656
      %v2000 = vmul.f32 %v596, %v1666
      %v2001 = vmul.f32 %v599, %v1676
      %v2002 = vmul.f32 %v602, %v1686
      %v2003 = vmul.f32 %v605, %v1696
      %v2004 = vmul.f32 %v608, %v1706
      %v2005 = vmul.f32 %v611, %v1716
      %v2006 = vmul.f32 %v614, %v1726
      %v2007 = vmul.f32 %v617, %v1736
      %v2008 = vmul.f32 %v620, %v1746
      %v2009 = vmul.f32 %v623, %v1756
      %v2010 = vmul.f32 %v626, %v1766
      %v2011 = vmul.f32 %v629, %v1776
      %v2012 = vmul.f32 %v632, %v1786
      %v2013 = vmul.f32 %v635, %v1796
      %v2014 = vmul.f32 %v638, %v1806
      %v2015 = vmul.f32 %v641, %v1816
      %v2016 = vmul.f32 %v644, %v1826
      %v2017 = vmul.f32 %v647, %v1836
      %v2018 = vmul.f32 %v650, %v1846
      %v2019 = vmul.f32 %v653, %v1856
      %v2020 = vmul.f32 %v656, %v1866
      %v2021 = vmul.f32 %v659, %v1876
      %v2022 = vmul.f32 %v662, %v1886
      %v2023 = vmul.f32 %v665, %v1896
      %v2024 = vmul.f32 %v668, %v1906
      %v2025 = vmul.f32 %v671, %v1916
      %v2026 = vmul.f32 %v674, %v1926
      %v2027 = vmul.f32 %v677, %v1936
      %v2028 = vmul.f32 %v680, %v1946
      %v2029 = vmul.f32 %v683, %v1956
      %v2030 = vmul.f32 %v686, %v1966
      %v2031 = vmul.f32 %v238, %v302
      %v2032 = vmul.f32 %v239, %v303
      %v2033 = vmul.f32 %v240, %v304
      %v2034 = vmul.f32 %v241, %v305
      %v2035 = vmul.f32 %v242, %v306
      %v2036 = vmul.f32 %v243, %v307
      %v2037 = vmul.f32 %v244, %v308
      %v2038 = vmul.f32 %v245, %v309
      %v2039 = vmul.f32 %v246, %v310
      %v2040 = vmul.f32 %v247, %v311
      %v2041 = vmul.f32 %v248, %v312
      %v2042 = vmul.f32 %v249, %v313
      %v2043 = vmul.f32 %v250, %v314
      %v2044 = vmul.f32 %v251, %v315
      %v2045 = vmul.f32 %v252, %v316
      %v2046 = vmul.f32 %v253, %v317
      %v2047 = vmul.f32 %v254, %v318
      %v2048 = vmul.f32 %v255, %v319
      %v2049 = vmul.f32 %v256, %v320
      %v2050 = vmul.f32 %v257, %v321
      %v2051 = vmul.f32 %v258, %v322
      %v2052 = vmul.f32 %v259, %v323
      %v2053 = vmul.f32 %v260, %v324
      %v2054 = vmul.f32 %v261, %v325
      %v2055 = vmul.f32 %v262, %v326
      %v2056 = vmul.f32 %v263, %v327
      %v2057 = vmul.f32 %v264, %v328
      %v2058 = vmul.f32 %v265, %v329
      %v2059 = vmul.f32 %v266, %v330
      %v2060 = vmul.f32 %v267, %v331
      %v2061 = vmul.f32 %v268, %v332
      %v2062 = vmul.f32 %v269, %v333
      %v2063 = vmul.f32 %v270, %v334
      %v2064 = vmul.f32 %v271, %v335
      %v2065 = vmul.f32 %v272, %v336
      %v2066 = vmul.f32 %v273, %v337
      %v2067 = vmul.f32 %v274, %v338
      %v2068 = vmul.f32 %v275, %v339
      %v2069 = vmul.f32 %v276, %v340
      %v2070 = vmul.f32 %v277, %v341
      %v2071 = vmul.f32 %v278, %v342
      %v2072 = vmul.f32 %v279, %v343
      %v2073 = vmul.f32 %v280, %v344
      %v2074 = vmul.f32 %v281, %v345
      %v2075 = vmul.f32 %v282, %v346
      %v2076 = vmul.f32 %v283, %v347
      %v2077 = vmul.f32 %v284, %v348
      %v2078 = vmul.f32 %v285, %v349
      %v2079 = vmul.f32 %v286, %v350
      %v2080 = vmul.f32 %v287, %v351
      %v2081 = vmul.f32 %v288, %v352
      %v2082 = vmul.f32 %v289, %v353
      %v2083 = vmul.f32 %v290, %v354
      %v2084 = vmul.f32 %v291, %v355
      %v2085 = vmul.f32 %v292, %v356
      %v2086 = vmul.f32 %v293, %v357
      %v2087 = vmul.f32 %v294, %v358
      %v2088 = vmul.f32 %v295, %v359
      %v2089 = vmul.f32 %v296, %v360
      %v2090 = vmul.f32 %v297, %v361
      %v2091 = vmul.f32 %v298, %v362
      %v2092 = vmul.f32 %v299, %v363
      %v2093 = vmul.f32 %v300, %v364
      %v2094 = vmul.f32 %v301, %v365
      %v2095 = vsel %vm494, %v2031, 0.0
      %2096 = vadd.xlane.f32.xlu0 %v2095
      %v2097 = vpop.xlane.xlu0 %2096
      %v2098 = vsel %vm494, %v2032, 0.0
      %2099 = vadd.xlane.f32.xlu0 %v2098
      %v2100 = vpop.xlane.xlu0 %2099
      %v2101 = vsel %vm494, %v2033, 0.0
      %2102 = vadd.xlane.f32.xlu0 %v2101
      %v2103 = vpop.xlane.xlu0 %2102
      %v2104 = vsel %vm494, %v2034, 0.0
      %2105 = vadd.xlane.f32.xlu0 %v2104
      %v2106 = vpop.xlane.xlu0 %2105
      %v2107 = vsel %vm494, %v2035, 0.0
      %2108 = vadd.xlane.f32.xlu0 %v2107
      %v2109 = vpop.xlane.xlu0 %2108
      %v2110 = vsel %vm494, %v2036, 0.0
      %2111 = vadd.xlane.f32.xlu0 %v2110
      %v2112 = vpop.xlane.xlu0 %2111
      %v2113 = vsel %vm494, %v2037, 0.0
      %2114 = vadd.xlane.f32.xlu0 %v2113
      %v2115 = vpop.xlane.xlu0 %2114
      %v2116 = vsel %vm494, %v2038, 0.0
      %2117 = vadd.xlane.f32.xlu0 %v2116
      %v2118 = vpop.xlane.xlu0 %2117
      %v2119 = vsel %vm494, %v2039, 0.0
      %2120 = vadd.xlane.f32.xlu0 %v2119
      %v2121 = vpop.xlane.xlu0 %2120
      %v2122 = vsel %vm494, %v2040, 0.0
      %2123 = vadd.xlane.f32.xlu0 %v2122
      %v2124 = vpop.xlane.xlu0 %2123
      %v2125 = vsel %vm494, %v2041, 0.0
      %2126 = vadd.xlane.f32.xlu0 %v2125
      %v2127 = vpop.xlane.xlu0 %2126
      %v2128 = vsel %vm494, %v2042, 0.0
      %2129 = vadd.xlane.f32.xlu0 %v2128
      %v2130 = vpop.xlane.xlu0 %2129
      %v2131 = vsel %vm494, %v2043, 0.0
      %2132 = vadd.xlane.f32.xlu0 %v2131
      %v2133 = vpop.xlane.xlu0 %2132
      %v2134 = vsel %vm494, %v2044, 0.0
      %2135 = vadd.xlane.f32.xlu0 %v2134
      %v2136 = vpop.xlane.xlu0 %2135
      %v2137 = vsel %vm494, %v2045, 0.0
      %2138 = vadd.xlane.f32.xlu0 %v2137
      %v2139 = vpop.xlane.xlu0 %2138
      %v2140 = vsel %vm494, %v2046, 0.0
      %2141 = vadd.xlane.f32.xlu0 %v2140
      %v2142 = vpop.xlane.xlu0 %2141
      %v2143 = vsel %vm494, %v2047, 0.0
      %2144 = vadd.xlane.f32.xlu0 %v2143
      %v2145 = vpop.xlane.xlu0 %2144
      %v2146 = vsel %vm494, %v2048, 0.0
      %2147 = vadd.xlane.f32.xlu0 %v2146
      %v2148 = vpop.xlane.xlu0 %2147
      %v2149 = vsel %vm494, %v2049, 0.0
      %2150 = vadd.xlane.f32.xlu0 %v2149
      %v2151 = vpop.xlane.xlu0 %2150
      %v2152 = vsel %vm494, %v2050, 0.0
      %2153 = vadd.xlane.f32.xlu0 %v2152
      %v2154 = vpop.xlane.xlu0 %2153
      %v2155 = vsel %vm494, %v2051, 0.0
      %2156 = vadd.xlane.f32.xlu0 %v2155
      %v2157 = vpop.xlane.xlu0 %2156
      %v2158 = vsel %vm494, %v2052, 0.0
      %2159 = vadd.xlane.f32.xlu0 %v2158
      %v2160 = vpop.xlane.xlu0 %2159
      %v2161 = vsel %vm494, %v2053, 0.0
      %2162 = vadd.xlane.f32.xlu0 %v2161
      %v2163 = vpop.xlane.xlu0 %2162
      %v2164 = vsel %vm494, %v2054, 0.0
      %2165 = vadd.xlane.f32.xlu0 %v2164
      %v2166 = vpop.xlane.xlu0 %2165
      %v2167 = vsel %vm494, %v2055, 0.0
      %2168 = vadd.xlane.f32.xlu0 %v2167
      %v2169 = vpop.xlane.xlu0 %2168
      %v2170 = vsel %vm494, %v2056, 0.0
      %2171 = vadd.xlane.f32.xlu0 %v2170
      %v2172 = vpop.xlane.xlu0 %2171
      %v2173 = vsel %vm494, %v2057, 0.0
      %2174 = vadd.xlane.f32.xlu0 %v2173
      %v2175 = vpop.xlane.xlu0 %2174
      %v2176 = vsel %vm494, %v2058, 0.0
      %2177 = vadd.xlane.f32.xlu0 %v2176
      %v2178 = vpop.xlane.xlu0 %2177
      %v2179 = vsel %vm494, %v2059, 0.0
      %2180 = vadd.xlane.f32.xlu0 %v2179
      %v2181 = vpop.xlane.xlu0 %2180
      %v2182 = vsel %vm494, %v2060, 0.0
      %2183 = vadd.xlane.f32.xlu0 %v2182
      %v2184 = vpop.xlane.xlu0 %2183
      %v2185 = vsel %vm494, %v2061, 0.0
      %2186 = vadd.xlane.f32.xlu0 %v2185
      %v2187 = vpop.xlane.xlu0 %2186
      %v2188 = vsel %vm494, %v2062, 0.0
      %2189 = vadd.xlane.f32.xlu0 %v2188
      %v2190 = vpop.xlane.xlu0 %2189
      %v2191 = vsel %vm494, %v2063, 0.0
      %2192 = vadd.xlane.f32.xlu0 %v2191
      %v2193 = vpop.xlane.xlu0 %2192
      %v2194 = vsel %vm494, %v2064, 0.0
      %2195 = vadd.xlane.f32.xlu0 %v2194
      %v2196 = vpop.xlane.xlu0 %2195
      %v2197 = vsel %vm494, %v2065, 0.0
      %2198 = vadd.xlane.f32.xlu0 %v2197
      %v2199 = vpop.xlane.xlu0 %2198
      %v2200 = vsel %vm494, %v2066, 0.0
      %2201 = vadd.xlane.f32.xlu0 %v2200
      %v2202 = vpop.xlane.xlu0 %2201
      %v2203 = vsel %vm494, %v2067, 0.0
      %2204 = vadd.xlane.f32.xlu0 %v2203
      %v2205 = vpop.xlane.xlu0 %2204
      %v2206 = vsel %vm494, %v2068, 0.0
      %2207 = vadd.xlane.f32.xlu0 %v2206
      %v2208 = vpop.xlane.xlu0 %2207
      %v2209 = vsel %vm494, %v2069, 0.0
      %2210 = vadd.xlane.f32.xlu0 %v2209
      %v2211 = vpop.xlane.xlu0 %2210
      %v2212 = vsel %vm494, %v2070, 0.0
      %2213 = vadd.xlane.f32.xlu0 %v2212
      %v2214 = vpop.xlane.xlu0 %2213
      %v2215 = vsel %vm494, %v2071, 0.0
      %2216 = vadd.xlane.f32.xlu0 %v2215
      %v2217 = vpop.xlane.xlu0 %2216
      %v2218 = vsel %vm494, %v2072, 0.0
      %2219 = vadd.xlane.f32.xlu0 %v2218
      %v2220 = vpop.xlane.xlu0 %2219
      %v2221 = vsel %vm494, %v2073, 0.0
      %2222 = vadd.xlane.f32.xlu0 %v2221
      %v2223 = vpop.xlane.xlu0 %2222
      %v2224 = vsel %vm494, %v2074, 0.0
      %2225 = vadd.xlane.f32.xlu0 %v2224
      %v2226 = vpop.xlane.xlu0 %2225
      %v2227 = vsel %vm494, %v2075, 0.0
      %2228 = vadd.xlane.f32.xlu0 %v2227
      %v2229 = vpop.xlane.xlu0 %2228
      %v2230 = vsel %vm494, %v2076, 0.0
      %2231 = vadd.xlane.f32.xlu0 %v2230
      %v2232 = vpop.xlane.xlu0 %2231
      %v2233 = vsel %vm494, %v2077, 0.0
      %2234 = vadd.xlane.f32.xlu0 %v2233
      %v2235 = vpop.xlane.xlu0 %2234
      %v2236 = vsel %vm494, %v2078, 0.0
      %2237 = vadd.xlane.f32.xlu0 %v2236
      %v2238 = vpop.xlane.xlu0 %2237
      %v2239 = vsel %vm494, %v2079, 0.0
      %2240 = vadd.xlane.f32.xlu0 %v2239
      %v2241 = vpop.xlane.xlu0 %2240
      %v2242 = vsel %vm494, %v2080, 0.0
      %2243 = vadd.xlane.f32.xlu0 %v2242
      %v2244 = vpop.xlane.xlu0 %2243
      %v2245 = vsel %vm494, %v2081, 0.0
      %2246 = vadd.xlane.f32.xlu0 %v2245
      %v2247 = vpop.xlane.xlu0 %2246
      %v2248 = vsel %vm494, %v2082, 0.0
      %2249 = vadd.xlane.f32.xlu0 %v2248
      %v2250 = vpop.xlane.xlu0 %2249
      %v2251 = vsel %vm494, %v2083, 0.0
      %2252 = vadd.xlane.f32.xlu0 %v2251
      %v2253 = vpop.xlane.xlu0 %2252
      %v2254 = vsel %vm494, %v2084, 0.0
      %2255 = vadd.xlane.f32.xlu0 %v2254
      %v2256 = vpop.xlane.xlu0 %2255
      %v2257 = vsel %vm494, %v2085, 0.0
      %2258 = vadd.xlane.f32.xlu0 %v2257
      %v2259 = vpop.xlane.xlu0 %2258
      %v2260 = vsel %vm494, %v2086, 0.0
      %2261 = vadd.xlane.f32.xlu0 %v2260
      %v2262 = vpop.xlane.xlu0 %2261
      %v2263 = vsel %vm494, %v2087, 0.0
      %2264 = vadd.xlane.f32.xlu0 %v2263
      %v2265 = vpop.xlane.xlu0 %2264
      %v2266 = vsel %vm494, %v2088, 0.0
      %2267 = vadd.xlane.f32.xlu0 %v2266
      %v2268 = vpop.xlane.xlu0 %2267
      %v2269 = vsel %vm494, %v2089, 0.0
      %2270 = vadd.xlane.f32.xlu0 %v2269
      %v2271 = vpop.xlane.xlu0 %2270
      %v2272 = vsel %vm494, %v2090, 0.0
      %2273 = vadd.xlane.f32.xlu0 %v2272
      %v2274 = vpop.xlane.xlu0 %2273
      %v2275 = vsel %vm494, %v2091, 0.0
      %2276 = vadd.xlane.f32.xlu0 %v2275
      %v2277 = vpop.xlane.xlu0 %2276
      %v2278 = vsel %vm494, %v2092, 0.0
      %2279 = vadd.xlane.f32.xlu0 %v2278
      %v2280 = vpop.xlane.xlu0 %2279
      %v2281 = vsel %vm494, %v2093, 0.0
      %2282 = vadd.xlane.f32.xlu0 %v2281
      %v2283 = vpop.xlane.xlu0 %2282
      %v2284 = vsel %vm494, %v2094, 0.0
      %2285 = vadd.xlane.f32.xlu0 %v2284
      %v2286 = vpop.xlane.xlu0 %2285
      %v2287 = vmul.f32 %v302, %v302
      %v2288 = vmul.f32 %v303, %v303
      %v2289 = vmul.f32 %v304, %v304
      %v2290 = vmul.f32 %v305, %v305
      %v2291 = vmul.f32 %v306, %v306
      %v2292 = vmul.f32 %v307, %v307
      %v2293 = vmul.f32 %v308, %v308
      %v2294 = vmul.f32 %v309, %v309
      %v2295 = vmul.f32 %v310, %v310
      %v2296 = vmul.f32 %v311, %v311
      %v2297 = vmul.f32 %v312, %v312
      %v2298 = vmul.f32 %v313, %v313
      %v2299 = vmul.f32 %v314, %v314
      %v2300 = vmul.f32 %v315, %v315
      %v2301 = vmul.f32 %v316, %v316
      %v2302 = vmul.f32 %v317, %v317
      %v2303 = vmul.f32 %v318, %v318
      %v2304 = vmul.f32 %v319, %v319
      %v2305 = vmul.f32 %v320, %v320
      %v2306 = vmul.f32 %v321, %v321
      %v2307 = vmul.f32 %v322, %v322
      %v2308 = vmul.f32 %v323, %v323
      %v2309 = vmul.f32 %v324, %v324
      %v2310 = vmul.f32 %v325, %v325
      %v2311 = vmul.f32 %v326, %v326
      %v2312 = vmul.f32 %v327, %v327
      %v2313 = vmul.f32 %v328, %v328
      %v2314 = vmul.f32 %v329, %v329
      %v2315 = vmul.f32 %v330, %v330
      %v2316 = vmul.f32 %v331, %v331
      %v2317 = vmul.f32 %v332, %v332
      %v2318 = vmul.f32 %v333, %v333
      %v2319 = vmul.f32 %v334, %v334
      %v2320 = vmul.f32 %v335, %v335
      %v2321 = vmul.f32 %v336, %v336
      %v2322 = vmul.f32 %v337, %v337
      %v2323 = vmul.f32 %v338, %v338
      %v2324 = vmul.f32 %v339, %v339
      %v2325 = vmul.f32 %v340, %v340
      %v2326 = vmul.f32 %v341, %v341
      %v2327 = vmul.f32 %v342, %v342
      %v2328 = vmul.f32 %v343, %v343
      %v2329 = vmul.f32 %v344, %v344
      %v2330 = vmul.f32 %v345, %v345
      %v2331 = vmul.f32 %v346, %v346
      %v2332 = vmul.f32 %v347, %v347
      %v2333 = vmul.f32 %v348, %v348
      %v2334 = vmul.f32 %v349, %v349
      %v2335 = vmul.f32 %v350, %v350
      %v2336 = vmul.f32 %v351, %v351
      %v2337 = vmul.f32 %v352, %v352
      %v2338 = vmul.f32 %v353, %v353
      %v2339 = vmul.f32 %v354, %v354
      %v2340 = vmul.f32 %v355, %v355
      %v2341 = vmul.f32 %v356, %v356
      %v2342 = vmul.f32 %v357, %v357
      %v2343 = vmul.f32 %v358, %v358
      %v2344 = vmul.f32 %v359, %v359
      %v2345 = vmul.f32 %v360, %v360
      %v2346 = vmul.f32 %v361, %v361
      %v2347 = vmul.f32 %v362, %v362
      %v2348 = vmul.f32 %v363, %v363
      %v2349 = vmul.f32 %v364, %v364
      %v2350 = vmul.f32 %v365, %v365
      %v2351 = vsel %vm494, %v2287, 0.0
      %2352 = vadd.xlane.f32.xlu0 %v2351
      %v2353 = vpop.xlane.xlu0 %2352
      %v2354 = vsel %vm494, %v2288, 0.0
      %2355 = vadd.xlane.f32.xlu0 %v2354
      %v2356 = vpop.xlane.xlu0 %2355
      %v2357 = vsel %vm494, %v2289, 0.0
      %2358 = vadd.xlane.f32.xlu0 %v2357
      %v2359 = vpop.xlane.xlu0 %2358
      %v2360 = vsel %vm494, %v2290, 0.0
      %2361 = vadd.xlane.f32.xlu0 %v2360
      %v2362 = vpop.xlane.xlu0 %2361
      %v2363 = vsel %vm494, %v2291, 0.0
      %2364 = vadd.xlane.f32.xlu0 %v2363
      %v2365 = vpop.xlane.xlu0 %2364
      %v2366 = vsel %vm494, %v2292, 0.0
      %2367 = vadd.xlane.f32.xlu0 %v2366
      %v2368 = vpop.xlane.xlu0 %2367
      %v2369 = vsel %vm494, %v2293, 0.0
      %2370 = vadd.xlane.f32.xlu0 %v2369
      %v2371 = vpop.xlane.xlu0 %2370
      %v2372 = vsel %vm494, %v2294, 0.0
      %2373 = vadd.xlane.f32.xlu0 %v2372
      %v2374 = vpop.xlane.xlu0 %2373
      %v2375 = vsel %vm494, %v2295, 0.0
      %2376 = vadd.xlane.f32.xlu0 %v2375
      %v2377 = vpop.xlane.xlu0 %2376
      %v2378 = vsel %vm494, %v2296, 0.0
      %2379 = vadd.xlane.f32.xlu0 %v2378
      %v2380 = vpop.xlane.xlu0 %2379
      %v2381 = vsel %vm494, %v2297, 0.0
      %2382 = vadd.xlane.f32.xlu0 %v2381
      %v2383 = vpop.xlane.xlu0 %2382
      %v2384 = vsel %vm494, %v2298, 0.0
      %2385 = vadd.xlane.f32.xlu0 %v2384
      %v2386 = vpop.xlane.xlu0 %2385
      %v2387 = vsel %vm494, %v2299, 0.0
      %2388 = vadd.xlane.f32.xlu0 %v2387
      %v2389 = vpop.xlane.xlu0 %2388
      %v2390 = vsel %vm494, %v2300, 0.0
      %2391 = vadd.xlane.f32.xlu0 %v2390
      %v2392 = vpop.xlane.xlu0 %2391
      %v2393 = vsel %vm494, %v2301, 0.0
      %2394 = vadd.xlane.f32.xlu0 %v2393
      %v2395 = vpop.xlane.xlu0 %2394
      %v2396 = vsel %vm494, %v2302, 0.0
      %2397 = vadd.xlane.f32.xlu0 %v2396
      %v2398 = vpop.xlane.xlu0 %2397
      %v2399 = vsel %vm494, %v2303, 0.0
      %2400 = vadd.xlane.f32.xlu0 %v2399
      %v2401 = vpop.xlane.xlu0 %2400
      %v2402 = vsel %vm494, %v2304, 0.0
      %2403 = vadd.xlane.f32.xlu0 %v2402
      %v2404 = vpop.xlane.xlu0 %2403
      %v2405 = vsel %vm494, %v2305, 0.0
      %2406 = vadd.xlane.f32.xlu0 %v2405
      %v2407 = vpop.xlane.xlu0 %2406
      %v2408 = vsel %vm494, %v2306, 0.0
      %2409 = vadd.xlane.f32.xlu0 %v2408
      %v2410 = vpop.xlane.xlu0 %2409
      %v2411 = vsel %vm494, %v2307, 0.0
      %2412 = vadd.xlane.f32.xlu0 %v2411
      %v2413 = vpop.xlane.xlu0 %2412
      %v2414 = vsel %vm494, %v2308, 0.0
      %2415 = vadd.xlane.f32.xlu0 %v2414
      %v2416 = vpop.xlane.xlu0 %2415
      %v2417 = vsel %vm494, %v2309, 0.0
      %2418 = vadd.xlane.f32.xlu0 %v2417
      %v2419 = vpop.xlane.xlu0 %2418
      %v2420 = vsel %vm494, %v2310, 0.0
      %2421 = vadd.xlane.f32.xlu0 %v2420
      %v2422 = vpop.xlane.xlu0 %2421
      %v2423 = vsel %vm494, %v2311, 0.0
      %2424 = vadd.xlane.f32.xlu0 %v2423
      %v2425 = vpop.xlane.xlu0 %2424
      %v2426 = vsel %vm494, %v2312, 0.0
      %2427 = vadd.xlane.f32.xlu0 %v2426
      %v2428 = vpop.xlane.xlu0 %2427
      %v2429 = vsel %vm494, %v2313, 0.0
      %2430 = vadd.xlane.f32.xlu0 %v2429
      %v2431 = vpop.xlane.xlu0 %2430
      %v2432 = vsel %vm494, %v2314, 0.0
      %2433 = vadd.xlane.f32.xlu0 %v2432
      %v2434 = vpop.xlane.xlu0 %2433
      %v2435 = vsel %vm494, %v2315, 0.0
      %2436 = vadd.xlane.f32.xlu0 %v2435
      %v2437 = vpop.xlane.xlu0 %2436
      %v2438 = vsel %vm494, %v2316, 0.0
      %2439 = vadd.xlane.f32.xlu0 %v2438
      %v2440 = vpop.xlane.xlu0 %2439
      %v2441 = vsel %vm494, %v2317, 0.0
      %2442 = vadd.xlane.f32.xlu0 %v2441
      %v2443 = vpop.xlane.xlu0 %2442
      %v2444 = vsel %vm494, %v2318, 0.0
      %2445 = vadd.xlane.f32.xlu0 %v2444
      %v2446 = vpop.xlane.xlu0 %2445
      %v2447 = vsel %vm494, %v2319, 0.0
      %2448 = vadd.xlane.f32.xlu0 %v2447
      %v2449 = vpop.xlane.xlu0 %2448
      %v2450 = vsel %vm494, %v2320, 0.0
      %2451 = vadd.xlane.f32.xlu0 %v2450
      %v2452 = vpop.xlane.xlu0 %2451
      %v2453 = vsel %vm494, %v2321, 0.0
      %2454 = vadd.xlane.f32.xlu0 %v2453
      %v2455 = vpop.xlane.xlu0 %2454
      %v2456 = vsel %vm494, %v2322, 0.0
      %2457 = vadd.xlane.f32.xlu0 %v2456
      %v2458 = vpop.xlane.xlu0 %2457
      %v2459 = vsel %vm494, %v2323, 0.0
      %2460 = vadd.xlane.f32.xlu0 %v2459
      %v2461 = vpop.xlane.xlu0 %2460
      %v2462 = vsel %vm494, %v2324, 0.0
      %2463 = vadd.xlane.f32.xlu0 %v2462
      %v2464 = vpop.xlane.xlu0 %2463
      %v2465 = vsel %vm494, %v2325, 0.0
      %2466 = vadd.xlane.f32.xlu0 %v2465
      %v2467 = vpop.xlane.xlu0 %2466
      %v2468 = vsel %vm494, %v2326, 0.0
      %2469 = vadd.xlane.f32.xlu0 %v2468
      %v2470 = vpop.xlane.xlu0 %2469
      %v2471 = vsel %vm494, %v2327, 0.0
      %2472 = vadd.xlane.f32.xlu0 %v2471
      %v2473 = vpop.xlane.xlu0 %2472
      %v2474 = vsel %vm494, %v2328, 0.0
      %2475 = vadd.xlane.f32.xlu0 %v2474
      %v2476 = vpop.xlane.xlu0 %2475
      %v2477 = vsel %vm494, %v2329, 0.0
      %2478 = vadd.xlane.f32.xlu0 %v2477
      %v2479 = vpop.xlane.xlu0 %2478
      %v2480 = vsel %vm494, %v2330, 0.0
      %2481 = vadd.xlane.f32.xlu0 %v2480
      %v2482 = vpop.xlane.xlu0 %2481
      %v2483 = vsel %vm494, %v2331, 0.0
      %2484 = vadd.xlane.f32.xlu0 %v2483
      %v2485 = vpop.xlane.xlu0 %2484
      %v2486 = vsel %vm494, %v2332, 0.0
      %2487 = vadd.xlane.f32.xlu0 %v2486
      %v2488 = vpop.xlane.xlu0 %2487
      %v2489 = vsel %vm494, %v2333, 0.0
      %2490 = vadd.xlane.f32.xlu0 %v2489
      %v2491 = vpop.xlane.xlu0 %2490
      %v2492 = vsel %vm494, %v2334, 0.0
      %2493 = vadd.xlane.f32.xlu0 %v2492
      %v2494 = vpop.xlane.xlu0 %2493
      %v2495 = vsel %vm494, %v2335, 0.0
      %2496 = vadd.xlane.f32.xlu0 %v2495
      %v2497 = vpop.xlane.xlu0 %2496
      %v2498 = vsel %vm494, %v2336, 0.0
      %2499 = vadd.xlane.f32.xlu0 %v2498
      %v2500 = vpop.xlane.xlu0 %2499
      %v2501 = vsel %vm494, %v2337, 0.0
      %2502 = vadd.xlane.f32.xlu0 %v2501
      %v2503 = vpop.xlane.xlu0 %2502
      %v2504 = vsel %vm494, %v2338, 0.0
      %2505 = vadd.xlane.f32.xlu0 %v2504
      %v2506 = vpop.xlane.xlu0 %2505
      %v2507 = vsel %vm494, %v2339, 0.0
      %2508 = vadd.xlane.f32.xlu0 %v2507
      %v2509 = vpop.xlane.xlu0 %2508
      %v2510 = vsel %vm494, %v2340, 0.0
      %2511 = vadd.xlane.f32.xlu0 %v2510
      %v2512 = vpop.xlane.xlu0 %2511
      %v2513 = vsel %vm494, %v2341, 0.0
      %2514 = vadd.xlane.f32.xlu0 %v2513
      %v2515 = vpop.xlane.xlu0 %2514
      %v2516 = vsel %vm494, %v2342, 0.0
      %2517 = vadd.xlane.f32.xlu0 %v2516
      %v2518 = vpop.xlane.xlu0 %2517
      %v2519 = vsel %vm494, %v2343, 0.0
      %2520 = vadd.xlane.f32.xlu0 %v2519
      %v2521 = vpop.xlane.xlu0 %2520
      %v2522 = vsel %vm494, %v2344, 0.0
      %2523 = vadd.xlane.f32.xlu0 %v2522
      %v2524 = vpop.xlane.xlu0 %2523
      %v2525 = vsel %vm494, %v2345, 0.0
      %2526 = vadd.xlane.f32.xlu0 %v2525
      %v2527 = vpop.xlane.xlu0 %2526
      %v2528 = vsel %vm494, %v2346, 0.0
      %2529 = vadd.xlane.f32.xlu0 %v2528
      %v2530 = vpop.xlane.xlu0 %2529
      %v2531 = vsel %vm494, %v2347, 0.0
      %2532 = vadd.xlane.f32.xlu0 %v2531
      %v2533 = vpop.xlane.xlu0 %2532
      %v2534 = vsel %vm494, %v2348, 0.0
      %2535 = vadd.xlane.f32.xlu0 %v2534
      %v2536 = vpop.xlane.xlu0 %2535
      %v2537 = vsel %vm494, %v2349, 0.0
      %2538 = vadd.xlane.f32.xlu0 %v2537
      %v2539 = vpop.xlane.xlu0 %2538
      %v2540 = vsel %vm494, %v2350, 0.0
      %2541 = vadd.xlane.f32.xlu0 %v2540
      %v2542 = vpop.xlane.xlu0 %2541
      %v2543 = vmul.f32 %v753, %v2353
      %v2544 = vmul.f32 %v756, %v2356
      %v2545 = vmul.f32 %v759, %v2359
      %v2546 = vmul.f32 %v762, %v2362
      %v2547 = vmul.f32 %v765, %v2365
      %v2548 = vmul.f32 %v768, %v2368
      %v2549 = vmul.f32 %v771, %v2371
      %v2550 = vmul.f32 %v774, %v2374
      %v2551 = vmul.f32 %v777, %v2377
      %v2552 = vmul.f32 %v780, %v2380
      %v2553 = vmul.f32 %v783, %v2383
      %v2554 = vmul.f32 %v786, %v2386
      %v2555 = vmul.f32 %v789, %v2389
      %v2556 = vmul.f32 %v792, %v2392
      %v2557 = vmul.f32 %v795, %v2395
      %v2558 = vmul.f32 %v798, %v2398
      %v2559 = vmul.f32 %v801, %v2401
      %v2560 = vmul.f32 %v804, %v2404
      %v2561 = vmul.f32 %v807, %v2407
      %v2562 = vmul.f32 %v810, %v2410
      %v2563 = vmul.f32 %v813, %v2413
      %v2564 = vmul.f32 %v816, %v2416
      %v2565 = vmul.f32 %v819, %v2419
      %v2566 = vmul.f32 %v822, %v2422
      %v2567 = vmul.f32 %v825, %v2425
      %v2568 = vmul.f32 %v828, %v2428
      %v2569 = vmul.f32 %v831, %v2431
      %v2570 = vmul.f32 %v834, %v2434
      %v2571 = vmul.f32 %v837, %v2437
      %v2572 = vmul.f32 %v840, %v2440
      %v2573 = vmul.f32 %v843, %v2443
      %v2574 = vmul.f32 %v846, %v2446
      %v2575 = vmul.f32 %v849, %v2449
      %v2576 = vmul.f32 %v852, %v2452
      %v2577 = vmul.f32 %v855, %v2455
      %v2578 = vmul.f32 %v858, %v2458
      %v2579 = vmul.f32 %v861, %v2461
      %v2580 = vmul.f32 %v864, %v2464
      %v2581 = vmul.f32 %v867, %v2467
      %v2582 = vmul.f32 %v870, %v2470
      %v2583 = vmul.f32 %v873, %v2473
      %v2584 = vmul.f32 %v876, %v2476
      %v2585 = vmul.f32 %v879, %v2479
      %v2586 = vmul.f32 %v882, %v2482
      %v2587 = vmul.f32 %v885, %v2485
      %v2588 = vmul.f32 %v888, %v2488
      %v2589 = vmul.f32 %v891, %v2491
      %v2590 = vmul.f32 %v894, %v2494
      %v2591 = vmul.f32 %v897, %v2497
      %v2592 = vmul.f32 %v900, %v2500
      %v2593 = vmul.f32 %v903, %v2503
      %v2594 = vmul.f32 %v906, %v2506
      %v2595 = vmul.f32 %v909, %v2509
      %v2596 = vmul.f32 %v912, %v2512
      %v2597 = vmul.f32 %v915, %v2515
      %v2598 = vmul.f32 %v918, %v2518
      %v2599 = vmul.f32 %v921, %v2521
      %v2600 = vmul.f32 %v924, %v2524
      %v2601 = vmul.f32 %v927, %v2527
      %v2602 = vmul.f32 %v930, %v2530
      %v2603 = vmul.f32 %v933, %v2533
      %v2604 = vmul.f32 %v936, %v2536
      %v2605 = vmul.f32 %v939, %v2539
      %v2606 = vmul.f32 %v942, %v2542
      %v2607 = vmax.f32 %v2543, 1e-12
      %v2608 = vmax.f32 %v2544, 1e-12
      %v2609 = vmax.f32 %v2545, 1e-12
      %v2610 = vmax.f32 %v2546, 1e-12
      %v2611 = vmax.f32 %v2547, 1e-12
      %v2612 = vmax.f32 %v2548, 1e-12
      %v2613 = vmax.f32 %v2549, 1e-12
      %v2614 = vmax.f32 %v2550, 1e-12
      %v2615 = vmax.f32 %v2551, 1e-12
      %v2616 = vmax.f32 %v2552, 1e-12
      %v2617 = vmax.f32 %v2553, 1e-12
      %v2618 = vmax.f32 %v2554, 1e-12
      %v2619 = vmax.f32 %v2555, 1e-12
      %v2620 = vmax.f32 %v2556, 1e-12
      %v2621 = vmax.f32 %v2557, 1e-12
      %v2622 = vmax.f32 %v2558, 1e-12
      %v2623 = vmax.f32 %v2559, 1e-12
      %v2624 = vmax.f32 %v2560, 1e-12
      %v2625 = vmax.f32 %v2561, 1e-12
      %v2626 = vmax.f32 %v2562, 1e-12
      %v2627 = vmax.f32 %v2563, 1e-12
      %v2628 = vmax.f32 %v2564, 1e-12
      %v2629 = vmax.f32 %v2565, 1e-12
      %v2630 = vmax.f32 %v2566, 1e-12
      %v2631 = vmax.f32 %v2567, 1e-12
      %v2632 = vmax.f32 %v2568, 1e-12
      %v2633 = vmax.f32 %v2569, 1e-12
      %v2634 = vmax.f32 %v2570, 1e-12
      %v2635 = vmax.f32 %v2571, 1e-12
      %v2636 = vmax.f32 %v2572, 1e-12
      %v2637 = vmax.f32 %v2573, 1e-12
      %v2638 = vmax.f32 %v2574, 1e-12
      %v2639 = vmax.f32 %v2575, 1e-12
      %v2640 = vmax.f32 %v2576, 1e-12
      %v2641 = vmax.f32 %v2577, 1e-12
      %v2642 = vmax.f32 %v2578, 1e-12
      %v2643 = vmax.f32 %v2579, 1e-12
      %v2644 = vmax.f32 %v2580, 1e-12
      %v2645 = vmax.f32 %v2581, 1e-12
      %v2646 = vmax.f32 %v2582, 1e-12
      %v2647 = vmax.f32 %v2583, 1e-12
      %v2648 = vmax.f32 %v2584, 1e-12
      %v2649 = vmax.f32 %v2585, 1e-12
      %v2650 = vmax.f32 %v2586, 1e-12
      %v2651 = vmax.f32 %v2587, 1e-12
      %v2652 = vmax.f32 %v2588, 1e-12
      %v2653 = vmax.f32 %v2589, 1e-12
      %v2654 = vmax.f32 %v2590, 1e-12
      %v2655 = vmax.f32 %v2591, 1e-12
      %v2656 = vmax.f32 %v2592, 1e-12
      %v2657 = vmax.f32 %v2593, 1e-12
      %v2658 = vmax.f32 %v2594, 1e-12
      %v2659 = vmax.f32 %v2595, 1e-12
      %v2660 = vmax.f32 %v2596, 1e-12
      %v2661 = vmax.f32 %v2597, 1e-12
      %v2662 = vmax.f32 %v2598, 1e-12
      %v2663 = vmax.f32 %v2599, 1e-12
      %v2664 = vmax.f32 %v2600, 1e-12
      %v2665 = vmax.f32 %v2601, 1e-12
      %v2666 = vmax.f32 %v2602, 1e-12
      %v2667 = vmax.f32 %v2603, 1e-12
      %v2668 = vmax.f32 %v2604, 1e-12
      %v2669 = vmax.f32 %v2605, 1e-12
      %v2670 = vmax.f32 %v2606, 1e-12
      %v2671 = vrsqrt.pop %v2607
      %v2672 = vmul.f32 %v2671, %v2607
      %v2673 = vmul.f32 %v2672, %v2671
      %v2674 = vmul.f32 0.5, %v2673
      %v2675 = vsub.f32 1.5, %v2674
      %v2676 = vmul.f32 %v2671, %v2675
      %vm2677 = vweird.f32 %v2607
      %vm2678 = vweird.f32 %v2671
      %vm2679 = vmor %vm2677, %vm2678
      %v2680 = vsel %vm2679, %v2671, %v2676
      %v2681 = vrsqrt.pop %v2608
      %v2682 = vmul.f32 %v2681, %v2608
      %v2683 = vmul.f32 %v2682, %v2681
      %v2684 = vmul.f32 0.5, %v2683
      %v2685 = vsub.f32 1.5, %v2684
      %v2686 = vmul.f32 %v2681, %v2685
      %vm2687 = vweird.f32 %v2608
      %vm2688 = vweird.f32 %v2681
      %vm2689 = vmor %vm2687, %vm2688
      %v2690 = vsel %vm2689, %v2681, %v2686
      %v2691 = vrsqrt.pop %v2609
      %v2692 = vmul.f32 %v2691, %v2609
      %v2693 = vmul.f32 %v2692, %v2691
      %v2694 = vmul.f32 0.5, %v2693
      %v2695 = vsub.f32 1.5, %v2694
      %v2696 = vmul.f32 %v2691, %v2695
      %vm2697 = vweird.f32 %v2609
      %vm2698 = vweird.f32 %v2691
      %vm2699 = vmor %vm2697, %vm2698
      %v2700 = vsel %vm2699, %v2691, %v2696
      %v2701 = vrsqrt.pop %v2610
      %v2702 = vmul.f32 %v2701, %v2610
      %v2703 = vmul.f32 %v2702, %v2701
      %v2704 = vmul.f32 0.5, %v2703
      %v2705 = vsub.f32 1.5, %v2704
      %v2706 = vmul.f32 %v2701, %v2705
      %vm2707 = vweird.f32 %v2610
      %vm2708 = vweird.f32 %v2701
      %vm2709 = vmor %vm2707, %vm2708
      %v2710 = vsel %vm2709, %v2701, %v2706
      %v2711 = vrsqrt.pop %v2611
      %v2712 = vmul.f32 %v2711, %v2611
      %v2713 = vmul.f32 %v2712, %v2711
      %v2714 = vmul.f32 0.5, %v2713
      %v2715 = vsub.f32 1.5, %v2714
      %v2716 = vmul.f32 %v2711, %v2715
      %vm2717 = vweird.f32 %v2611
      %vm2718 = vweird.f32 %v2711
      %vm2719 = vmor %vm2717, %vm2718
      %v2720 = vsel %vm2719, %v2711, %v2716
      %v2721 = vrsqrt.pop %v2612
      %v2722 = vmul.f32 %v2721, %v2612
      %v2723 = vmul.f32 %v2722, %v2721
      %v2724 = vmul.f32 0.5, %v2723
      %v2725 = vsub.f32 1.5, %v2724
      %v2726 = vmul.f32 %v2721, %v2725
      %vm2727 = vweird.f32 %v2612
      %vm2728 = vweird.f32 %v2721
      %vm2729 = vmor %vm2727, %vm2728
      %v2730 = vsel %vm2729, %v2721, %v2726
      %v2731 = vrsqrt.pop %v2613
      %v2732 = vmul.f32 %v2731, %v2613
      %v2733 = vmul.f32 %v2732, %v2731
      %v2734 = vmul.f32 0.5, %v2733
      %v2735 = vsub.f32 1.5, %v2734
      %v2736 = vmul.f32 %v2731, %v2735
      %vm2737 = vweird.f32 %v2613
      %vm2738 = vweird.f32 %v2731
      %vm2739 = vmor %vm2737, %vm2738
      %v2740 = vsel %vm2739, %v2731, %v2736
      %v2741 = vrsqrt.pop %v2614
      %v2742 = vmul.f32 %v2741, %v2614
      %v2743 = vmul.f32 %v2742, %v2741
      %v2744 = vmul.f32 0.5, %v2743
      %v2745 = vsub.f32 1.5, %v2744
      %v2746 = vmul.f32 %v2741, %v2745
      %vm2747 = vweird.f32 %v2614
      %vm2748 = vweird.f32 %v2741
      %vm2749 = vmor %vm2747, %vm2748
      %v2750 = vsel %vm2749, %v2741, %v2746
      %v2751 = vrsqrt.pop %v2615
      %v2752 = vmul.f32 %v2751, %v2615
      %v2753 = vmul.f32 %v2752, %v2751
      %v2754 = vmul.f32 0.5, %v2753
      %v2755 = vsub.f32 1.5, %v2754
      %v2756 = vmul.f32 %v2751, %v2755
      %vm2757 = vweird.f32 %v2615
      %vm2758 = vweird.f32 %v2751
      %vm2759 = vmor %vm2757, %vm2758
      %v2760 = vsel %vm2759, %v2751, %v2756
      %v2761 = vrsqrt.pop %v2616
      %v2762 = vmul.f32 %v2761, %v2616
      %v2763 = vmul.f32 %v2762, %v2761
      %v2764 = vmul.f32 0.5, %v2763
      %v2765 = vsub.f32 1.5, %v2764
      %v2766 = vmul.f32 %v2761, %v2765
      %vm2767 = vweird.f32 %v2616
      %vm2768 = vweird.f32 %v2761
      %vm2769 = vmor %vm2767, %vm2768
      %v2770 = vsel %vm2769, %v2761, %v2766
      %v2771 = vrsqrt.pop %v2617
      %v2772 = vmul.f32 %v2771, %v2617
      %v2773 = vmul.f32 %v2772, %v2771
      %v2774 = vmul.f32 0.5, %v2773
      %v2775 = vsub.f32 1.5, %v2774
      %v2776 = vmul.f32 %v2771, %v2775
      %vm2777 = vweird.f32 %v2617
      %vm2778 = vweird.f32 %v2771
      %vm2779 = vmor %vm2777, %vm2778
      %v2780 = vsel %vm2779, %v2771, %v2776
      %v2781 = vrsqrt.pop %v2618
      %v2782 = vmul.f32 %v2781, %v2618
      %v2783 = vmul.f32 %v2782, %v2781
      %v2784 = vmul.f32 0.5, %v2783
      %v2785 = vsub.f32 1.5, %v2784
      %v2786 = vmul.f32 %v2781, %v2785
      %vm2787 = vweird.f32 %v2618
      %vm2788 = vweird.f32 %v2781
      %vm2789 = vmor %vm2787, %vm2788
      %v2790 = vsel %vm2789, %v2781, %v2786
      %v2791 = vrsqrt.pop %v2619
      %v2792 = vmul.f32 %v2791, %v2619
      %v2793 = vmul.f32 %v2792, %v2791
      %v2794 = vmul.f32 0.5, %v2793
      %v2795 = vsub.f32 1.5, %v2794
      %v2796 = vmul.f32 %v2791, %v2795
      %vm2797 = vweird.f32 %v2619
      %vm2798 = vweird.f32 %v2791
      %vm2799 = vmor %vm2797, %vm2798
      %v2800 = vsel %vm2799, %v2791, %v2796
      %v2801 = vrsqrt.pop %v2620
      %v2802 = vmul.f32 %v2801, %v2620
      %v2803 = vmul.f32 %v2802, %v2801
      %v2804 = vmul.f32 0.5, %v2803
      %v2805 = vsub.f32 1.5, %v2804
      %v2806 = vmul.f32 %v2801, %v2805
      %vm2807 = vweird.f32 %v2620
      %vm2808 = vweird.f32 %v2801
      %vm2809 = vmor %vm2807, %vm2808
      %v2810 = vsel %vm2809, %v2801, %v2806
      %v2811 = vrsqrt.pop %v2621
      %v2812 = vmul.f32 %v2811, %v2621
      %v2813 = vmul.f32 %v2812, %v2811
      %v2814 = vmul.f32 0.5, %v2813
      %v2815 = vsub.f32 1.5, %v2814
      %v2816 = vmul.f32 %v2811, %v2815
      %vm2817 = vweird.f32 %v2621
      %vm2818 = vweird.f32 %v2811
      %vm2819 = vmor %vm2817, %vm2818
      %v2820 = vsel %vm2819, %v2811, %v2816
      %v2821 = vrsqrt.pop %v2622
      %v2822 = vmul.f32 %v2821, %v2622
      %v2823 = vmul.f32 %v2822, %v2821
      %v2824 = vmul.f32 0.5, %v2823
      %v2825 = vsub.f32 1.5, %v2824
      %v2826 = vmul.f32 %v2821, %v2825
      %vm2827 = vweird.f32 %v2622
      %vm2828 = vweird.f32 %v2821
      %vm2829 = vmor %vm2827, %vm2828
      %v2830 = vsel %vm2829, %v2821, %v2826
      %v2831 = vrsqrt.pop %v2623
      %v2832 = vmul.f32 %v2831, %v2623
      %v2833 = vmul.f32 %v2832, %v2831
      %v2834 = vmul.f32 0.5, %v2833
      %v2835 = vsub.f32 1.5, %v2834
      %v2836 = vmul.f32 %v2831, %v2835
      %vm2837 = vweird.f32 %v2623
      %vm2838 = vweird.f32 %v2831
      %vm2839 = vmor %vm2837, %vm2838
      %v2840 = vsel %vm2839, %v2831, %v2836
      %v2841 = vrsqrt.pop %v2624
      %v2842 = vmul.f32 %v2841, %v2624
      %v2843 = vmul.f32 %v2842, %v2841
      %v2844 = vmul.f32 0.5, %v2843
      %v2845 = vsub.f32 1.5, %v2844
      %v2846 = vmul.f32 %v2841, %v2845
      %vm2847 = vweird.f32 %v2624
      %vm2848 = vweird.f32 %v2841
      %vm2849 = vmor %vm2847, %vm2848
      %v2850 = vsel %vm2849, %v2841, %v2846
      %v2851 = vrsqrt.pop %v2625
      %v2852 = vmul.f32 %v2851, %v2625
      %v2853 = vmul.f32 %v2852, %v2851
      %v2854 = vmul.f32 0.5, %v2853
      %v2855 = vsub.f32 1.5, %v2854
      %v2856 = vmul.f32 %v2851, %v2855
      %vm2857 = vweird.f32 %v2625
      %vm2858 = vweird.f32 %v2851
      %vm2859 = vmor %vm2857, %vm2858
      %v2860 = vsel %vm2859, %v2851, %v2856
      %v2861 = vrsqrt.pop %v2626
      %v2862 = vmul.f32 %v2861, %v2626
      %v2863 = vmul.f32 %v2862, %v2861
      %v2864 = vmul.f32 0.5, %v2863
      %v2865 = vsub.f32 1.5, %v2864
      %v2866 = vmul.f32 %v2861, %v2865
      %vm2867 = vweird.f32 %v2626
      %vm2868 = vweird.f32 %v2861
      %vm2869 = vmor %vm2867, %vm2868
      %v2870 = vsel %vm2869, %v2861, %v2866
      %v2871 = vrsqrt.pop %v2627
      %v2872 = vmul.f32 %v2871, %v2627
      %v2873 = vmul.f32 %v2872, %v2871
      %v2874 = vmul.f32 0.5, %v2873
      %v2875 = vsub.f32 1.5, %v2874
      %v2876 = vmul.f32 %v2871, %v2875
      %vm2877 = vweird.f32 %v2627
      %vm2878 = vweird.f32 %v2871
      %vm2879 = vmor %vm2877, %vm2878
      %v2880 = vsel %vm2879, %v2871, %v2876
      %v2881 = vrsqrt.pop %v2628
      %v2882 = vmul.f32 %v2881, %v2628
      %v2883 = vmul.f32 %v2882, %v2881
      %v2884 = vmul.f32 0.5, %v2883
      %v2885 = vsub.f32 1.5, %v2884
      %v2886 = vmul.f32 %v2881, %v2885
      %vm2887 = vweird.f32 %v2628
      %vm2888 = vweird.f32 %v2881
      %vm2889 = vmor %vm2887, %vm2888
      %v2890 = vsel %vm2889, %v2881, %v2886
      %v2891 = vrsqrt.pop %v2629
      %v2892 = vmul.f32 %v2891, %v2629
      %v2893 = vmul.f32 %v2892, %v2891
      %v2894 = vmul.f32 0.5, %v2893
      %v2895 = vsub.f32 1.5, %v2894
      %v2896 = vmul.f32 %v2891, %v2895
      %vm2897 = vweird.f32 %v2629
      %vm2898 = vweird.f32 %v2891
      %vm2899 = vmor %vm2897, %vm2898
      %v2900 = vsel %vm2899, %v2891, %v2896
      %v2901 = vrsqrt.pop %v2630
      %v2902 = vmul.f32 %v2901, %v2630
      %v2903 = vmul.f32 %v2902, %v2901
      %v2904 = vmul.f32 0.5, %v2903
      %v2905 = vsub.f32 1.5, %v2904
      %v2906 = vmul.f32 %v2901, %v2905
      %vm2907 = vweird.f32 %v2630
      %vm2908 = vweird.f32 %v2901
      %vm2909 = vmor %vm2907, %vm2908
      %v2910 = vsel %vm2909, %v2901, %v2906
      %v2911 = vrsqrt.pop %v2631
      %v2912 = vmul.f32 %v2911, %v2631
      %v2913 = vmul.f32 %v2912, %v2911
      %v2914 = vmul.f32 0.5, %v2913
      %v2915 = vsub.f32 1.5, %v2914
      %v2916 = vmul.f32 %v2911, %v2915
      %vm2917 = vweird.f32 %v2631
      %vm2918 = vweird.f32 %v2911
      %vm2919 = vmor %vm2917, %vm2918
      %v2920 = vsel %vm2919, %v2911, %v2916
      %v2921 = vrsqrt.pop %v2632
      %v2922 = vmul.f32 %v2921, %v2632
      %v2923 = vmul.f32 %v2922, %v2921
      %v2924 = vmul.f32 0.5, %v2923
      %v2925 = vsub.f32 1.5, %v2924
      %v2926 = vmul.f32 %v2921, %v2925
      %vm2927 = vweird.f32 %v2632
      %vm2928 = vweird.f32 %v2921
      %vm2929 = vmor %vm2927, %vm2928
      %v2930 = vsel %vm2929, %v2921, %v2926
      %v2931 = vrsqrt.pop %v2633
      %v2932 = vmul.f32 %v2931, %v2633
      %v2933 = vmul.f32 %v2932, %v2931
      %v2934 = vmul.f32 0.5, %v2933
      %v2935 = vsub.f32 1.5, %v2934
      %v2936 = vmul.f32 %v2931, %v2935
      %vm2937 = vweird.f32 %v2633
      %vm2938 = vweird.f32 %v2931
      %vm2939 = vmor %vm2937, %vm2938
      %v2940 = vsel %vm2939, %v2931, %v2936
      %v2941 = vrsqrt.pop %v2634
      %v2942 = vmul.f32 %v2941, %v2634
      %v2943 = vmul.f32 %v2942, %v2941
      %v2944 = vmul.f32 0.5, %v2943
      %v2945 = vsub.f32 1.5, %v2944
      %v2946 = vmul.f32 %v2941, %v2945
      %vm2947 = vweird.f32 %v2634
      %vm2948 = vweird.f32 %v2941
      %vm2949 = vmor %vm2947, %vm2948
      %v2950 = vsel %vm2949, %v2941, %v2946
      %v2951 = vrsqrt.pop %v2635
      %v2952 = vmul.f32 %v2951, %v2635
      %v2953 = vmul.f32 %v2952, %v2951
      %v2954 = vmul.f32 0.5, %v2953
      %v2955 = vsub.f32 1.5, %v2954
      %v2956 = vmul.f32 %v2951, %v2955
      %vm2957 = vweird.f32 %v2635
      %vm2958 = vweird.f32 %v2951
      %vm2959 = vmor %vm2957, %vm2958
      %v2960 = vsel %vm2959, %v2951, %v2956
      %v2961 = vrsqrt.pop %v2636
      %v2962 = vmul.f32 %v2961, %v2636
      %v2963 = vmul.f32 %v2962, %v2961
      %v2964 = vmul.f32 0.5, %v2963
      %v2965 = vsub.f32 1.5, %v2964
      %v2966 = vmul.f32 %v2961, %v2965
      %vm2967 = vweird.f32 %v2636
      %vm2968 = vweird.f32 %v2961
      %vm2969 = vmor %vm2967, %vm2968
      %v2970 = vsel %vm2969, %v2961, %v2966
      %v2971 = vrsqrt.pop %v2637
      %v2972 = vmul.f32 %v2971, %v2637
      %v2973 = vmul.f32 %v2972, %v2971
      %v2974 = vmul.f32 0.5, %v2973
      %v2975 = vsub.f32 1.5, %v2974
      %v2976 = vmul.f32 %v2971, %v2975
      %vm2977 = vweird.f32 %v2637
      %vm2978 = vweird.f32 %v2971
      %vm2979 = vmor %vm2977, %vm2978
      %v2980 = vsel %vm2979, %v2971, %v2976
      %v2981 = vrsqrt.pop %v2638
      %v2982 = vmul.f32 %v2981, %v2638
      %v2983 = vmul.f32 %v2982, %v2981
      %v2984 = vmul.f32 0.5, %v2983
      %v2985 = vsub.f32 1.5, %v2984
      %v2986 = vmul.f32 %v2981, %v2985
      %vm2987 = vweird.f32 %v2638
      %vm2988 = vweird.f32 %v2981
      %vm2989 = vmor %vm2987, %vm2988
      %v2990 = vsel %vm2989, %v2981, %v2986
      %v2991 = vrsqrt.pop %v2639
      %v2992 = vmul.f32 %v2991, %v2639
      %v2993 = vmul.f32 %v2992, %v2991
      %v2994 = vmul.f32 0.5, %v2993
      %v2995 = vsub.f32 1.5, %v2994
      %v2996 = vmul.f32 %v2991, %v2995
      %vm2997 = vweird.f32 %v2639
      %vm2998 = vweird.f32 %v2991
      %vm2999 = vmor %vm2997, %vm2998
      %v3000 = vsel %vm2999, %v2991, %v2996
      %v3001 = vrsqrt.pop %v2640
      %v3002 = vmul.f32 %v3001, %v2640
      %v3003 = vmul.f32 %v3002, %v3001
      %v3004 = vmul.f32 0.5, %v3003
      %v3005 = vsub.f32 1.5, %v3004
      %v3006 = vmul.f32 %v3001, %v3005
      %vm3007 = vweird.f32 %v2640
      %vm3008 = vweird.f32 %v3001
      %vm3009 = vmor %vm3007, %vm3008
      %v3010 = vsel %vm3009, %v3001, %v3006
      %v3011 = vrsqrt.pop %v2641
      %v3012 = vmul.f32 %v3011, %v2641
      %v3013 = vmul.f32 %v3012, %v3011
      %v3014 = vmul.f32 0.5, %v3013
      %v3015 = vsub.f32 1.5, %v3014
      %v3016 = vmul.f32 %v3011, %v3015
      %vm3017 = vweird.f32 %v2641
      %vm3018 = vweird.f32 %v3011
      %vm3019 = vmor %vm3017, %vm3018
      %v3020 = vsel %vm3019, %v3011, %v3016
      %v3021 = vrsqrt.pop %v2642
      %v3022 = vmul.f32 %v3021, %v2642
      %v3023 = vmul.f32 %v3022, %v3021
      %v3024 = vmul.f32 0.5, %v3023
      %v3025 = vsub.f32 1.5, %v3024
      %v3026 = vmul.f32 %v3021, %v3025
      %vm3027 = vweird.f32 %v2642
      %vm3028 = vweird.f32 %v3021
      %vm3029 = vmor %vm3027, %vm3028
      %v3030 = vsel %vm3029, %v3021, %v3026
      %v3031 = vrsqrt.pop %v2643
      %v3032 = vmul.f32 %v3031, %v2643
      %v3033 = vmul.f32 %v3032, %v3031
      %v3034 = vmul.f32 0.5, %v3033
      %v3035 = vsub.f32 1.5, %v3034
      %v3036 = vmul.f32 %v3031, %v3035
      %vm3037 = vweird.f32 %v2643
      %vm3038 = vweird.f32 %v3031
      %vm3039 = vmor %vm3037, %vm3038
      %v3040 = vsel %vm3039, %v3031, %v3036
      %v3041 = vrsqrt.pop %v2644
      %v3042 = vmul.f32 %v3041, %v2644
      %v3043 = vmul.f32 %v3042, %v3041
      %v3044 = vmul.f32 0.5, %v3043
      %v3045 = vsub.f32 1.5, %v3044
      %v3046 = vmul.f32 %v3041, %v3045
      %vm3047 = vweird.f32 %v2644
      %vm3048 = vweird.f32 %v3041
      %vm3049 = vmor %vm3047, %vm3048
      %v3050 = vsel %vm3049, %v3041, %v3046
      %v3051 = vrsqrt.pop %v2645
      %v3052 = vmul.f32 %v3051, %v2645
      %v3053 = vmul.f32 %v3052, %v3051
      %v3054 = vmul.f32 0.5, %v3053
      %v3055 = vsub.f32 1.5, %v3054
      %v3056 = vmul.f32 %v3051, %v3055
      %vm3057 = vweird.f32 %v2645
      %vm3058 = vweird.f32 %v3051
      %vm3059 = vmor %vm3057, %vm3058
      %v3060 = vsel %vm3059, %v3051, %v3056
      %v3061 = vrsqrt.pop %v2646
      %v3062 = vmul.f32 %v3061, %v2646
      %v3063 = vmul.f32 %v3062, %v3061
      %v3064 = vmul.f32 0.5, %v3063
      %v3065 = vsub.f32 1.5, %v3064
      %v3066 = vmul.f32 %v3061, %v3065
      %vm3067 = vweird.f32 %v2646
      %vm3068 = vweird.f32 %v3061
      %vm3069 = vmor %vm3067, %vm3068
      %v3070 = vsel %vm3069, %v3061, %v3066
      %v3071 = vrsqrt.pop %v2647
      %v3072 = vmul.f32 %v3071, %v2647
      %v3073 = vmul.f32 %v3072, %v3071
      %v3074 = vmul.f32 0.5, %v3073
      %v3075 = vsub.f32 1.5, %v3074
      %v3076 = vmul.f32 %v3071, %v3075
      %vm3077 = vweird.f32 %v2647
      %vm3078 = vweird.f32 %v3071
      %vm3079 = vmor %vm3077, %vm3078
      %v3080 = vsel %vm3079, %v3071, %v3076
      %v3081 = vrsqrt.pop %v2648
      %v3082 = vmul.f32 %v3081, %v2648
      %v3083 = vmul.f32 %v3082, %v3081
      %v3084 = vmul.f32 0.5, %v3083
      %v3085 = vsub.f32 1.5, %v3084
      %v3086 = vmul.f32 %v3081, %v3085
      %vm3087 = vweird.f32 %v2648
      %vm3088 = vweird.f32 %v3081
      %vm3089 = vmor %vm3087, %vm3088
      %v3090 = vsel %vm3089, %v3081, %v3086
      %v3091 = vrsqrt.pop %v2649
      %v3092 = vmul.f32 %v3091, %v2649
      %v3093 = vmul.f32 %v3092, %v3091
      %v3094 = vmul.f32 0.5, %v3093
      %v3095 = vsub.f32 1.5, %v3094
      %v3096 = vmul.f32 %v3091, %v3095
      %vm3097 = vweird.f32 %v2649
      %vm3098 = vweird.f32 %v3091
      %vm3099 = vmor %vm3097, %vm3098
      %v3100 = vsel %vm3099, %v3091, %v3096
      %v3101 = vrsqrt.pop %v2650
      %v3102 = vmul.f32 %v3101, %v2650
      %v3103 = vmul.f32 %v3102, %v3101
      %v3104 = vmul.f32 0.5, %v3103
      %v3105 = vsub.f32 1.5, %v3104
      %v3106 = vmul.f32 %v3101, %v3105
      %vm3107 = vweird.f32 %v2650
      %vm3108 = vweird.f32 %v3101
      %vm3109 = vmor %vm3107, %vm3108
      %v3110 = vsel %vm3109, %v3101, %v3106
      %v3111 = vrsqrt.pop %v2651
      %v3112 = vmul.f32 %v3111, %v2651
      %v3113 = vmul.f32 %v3112, %v3111
      %v3114 = vmul.f32 0.5, %v3113
      %v3115 = vsub.f32 1.5, %v3114
      %v3116 = vmul.f32 %v3111, %v3115
      %vm3117 = vweird.f32 %v2651
      %vm3118 = vweird.f32 %v3111
      %vm3119 = vmor %vm3117, %vm3118
      %v3120 = vsel %vm3119, %v3111, %v3116
      %v3121 = vrsqrt.pop %v2652
      %v3122 = vmul.f32 %v3121, %v2652
      %v3123 = vmul.f32 %v3122, %v3121
      %v3124 = vmul.f32 0.5, %v3123
      %v3125 = vsub.f32 1.5, %v3124
      %v3126 = vmul.f32 %v3121, %v3125
      %vm3127 = vweird.f32 %v2652
      %vm3128 = vweird.f32 %v3121
      %vm3129 = vmor %vm3127, %vm3128
      %v3130 = vsel %vm3129, %v3121, %v3126
      %v3131 = vrsqrt.pop %v2653
      %v3132 = vmul.f32 %v3131, %v2653
      %v3133 = vmul.f32 %v3132, %v3131
      %v3134 = vmul.f32 0.5, %v3133
      %v3135 = vsub.f32 1.5, %v3134
      %v3136 = vmul.f32 %v3131, %v3135
      %vm3137 = vweird.f32 %v2653
      %vm3138 = vweird.f32 %v3131
      %vm3139 = vmor %vm3137, %vm3138
      %v3140 = vsel %vm3139, %v3131, %v3136
      %v3141 = vrsqrt.pop %v2654
      %v3142 = vmul.f32 %v3141, %v2654
      %v3143 = vmul.f32 %v3142, %v3141
      %v3144 = vmul.f32 0.5, %v3143
      %v3145 = vsub.f32 1.5, %v3144
      %v3146 = vmul.f32 %v3141, %v3145
      %vm3147 = vweird.f32 %v2654
      %vm3148 = vweird.f32 %v3141
      %vm3149 = vmor %vm3147, %vm3148
      %v3150 = vsel %vm3149, %v3141, %v3146
      %v3151 = vrsqrt.pop %v2655
      %v3152 = vmul.f32 %v3151, %v2655
      %v3153 = vmul.f32 %v3152, %v3151
      %v3154 = vmul.f32 0.5, %v3153
      %v3155 = vsub.f32 1.5, %v3154
      %v3156 = vmul.f32 %v3151, %v3155
      %vm3157 = vweird.f32 %v2655
      %vm3158 = vweird.f32 %v3151
      %vm3159 = vmor %vm3157, %vm3158
      %v3160 = vsel %vm3159, %v3151, %v3156
      %v3161 = vrsqrt.pop %v2656
      %v3162 = vmul.f32 %v3161, %v2656
      %v3163 = vmul.f32 %v3162, %v3161
      %v3164 = vmul.f32 0.5, %v3163
      %v3165 = vsub.f32 1.5, %v3164
      %v3166 = vmul.f32 %v3161, %v3165
      %vm3167 = vweird.f32 %v2656
      %vm3168 = vweird.f32 %v3161
      %vm3169 = vmor %vm3167, %vm3168
      %v3170 = vsel %vm3169, %v3161, %v3166
      %v3171 = vrsqrt.pop %v2657
      %v3172 = vmul.f32 %v3171, %v2657
      %v3173 = vmul.f32 %v3172, %v3171
      %v3174 = vmul.f32 0.5, %v3173
      %v3175 = vsub.f32 1.5, %v3174
      %v3176 = vmul.f32 %v3171, %v3175
      %vm3177 = vweird.f32 %v2657
      %vm3178 = vweird.f32 %v3171
      %vm3179 = vmor %vm3177, %vm3178
      %v3180 = vsel %vm3179, %v3171, %v3176
      %v3181 = vrsqrt.pop %v2658
      %v3182 = vmul.f32 %v3181, %v2658
      %v3183 = vmul.f32 %v3182, %v3181
      %v3184 = vmul.f32 0.5, %v3183
      %v3185 = vsub.f32 1.5, %v3184
      %v3186 = vmul.f32 %v3181, %v3185
      %vm3187 = vweird.f32 %v2658
      %vm3188 = vweird.f32 %v3181
      %vm3189 = vmor %vm3187, %vm3188
      %v3190 = vsel %vm3189, %v3181, %v3186
      %v3191 = vrsqrt.pop %v2659
      %v3192 = vmul.f32 %v3191, %v2659
      %v3193 = vmul.f32 %v3192, %v3191
      %v3194 = vmul.f32 0.5, %v3193
      %v3195 = vsub.f32 1.5, %v3194
      %v3196 = vmul.f32 %v3191, %v3195
      %vm3197 = vweird.f32 %v2659
      %vm3198 = vweird.f32 %v3191
      %vm3199 = vmor %vm3197, %vm3198
      %v3200 = vsel %vm3199, %v3191, %v3196
      %v3201 = vrsqrt.pop %v2660
      %v3202 = vmul.f32 %v3201, %v2660
      %v3203 = vmul.f32 %v3202, %v3201
      %v3204 = vmul.f32 0.5, %v3203
      %v3205 = vsub.f32 1.5, %v3204
      %v3206 = vmul.f32 %v3201, %v3205
      %vm3207 = vweird.f32 %v2660
      %vm3208 = vweird.f32 %v3201
      %vm3209 = vmor %vm3207, %vm3208
      %v3210 = vsel %vm3209, %v3201, %v3206
      %v3211 = vrsqrt.pop %v2661
      %v3212 = vmul.f32 %v3211, %v2661
      %v3213 = vmul.f32 %v3212, %v3211
      %v3214 = vmul.f32 0.5, %v3213
      %v3215 = vsub.f32 1.5, %v3214
      %v3216 = vmul.f32 %v3211, %v3215
      %vm3217 = vweird.f32 %v2661
      %vm3218 = vweird.f32 %v3211
      %vm3219 = vmor %vm3217, %vm3218
      %v3220 = vsel %vm3219, %v3211, %v3216
      %v3221 = vrsqrt.pop %v2662
      %v3222 = vmul.f32 %v3221, %v2662
      %v3223 = vmul.f32 %v3222, %v3221
      %v3224 = vmul.f32 0.5, %v3223
      %v3225 = vsub.f32 1.5, %v3224
      %v3226 = vmul.f32 %v3221, %v3225
      %vm3227 = vweird.f32 %v2662
      %vm3228 = vweird.f32 %v3221
      %vm3229 = vmor %vm3227, %vm3228
      %v3230 = vsel %vm3229, %v3221, %v3226
      %v3231 = vrsqrt.pop %v2663
      %v3232 = vmul.f32 %v3231, %v2663
      %v3233 = vmul.f32 %v3232, %v3231
      %v3234 = vmul.f32 0.5, %v3233
      %v3235 = vsub.f32 1.5, %v3234
      %v3236 = vmul.f32 %v3231, %v3235
      %vm3237 = vweird.f32 %v2663
      %vm3238 = vweird.f32 %v3231
      %vm3239 = vmor %vm3237, %vm3238
      %v3240 = vsel %vm3239, %v3231, %v3236
      %v3241 = vrsqrt.pop %v2664
      %v3242 = vmul.f32 %v3241, %v2664
      %v3243 = vmul.f32 %v3242, %v3241
      %v3244 = vmul.f32 0.5, %v3243
      %v3245 = vsub.f32 1.5, %v3244
      %v3246 = vmul.f32 %v3241, %v3245
      %vm3247 = vweird.f32 %v2664
      %vm3248 = vweird.f32 %v3241
      %vm3249 = vmor %vm3247, %vm3248
      %v3250 = vsel %vm3249, %v3241, %v3246
      %v3251 = vrsqrt.pop %v2665
      %v3252 = vmul.f32 %v3251, %v2665
      %v3253 = vmul.f32 %v3252, %v3251
      %v3254 = vmul.f32 0.5, %v3253
      %v3255 = vsub.f32 1.5, %v3254
      %v3256 = vmul.f32 %v3251, %v3255
      %vm3257 = vweird.f32 %v2665
      %vm3258 = vweird.f32 %v3251
      %vm3259 = vmor %vm3257, %vm3258
      %v3260 = vsel %vm3259, %v3251, %v3256
      %v3261 = vrsqrt.pop %v2666
      %v3262 = vmul.f32 %v3261, %v2666
      %v3263 = vmul.f32 %v3262, %v3261
      %v3264 = vmul.f32 0.5, %v3263
      %v3265 = vsub.f32 1.5, %v3264
      %v3266 = vmul.f32 %v3261, %v3265
      %vm3267 = vweird.f32 %v2666
      %vm3268 = vweird.f32 %v3261
      %vm3269 = vmor %vm3267, %vm3268
      %v3270 = vsel %vm3269, %v3261, %v3266
      %v3271 = vrsqrt.pop %v2667
      %v3272 = vmul.f32 %v3271, %v2667
      %v3273 = vmul.f32 %v3272, %v3271
      %v3274 = vmul.f32 0.5, %v3273
      %v3275 = vsub.f32 1.5, %v3274
      %v3276 = vmul.f32 %v3271, %v3275
      %vm3277 = vweird.f32 %v2667
      %vm3278 = vweird.f32 %v3271
      %vm3279 = vmor %vm3277, %vm3278
      %v3280 = vsel %vm3279, %v3271, %v3276
      %v3281 = vrsqrt.pop %v2668
      %v3282 = vmul.f32 %v3281, %v2668
      %v3283 = vmul.f32 %v3282, %v3281
      %v3284 = vmul.f32 0.5, %v3283
      %v3285 = vsub.f32 1.5, %v3284
      %v3286 = vmul.f32 %v3281, %v3285
      %vm3287 = vweird.f32 %v2668
      %vm3288 = vweird.f32 %v3281
      %vm3289 = vmor %vm3287, %vm3288
      %v3290 = vsel %vm3289, %v3281, %v3286
      %v3291 = vrsqrt.pop %v2669
      %v3292 = vmul.f32 %v3291, %v2669
      %v3293 = vmul.f32 %v3292, %v3291
      %v3294 = vmul.f32 0.5, %v3293
      %v3295 = vsub.f32 1.5, %v3294
      %v3296 = vmul.f32 %v3291, %v3295
      %vm3297 = vweird.f32 %v2669
      %vm3298 = vweird.f32 %v3291
      %vm3299 = vmor %vm3297, %vm3298
      %v3300 = vsel %vm3299, %v3291, %v3296
      %v3301 = vrsqrt.pop %v2670
      %v3302 = vmul.f32 %v3301, %v2670
      %v3303 = vmul.f32 %v3302, %v3301
      %v3304 = vmul.f32 0.5, %v3303
      %v3305 = vsub.f32 1.5, %v3304
      %v3306 = vmul.f32 %v3301, %v3305
      %vm3307 = vweird.f32 %v2670
      %vm3308 = vweird.f32 %v3301
      %vm3309 = vmor %vm3307, %vm3308
      %v3310 = vsel %vm3309, %v3301, %v3306
      %v3311 = vmul.f32 %v2097, %v2680
      %v3312 = vmul.f32 %v2100, %v2690
      %v3313 = vmul.f32 %v2103, %v2700
      %v3314 = vmul.f32 %v2106, %v2710
      %v3315 = vmul.f32 %v2109, %v2720
      %v3316 = vmul.f32 %v2112, %v2730
      %v3317 = vmul.f32 %v2115, %v2740
      %v3318 = vmul.f32 %v2118, %v2750
      %v3319 = vmul.f32 %v2121, %v2760
      %v3320 = vmul.f32 %v2124, %v2770
      %v3321 = vmul.f32 %v2127, %v2780
      %v3322 = vmul.f32 %v2130, %v2790
      %v3323 = vmul.f32 %v2133, %v2800
      %v3324 = vmul.f32 %v2136, %v2810
      %v3325 = vmul.f32 %v2139, %v2820
      %v3326 = vmul.f32 %v2142, %v2830
      %v3327 = vmul.f32 %v2145, %v2840
      %v3328 = vmul.f32 %v2148, %v2850
      %v3329 = vmul.f32 %v2151, %v2860
      %v3330 = vmul.f32 %v2154, %v2870
      %v3331 = vmul.f32 %v2157, %v2880
      %v3332 = vmul.f32 %v2160, %v2890
      %v3333 = vmul.f32 %v2163, %v2900
      %v3334 = vmul.f32 %v2166, %v2910
      %v3335 = vmul.f32 %v2169, %v2920
      %v3336 = vmul.f32 %v2172, %v2930
      %v3337 = vmul.f32 %v2175, %v2940
      %v3338 = vmul.f32 %v2178, %v2950
      %v3339 = vmul.f32 %v2181, %v2960
      %v3340 = vmul.f32 %v2184, %v2970
      %v3341 = vmul.f32 %v2187, %v2980
      %v3342 = vmul.f32 %v2190, %v2990
      %v3343 = vmul.f32 %v2193, %v3000
      %v3344 = vmul.f32 %v2196, %v3010
      %v3345 = vmul.f32 %v2199, %v3020
      %v3346 = vmul.f32 %v2202, %v3030
      %v3347 = vmul.f32 %v2205, %v3040
      %v3348 = vmul.f32 %v2208, %v3050
      %v3349 = vmul.f32 %v2211, %v3060
      %v3350 = vmul.f32 %v2214, %v3070
      %v3351 = vmul.f32 %v2217, %v3080
      %v3352 = vmul.f32 %v2220, %v3090
      %v3353 = vmul.f32 %v2223, %v3100
      %v3354 = vmul.f32 %v2226, %v3110
      %v3355 = vmul.f32 %v2229, %v3120
      %v3356 = vmul.f32 %v2232, %v3130
      %v3357 = vmul.f32 %v2235, %v3140
      %v3358 = vmul.f32 %v2238, %v3150
      %v3359 = vmul.f32 %v2241, %v3160
      %v3360 = vmul.f32 %v2244, %v3170
      %v3361 = vmul.f32 %v2247, %v3180
      %v3362 = vmul.f32 %v2250, %v3190
      %v3363 = vmul.f32 %v2253, %v3200
      %v3364 = vmul.f32 %v2256, %v3210
      %v3365 = vmul.f32 %v2259, %v3220
      %v3366 = vmul.f32 %v2262, %v3230
      %v3367 = vmul.f32 %v2265, %v3240
      %v3368 = vmul.f32 %v2268, %v3250
      %v3369 = vmul.f32 %v2271, %v3260
      %v3370 = vmul.f32 %v2274, %v3270
      %v3371 = vmul.f32 %v2277, %v3280
      %v3372 = vmul.f32 %v2280, %v3290
      %v3373 = vmul.f32 %v2283, %v3300
      %v3374 = vmul.f32 %v2286, %v3310
      %v3375 = vsub.f32 %v1967, %v3311
      %v3376 = vsub.f32 %v1968, %v3312
      %v3377 = vsub.f32 %v1969, %v3313
      %v3378 = vsub.f32 %v1970, %v3314
      %v3379 = vsub.f32 %v1971, %v3315
      %v3380 = vsub.f32 %v1972, %v3316
      %v3381 = vsub.f32 %v1973, %v3317
      %v3382 = vsub.f32 %v1974, %v3318
      %v3383 = vsub.f32 %v1975, %v3319
      %v3384 = vsub.f32 %v1976, %v3320
      %v3385 = vsub.f32 %v1977, %v3321
      %v3386 = vsub.f32 %v1978, %v3322
      %v3387 = vsub.f32 %v1979, %v3323
      %v3388 = vsub.f32 %v1980, %v3324
      %v3389 = vsub.f32 %v1981, %v3325
      %v3390 = vsub.f32 %v1982, %v3326
      %v3391 = vsub.f32 %v1983, %v3327
      %v3392 = vsub.f32 %v1984, %v3328
      %v3393 = vsub.f32 %v1985, %v3329
      %v3394 = vsub.f32 %v1986, %v3330
      %v3395 = vsub.f32 %v1987, %v3331
      %v3396 = vsub.f32 %v1988, %v3332
      %v3397 = vsub.f32 %v1989, %v3333
      %v3398 = vsub.f32 %v1990, %v3334
      %v3399 = vsub.f32 %v1991, %v3335
      %v3400 = vsub.f32 %v1992, %v3336
      %v3401 = vsub.f32 %v1993, %v3337
      %v3402 = vsub.f32 %v1994, %v3338
      %v3403 = vsub.f32 %v1995, %v3339
      %v3404 = vsub.f32 %v1996, %v3340
      %v3405 = vsub.f32 %v1997, %v3341
      %v3406 = vsub.f32 %v1998, %v3342
      %v3407 = vsub.f32 %v1999, %v3343
      %v3408 = vsub.f32 %v2000, %v3344
      %v3409 = vsub.f32 %v2001, %v3345
      %v3410 = vsub.f32 %v2002, %v3346
      %v3411 = vsub.f32 %v2003, %v3347
      %v3412 = vsub.f32 %v2004, %v3348
      %v3413 = vsub.f32 %v2005, %v3349
      %v3414 = vsub.f32 %v2006, %v3350
      %v3415 = vsub.f32 %v2007, %v3351
      %v3416 = vsub.f32 %v2008, %v3352
      %v3417 = vsub.f32 %v2009, %v3353
      %v3418 = vsub.f32 %v2010, %v3354
      %v3419 = vsub.f32 %v2011, %v3355
      %v3420 = vsub.f32 %v2012, %v3356
      %v3421 = vsub.f32 %v2013, %v3357
      %v3422 = vsub.f32 %v2014, %v3358
      %v3423 = vsub.f32 %v2015, %v3359
      %v3424 = vsub.f32 %v2016, %v3360
      %v3425 = vsub.f32 %v2017, %v3361
      %v3426 = vsub.f32 %v2018, %v3362
      %v3427 = vsub.f32 %v2019, %v3363
      %v3428 = vsub.f32 %v2020, %v3364
      %v3429 = vsub.f32 %v2021, %v3365
      %v3430 = vsub.f32 %v2022, %v3366
      %v3431 = vsub.f32 %v2023, %v3367
      %v3432 = vsub.f32 %v2024, %v3368
      %v3433 = vsub.f32 %v2025, %v3369
      %v3434 = vsub.f32 %v2026, %v3370
      %v3435 = vsub.f32 %v2027, %v3371
      %v3436 = vsub.f32 %v2028, %v3372
      %v3437 = vsub.f32 %v2029, %v3373
      %v3438 = vsub.f32 %v2030, %v3374
      %v3439 = vstv %s237
      %v3440 = vmul.f32 %v3375, %v3439
      %v3441 = vmul.f32 %v3376, %v3439
      %v3442 = vmul.f32 %v3377, %v3439
      %v3443 = vmul.f32 %v3378, %v3439
      %v3444 = vmul.f32 %v3379, %v3439
      %v3445 = vmul.f32 %v3380, %v3439
      %v3446 = vmul.f32 %v3381, %v3439
      %v3447 = vmul.f32 %v3382, %v3439
      %v3448 = vmul.f32 %v3383, %v3439
      %v3449 = vmul.f32 %v3384, %v3439
      %v3450 = vmul.f32 %v3385, %v3439
      %v3451 = vmul.f32 %v3386, %v3439
      %v3452 = vmul.f32 %v3387, %v3439
      %v3453 = vmul.f32 %v3388, %v3439
      %v3454 = vmul.f32 %v3389, %v3439
      %v3455 = vmul.f32 %v3390, %v3439
      %v3456 = vmul.f32 %v3391, %v3439
      %v3457 = vmul.f32 %v3392, %v3439
      %v3458 = vmul.f32 %v3393, %v3439
      %v3459 = vmul.f32 %v3394, %v3439
      %v3460 = vmul.f32 %v3395, %v3439
      %v3461 = vmul.f32 %v3396, %v3439
      %v3462 = vmul.f32 %v3397, %v3439
      %v3463 = vmul.f32 %v3398, %v3439
      %v3464 = vmul.f32 %v3399, %v3439
      %v3465 = vmul.f32 %v3400, %v3439
      %v3466 = vmul.f32 %v3401, %v3439
      %v3467 = vmul.f32 %v3402, %v3439
      %v3468 = vmul.f32 %v3403, %v3439
      %v3469 = vmul.f32 %v3404, %v3439
      %v3470 = vmul.f32 %v3405, %v3439
      %v3471 = vmul.f32 %v3406, %v3439
      %v3472 = vmul.f32 %v3407, %v3439
      %v3473 = vmul.f32 %v3408, %v3439
      %v3474 = vmul.f32 %v3409, %v3439
      %v3475 = vmul.f32 %v3410, %v3439
      %v3476 = vmul.f32 %v3411, %v3439
      %v3477 = vmul.f32 %v3412, %v3439
      %v3478 = vmul.f32 %v3413, %v3439
      %v3479 = vmul.f32 %v3414, %v3439
      %v3480 = vmul.f32 %v3415, %v3439
      %v3481 = vmul.f32 %v3416, %v3439
      %v3482 = vmul.f32 %v3417, %v3439
      %v3483 = vmul.f32 %v3418, %v3439
      %v3484 = vmul.f32 %v3419, %v3439
      %v3485 = vmul.f32 %v3420, %v3439
      %v3486 = vmul.f32 %v3421, %v3439
      %v3487 = vmul.f32 %v3422, %v3439
      %v3488 = vmul.f32 %v3423, %v3439
      %v3489 = vmul.f32 %v3424, %v3439
      %v3490 = vmul.f32 %v3425, %v3439
      %v3491 = vmul.f32 %v3426, %v3439
      %v3492 = vmul.f32 %v3427, %v3439
      %v3493 = vmul.f32 %v3428, %v3439
      %v3494 = vmul.f32 %v3429, %v3439
      %v3495 = vmul.f32 %v3430, %v3439
      %v3496 = vmul.f32 %v3431, %v3439
      %v3497 = vmul.f32 %v3432, %v3439
      %v3498 = vmul.f32 %v3433, %v3439
      %v3499 = vmul.f32 %v3434, %v3439
      %v3500 = vmul.f32 %v3435, %v3439
      %v3501 = vmul.f32 %v3436, %v3439
      %v3502 = vmul.f32 %v3437, %v3439
      %v3503 = vmul.f32 %v3438, %v3439
      %v3504 = vmax.f32 %v3440, 0.0
      %v3505 = vmax.f32 %v3441, 0.0
      %v3506 = vmax.f32 %v3442, 0.0
      %v3507 = vmax.f32 %v3443, 0.0
      %v3508 = vmax.f32 %v3444, 0.0
      %v3509 = vmax.f32 %v3445, 0.0
      %v3510 = vmax.f32 %v3446, 0.0
      %v3511 = vmax.f32 %v3447, 0.0
      %v3512 = vmax.f32 %v3448, 0.0
      %v3513 = vmax.f32 %v3449, 0.0
      %v3514 = vmax.f32 %v3450, 0.0
      %v3515 = vmax.f32 %v3451, 0.0
      %v3516 = vmax.f32 %v3452, 0.0
      %v3517 = vmax.f32 %v3453, 0.0
      %v3518 = vmax.f32 %v3454, 0.0
      %v3519 = vmax.f32 %v3455, 0.0
      %v3520 = vmax.f32 %v3456, 0.0
      %v3521 = vmax.f32 %v3457, 0.0
      %v3522 = vmax.f32 %v3458, 0.0
      %v3523 = vmax.f32 %v3459, 0.0
      %v3524 = vmax.f32 %v3460, 0.0
      %v3525 = vmax.f32 %v3461, 0.0
      %v3526 = vmax.f32 %v3462, 0.0
      %v3527 = vmax.f32 %v3463, 0.0
      %v3528 = vmax.f32 %v3464, 0.0
      %v3529 = vmax.f32 %v3465, 0.0
      %v3530 = vmax.f32 %v3466, 0.0
      %v3531 = vmax.f32 %v3467, 0.0
      %v3532 = vmax.f32 %v3468, 0.0
      %v3533 = vmax.f32 %v3469, 0.0
      %v3534 = vmax.f32 %v3470, 0.0
      %v3535 = vmax.f32 %v3471, 0.0
      %v3536 = vmax.f32 %v3472, 0.0
      %v3537 = vmax.f32 %v3473, 0.0
      %v3538 = vmax.f32 %v3474, 0.0
      %v3539 = vmax.f32 %v3475, 0.0
      %v3540 = vmax.f32 %v3476, 0.0
      %v3541 = vmax.f32 %v3477, 0.0
      %v3542 = vmax.f32 %v3478, 0.0
      %v3543 = vmax.f32 %v3479, 0.0
      %v3544 = vmax.f32 %v3480, 0.0
      %v3545 = vmax.f32 %v3481, 0.0
      %v3546 = vmax.f32 %v3482, 0.0
      %v3547 = vmax.f32 %v3483, 0.0
      %v3548 = vmax.f32 %v3484, 0.0
      %v3549 = vmax.f32 %v3485, 0.0
      %v3550 = vmax.f32 %v3486, 0.0
      %v3551 = vmax.f32 %v3487, 0.0
      %v3552 = vmax.f32 %v3488, 0.0
      %v3553 = vmax.f32 %v3489, 0.0
      %v3554 = vmax.f32 %v3490, 0.0
      %v3555 = vmax.f32 %v3491, 0.0
      %v3556 = vmax.f32 %v3492, 0.0
      %v3557 = vmax.f32 %v3493, 0.0
      %v3558 = vmax.f32 %v3494, 0.0
      %v3559 = vmax.f32 %v3495, 0.0
      %v3560 = vmax.f32 %v3496, 0.0
      %v3561 = vmax.f32 %v3497, 0.0
      %v3562 = vmax.f32 %v3498, 0.0
      %v3563 = vmax.f32 %v3499, 0.0
      %v3564 = vmax.f32 %v3500, 0.0
      %v3565 = vmax.f32 %v3501, 0.0
      %v3566 = vmax.f32 %v3502, 0.0
      %v3567 = vmax.f32 %v3503, 0.0
      %v3568 = vand.u32 2147483647, %v3440
      %v3569 = vand.u32 2147483647, %v3441
      %v3570 = vand.u32 2147483647, %v3442
      %v3571 = vand.u32 2147483647, %v3443
      %v3572 = vand.u32 2147483647, %v3444
      %v3573 = vand.u32 2147483647, %v3445
      %v3574 = vand.u32 2147483647, %v3446
      %v3575 = vand.u32 2147483647, %v3447
      %v3576 = vand.u32 2147483647, %v3448
      %v3577 = vand.u32 2147483647, %v3449
      %v3578 = vand.u32 2147483647, %v3450
      %v3579 = vand.u32 2147483647, %v3451
      %v3580 = vand.u32 2147483647, %v3452
      %v3581 = vand.u32 2147483647, %v3453
      %v3582 = vand.u32 2147483647, %v3454
      %v3583 = vand.u32 2147483647, %v3455
      %v3584 = vand.u32 2147483647, %v3456
      %v3585 = vand.u32 2147483647, %v3457
      %v3586 = vand.u32 2147483647, %v3458
      %v3587 = vand.u32 2147483647, %v3459
      %v3588 = vand.u32 2147483647, %v3460
      %v3589 = vand.u32 2147483647, %v3461
      %v3590 = vand.u32 2147483647, %v3462
      %v3591 = vand.u32 2147483647, %v3463
      %v3592 = vand.u32 2147483647, %v3464
      %v3593 = vand.u32 2147483647, %v3465
      %v3594 = vand.u32 2147483647, %v3466
      %v3595 = vand.u32 2147483647, %v3467
      %v3596 = vand.u32 2147483647, %v3468
      %v3597 = vand.u32 2147483647, %v3469
      %v3598 = vand.u32 2147483647, %v3470
      %v3599 = vand.u32 2147483647, %v3471
      %v3600 = vand.u32 2147483647, %v3472
      %v3601 = vand.u32 2147483647, %v3473
      %v3602 = vand.u32 2147483647, %v3474
      %v3603 = vand.u32 2147483647, %v3475
      %v3604 = vand.u32 2147483647, %v3476
      %v3605 = vand.u32 2147483647, %v3477
      %v3606 = vand.u32 2147483647, %v3478
      %v3607 = vand.u32 2147483647, %v3479
      %v3608 = vand.u32 2147483647, %v3480
      %v3609 = vand.u32 2147483647, %v3481
      %v3610 = vand.u32 2147483647, %v3482
      %v3611 = vand.u32 2147483647, %v3483
      %v3612 = vand.u32 2147483647, %v3484
      %v3613 = vand.u32 2147483647, %v3485
      %v3614 = vand.u32 2147483647, %v3486
      %v3615 = vand.u32 2147483647, %v3487
      %v3616 = vand.u32 2147483647, %v3488
      %v3617 = vand.u32 2147483647, %v3489
      %v3618 = vand.u32 2147483647, %v3490
      %v3619 = vand.u32 2147483647, %v3491
      %v3620 = vand.u32 2147483647, %v3492
      %v3621 = vand.u32 2147483647, %v3493
      %v3622 = vand.u32 2147483647, %v3494
      %v3623 = vand.u32 2147483647, %v3495
      %v3624 = vand.u32 2147483647, %v3496
      %v3625 = vand.u32 2147483647, %v3497
      %v3626 = vand.u32 2147483647, %v3498
      %v3627 = vand.u32 2147483647, %v3499
      %v3628 = vand.u32 2147483647, %v3500
      %v3629 = vand.u32 2147483647, %v3501
      %v3630 = vand.u32 2147483647, %v3502
      %v3631 = vand.u32 2147483647, %v3503
      %v3632 = vsub.f32 0.0, %v3568
      %v3633 = vsub.f32 0.0, %v3569
      %v3634 = vsub.f32 0.0, %v3570
      %v3635 = vsub.f32 0.0, %v3571
      %v3636 = vsub.f32 0.0, %v3572
      %v3637 = vsub.f32 0.0, %v3573
      %v3638 = vsub.f32 0.0, %v3574
      %v3639 = vsub.f32 0.0, %v3575
      %v3640 = vsub.f32 0.0, %v3576
      %v3641 = vsub.f32 0.0, %v3577
      %v3642 = vsub.f32 0.0, %v3578
      %v3643 = vsub.f32 0.0, %v3579
      %v3644 = vsub.f32 0.0, %v3580
      %v3645 = vsub.f32 0.0, %v3581
      %v3646 = vsub.f32 0.0, %v3582
      %v3647 = vsub.f32 0.0, %v3583
      %v3648 = vsub.f32 0.0, %v3584
      %v3649 = vsub.f32 0.0, %v3585
      %v3650 = vsub.f32 0.0, %v3586
      %v3651 = vsub.f32 0.0, %v3587
      %v3652 = vsub.f32 0.0, %v3588
      %v3653 = vsub.f32 0.0, %v3589
      %v3654 = vsub.f32 0.0, %v3590
      %v3655 = vsub.f32 0.0, %v3591
      %v3656 = vsub.f32 0.0, %v3592
      %v3657 = vsub.f32 0.0, %v3593
      %v3658 = vsub.f32 0.0, %v3594
      %v3659 = vsub.f32 0.0, %v3595
      %v3660 = vsub.f32 0.0, %v3596
      %v3661 = vsub.f32 0.0, %v3597
      %v3662 = vsub.f32 0.0, %v3598
      %v3663 = vsub.f32 0.0, %v3599
      %v3664 = vsub.f32 0.0, %v3600
      %v3665 = vsub.f32 0.0, %v3601
      %v3666 = vsub.f32 0.0, %v3602
      %v3667 = vsub.f32 0.0, %v3603
      %v3668 = vsub.f32 0.0, %v3604
      %v3669 = vsub.f32 0.0, %v3605
      %v3670 = vsub.f32 0.0, %v3606
      %v3671 = vsub.f32 0.0, %v3607
      %v3672 = vsub.f32 0.0, %v3608
      %v3673 = vsub.f32 0.0, %v3609
      %v3674 = vsub.f32 0.0, %v3610
      %v3675 = vsub.f32 0.0, %v3611
      %v3676 = vsub.f32 0.0, %v3612
      %v3677 = vsub.f32 0.0, %v3613
      %v3678 = vsub.f32 0.0, %v3614
      %v3679 = vsub.f32 0.0, %v3615
      %v3680 = vsub.f32 0.0, %v3616
      %v3681 = vsub.f32 0.0, %v3617
      %v3682 = vsub.f32 0.0, %v3618
      %v3683 = vsub.f32 0.0, %v3619
      %v3684 = vsub.f32 0.0, %v3620
      %v3685 = vsub.f32 0.0, %v3621
      %v3686 = vsub.f32 0.0, %v3622
      %v3687 = vsub.f32 0.0, %v3623
      %v3688 = vsub.f32 0.0, %v3624
      %v3689 = vsub.f32 0.0, %v3625
      %v3690 = vsub.f32 0.0, %v3626
      %v3691 = vsub.f32 0.0, %v3627
      %v3692 = vsub.f32 0.0, %v3628
      %v3693 = vsub.f32 0.0, %v3629
      %v3694 = vsub.f32 0.0, %v3630
      %v3695 = vsub.f32 0.0, %v3631
      %v3696 = vmul.f32 %v3632, 1.442695
      %v3697 = vpow.pop %v3696
      %v3698 = vmul.f32 %v3633, 1.442695
      %v3699 = vpow.pop %v3698
      %v3700 = vmul.f32 %v3634, 1.442695
      %v3701 = vpow.pop %v3700
      %v3702 = vmul.f32 %v3635, 1.442695
      %v3703 = vpow.pop %v3702
      %v3704 = vmul.f32 %v3636, 1.442695
      %v3705 = vpow.pop %v3704
      %v3706 = vmul.f32 %v3637, 1.442695
      %v3707 = vpow.pop %v3706
      %v3708 = vmul.f32 %v3638, 1.442695
      %v3709 = vpow.pop %v3708
      %v3710 = vmul.f32 %v3639, 1.442695
      %v3711 = vpow.pop %v3710
      %v3712 = vmul.f32 %v3640, 1.442695
      %v3713 = vpow.pop %v3712
      %v3714 = vmul.f32 %v3641, 1.442695
      %v3715 = vpow.pop %v3714
      %v3716 = vmul.f32 %v3642, 1.442695
      %v3717 = vpow.pop %v3716
      %v3718 = vmul.f32 %v3643, 1.442695
      %v3719 = vpow.pop %v3718
      %v3720 = vmul.f32 %v3644, 1.442695
      %v3721 = vpow.pop %v3720
      %v3722 = vmul.f32 %v3645, 1.442695
      %v3723 = vpow.pop %v3722
      %v3724 = vmul.f32 %v3646, 1.442695
      %v3725 = vpow.pop %v3724
      %v3726 = vmul.f32 %v3647, 1.442695
      %v3727 = vpow.pop %v3726
      %v3728 = vmul.f32 %v3648, 1.442695
      %v3729 = vpow.pop %v3728
      %v3730 = vmul.f32 %v3649, 1.442695
      %v3731 = vpow.pop %v3730
      %v3732 = vmul.f32 %v3650, 1.442695
      %v3733 = vpow.pop %v3732
      %v3734 = vmul.f32 %v3651, 1.442695
      %v3735 = vpow.pop %v3734
      %v3736 = vmul.f32 %v3652, 1.442695
      %v3737 = vpow.pop %v3736
      %v3738 = vmul.f32 %v3653, 1.442695
      %v3739 = vpow.pop %v3738
      %v3740 = vmul.f32 %v3654, 1.442695
      %v3741 = vpow.pop %v3740
      %v3742 = vmul.f32 %v3655, 1.442695
      %v3743 = vpow.pop %v3742
      %v3744 = vmul.f32 %v3656, 1.442695
      %v3745 = vpow.pop %v3744
      %v3746 = vmul.f32 %v3657, 1.442695
      %v3747 = vpow.pop %v3746
      %v3748 = vmul.f32 %v3658, 1.442695
      %v3749 = vpow.pop %v3748
      %v3750 = vmul.f32 %v3659, 1.442695
      %v3751 = vpow.pop %v3750
      %v3752 = vmul.f32 %v3660, 1.442695
      %v3753 = vpow.pop %v3752
      %v3754 = vmul.f32 %v3661, 1.442695
      %v3755 = vpow.pop %v3754
      %v3756 = vmul.f32 %v3662, 1.442695
      %v3757 = vpow.pop %v3756
      %v3758 = vmul.f32 %v3663, 1.442695
      %v3759 = vpow.pop %v3758
      %v3760 = vmul.f32 %v3664, 1.442695
      %v3761 = vpow.pop %v3760
      %v3762 = vmul.f32 %v3665, 1.442695
      %v3763 = vpow.pop %v3762
      %v3764 = vmul.f32 %v3666, 1.442695
      %v3765 = vpow.pop %v3764
      %v3766 = vmul.f32 %v3667, 1.442695
      %v3767 = vpow.pop %v3766
      %v3768 = vmul.f32 %v3668, 1.442695
      %v3769 = vpow.pop %v3768
      %v3770 = vmul.f32 %v3669, 1.442695
      %v3771 = vpow.pop %v3770
      %v3772 = vmul.f32 %v3670, 1.442695
      %v3773 = vpow.pop %v3772
      %v3774 = vmul.f32 %v3671, 1.442695
      %v3775 = vpow.pop %v3774
      %v3776 = vmul.f32 %v3672, 1.442695
      %v3777 = vpow.pop %v3776
      %v3778 = vmul.f32 %v3673, 1.442695
      %v3779 = vpow.pop %v3778
      %v3780 = vmul.f32 %v3674, 1.442695
      %v3781 = vpow.pop %v3780
      %v3782 = vmul.f32 %v3675, 1.442695
      %v3783 = vpow.pop %v3782
      %v3784 = vmul.f32 %v3676, 1.442695
      %v3785 = vpow.pop %v3784
      %v3786 = vmul.f32 %v3677, 1.442695
      %v3787 = vpow.pop %v3786
      %v3788 = vmul.f32 %v3678, 1.442695
      %v3789 = vpow.pop %v3788
      %v3790 = vmul.f32 %v3679, 1.442695
      %v3791 = vpow.pop %v3790
      %v3792 = vmul.f32 %v3680, 1.442695
      %v3793 = vpow.pop %v3792
      %v3794 = vmul.f32 %v3681, 1.442695
      %v3795 = vpow.pop %v3794
      %v3796 = vmul.f32 %v3682, 1.442695
      %v3797 = vpow.pop %v3796
      %v3798 = vmul.f32 %v3683, 1.442695
      %v3799 = vpow.pop %v3798
      %v3800 = vmul.f32 %v3684, 1.442695
      %v3801 = vpow.pop %v3800
      %v3802 = vmul.f32 %v3685, 1.442695
      %v3803 = vpow.pop %v3802
      %v3804 = vmul.f32 %v3686, 1.442695
      %v3805 = vpow.pop %v3804
      %v3806 = vmul.f32 %v3687, 1.442695
      %v3807 = vpow.pop %v3806
      %v3808 = vmul.f32 %v3688, 1.442695
      %v3809 = vpow.pop %v3808
      %v3810 = vmul.f32 %v3689, 1.442695
      %v3811 = vpow.pop %v3810
      %v3812 = vmul.f32 %v3690, 1.442695
      %v3813 = vpow.pop %v3812
      %v3814 = vmul.f32 %v3691, 1.442695
      %v3815 = vpow.pop %v3814
      %v3816 = vmul.f32 %v3692, 1.442695
      %v3817 = vpow.pop %v3816
      %v3818 = vmul.f32 %v3693, 1.442695
      %v3819 = vpow.pop %v3818
      %v3820 = vmul.f32 %v3694, 1.442695
      %v3821 = vpow.pop %v3820
      %v3822 = vmul.f32 %v3695, 1.442695
      %v3823 = vpow.pop %v3822
      %v3824 = vadd.f32 %v3697, 1.0
      %v3825 = vadd.f32 %v3699, 1.0
      %v3826 = vadd.f32 %v3701, 1.0
      %v3827 = vadd.f32 %v3703, 1.0
      %v3828 = vadd.f32 %v3705, 1.0
      %v3829 = vadd.f32 %v3707, 1.0
      %v3830 = vadd.f32 %v3709, 1.0
      %v3831 = vadd.f32 %v3711, 1.0
      %v3832 = vadd.f32 %v3713, 1.0
      %v3833 = vadd.f32 %v3715, 1.0
      %v3834 = vadd.f32 %v3717, 1.0
      %v3835 = vadd.f32 %v3719, 1.0
      %v3836 = vadd.f32 %v3721, 1.0
      %v3837 = vadd.f32 %v3723, 1.0
      %v3838 = vadd.f32 %v3725, 1.0
      %v3839 = vadd.f32 %v3727, 1.0
      %v3840 = vadd.f32 %v3729, 1.0
      %v3841 = vadd.f32 %v3731, 1.0
      %v3842 = vadd.f32 %v3733, 1.0
      %v3843 = vadd.f32 %v3735, 1.0
      %v3844 = vadd.f32 %v3737, 1.0
      %v3845 = vadd.f32 %v3739, 1.0
      %v3846 = vadd.f32 %v3741, 1.0
      %v3847 = vadd.f32 %v3743, 1.0
      %v3848 = vadd.f32 %v3745, 1.0
      %v3849 = vadd.f32 %v3747, 1.0
      %v3850 = vadd.f32 %v3749, 1.0
      %v3851 = vadd.f32 %v3751, 1.0
      %v3852 = vadd.f32 %v3753, 1.0
      %v3853 = vadd.f32 %v3755, 1.0
      %v3854 = vadd.f32 %v3757, 1.0
      %v3855 = vadd.f32 %v3759, 1.0
      %v3856 = vadd.f32 %v3761, 1.0
      %v3857 = vadd.f32 %v3763, 1.0
      %v3858 = vadd.f32 %v3765, 1.0
      %v3859 = vadd.f32 %v3767, 1.0
      %v3860 = vadd.f32 %v3769, 1.0
      %v3861 = vadd.f32 %v3771, 1.0
      %v3862 = vadd.f32 %v3773, 1.0
      %v3863 = vadd.f32 %v3775, 1.0
      %v3864 = vadd.f32 %v3777, 1.0
      %v3865 = vadd.f32 %v3779, 1.0
      %v3866 = vadd.f32 %v3781, 1.0
      %v3867 = vadd.f32 %v3783, 1.0
      %v3868 = vadd.f32 %v3785, 1.0
      %v3869 = vadd.f32 %v3787, 1.0
      %v3870 = vadd.f32 %v3789, 1.0
      %v3871 = vadd.f32 %v3791, 1.0
      %v3872 = vadd.f32 %v3793, 1.0
      %v3873 = vadd.f32 %v3795, 1.0
      %v3874 = vadd.f32 %v3797, 1.0
      %v3875 = vadd.f32 %v3799, 1.0
      %v3876 = vadd.f32 %v3801, 1.0
      %v3877 = vadd.f32 %v3803, 1.0
      %v3878 = vadd.f32 %v3805, 1.0
      %v3879 = vadd.f32 %v3807, 1.0
      %v3880 = vadd.f32 %v3809, 1.0
      %v3881 = vadd.f32 %v3811, 1.0
      %v3882 = vadd.f32 %v3813, 1.0
      %v3883 = vadd.f32 %v3815, 1.0
      %v3884 = vadd.f32 %v3817, 1.0
      %v3885 = vadd.f32 %v3819, 1.0
      %v3886 = vadd.f32 %v3821, 1.0
      %v3887 = vadd.f32 %v3823, 1.0
      %v3888 = vlog2.pop %v3824
      %v3889 = vmul.f32 %v3888, 0.6931472
      %v3890 = vlog2.pop %v3825
      %v3891 = vmul.f32 %v3890, 0.6931472
      %v3892 = vlog2.pop %v3826
      %v3893 = vmul.f32 %v3892, 0.6931472
      %v3894 = vlog2.pop %v3827
      %v3895 = vmul.f32 %v3894, 0.6931472
      %v3896 = vlog2.pop %v3828
      %v3897 = vmul.f32 %v3896, 0.6931472
      %v3898 = vlog2.pop %v3829
      %v3899 = vmul.f32 %v3898, 0.6931472
      %v3900 = vlog2.pop %v3830
      %v3901 = vmul.f32 %v3900, 0.6931472
      %v3902 = vlog2.pop %v3831
      %v3903 = vmul.f32 %v3902, 0.6931472
      %v3904 = vlog2.pop %v3832
      %v3905 = vmul.f32 %v3904, 0.6931472
      %v3906 = vlog2.pop %v3833
      %v3907 = vmul.f32 %v3906, 0.6931472
      %v3908 = vlog2.pop %v3834
      %v3909 = vmul.f32 %v3908, 0.6931472
      %v3910 = vlog2.pop %v3835
      %v3911 = vmul.f32 %v3910, 0.6931472
      %v3912 = vlog2.pop %v3836
      %v3913 = vmul.f32 %v3912, 0.6931472
      %v3914 = vlog2.pop %v3837
      %v3915 = vmul.f32 %v3914, 0.6931472
      %v3916 = vlog2.pop %v3838
      %v3917 = vmul.f32 %v3916, 0.6931472
      %v3918 = vlog2.pop %v3839
      %v3919 = vmul.f32 %v3918, 0.6931472
      %v3920 = vlog2.pop %v3840
      %v3921 = vmul.f32 %v3920, 0.6931472
      %v3922 = vlog2.pop %v3841
      %v3923 = vmul.f32 %v3922, 0.6931472
      %v3924 = vlog2.pop %v3842
      %v3925 = vmul.f32 %v3924, 0.6931472
      %v3926 = vlog2.pop %v3843
      %v3927 = vmul.f32 %v3926, 0.6931472
      %v3928 = vlog2.pop %v3844
      %v3929 = vmul.f32 %v3928, 0.6931472
      %v3930 = vlog2.pop %v3845
      %v3931 = vmul.f32 %v3930, 0.6931472
      %v3932 = vlog2.pop %v3846
      %v3933 = vmul.f32 %v3932, 0.6931472
      %v3934 = vlog2.pop %v3847
      %v3935 = vmul.f32 %v3934, 0.6931472
      %v3936 = vlog2.pop %v3848
      %v3937 = vmul.f32 %v3936, 0.6931472
      %v3938 = vlog2.pop %v3849
      %v3939 = vmul.f32 %v3938, 0.6931472
      %v3940 = vlog2.pop %v3850
      %v3941 = vmul.f32 %v3940, 0.6931472
      %v3942 = vlog2.pop %v3851
      %v3943 = vmul.f32 %v3942, 0.6931472
      %v3944 = vlog2.pop %v3852
      %v3945 = vmul.f32 %v3944, 0.6931472
      %v3946 = vlog2.pop %v3853
      %v3947 = vmul.f32 %v3946, 0.6931472
      %v3948 = vlog2.pop %v3854
      %v3949 = vmul.f32 %v3948, 0.6931472
      %v3950 = vlog2.pop %v3855
      %v3951 = vmul.f32 %v3950, 0.6931472
      %v3952 = vlog2.pop %v3856
      %v3953 = vmul.f32 %v3952, 0.6931472
      %v3954 = vlog2.pop %v3857
      %v3955 = vmul.f32 %v3954, 0.6931472
      %v3956 = vlog2.pop %v3858
      %v3957 = vmul.f32 %v3956, 0.6931472
      %v3958 = vlog2.pop %v3859
      %v3959 = vmul.f32 %v3958, 0.6931472
      %v3960 = vlog2.pop %v3860
      %v3961 = vmul.f32 %v3960, 0.6931472
      %v3962 = vlog2.pop %v3861
      %v3963 = vmul.f32 %v3962, 0.6931472
      %v3964 = vlog2.pop %v3862
      %v3965 = vmul.f32 %v3964, 0.6931472
      %v3966 = vlog2.pop %v3863
      %v3967 = vmul.f32 %v3966, 0.6931472
      %v3968 = vlog2.pop %v3864
      %v3969 = vmul.f32 %v3968, 0.6931472
      %v3970 = vlog2.pop %v3865
      %v3971 = vmul.f32 %v3970, 0.6931472
      %v3972 = vlog2.pop %v3866
      %v3973 = vmul.f32 %v3972, 0.6931472
      %v3974 = vlog2.pop %v3867
      %v3975 = vmul.f32 %v3974, 0.6931472
      %v3976 = vlog2.pop %v3868
      %v3977 = vmul.f32 %v3976, 0.6931472
      %v3978 = vlog2.pop %v3869
      %v3979 = vmul.f32 %v3978, 0.6931472
      %v3980 = vlog2.pop %v3870
      %v3981 = vmul.f32 %v3980, 0.6931472
      %v3982 = vlog2.pop %v3871
      %v3983 = vmul.f32 %v3982, 0.6931472
      %v3984 = vlog2.pop %v3872
      %v3985 = vmul.f32 %v3984, 0.6931472
      %v3986 = vlog2.pop %v3873
      %v3987 = vmul.f32 %v3986, 0.6931472
      %v3988 = vlog2.pop %v3874
      %v3989 = vmul.f32 %v3988, 0.6931472
      %v3990 = vlog2.pop %v3875
      %v3991 = vmul.f32 %v3990, 0.6931472
      %v3992 = vlog2.pop %v3876
      %v3993 = vmul.f32 %v3992, 0.6931472
      %v3994 = vlog2.pop %v3877
      %v3995 = vmul.f32 %v3994, 0.6931472
      %v3996 = vlog2.pop %v3878
      %v3997 = vmul.f32 %v3996, 0.6931472
      %v3998 = vlog2.pop %v3879
      %v3999 = vmul.f32 %v3998, 0.6931472
      %v4000 = vlog2.pop %v3880
      %v4001 = vmul.f32 %v4000, 0.6931472
      %v4002 = vlog2.pop %v3881
      %v4003 = vmul.f32 %v4002, 0.6931472
      %v4004 = vlog2.pop %v3882
      %v4005 = vmul.f32 %v4004, 0.6931472
      %v4006 = vlog2.pop %v3883
      %v4007 = vmul.f32 %v4006, 0.6931472
      %v4008 = vlog2.pop %v3884
      %v4009 = vmul.f32 %v4008, 0.6931472
      %v4010 = vlog2.pop %v3885
      %v4011 = vmul.f32 %v4010, 0.6931472
      %v4012 = vlog2.pop %v3886
      %v4013 = vmul.f32 %v4012, 0.6931472
      %v4014 = vlog2.pop %v3887
      %v4015 = vmul.f32 %v4014, 0.6931472
      %v4016 = vadd.f32 %v3504, %v3889
      %v4017 = vadd.f32 %v3505, %v3891
      %v4018 = vadd.f32 %v3506, %v3893
      %v4019 = vadd.f32 %v3507, %v3895
      %v4020 = vadd.f32 %v3508, %v3897
      %v4021 = vadd.f32 %v3509, %v3899
      %v4022 = vadd.f32 %v3510, %v3901
      %v4023 = vadd.f32 %v3511, %v3903
      %v4024 = vadd.f32 %v3512, %v3905
      %v4025 = vadd.f32 %v3513, %v3907
      %v4026 = vadd.f32 %v3514, %v3909
      %v4027 = vadd.f32 %v3515, %v3911
      %v4028 = vadd.f32 %v3516, %v3913
      %v4029 = vadd.f32 %v3517, %v3915
      %v4030 = vadd.f32 %v3518, %v3917
      %v4031 = vadd.f32 %v3519, %v3919
      %v4032 = vadd.f32 %v3520, %v3921
      %v4033 = vadd.f32 %v3521, %v3923
      %v4034 = vadd.f32 %v3522, %v3925
      %v4035 = vadd.f32 %v3523, %v3927
      %v4036 = vadd.f32 %v3524, %v3929
      %v4037 = vadd.f32 %v3525, %v3931
      %v4038 = vadd.f32 %v3526, %v3933
      %v4039 = vadd.f32 %v3527, %v3935
      %v4040 = vadd.f32 %v3528, %v3937
      %v4041 = vadd.f32 %v3529, %v3939
      %v4042 = vadd.f32 %v3530, %v3941
      %v4043 = vadd.f32 %v3531, %v3943
      %v4044 = vadd.f32 %v3532, %v3945
      %v4045 = vadd.f32 %v3533, %v3947
      %v4046 = vadd.f32 %v3534, %v3949
      %v4047 = vadd.f32 %v3535, %v3951
      %v4048 = vadd.f32 %v3536, %v3953
      %v4049 = vadd.f32 %v3537, %v3955
      %v4050 = vadd.f32 %v3538, %v3957
      %v4051 = vadd.f32 %v3539, %v3959
      %v4052 = vadd.f32 %v3540, %v3961
      %v4053 = vadd.f32 %v3541, %v3963
      %v4054 = vadd.f32 %v3542, %v3965
      %v4055 = vadd.f32 %v3543, %v3967
      %v4056 = vadd.f32 %v3544, %v3969
      %v4057 = vadd.f32 %v3545, %v3971
      %v4058 = vadd.f32 %v3546, %v3973
      %v4059 = vadd.f32 %v3547, %v3975
      %v4060 = vadd.f32 %v3548, %v3977
      %v4061 = vadd.f32 %v3549, %v3979
      %v4062 = vadd.f32 %v3550, %v3981
      %v4063 = vadd.f32 %v3551, %v3983
      %v4064 = vadd.f32 %v3552, %v3985
      %v4065 = vadd.f32 %v3553, %v3987
      %v4066 = vadd.f32 %v3554, %v3989
      %v4067 = vadd.f32 %v3555, %v3991
      %v4068 = vadd.f32 %v3556, %v3993
      %v4069 = vadd.f32 %v3557, %v3995
      %v4070 = vadd.f32 %v3558, %v3997
      %v4071 = vadd.f32 %v3559, %v3999
      %v4072 = vadd.f32 %v3560, %v4001
      %v4073 = vadd.f32 %v3561, %v4003
      %v4074 = vadd.f32 %v3562, %v4005
      %v4075 = vadd.f32 %v3563, %v4007
      %v4076 = vadd.f32 %v3564, %v4009
      %v4077 = vadd.f32 %v3565, %v4011
      %v4078 = vadd.f32 %v3566, %v4013
      %v4079 = vadd.f32 %v3567, %v4015
      %vm4080 = vcmask 7168
      %v4081 = vsel %vm4080, %v4016, 0.0
      %v4082 = vsel %vm4080, %v4017, 0.0
      %v4083 = vadd.f32 %v4081, %v4082
      %v4084 = vsel %vm4080, %v4018, 0.0
      %v4085 = vadd.f32 %v4083, %v4084
      %v4086 = vsel %vm4080, %v4019, 0.0
      %v4087 = vadd.f32 %v4085, %v4086
      %v4088 = vsel %vm4080, %v4020, 0.0
      %v4089 = vadd.f32 %v4087, %v4088
      %v4090 = vsel %vm4080, %v4021, 0.0
      %v4091 = vadd.f32 %v4089, %v4090
      %v4092 = vsel %vm4080, %v4022, 0.0
      %v4093 = vadd.f32 %v4091, %v4092
      %v4094 = vsel %vm4080, %v4023, 0.0
      %v4095 = vadd.f32 %v4093, %v4094
      %v4096 = vsel %vm4080, %v4024, 0.0
      %v4097 = vadd.f32 %v4095, %v4096
      %v4098 = vsel %vm4080, %v4025, 0.0
      %v4099 = vadd.f32 %v4097, %v4098
      %v4100 = vsel %vm4080, %v4026, 0.0
      %v4101 = vadd.f32 %v4099, %v4100
      %v4102 = vsel %vm4080, %v4027, 0.0
      %v4103 = vadd.f32 %v4101, %v4102
      %v4104 = vsel %vm4080, %v4028, 0.0
      %v4105 = vadd.f32 %v4103, %v4104
      %v4106 = vsel %vm4080, %v4029, 0.0
      %v4107 = vadd.f32 %v4105, %v4106
      %v4108 = vsel %vm4080, %v4030, 0.0
      %v4109 = vadd.f32 %v4107, %v4108
      %v4110 = vsel %vm4080, %v4031, 0.0
      %v4111 = vadd.f32 %v4109, %v4110
      %v4112 = vsel %vm4080, %v4032, 0.0
      %v4113 = vadd.f32 %v4111, %v4112
      %v4114 = vsel %vm4080, %v4033, 0.0
      %v4115 = vadd.f32 %v4113, %v4114
      %v4116 = vsel %vm4080, %v4034, 0.0
      %v4117 = vadd.f32 %v4115, %v4116
      %v4118 = vsel %vm4080, %v4035, 0.0
      %v4119 = vadd.f32 %v4117, %v4118
      %v4120 = vsel %vm4080, %v4036, 0.0
      %v4121 = vadd.f32 %v4119, %v4120
      %v4122 = vsel %vm4080, %v4037, 0.0
      %v4123 = vadd.f32 %v4121, %v4122
      %v4124 = vsel %vm4080, %v4038, 0.0
      %v4125 = vadd.f32 %v4123, %v4124
      %v4126 = vsel %vm4080, %v4039, 0.0
      %v4127 = vadd.f32 %v4125, %v4126
      %v4128 = vsel %vm4080, %v4040, 0.0
      %v4129 = vadd.f32 %v4127, %v4128
      %v4130 = vsel %vm4080, %v4041, 0.0
      %v4131 = vadd.f32 %v4129, %v4130
      %v4132 = vsel %vm4080, %v4042, 0.0
      %v4133 = vadd.f32 %v4131, %v4132
      %v4134 = vsel %vm4080, %v4043, 0.0
      %v4135 = vadd.f32 %v4133, %v4134
      %v4136 = vsel %vm4080, %v4044, 0.0
      %v4137 = vadd.f32 %v4135, %v4136
      %v4138 = vsel %vm4080, %v4045, 0.0
      %v4139 = vadd.f32 %v4137, %v4138
      %v4140 = vsel %vm4080, %v4046, 0.0
      %v4141 = vadd.f32 %v4139, %v4140
      %v4142 = vsel %vm4080, %v4047, 0.0
      %v4143 = vadd.f32 %v4141, %v4142
      %v4144 = vsel %vm4080, %v4048, 0.0
      %v4145 = vadd.f32 %v4143, %v4144
      %v4146 = vsel %vm4080, %v4049, 0.0
      %v4147 = vadd.f32 %v4145, %v4146
      %v4148 = vsel %vm4080, %v4050, 0.0
      %v4149 = vadd.f32 %v4147, %v4148
      %v4150 = vsel %vm4080, %v4051, 0.0
      %v4151 = vadd.f32 %v4149, %v4150
      %v4152 = vsel %vm4080, %v4052, 0.0
      %v4153 = vadd.f32 %v4151, %v4152
      %v4154 = vsel %vm4080, %v4053, 0.0
      %v4155 = vadd.f32 %v4153, %v4154
      %v4156 = vsel %vm4080, %v4054, 0.0
      %v4157 = vadd.f32 %v4155, %v4156
      %v4158 = vsel %vm4080, %v4055, 0.0
      %v4159 = vadd.f32 %v4157, %v4158
      %v4160 = vsel %vm4080, %v4056, 0.0
      %v4161 = vadd.f32 %v4159, %v4160
      %v4162 = vsel %vm4080, %v4057, 0.0
      %v4163 = vadd.f32 %v4161, %v4162
      %v4164 = vsel %vm4080, %v4058, 0.0
      %v4165 = vadd.f32 %v4163, %v4164
      %v4166 = vsel %vm4080, %v4059, 0.0
      %v4167 = vadd.f32 %v4165, %v4166
      %v4168 = vsel %vm4080, %v4060, 0.0
      %v4169 = vadd.f32 %v4167, %v4168
      %v4170 = vsel %vm4080, %v4061, 0.0
      %v4171 = vadd.f32 %v4169, %v4170
      %v4172 = vsel %vm4080, %v4062, 0.0
      %v4173 = vadd.f32 %v4171, %v4172
      %v4174 = vsel %vm4080, %v4063, 0.0
      %v4175 = vadd.f32 %v4173, %v4174
      %v4176 = vsel %vm4080, %v4064, 0.0
      %v4177 = vadd.f32 %v4175, %v4176
      %v4178 = vsel %vm4080, %v4065, 0.0
      %v4179 = vadd.f32 %v4177, %v4178
      %v4180 = vsel %vm4080, %v4066, 0.0
      %v4181 = vadd.f32 %v4179, %v4180
      %v4182 = vsel %vm4080, %v4067, 0.0
      %v4183 = vadd.f32 %v4181, %v4182
      %v4184 = vsel %vm4080, %v4068, 0.0
      %v4185 = vadd.f32 %v4183, %v4184
      %v4186 = vsel %vm4080, %v4069, 0.0
      %v4187 = vadd.f32 %v4185, %v4186
      %v4188 = vsel %vm4080, %v4070, 0.0
      %v4189 = vadd.f32 %v4187, %v4188
      %v4190 = vsel %vm4080, %v4071, 0.0
      %v4191 = vadd.f32 %v4189, %v4190
      %v4192 = vsel %vm4080, %v4072, 0.0
      %v4193 = vadd.f32 %v4191, %v4192
      %v4194 = vsel %vm4080, %v4073, 0.0
      %v4195 = vadd.f32 %v4193, %v4194
      %v4196 = vsel %vm4080, %v4074, 0.0
      %v4197 = vadd.f32 %v4195, %v4196
      %v4198 = vsel %vm4080, %v4075, 0.0
      %v4199 = vadd.f32 %v4197, %v4198
      %v4200 = vsel %vm4080, %v4076, 0.0
      %v4201 = vadd.f32 %v4199, %v4200
      %v4202 = vsel %vm4080, %v4077, 0.0
      %v4203 = vadd.f32 %v4201, %v4202
      %v4204 = vsel %vm4080, %v4078, 0.0
      %v4205 = vadd.f32 %v4203, %v4204
      %v4206 = vsel %vm4080, %v4079, 0.0
      %v4207 = vadd.f32 %v4205, %v4206
      %4208 = vadd.xlane.f32.xlu0 %v4207
      %v4209 = vpop.xlane.xlu0 %4208
      %v4210 = vrot.slane %v4209, 4
      %v4211 = vadd.f32 %v4209, %v4210
      %v4212 = vrot.slane %v4211, 2
      %v4213 = vadd.f32 %v4211, %v4212
      %v4214 = vrot.slane %v4213, 1
      %v4215 = vadd.f32 %v4213, %v4214
      %s4216 = vtos %v4215
      %v4217 = vstv %s4216
      %4218 = vst [vmem:[%s236] sm:$0xff] %v4217
      %p4219 = scmp.lt.s32.totalorder %s16, 7
      %s4220 = scalar_select %p4219, %s16, 7
      %s4221 = smul.addr %s4220, 8
      %s4222 = scalar_lea.vmem %s4, %s4221
      // Predicated region
      $region37: #{modeler_forward.9} parent=35 // pred_check
        %p4223 = pneg %p133
      $region38: #{modeler_forward.9} parent=35 // pred_check_branch
        %4225 = sbr.rel (%p4223) target = $region40
      $region39: #{modeler_forward.9} parent=35 // pred_region
        _
      $region40: #{modeler_forward.9} parent=35 // pred_fallthru
        _
    $region36: #{modeler_forward.9} parent=5 // pred_fallthru
      _
    %p4226 = scmp.le.s32.totalorder 2, %s11
    // Predicated region
    $region41: #{modeler_forward.9} parent=5 // pred_check
      %p4227 = pneg %p4226
    $region42: #{modeler_forward.9} parent=5 // pred_check_branch
      %4229 = sbr.rel (%p4227) target = $region44
    $region43: #{modeler_forward.9} parent=5 // pred_region
      %s4230 = ssub.s32 %s11, 2
      // Predicated region
      $region45: #{modeler_forward.9} parent=43 // pred_check
        %p4231 = pneg %p139
      $region46: #{modeler_forward.9} parent=43 // pred_check_branch
        %4233 = sbr.rel (%p4231) target = $region48
      $region47: #{modeler_forward.9} parent=43 // pred_region
        %p4234 = scmp.lt.s32.totalorder %s17, 7
        %s4235 = scalar_select %p4234, %s17, 7
        %s4236 = smul.addr %s4235, 8
        %s4237 = scalar_lea.vmem %s4, %s4236
      $region48: #{modeler_forward.9} parent=43 // pred_fallthru
        _
    $region44: #{modeler_forward.9} parent=5 // pred_fallthru
      _
  $region6: #{modeler_forward.9} parent=0 // loop_footer
    %s15 = sadd.s32 1, %s11
  $region7: #{modeler_forward.9} parent=0 // loop_footer_branch
    %10 = sbr.rel target = $region3
  $region8: #{modeler_forward.9} parent=0 // loop_exit
    _

</llo_original>
